<compile_context>
chip_gen: v7x
topology: tpu7x:2x2x1
jax: 0.10.0
libtpu: 0.0.40
codegen_flags: <defaults>
</compile_context>

<pallas_src>
import functools

import jax
import jax.numpy as jnp
from jax.experimental import pallas as pl
from jax.experimental.pallas import tpu as pltpu


def _round_up(x, m):
    return (x + m - 1) // m * m


# ----------------------------------------------------------------------------
# Pallas kernel: fused  Y = act(X @ W + b)   (bf16 MXU, f32 epilogue)
# ----------------------------------------------------------------------------
def _matmul_bias_act_kernel(x_ref, w_ref, b_ref, o_ref, *, relu):
    y = jnp.dot(x_ref[...], w_ref[...], preferred_element_type=jnp.float32)
    y = y + b_ref[...]                      # f32 epilogue (v5e: no bf16 VALU)
    if relu:
        y = jnp.maximum(y, 0.0)
    o_ref[...] = y.astype(o_ref.dtype)      # cast only at the store


def matmul_bias_act(x, w, b, relu, out_dtype=jnp.bfloat16):
    """y = (relu?)(x @ w + b).  x:(M,K) w:(K,N) b:(N,)  -> (M,N) out_dtype."""
    M, K = x.shape
    N = w.shape[1]

    # Lane-dense K (only enc_conv0 has K=48 < 128; all other K are k*128).
    K_pad = _round_up(K, 128)
    if K_pad != K:
        x = jnp.pad(x, ((0, 0), (0, K_pad - K)))
        w = jnp.pad(w, ((0, K_pad - K), (0, 0)))

    # M tiling: target ~4 MiB bf16 X tiles (K-dependent cap, up to 2048 rows),
    # and force >=2 M tiles when possible so v7x's 2nd TensorCore is used.
    cap = max(256, min(2048, (4 * 1024 * 1024) // (2 * K_pad)))
    n_m = -(-M // cap)
    if M >= 32:
        n_m = max(n_m, 2)
    TM = _round_up(-(-M // n_m), 16)
    M_pad = _round_up(M, TM)

    # N tiling: lane-dense (multiple of 128), 256-wide to fill v6e/v7x MXU.
    TN = min(256, _round_up(N, 128))
    N_pad = _round_up(N, TN)

    if M_pad != M:
        x = jnp.pad(x, ((0, M_pad - M), (0, 0)))
    if N_pad != N:
        w = jnp.pad(w, ((0, 0), (0, N_pad - N)))
        b = jnp.pad(b, ((0, N_pad - N),))

    xb = x.astype(jnp.bfloat16)
    wb = w.astype(jnp.bfloat16)
    b2 = b.reshape(1, N_pad).astype(jnp.float32)

    out_bytes = jnp.dtype(out_dtype).itemsize
    cost = pl.CostEstimate(
        flops=2 * M_pad * K_pad * N_pad,
        transcendentals=0,
        bytes_accessed=(M_pad * K_pad * 2 + K_pad * N_pad * 2
                        + N_pad * 4 + M_pad * N_pad * out_bytes),
    )

    out = pl.pallas_call(
        functools.partial(_matmul_bias_act_kernel, relu=relu),
        out_shape=jax.ShapeDtypeStruct((M_pad, N_pad), out_dtype),
        grid_spec=pltpu.PrefetchScalarGridSpec(
            num_scalar_prefetch=0,
            grid=(M_pad // TM, N_pad // TN),
            in_specs=[
                pl.BlockSpec((TM, K_pad), lambda i, j: (i, 0)),   # X row tile
                pl.BlockSpec((K_pad, TN), lambda i, j: (0, j)),   # W col tile
                pl.BlockSpec((1, TN), lambda i, j: (0, j)),       # bias tile
            ],
            out_specs=pl.BlockSpec((TM, TN), lambda i, j: (i, j)),
        ),
        compiler_params=pltpu.CompilerParams(
            dimension_semantics=("parallel", "parallel"),
            vmem_limit_bytes=32 * 1024 * 1024),   # safe on v5e/v6e/v7x
        cost_estimate=cost,
    )(xb, wb, b2)

    if M_pad != M or N_pad != N:
        out = out[:M, :N]
    return out


# ----------------------------------------------------------------------------
# Pallas kernel: fused latent bottleneck  h = (x @ W1 + b1) @ W2 + b2
# ----------------------------------------------------------------------------
def _fc_pair_kernel(x_ref, w1_ref, b1_ref, w2_ref, b2_ref, o_ref):
    z = jnp.dot(x_ref[...], w1_ref[...], preferred_element_type=jnp.float32)
    z = z + b1_ref[...]
    h = jnp.dot(z.astype(jnp.bfloat16), w2_ref[...],
                preferred_element_type=jnp.float32)
    o_ref[...] = (h + b2_ref[...]).astype(o_ref.dtype)


def fc_pair(x, w1, b1, w2, b2):
    """Fused enc_fc -> dec_fc (neither fc has an activation in the model)."""
    M, K1 = x.shape
    N1 = w1.shape[1]
    N2 = w2.shape[1]
    M_pad = _round_up(M, 16)
    if M_pad != M:
        x = jnp.pad(x, ((0, M_pad - M), (0, 0)))

    out = pl.pallas_call(
        _fc_pair_kernel,
        out_shape=jax.ShapeDtypeStruct((M_pad, N2), jnp.bfloat16),
        grid_spec=pltpu.PrefetchScalarGridSpec(
            num_scalar_prefetch=0,
            grid=(1,),
            in_specs=[
                pl.BlockSpec((M_pad, K1), lambda i: (0, 0)),
                pl.BlockSpec((K1, N1), lambda i: (0, 0)),
                pl.BlockSpec((1, N1), lambda i: (0, 0)),
                pl.BlockSpec((N1, N2), lambda i: (0, 0)),
                pl.BlockSpec((1, N2), lambda i: (0, 0)),
            ],
            out_specs=pl.BlockSpec((M_pad, N2), lambda i: (0, 0)),
        ),
        compiler_params=pltpu.CompilerParams(
            dimension_semantics=("arbitrary",),
            vmem_limit_bytes=32 * 1024 * 1024),
    )(x.astype(jnp.bfloat16), w1.astype(jnp.bfloat16),
      b1.reshape(1, N1).astype(jnp.float32),
      w2.astype(jnp.bfloat16), b2.reshape(1, N2).astype(jnp.float32))
    return out[:M]


# ----------------------------------------------------------------------------
# Conv / ConvTranspose (NHWC bf16 activations, torch-layout f32 weights)
# ----------------------------------------------------------------------------
def _im2col(x, kh, kw, stride, pad):
    """NHWC im2col via static strided slices (no gather), built in bf16.
    x: (B,H,W,C) -> cols (B*OH*OW, kh*kw*C), tap-major / channel-minor."""
    B, H, W, C = x.shape
    xp = jnp.pad(x.astype(jnp.bfloat16), ((0, 0), (pad, pad), (pad, pad), (0, 0)))
    OH = (H + 2 * pad - kh) // stride + 1
    OW = (W + 2 * pad - kw) // stride + 1
    hs = (OH - 1) * stride + 1
    ws = (OW - 1) * stride + 1
    taps = [xp[:, dy:dy + hs:stride, dx:dx + ws:stride, :]
            for dy in range(kh) for dx in range(kw)]
    cols = jnp.concatenate(taps, axis=-1)             # (B, OH, OW, kh*kw*C)
    return cols.reshape(B * OH * OW, kh * kw * C), OH, OW


def conv2d(x, w, b, stride, pad, relu, out_dtype=jnp.bfloat16):
    """PyTorch-semantics Conv2d on NHWC. x:(B,H,W,IC) w:(OC,IC,kh,kw) b:(OC,)."""
    OC, IC, kh, kw = w.shape
    B = x.shape[0]
    cols, OH, OW = _im2col(x, kh, kw, stride, pad)
    wm = jnp.transpose(w, (2, 3, 1, 0)).reshape(kh * kw * IC, OC)
    y = matmul_bias_act(cols, wm, b, relu, out_dtype)  # (B*OH*OW, OC)
    return y.reshape(B, OH, OW, OC)


def conv_transpose2d_s1(x, w, b, pad, relu, out_dtype=jnp.bfloat16):
    """ConvTranspose2d with stride=1: direct conv with flipped kernel."""
    IC, OC, kh, kw = w.shape
    w_conv = jnp.transpose(jnp.flip(w, axis=(2, 3)), (1, 0, 2, 3))  # (OC,IC,kh,kw)
    return conv2d(x, w_conv, b, stride=1, pad=kh - 1 - pad, relu=relu,
                  out_dtype=out_dtype)


def _convT4x4_s2_weight(w):
    """(IC,OC,4,4) ConvTranspose2d(stride=2,padding=1) weights -> (4*IC, 4*OC)
    matrix of the four dense 2x2 sub-pixel kernels.
    Row index = (dy*2+dx)*IC + ic ; col index = (ry*2+rx)*OC + oc, where
    sub-kernel tap  w_sub[ry,rx,dy,dx] = w[:, :, 3-ry-2*dy, 3-rx-2*dx]."""
    IC, OC, kh, kw = w.shape
    assert kh == 4 and kw == 4, "sub-pixel path assumes kernel_size=4"
    blocks = []
    for dy in range(2):
        for dx in range(2):
            cols = [w[:, :, 3 - ry - 2 * dy, 3 - rx - 2 * dx]
                    for ry in range(2) for rx in range(2)]   # each (IC, OC)
            blocks.append(jnp.concatenate(cols, axis=1))     # (IC, 4*OC)
    return jnp.concatenate(blocks, axis=0)                   # (4*IC, 4*OC)


def conv_transpose2d_s2(x, w, b, relu, out_dtype=jnp.bfloat16):
    """ConvTranspose2d(kernel=4, stride=2, padding=1), PyTorch semantics,
    via sub-pixel decomposition (no zero-dilated input).
    x: (B,H,W,IC) NHWC ; w: (IC,OC,4,4) ; out: (B,2H,2W,OC)."""
    B, H, W, IC = x.shape
    OC = w.shape[1]
    xp = jnp.pad(x.astype(jnp.bfloat16), ((0, 0), (1, 1), (1, 1), (0, 0)))
    cols = jnp.concatenate(
        [xp[:, dy:dy + H + 1, dx:dx + W + 1, :]
         for dy in range(2) for dx in range(2)], axis=-1)
    cols = cols.reshape(B * (H + 1) * (W + 1), 4 * IC)
    y = matmul_bias_act(cols, _convT4x4_s2_weight(w), jnp.tile(b, 4), relu,
                        out_dtype)
    y = y.reshape(B, H + 1, W + 1, 4, OC)
    # interleave: out[:, 2q+ry, 2p+rx, :] = y[:, q+ry, p+rx, ry*2+rx, :]
    rows = []
    for ry in range(2):
        rows.append(jnp.stack(
            [y[:, ry:ry + H, rx:rx + W, ry * 2 + rx, :] for rx in range(2)],
            axis=3))                                          # (B,H,W,2,OC)
    out = jnp.stack(rows, axis=2)                             # (B,H,2,W,2,OC)
    return out.reshape(B, 2 * H, 2 * W, OC)


# ----------------------------------------------------------------------------
# Model: parameters + forward
# ----------------------------------------------------------------------------
LATENT_DIM = 128
# (in_ch, out_ch, kernel, stride, pad)
ENC_SPECS = [(3, 32, 4, 2, 1), (32, 64, 4, 2, 1), (64, 128, 4, 2, 1),
             (128, 256, 4, 2, 1), (256, 256, 3, 1, 1), (256, 256, 3, 1, 1)]
DEC_SPECS = [(256, 256, 3, 1, 1), (256, 256, 3, 1, 1), (256, 128, 4, 2, 1),
             (128, 64, 4, 2, 1), (64, 32, 4, 2, 1), (32, 3, 4, 2, 1)]


def init_params(key, latent_dim=LATENT_DIM):
    params = {}

    def uniform(k, shape, fan_in):
        bound = 1.0 / jnp.sqrt(jnp.float32(fan_in))
        return jax.random.uniform(k, shape, jnp.float32, -bound, bound)

    keys = iter(jax.random.split(key, 64))
    # encoder convs: weight (OC, IC, kh, kw)   (torch Conv2d layout)
    for i, (ic, oc, k, s, p) in enumerate(ENC_SPECS):
        params[f"enc_conv{i}_w"] = uniform(next(keys), (oc, ic, k, k), ic * k * k)
        params[f"enc_conv{i}_b"] = uniform(next(keys), (oc,), ic * k * k)
    # encoder fc: stored as (in, out)
    params["enc_fc_w"] = uniform(next(keys), (256 * 2 * 2, latent_dim), 256 * 2 * 2)
    params["enc_fc_b"] = uniform(next(keys), (latent_dim,), 256 * 2 * 2)
    # decoder fc
    params["dec_fc_w"] = uniform(next(keys), (latent_dim, 256 * 2 * 2), latent_dim)
    params["dec_fc_b"] = uniform(next(keys), (256 * 2 * 2,), latent_dim)
    # decoder conv-transposes: weight (IC, OC, kh, kw)   (torch layout)
    for i, (ic, oc, k, s, p) in enumerate(DEC_SPECS):
        params[f"dec_convt{i}_w"] = uniform(next(keys), (ic, oc, k, k), oc * k * k)
        params[f"dec_convt{i}_b"] = uniform(next(keys), (oc,), oc * k * k)
    return params


def conv_autoencoder_forward(params, x):
    """x: (B, 3, 32, 32) float32  ->  (B, 3, 32, 32) float32."""
    B = x.shape[0]
    # NCHW -> NHWC once; activations are bf16 from here on.
    h = jnp.transpose(x, (0, 2, 3, 1)).astype(jnp.bfloat16)
    # ---- encoder ----
    for i, (ic, oc, k, s, p) in enumerate(ENC_SPECS):
        h = conv2d(h, params[f"enc_conv{i}_w"], params[f"enc_conv{i}_b"],
                   stride=s, pad=p, relu=True)
    # flatten in torch (C,H,W) order so fc weights keep the PyTorch layout
    h = jnp.transpose(h, (0, 3, 1, 2)).reshape(B, -1)         # (B, 256*2*2)
    # ---- latent bottleneck: enc_fc -> dec_fc fused in one Pallas kernel ----
    h = fc_pair(h, params["enc_fc_w"], params["enc_fc_b"],
                params["dec_fc_w"], params["dec_fc_b"])       # (B, 256*2*2) bf16
    h = jnp.transpose(h.reshape(B, 256, 2, 2), (0, 2, 3, 1))  # -> NHWC (2,2,256)
    # ---- decoder ----
    for i, (ic, oc, k, s, p) in enumerate(DEC_SPECS):
        last = i == len(DEC_SPECS) - 1
        relu = not last
        out_dtype = jnp.float32 if last else jnp.bfloat16
        w, bb = params[f"dec_convt{i}_w"], params[f"dec_convt{i}_b"]
        if s == 1:
            h = conv_transpose2d_s1(h, w, bb, pad=p, relu=relu, out_dtype=out_dtype)
        else:
            h = conv_transpose2d_s2(h, w, bb, relu=relu, out_dtype=out_dtype)
    return jnp.transpose(h, (0, 3, 1, 2))                     # NHWC -> NCHW (once)


# ----------------------------------------------------------------------------
# Pure-JAX f32 reference (PyTorch semantics) for numerical validation
# ----------------------------------------------------------------------------
def _conv2d_ref(x, w, b, stride, pad):
    y = jax.lax.conv_general_dilated(
        x, w, window_strides=(stride, stride),
        padding=[(pad, pad), (pad, pad)],
        dimension_numbers=("NCHW", "OIHW", "NCHW"),
        precision=jax.lax.Precision.HIGHEST)
    return y + b.reshape(1, -1, 1, 1)


def _convT2d_ref(x, w, b, stride, pad):
    IC, OC, kh, kw = w.shape
    w_conv = jnp.transpose(jnp.flip(w, axis=(2, 3)), (1, 0, 2, 3))
    y = jax.lax.conv_general_dilated(
        x, w_conv, window_strides=(1, 1),
        padding=[(kh - 1 - pad, kh - 1 - pad)] * 2,
        lhs_dilation=(stride, stride),
        dimension_numbers=("NCHW", "OIHW", "NCHW"),
        precision=jax.lax.Precision.HIGHEST)
    return y + b.reshape(1, -1, 1, 1)


def reference_forward(params, x):
    h = x
    for i, (ic, oc, k, s, p) in enumerate(ENC_SPECS):
        h = jnp.maximum(_conv2d_ref(h, params[f"enc_conv{i}_w"],
                                    params[f"enc_conv{i}_b"], s, p), 0.0)
    h = h.reshape(h.shape[0], -1)
    z = jnp.dot(h, params["enc_fc_w"],
                precision=jax.lax.Precision.HIGHEST) + params["enc_fc_b"]
    h = jnp.dot(z, params["dec_fc_w"],
                precision=jax.lax.Precision.HIGHEST) + params["dec_fc_b"]
    h = h.reshape(-1, 256, 2, 2)
    for i, (ic, oc, k, s, p) in enumerate(DEC_SPECS):
        h = _convT2d_ref(h, params[f"dec_convt{i}_w"],
                         params[f"dec_convt{i}_b"], s, p)
        if i < len(DEC_SPECS) - 1:
            h = jnp.maximum(h, 0.0)
    return h


if __name__ == "__main__":
    key = jax.random.PRNGKey(0)
    pkey, xkey = jax.random.split(key)
    params = init_params(pkey)
    x = jax.random.normal(xkey, (2, 3, 32, 32), dtype=jnp.float32)

    fwd = jax.jit(conv_autoencoder_forward)
    x_hat = jax.block_until_ready(fwd(params, x))

    assert x_hat.shape == (2, 3, 32, 32), x_hat.shape
    assert x_hat.dtype == jnp.float32
    assert bool(jnp.all(jnp.isfinite(x_hat)))

    # Numerical cross-check against a pure-JAX f32 reference (bf16 MXU inputs
    # => allow a loose but meaningful relative-L2 tolerance).
    ref = jax.block_until_ready(jax.jit(reference_forward)(params, x))
    rel = jnp.linalg.norm(x_hat - ref) / (jnp.linalg.norm(ref) + 1e-12)
    assert bool(rel < 0.1), f"relative L2 error vs f32 reference: {float(rel)}"

    print("KERNEL_OK")
</pallas_src>

<mosaic_0001>
module attributes {stable_mosaic.version = 11 : i64} {
  func.func @_matmul_bias_act_kernel(%arg0: i32, %arg1: i32, %arg2: memref<256x128xbf16, #tpu.memory_space<vmem>>, %arg3: memref<128x128xbf16, #tpu.memory_space<vmem>>, %arg4: memref<1x128xf32, #tpu.memory_space<vmem>>, %arg5: memref<256x128xbf16, #tpu.memory_space<vmem>>) attributes {dimension_semantics = [#tpu.dimension_semantics<parallel>, #tpu.dimension_semantics<parallel>], iteration_bounds = array<i64: 2, 1>, scalar_prefetch = 0 : i64, scratch_operands = 0 : i64, tpu.core_type = #tpu.core_type<tc>, window_params = [{transform_indices = @transform_0, window_bounds = array<i64: 256, 128>}, {transform_indices = @transform_1, window_bounds = array<i64: 128, 128>}, {transform_indices = @transform_2, window_bounds = array<i64: 1, 128>}, {transform_indices = @transform_3, window_bounds = array<i64: 256, 128>}]} {
    %c0 = arith.constant 0 : index
    %c0_0 = arith.constant 0 : index
    %0 = vector.load %arg2[%c0, %c0_0] : memref<256x128xbf16, #tpu.memory_space<vmem>>, vector<256x128xbf16>
    %c0_1 = arith.constant 0 : index
    %c0_2 = arith.constant 0 : index
    %1 = vector.load %arg3[%c0_1, %c0_2] : memref<128x128xbf16, #tpu.memory_space<vmem>>, vector<128x128xbf16>
    %cst = arith.constant dense<0.000000e+00> : vector<256x128xf32>
    %2 = tpu.matmul %0, %1, %cst {dimension_numbers = #tpu.dot_dimension_numbers<[1], [0], [0], [1], [0, 0, 1, 1], [], []>} : vector<256x128xbf16>, vector<128x128xbf16>, vector<256x128xf32> -> vector<256x128xf32>
    %c0_3 = arith.constant 0 : index
    %c0_4 = arith.constant 0 : index
    %3 = vector.load %arg4[%c0_3, %c0_4] : memref<1x128xf32, #tpu.memory_space<vmem>>, vector<1x128xf32>
    %4 = vector.broadcast %3 : vector<1x128xf32> to vector<256x128xf32>
    %5 = arith.addf %2, %4 : vector<256x128xf32>
    %cst_5 = arith.constant 0.000000e+00 : f32
    %6 = vector.broadcast %cst_5 : f32 to vector<256x128xf32>
    %7 = arith.maximumf %5, %6 : vector<256x128xf32>
    %8 = arith.truncf %7 : vector<256x128xf32> to vector<256x128xbf16>
    %c0_6 = arith.constant 0 : index
    %c0_7 = arith.constant 0 : index
    %9 = vector.load %arg5[%c0_6, %c0_7] : memref<256x128xbf16, #tpu.memory_space<vmem>>, vector<256x128xbf16>
    tpu.vector_store %arg5[%c0_6, %c0_7], %8 {strides = array<i32>} : memref<256x128xbf16, #tpu.memory_space<vmem>>, vector<256x128xbf16>,
    return
  }
  func.func @transform_0(%arg0: i32, %arg1: i32) -> (i32, i32) {
    %c0_i32 = arith.constant 0 : i32
    %c0_i32_0 = arith.constant 0 : i32
    return %arg0, %c0_i32 : i32, i32
  }
  func.func @transform_1(%arg0: i32, %arg1: i32) -> (i32, i32) {
    %c0_i32 = arith.constant 0 : i32
    %c0_i32_0 = arith.constant 0 : i32
    return %c0_i32, %arg1 : i32, i32
  }
  func.func @transform_2(%arg0: i32, %arg1: i32) -> (i32, i32) {
    %c0_i32 = arith.constant 0 : i32
    %c0_i32_0 = arith.constant 0 : i32
    return %c0_i32, %arg1 : i32, i32
  }
  func.func @transform_3(%arg0: i32, %arg1: i32) -> (i32, i32) {
    %c0_i32 = arith.constant 0 : i32
    return %arg0, %arg1 : i32, i32
  }
}

module attributes {stable_mosaic.version = 11 : i64} {
  func.func @_matmul_bias_act_kernel(%arg0: i32, %arg1: i32, %arg2: memref<64x512xbf16, #tpu.memory_space<vmem>>, %arg3: memref<512x128xbf16, #tpu.memory_space<vmem>>, %arg4: memref<1x128xf32, #tpu.memory_space<vmem>>, %arg5: memref<64x128xbf16, #tpu.memory_space<vmem>>) attributes {dimension_semantics = [#tpu.dimension_semantics<parallel>, #tpu.dimension_semantics<parallel>], iteration_bounds = array<i64: 2, 1>, scalar_prefetch = 0 : i64, scratch_operands = 0 : i64, tpu.core_type = #tpu.core_type<tc>, window_params = [{transform_indices = @transform_0, window_bounds = array<i64: 64, 512>}, {transform_indices = @transform_1, window_bounds = array<i64: 512, 128>}, {transform_indices = @transform_2, window_bounds = array<i64: 1, 128>}, {transform_indices = @transform_3, window_bounds = array<i64: 64, 128>}]} {
    %c0 = arith.constant 0 : index
    %c0_0 = arith.constant 0 : index
    %0 = vector.load %arg2[%c0, %c0_0] : memref<64x512xbf16, #tpu.memory_space<vmem>>, vector<64x512xbf16>
    %c0_1 = arith.constant 0 : index
    %c0_2 = arith.constant 0 : index
    %1 = vector.load %arg3[%c0_1, %c0_2] : memref<512x128xbf16, #tpu.memory_space<vmem>>, vector<512x128xbf16>
    %cst = arith.constant dense<0.000000e+00> : vector<64x128xf32>
    %2 = tpu.matmul %0, %1, %cst {dimension_numbers = #tpu.dot_dimension_numbers<[1], [0], [0], [1], [0, 0, 1, 1], [], []>} : vector<64x512xbf16>, vector<512x128xbf16>, vector<64x128xf32> -> vector<64x128xf32>
    %c0_3 = arith.constant 0 : index
    %c0_4 = arith.constant 0 : index
    %3 = vector.load %arg4[%c0_3, %c0_4] : memref<1x128xf32, #tpu.memory_space<vmem>>, vector<1x128xf32>
    %4 = vector.broadcast %3 : vector<1x128xf32> to vector<64x128xf32>
    %5 = arith.addf %2, %4 : vector<64x128xf32>
    %cst_5 = arith.constant 0.000000e+00 : f32
    %6 = vector.broadcast %cst_5 : f32 to vector<64x128xf32>
    %7 = arith.maximumf %5, %6 : vector<64x128xf32>
    %8 = arith.truncf %7 : vector<64x128xf32> to vector<64x128xbf16>
    %c0_6 = arith.constant 0 : index
    %c0_7 = arith.constant 0 : index
    %9 = vector.load %arg5[%c0_6, %c0_7] : memref<64x128xbf16, #tpu.memory_space<vmem>>, vector<64x128xbf16>
    tpu.vector_store %arg5[%c0_6, %c0_7], %8 {strides = array<i32>} : memref<64x128xbf16, #tpu.memory_space<vmem>>, vector<64x128xbf16>,
    return
  }
  func.func @transform_0(%arg0: i32, %arg1: i32) -> (i32, i32) {
    %c0_i32 = arith.constant 0 : i32
    %c0_i32_0 = arith.constant 0 : i32
    return %arg0, %c0_i32 : i32, i32
  }
  func.func @transform_1(%arg0: i32, %arg1: i32) -> (i32, i32) {
    %c0_i32 = arith.constant 0 : i32
    %c0_i32_0 = arith.constant 0 : i32
    return %c0_i32, %arg1 : i32, i32
  }
  func.func @transform_2(%arg0: i32, %arg1: i32) -> (i32, i32) {
    %c0_i32 = arith.constant 0 : i32
    %c0_i32_0 = arith.constant 0 : i32
    return %c0_i32, %arg1 : i32, i32
  }
  func.func @transform_3(%arg0: i32, %arg1: i32) -> (i32, i32) {
    %c0_i32 = arith.constant 0 : i32
    return %arg0, %arg1 : i32, i32
  }
}

module attributes {stable_mosaic.version = 11 : i64} {
  func.func @_matmul_bias_act_kernel(%arg0: i32, %arg1: i32, %arg2: memref<16x1024xbf16, #tpu.memory_space<vmem>>, %arg3: memref<1024x128xbf16, #tpu.memory_space<vmem>>, %arg4: memref<1x128xf32, #tpu.memory_space<vmem>>, %arg5: memref<16x128xbf16, #tpu.memory_space<vmem>>) attributes {dimension_semantics = [#tpu.dimension_semantics<parallel>, #tpu.dimension_semantics<parallel>], iteration_bounds = array<i64: 2, 1>, scalar_prefetch = 0 : i64, scratch_operands = 0 : i64, tpu.core_type = #tpu.core_type<tc>, window_params = [{transform_indices = @transform_0, window_bounds = array<i64: 16, 1024>}, {transform_indices = @transform_1, window_bounds = array<i64: 1024, 128>}, {transform_indices = @transform_2, window_bounds = array<i64: 1, 128>}, {transform_indices = @transform_3, window_bounds = array<i64: 16, 128>}]} {
    %c0 = arith.constant 0 : index
    %c0_0 = arith.constant 0 : index
    %0 = vector.load %arg2[%c0, %c0_0] : memref<16x1024xbf16, #tpu.memory_space<vmem>>, vector<16x1024xbf16>
    %c0_1 = arith.constant 0 : index
    %c0_2 = arith.constant 0 : index
    %1 = vector.load %arg3[%c0_1, %c0_2] : memref<1024x128xbf16, #tpu.memory_space<vmem>>, vector<1024x128xbf16>
    %cst = arith.constant dense<0.000000e+00> : vector<16x128xf32>
    %2 = tpu.matmul %0, %1, %cst {dimension_numbers = #tpu.dot_dimension_numbers<[1], [0], [0], [1], [0, 0, 1, 1], [], []>} : vector<16x1024xbf16>, vector<1024x128xbf16>, vector<16x128xf32> -> vector<16x128xf32>
    %c0_3 = arith.constant 0 : index
    %c0_4 = arith.constant 0 : index
    %3 = vector.load %arg4[%c0_3, %c0_4] : memref<1x128xf32, #tpu.memory_space<vmem>>, vector<1x128xf32>
    %4 = vector.broadcast %3 : vector<1x128xf32> to vector<16x128xf32>
    %5 = arith.addf %2, %4 : vector<16x128xf32>
    %cst_5 = arith.constant 0.000000e+00 : f32
    %6 = vector.broadcast %cst_5 : f32 to vector<16x128xf32>
    %7 = arith.maximumf %5, %6 : vector<16x128xf32>
    %8 = arith.truncf %7 : vector<16x128xf32> to vector<16x128xbf16>
    %c0_6 = arith.constant 0 : index
    %c0_7 = arith.constant 0 : index
    %9 = vector.load %arg5[%c0_6, %c0_7] : memref<16x128xbf16, #tpu.memory_space<vmem>>, vector<16x128xbf16>
    tpu.vector_store %arg5[%c0_6, %c0_7], %8 {strides = array<i32>} : memref<16x128xbf16, #tpu.memory_space<vmem>>, vector<16x128xbf16>,
    return
  }
  func.func @transform_0(%arg0: i32, %arg1: i32) -> (i32, i32) {
    %c0_i32 = arith.constant 0 : i32
    %c0_i32_0 = arith.constant 0 : i32
    return %arg0, %c0_i32 : i32, i32
  }
  func.func @transform_1(%arg0: i32, %arg1: i32) -> (i32, i32) {
    %c0_i32 = arith.constant 0 : i32
    %c0_i32_0 = arith.constant 0 : i32
    return %c0_i32, %arg1 : i32, i32
  }
  func.func @transform_2(%arg0: i32, %arg1: i32) -> (i32, i32) {
    %c0_i32 = arith.constant 0 : i32
    %c0_i32_0 = arith.constant 0 : i32
    return %c0_i32, %arg1 : i32, i32
  }
  func.func @transform_3(%arg0: i32, %arg1: i32) -> (i32, i32) {
    %c0_i32 = arith.constant 0 : i32
    return %arg0, %arg1 : i32, i32
  }
}

module attributes {stable_mosaic.version = 11 : i64} {
  func.func @_matmul_bias_act_kernel(%arg0: i32, %arg1: i32, %arg2: memref<16x2048xbf16, #tpu.memory_space<vmem>>, %arg3: memref<2048x256xbf16, #tpu.memory_space<vmem>>, %arg4: memref<1x256xf32, #tpu.memory_space<vmem>>, %arg5: memref<16x256xbf16, #tpu.memory_space<vmem>>) attributes {dimension_semantics = [#tpu.dimension_semantics<parallel>, #tpu.dimension_semantics<parallel>], iteration_bounds = array<i64: 1, 1>, scalar_prefetch = 0 : i64, scratch_operands = 0 : i64, tpu.core_type = #tpu.core_type<tc>, window_params = [{transform_indices = @transform_0, window_bounds = array<i64: 16, 2048>}, {transform_indices = @transform_1, window_bounds = array<i64: 2048, 256>}, {transform_indices = @transform_2, window_bounds = array<i64: 1, 256>}, {transform_indices = @transform_3, window_bounds = array<i64: 16, 256>}]} {
    %c0 = arith.constant 0 : index
    %c0_0 = arith.constant 0 : index
    %0 = vector.load %arg2[%c0, %c0_0] : memref<16x2048xbf16, #tpu.memory_space<vmem>>, vector<16x2048xbf16>
    %c0_1 = arith.constant 0 : index
    %c0_2 = arith.constant 0 : index
    %1 = vector.load %arg3[%c0_1, %c0_2] : memref<2048x256xbf16, #tpu.memory_space<vmem>>, vector<2048x256xbf16>
    %cst = arith.constant dense<0.000000e+00> : vector<16x256xf32>
    %2 = tpu.matmul %0, %1, %cst {dimension_numbers = #tpu.dot_dimension_numbers<[1], [0], [0], [1], [0, 0, 1, 1], [], []>} : vector<16x2048xbf16>, vector<2048x256xbf16>, vector<16x256xf32> -> vector<16x256xf32>
    %c0_3 = arith.constant 0 : index
    %c0_4 = arith.constant 0 : index
    %3 = vector.load %arg4[%c0_3, %c0_4] : memref<1x256xf32, #tpu.memory_space<vmem>>, vector<1x256xf32>
    %4 = vector.broadcast %3 : vector<1x256xf32> to vector<16x256xf32>
    %5 = arith.addf %2, %4 : vector<16x256xf32>
    %cst_5 = arith.constant 0.000000e+00 : f32
    %6 = vector.broadcast %cst_5 : f32 to vector<16x256xf32>
    %7 = arith.maximumf %5, %6 : vector<16x256xf32>
    %8 = arith.truncf %7 : vector<16x256xf32> to vector<16x256xbf16>
    %c0_6 = arith.constant 0 : index
    %c0_7 = arith.constant 0 : index
    %9 = vector.load %arg5[%c0_6, %c0_7] : memref<16x256xbf16, #tpu.memory_space<vmem>>, vector<16x256xbf16>
    tpu.vector_store %arg5[%c0_6, %c0_7], %8 {strides = array<i32>} : memref<16x256xbf16, #tpu.memory_space<vmem>>, vector<16x256xbf16>,
    return
  }
  func.func @transform_0(%arg0: i32, %arg1: i32) -> (i32, i32) {
    %c0_i32 = arith.constant 0 : i32
    %c0_i32_0 = arith.constant 0 : i32
    return %arg0, %c0_i32 : i32, i32
  }
  func.func @transform_1(%arg0: i32, %arg1: i32) -> (i32, i32) {
    %c0_i32 = arith.constant 0 : i32
    %c0_i32_0 = arith.constant 0 : i32
    return %c0_i32, %arg1 : i32, i32
  }
  func.func @transform_2(%arg0: i32, %arg1: i32) -> (i32, i32) {
    %c0_i32 = arith.constant 0 : i32
    %c0_i32_0 = arith.constant 0 : i32
    return %c0_i32, %arg1 : i32, i32
  }
  func.func @transform_3(%arg0: i32, %arg1: i32) -> (i32, i32) {
    %c0_i32 = arith.constant 0 : i32
    return %arg0, %arg1 : i32, i32
  }
}

module attributes {stable_mosaic.version = 11 : i64} {
  func.func @_matmul_bias_act_kernel(%arg0: i32, %arg1: i32, %arg2: memref<16x2304xbf16, #tpu.memory_space<vmem>>, %arg3: memref<2304x256xbf16, #tpu.memory_space<vmem>>, %arg4: memref<1x256xf32, #tpu.memory_space<vmem>>, %arg5: memref<16x256xbf16, #tpu.memory_space<vmem>>) attributes {dimension_semantics = [#tpu.dimension_semantics<parallel>, #tpu.dimension_semantics<parallel>], iteration_bounds = array<i64: 1, 1>, scalar_prefetch = 0 : i64, scratch_operands = 0 : i64, tpu.core_type = #tpu.core_type<tc>, window_params = [{transform_indices = @transform_0, window_bounds = array<i64: 16, 2304>}, {transform_indices = @transform_1, window_bounds = array<i64: 2304, 256>}, {transform_indices = @transform_2, window_bounds = array<i64: 1, 256>}, {transform_indices = @transform_3, window_bounds = array<i64: 16, 256>}]} {
    %c0 = arith.constant 0 : index
    %c0_0 = arith.constant 0 : index
    %0 = vector.load %arg2[%c0, %c0_0] : memref<16x2304xbf16, #tpu.memory_space<vmem>>, vector<16x2304xbf16>
    %c0_1 = arith.constant 0 : index
    %c0_2 = arith.constant 0 : index
    %1 = vector.load %arg3[%c0_1, %c0_2] : memref<2304x256xbf16, #tpu.memory_space<vmem>>, vector<2304x256xbf16>
    %cst = arith.constant dense<0.000000e+00> : vector<16x256xf32>
    %2 = tpu.matmul %0, %1, %cst {dimension_numbers = #tpu.dot_dimension_numbers<[1], [0], [0], [1], [0, 0, 1, 1], [], []>} : vector<16x2304xbf16>, vector<2304x256xbf16>, vector<16x256xf32> -> vector<16x256xf32>
    %c0_3 = arith.constant 0 : index
    %c0_4 = arith.constant 0 : index
    %3 = vector.load %arg4[%c0_3, %c0_4] : memref<1x256xf32, #tpu.memory_space<vmem>>, vector<1x256xf32>
    %4 = vector.broadcast %3 : vector<1x256xf32> to vector<16x256xf32>
    %5 = arith.addf %2, %4 : vector<16x256xf32>
    %cst_5 = arith.constant 0.000000e+00 : f32
    %6 = vector.broadcast %cst_5 : f32 to vector<16x256xf32>
    %7 = arith.maximumf %5, %6 : vector<16x256xf32>
    %8 = arith.truncf %7 : vector<16x256xf32> to vector<16x256xbf16>
    %c0_6 = arith.constant 0 : index
    %c0_7 = arith.constant 0 : index
    %9 = vector.load %arg5[%c0_6, %c0_7] : memref<16x256xbf16, #tpu.memory_space<vmem>>, vector<16x256xbf16>
    tpu.vector_store %arg5[%c0_6, %c0_7], %8 {strides = array<i32>} : memref<16x256xbf16, #tpu.memory_space<vmem>>, vector<16x256xbf16>,
    return
  }
  func.func @transform_0(%arg0: i32, %arg1: i32) -> (i32, i32) {
    %c0_i32 = arith.constant 0 : i32
    %c0_i32_0 = arith.constant 0 : i32
    return %arg0, %c0_i32 : i32, i32
  }
  func.func @transform_1(%arg0: i32, %arg1: i32) -> (i32, i32) {
    %c0_i32 = arith.constant 0 : i32
    %c0_i32_0 = arith.constant 0 : i32
    return %c0_i32, %arg1 : i32, i32
  }
  func.func @transform_2(%arg0: i32, %arg1: i32) -> (i32, i32) {
    %c0_i32 = arith.constant 0 : i32
    %c0_i32_0 = arith.constant 0 : i32
    return %c0_i32, %arg1 : i32, i32
  }
  func.func @transform_3(%arg0: i32, %arg1: i32) -> (i32, i32) {
    %c0_i32 = arith.constant 0 : i32
    return %arg0, %arg1 : i32, i32
  }
}

module attributes {stable_mosaic.version = 11 : i64} {
  func.func @_fc_pair_kernel(%arg0: i32, %arg1: memref<16x1024xbf16, #tpu.memory_space<vmem>>, %arg2: memref<1024x128xbf16, #tpu.memory_space<vmem>>, %arg3: memref<1x128xf32, #tpu.memory_space<vmem>>, %arg4: memref<128x1024xbf16, #tpu.memory_space<vmem>>, %arg5: memref<1x1024xf32, #tpu.memory_space<vmem>>, %arg6: memref<16x1024xbf16, #tpu.memory_space<vmem>>) attributes {dimension_semantics = [#tpu.dimension_semantics<arbitrary>], iteration_bounds = array<i64: 1>, scalar_prefetch = 0 : i64, scratch_operands = 0 : i64, tpu.core_type = #tpu.core_type<tc>, window_params = [{pipeline_mode = #tpu.pipeline_mode<synchronous>, transform_indices = @transform_0, window_bounds = array<i64: 16, 1024>}, {pipeline_mode = #tpu.pipeline_mode<synchronous>, transform_indices = @transform_1, window_bounds = array<i64: 1024, 128>}, {pipeline_mode = #tpu.pipeline_mode<synchronous>, transform_indices = @transform_2, window_bounds = array<i64: 1, 128>}, {pipeline_mode = #tpu.pipeline_mode<synchronous>, transform_indices = @transform_3, window_bounds = array<i64: 128, 1024>}, {pipeline_mode = #tpu.pipeline_mode<synchronous>, transform_indices = @transform_4, window_bounds = array<i64: 1, 1024>}, {pipeline_mode = #tpu.pipeline_mode<synchronous>, transform_indices = @transform_5, window_bounds = array<i64: 16, 1024>}]} {
    %c0 = arith.constant 0 : index
    %c0_0 = arith.constant 0 : index
    %0 = vector.load %arg1[%c0, %c0_0] : memref<16x1024xbf16, #tpu.memory_space<vmem>>, vector<16x1024xbf16>
    %c0_1 = arith.constant 0 : index
    %c0_2 = arith.constant 0 : index
    %1 = vector.load %arg2[%c0_1, %c0_2] : memref<1024x128xbf16, #tpu.memory_space<vmem>>, vector<1024x128xbf16>
    %cst = arith.constant dense<0.000000e+00> : vector<16x128xf32>
    %2 = tpu.matmul %0, %1, %cst {dimension_numbers = #tpu.dot_dimension_numbers<[1], [0], [0], [1], [0, 0, 1, 1], [], []>} : vector<16x1024xbf16>, vector<1024x128xbf16>, vector<16x128xf32> -> vector<16x128xf32>
    %c0_3 = arith.constant 0 : index
    %c0_4 = arith.constant 0 : index
    %3 = vector.load %arg3[%c0_3, %c0_4] : memref<1x128xf32, #tpu.memory_space<vmem>>, vector<1x128xf32>
    %4 = vector.broadcast %3 : vector<1x128xf32> to vector<16x128xf32>
    %5 = arith.addf %2, %4 : vector<16x128xf32>
    %6 = arith.truncf %5 : vector<16x128xf32> to vector<16x128xbf16>
    %c0_5 = arith.constant 0 : index
    %c0_6 = arith.constant 0 : index
    %7 = vector.load %arg4[%c0_5, %c0_6] : memref<128x1024xbf16, #tpu.memory_space<vmem>>, vector<128x1024xbf16>
    %cst_7 = arith.constant dense<0.000000e+00> : vector<16x1024xf32>
    %8 = tpu.matmul %6, %7, %cst_7 {dimension_numbers = #tpu.dot_dimension_numbers<[1], [0], [0], [1], [0, 0, 1, 1], [], []>} : vector<16x128xbf16>, vector<128x1024xbf16>, vector<16x1024xf32> -> vector<16x1024xf32>
    %c0_8 = arith.constant 0 : index
    %c0_9 = arith.constant 0 : index
    %9 = vector.load %arg5[%c0_8, %c0_9] : memref<1x1024xf32, #tpu.memory_space<vmem>>, vector<1x1024xf32>
    %10 = vector.broadcast %9 : vector<1x1024xf32> to vector<16x1024xf32>
    %11 = arith.addf %8, %10 : vector<16x1024xf32>
    %12 = arith.truncf %11 : vector<16x1024xf32> to vector<16x1024xbf16>
    %c0_10 = arith.constant 0 : index
    %c0_11 = arith.constant 0 : index
    %13 = vector.load %arg6[%c0_10, %c0_11] : memref<16x1024xbf16, #tpu.memory_space<vmem>>, vector<16x1024xbf16>
    tpu.vector_store %arg6[%c0_10, %c0_11], %12 {strides = array<i32>} : memref<16x1024xbf16, #tpu.memory_space<vmem>>, vector<16x1024xbf16>,
    return
  }
  func.func @transform_0(%arg0: i32) -> (i32, i32) {
    %c0_i32 = arith.constant 0 : i32
    %c0_i32_0 = arith.constant 0 : i32
    %c0_i32_1 = arith.constant 0 : i32
    return %c0_i32, %c0_i32_0 : i32, i32
  }
  func.func @transform_1(%arg0: i32) -> (i32, i32) {
    %c0_i32 = arith.constant 0 : i32
    %c0_i32_0 = arith.constant 0 : i32
    %c0_i32_1 = arith.constant 0 : i32
    return %c0_i32, %c0_i32_0 : i32, i32
  }
  func.func @transform_2(%arg0: i32) -> (i32, i32) {
    %c0_i32 = arith.constant 0 : i32
    %c0_i32_0 = arith.constant 0 : i32
    %c0_i32_1 = arith.constant 0 : i32
    return %c0_i32, %c0_i32_0 : i32, i32
  }
  func.func @transform_3(%arg0: i32) -> (i32, i32) {
    %c0_i32 = arith.constant 0 : i32
    %c0_i32_0 = arith.constant 0 : i32
    %c0_i32_1 = arith.constant 0 : i32
    return %c0_i32, %c0_i32_0 : i32, i32
  }
  func.func @transform_4(%arg0: i32) -> (i32, i32) {
    %c0_i32 = arith.constant 0 : i32
    %c0_i32_0 = arith.constant 0 : i32
    %c0_i32_1 = arith.constant 0 : i32
    return %c0_i32, %c0_i32_0 : i32, i32
  }
  func.func @transform_5(%arg0: i32) -> (i32, i32) {
    %c0_i32 = arith.constant 0 : i32
    %c0_i32_0 = arith.constant 0 : i32
    %c0_i32_1 = arith.constant 0 : i32
    return %c0_i32, %c0_i32_0 : i32, i32
  }
}

module attributes {stable_mosaic.version = 11 : i64} {
  func.func @_matmul_bias_act_kernel(%arg0: i32, %arg1: i32, %arg2: memref<32x1024xbf16, #tpu.memory_space<vmem>>, %arg3: memref<1024x256xbf16, #tpu.memory_space<vmem>>, %arg4: memref<1x256xf32, #tpu.memory_space<vmem>>, %arg5: memref<32x256xbf16, #tpu.memory_space<vmem>>) attributes {dimension_semantics = [#tpu.dimension_semantics<parallel>, #tpu.dimension_semantics<parallel>], iteration_bounds = array<i64: 1, 2>, scalar_prefetch = 0 : i64, scratch_operands = 0 : i64, tpu.core_type = #tpu.core_type<tc>, window_params = [{transform_indices = @transform_0, window_bounds = array<i64: 32, 1024>}, {transform_indices = @transform_1, window_bounds = array<i64: 1024, 256>}, {transform_indices = @transform_2, window_bounds = array<i64: 1, 256>}, {transform_indices = @transform_3, window_bounds = array<i64: 32, 256>}]} {
    %c0 = arith.constant 0 : index
    %c0_0 = arith.constant 0 : index
    %0 = vector.load %arg2[%c0, %c0_0] : memref<32x1024xbf16, #tpu.memory_space<vmem>>, vector<32x1024xbf16>
    %c0_1 = arith.constant 0 : index
    %c0_2 = arith.constant 0 : index
    %1 = vector.load %arg3[%c0_1, %c0_2] : memref<1024x256xbf16, #tpu.memory_space<vmem>>, vector<1024x256xbf16>
    %cst = arith.constant dense<0.000000e+00> : vector<32x256xf32>
    %2 = tpu.matmul %0, %1, %cst {dimension_numbers = #tpu.dot_dimension_numbers<[1], [0], [0], [1], [0, 0, 1, 1], [], []>} : vector<32x1024xbf16>, vector<1024x256xbf16>, vector<32x256xf32> -> vector<32x256xf32>
    %c0_3 = arith.constant 0 : index
    %c0_4 = arith.constant 0 : index
    %3 = vector.load %arg4[%c0_3, %c0_4] : memref<1x256xf32, #tpu.memory_space<vmem>>, vector<1x256xf32>
    %4 = vector.broadcast %3 : vector<1x256xf32> to vector<32x256xf32>
    %5 = arith.addf %2, %4 : vector<32x256xf32>
    %cst_5 = arith.constant 0.000000e+00 : f32
    %6 = vector.broadcast %cst_5 : f32 to vector<32x256xf32>
    %7 = arith.maximumf %5, %6 : vector<32x256xf32>
    %8 = arith.truncf %7 : vector<32x256xf32> to vector<32x256xbf16>
    %c0_6 = arith.constant 0 : index
    %c0_7 = arith.constant 0 : index
    %9 = vector.load %arg5[%c0_6, %c0_7] : memref<32x256xbf16, #tpu.memory_space<vmem>>, vector<32x256xbf16>
    tpu.vector_store %arg5[%c0_6, %c0_7], %8 {strides = array<i32>} : memref<32x256xbf16, #tpu.memory_space<vmem>>, vector<32x256xbf16>,
    return
  }
  func.func @transform_0(%arg0: i32, %arg1: i32) -> (i32, i32) {
    %c0_i32 = arith.constant 0 : i32
    %c0_i32_0 = arith.constant 0 : i32
    return %arg0, %c0_i32 : i32, i32
  }
  func.func @transform_1(%arg0: i32, %arg1: i32) -> (i32, i32) {
    %c0_i32 = arith.constant 0 : i32
    %c0_i32_0 = arith.constant 0 : i32
    return %c0_i32, %arg1 : i32, i32
  }
  func.func @transform_2(%arg0: i32, %arg1: i32) -> (i32, i32) {
    %c0_i32 = arith.constant 0 : i32
    %c0_i32_0 = arith.constant 0 : i32
    return %c0_i32, %arg1 : i32, i32
  }
  func.func @transform_3(%arg0: i32, %arg1: i32) -> (i32, i32) {
    %c0_i32 = arith.constant 0 : i32
    return %arg0, %arg1 : i32, i32
  }
}

module attributes {stable_mosaic.version = 11 : i64} {
  func.func @_matmul_bias_act_kernel(%arg0: i32, %arg1: i32, %arg2: memref<32x512xbf16, #tpu.memory_space<vmem>>, %arg3: memref<512x256xbf16, #tpu.memory_space<vmem>>, %arg4: memref<1x256xf32, #tpu.memory_space<vmem>>, %arg5: memref<32x256xbf16, #tpu.memory_space<vmem>>) attributes {dimension_semantics = [#tpu.dimension_semantics<parallel>, #tpu.dimension_semantics<parallel>], iteration_bounds = array<i64: 2, 1>, scalar_prefetch = 0 : i64, scratch_operands = 0 : i64, tpu.core_type = #tpu.core_type<tc>, window_params = [{transform_indices = @transform_0, window_bounds = array<i64: 32, 512>}, {transform_indices = @transform_1, window_bounds = array<i64: 512, 256>}, {transform_indices = @transform_2, window_bounds = array<i64: 1, 256>}, {transform_indices = @transform_3, window_bounds = array<i64: 32, 256>}]} {
    %c0 = arith.constant 0 : index
    %c0_0 = arith.constant 0 : index
    %0 = vector.load %arg2[%c0, %c0_0] : memref<32x512xbf16, #tpu.memory_space<vmem>>, vector<32x512xbf16>
    %c0_1 = arith.constant 0 : index
    %c0_2 = arith.constant 0 : index
    %1 = vector.load %arg3[%c0_1, %c0_2] : memref<512x256xbf16, #tpu.memory_space<vmem>>, vector<512x256xbf16>
    %cst = arith.constant dense<0.000000e+00> : vector<32x256xf32>
    %2 = tpu.matmul %0, %1, %cst {dimension_numbers = #tpu.dot_dimension_numbers<[1], [0], [0], [1], [0, 0, 1, 1], [], []>} : vector<32x512xbf16>, vector<512x256xbf16>, vector<32x256xf32> -> vector<32x256xf32>
    %c0_3 = arith.constant 0 : index
    %c0_4 = arith.constant 0 : index
    %3 = vector.load %arg4[%c0_3, %c0_4] : memref<1x256xf32, #tpu.memory_space<vmem>>, vector<1x256xf32>
    %4 = vector.broadcast %3 : vector<1x256xf32> to vector<32x256xf32>
    %5 = arith.addf %2, %4 : vector<32x256xf32>
    %cst_5 = arith.constant 0.000000e+00 : f32
    %6 = vector.broadcast %cst_5 : f32 to vector<32x256xf32>
    %7 = arith.maximumf %5, %6 : vector<32x256xf32>
    %8 = arith.truncf %7 : vector<32x256xf32> to vector<32x256xbf16>
    %c0_6 = arith.constant 0 : index
    %c0_7 = arith.constant 0 : index
    %9 = vector.load %arg5[%c0_6, %c0_7] : memref<32x256xbf16, #tpu.memory_space<vmem>>, vector<32x256xbf16>
    tpu.vector_store %arg5[%c0_6, %c0_7], %8 {strides = array<i32>} : memref<32x256xbf16, #tpu.memory_space<vmem>>, vector<32x256xbf16>,
    return
  }
  func.func @transform_0(%arg0: i32, %arg1: i32) -> (i32, i32) {
    %c0_i32 = arith.constant 0 : i32
    %c0_i32_0 = arith.constant 0 : i32
    return %arg0, %c0_i32 : i32, i32
  }
  func.func @transform_1(%arg0: i32, %arg1: i32) -> (i32, i32) {
    %c0_i32 = arith.constant 0 : i32
    %c0_i32_0 = arith.constant 0 : i32
    return %c0_i32, %arg1 : i32, i32
  }
  func.func @transform_2(%arg0: i32, %arg1: i32) -> (i32, i32) {
    %c0_i32 = arith.constant 0 : i32
    %c0_i32_0 = arith.constant 0 : i32
    return %c0_i32, %arg1 : i32, i32
  }
  func.func @transform_3(%arg0: i32, %arg1: i32) -> (i32, i32) {
    %c0_i32 = arith.constant 0 : i32
    return %arg0, %arg1 : i32, i32
  }
}

module attributes {stable_mosaic.version = 11 : i64} {
  func.func @_matmul_bias_act_kernel(%arg0: i32, %arg1: i32, %arg2: memref<96x256xbf16, #tpu.memory_space<vmem>>, %arg3: memref<256x128xbf16, #tpu.memory_space<vmem>>, %arg4: memref<1x128xf32, #tpu.memory_space<vmem>>, %arg5: memref<96x128xbf16, #tpu.memory_space<vmem>>) attributes {dimension_semantics = [#tpu.dimension_semantics<parallel>, #tpu.dimension_semantics<parallel>], iteration_bounds = array<i64: 2, 1>, scalar_prefetch = 0 : i64, scratch_operands = 0 : i64, tpu.core_type = #tpu.core_type<tc>, window_params = [{transform_indices = @transform_0, window_bounds = array<i64: 96, 256>}, {transform_indices = @transform_1, window_bounds = array<i64: 256, 128>}, {transform_indices = @transform_2, window_bounds = array<i64: 1, 128>}, {transform_indices = @transform_3, window_bounds = array<i64: 96, 128>}]} {
    %c0 = arith.constant 0 : index
    %c0_0 = arith.constant 0 : index
    %0 = vector.load %arg2[%c0, %c0_0] : memref<96x256xbf16, #tpu.memory_space<vmem>>, vector<96x256xbf16>
    %c0_1 = arith.constant 0 : index
    %c0_2 = arith.constant 0 : index
    %1 = vector.load %arg3[%c0_1, %c0_2] : memref<256x128xbf16, #tpu.memory_space<vmem>>, vector<256x128xbf16>
    %cst = arith.constant dense<0.000000e+00> : vector<96x128xf32>
    %2 = tpu.matmul %0, %1, %cst {dimension_numbers = #tpu.dot_dimension_numbers<[1], [0], [0], [1], [0, 0, 1, 1], [], []>} : vector<96x256xbf16>, vector<256x128xbf16>, vector<96x128xf32> -> vector<96x128xf32>
    %c0_3 = arith.constant 0 : index
    %c0_4 = arith.constant 0 : index
    %3 = vector.load %arg4[%c0_3, %c0_4] : memref<1x128xf32, #tpu.memory_space<vmem>>, vector<1x128xf32>
    %4 = vector.broadcast %3 : vector<1x128xf32> to vector<96x128xf32>
    %5 = arith.addf %2, %4 : vector<96x128xf32>
    %cst_5 = arith.constant 0.000000e+00 : f32
    %6 = vector.broadcast %cst_5 : f32 to vector<96x128xf32>
    %7 = arith.maximumf %5, %6 : vector<96x128xf32>
    %8 = arith.truncf %7 : vector<96x128xf32> to vector<96x128xbf16>
    %c0_6 = arith.constant 0 : index
    %c0_7 = arith.constant 0 : index
    %9 = vector.load %arg5[%c0_6, %c0_7] : memref<96x128xbf16, #tpu.memory_space<vmem>>, vector<96x128xbf16>
    tpu.vector_store %arg5[%c0_6, %c0_7], %8 {strides = array<i32>} : memref<96x128xbf16, #tpu.memory_space<vmem>>, vector<96x128xbf16>,
    return
  }
  func.func @transform_0(%arg0: i32, %arg1: i32) -> (i32, i32) {
    %c0_i32 = arith.constant 0 : i32
    %c0_i32_0 = arith.constant 0 : i32
    return %arg0, %c0_i32 : i32, i32
  }
  func.func @transform_1(%arg0: i32, %arg1: i32) -> (i32, i32) {
    %c0_i32 = arith.constant 0 : i32
    %c0_i32_0 = arith.constant 0 : i32
    return %c0_i32, %arg1 : i32, i32
  }
  func.func @transform_2(%arg0: i32, %arg1: i32) -> (i32, i32) {
    %c0_i32 = arith.constant 0 : i32
    %c0_i32_0 = arith.constant 0 : i32
    return %c0_i32, %arg1 : i32, i32
  }
  func.func @transform_3(%arg0: i32, %arg1: i32) -> (i32, i32) {
    %c0_i32 = arith.constant 0 : i32
    return %arg0, %arg1 : i32, i32
  }
}

module attributes {stable_mosaic.version = 11 : i64} {
  func.func @_matmul_bias_act_kernel(%arg0: i32, %arg1: i32, %arg2: memref<304x128xbf16, #tpu.memory_space<vmem>>, %arg3: memref<128x128xbf16, #tpu.memory_space<vmem>>, %arg4: memref<1x128xf32, #tpu.memory_space<vmem>>, %arg5: memref<304x128xf32, #tpu.memory_space<vmem>>) attributes {dimension_semantics = [#tpu.dimension_semantics<parallel>, #tpu.dimension_semantics<parallel>], iteration_bounds = array<i64: 2, 1>, scalar_prefetch = 0 : i64, scratch_operands = 0 : i64, tpu.core_type = #tpu.core_type<tc>, window_params = [{transform_indices = @transform_0, window_bounds = array<i64: 304, 128>}, {transform_indices = @transform_1, window_bounds = array<i64: 128, 128>}, {transform_indices = @transform_2, window_bounds = array<i64: 1, 128>}, {transform_indices = @transform_3, window_bounds = array<i64: 304, 128>}]} {
    %c0 = arith.constant 0 : index
    %c0_0 = arith.constant 0 : index
    %0 = vector.load %arg2[%c0, %c0_0] : memref<304x128xbf16, #tpu.memory_space<vmem>>, vector<304x128xbf16>
    %c0_1 = arith.constant 0 : index
    %c0_2 = arith.constant 0 : index
    %1 = vector.load %arg3[%c0_1, %c0_2] : memref<128x128xbf16, #tpu.memory_space<vmem>>, vector<128x128xbf16>
    %cst = arith.constant dense<0.000000e+00> : vector<304x128xf32>
    %2 = tpu.matmul %0, %1, %cst {dimension_numbers = #tpu.dot_dimension_numbers<[1], [0], [0], [1], [0, 0, 1, 1], [], []>} : vector<304x128xbf16>, vector<128x128xbf16>, vector<304x128xf32> -> vector<304x128xf32>
    %c0_3 = arith.constant 0 : index
    %c0_4 = arith.constant 0 : index
    %3 = vector.load %arg4[%c0_3, %c0_4] : memref<1x128xf32, #tpu.memory_space<vmem>>, vector<1x128xf32>
    %4 = vector.broadcast %3 : vector<1x128xf32> to vector<304x128xf32>
    %5 = arith.addf %2, %4 : vector<304x128xf32>
    %c0_5 = arith.constant 0 : index
    %c0_6 = arith.constant 0 : index
    %6 = vector.load %arg5[%c0_5, %c0_6] : memref<304x128xf32, #tpu.memory_space<vmem>>, vector<304x128xf32>
    tpu.vector_store %arg5[%c0_5, %c0_6], %5 {strides = array<i32>} : memref<304x128xf32, #tpu.memory_space<vmem>>, vector<304x128xf32>,
    return
  }
  func.func @transform_0(%arg0: i32, %arg1: i32) -> (i32, i32) {
    %c0_i32 = arith.constant 0 : i32
    %c0_i32_0 = arith.constant 0 : i32
    return %arg0, %c0_i32 : i32, i32
  }
  func.func @transform_1(%arg0: i32, %arg1: i32) -> (i32, i32) {
    %c0_i32 = arith.constant 0 : i32
    %c0_i32_0 = arith.constant 0 : i32
    return %c0_i32, %arg1 : i32, i32
  }
  func.func @transform_2(%arg0: i32, %arg1: i32) -> (i32, i32) {
    %c0_i32 = arith.constant 0 : i32
    %c0_i32_0 = arith.constant 0 : i32
    return %c0_i32, %arg1 : i32, i32
  }
  func.func @transform_3(%arg0: i32, %arg1: i32) -> (i32, i32) {
    %c0_i32 = arith.constant 0 : i32
    return %arg0, %arg1 : i32, i32
  }
}

</mosaic_0001>

<llo_original>
// kernel: conv_autoencoder_forward.13
$region0: #{conv_autoencoder_forward.13}
  #allocation0 [shape = 'u32[]', space=smem, size = 0x4, offset = 0x4, fixed_abs, tag = 'smem constant byte address 0x4 - core index']
  #allocation1 [shape = 'u32[144,128]{1,0:T(1,128)}', space=vmem, size = 0x12000, scoped, tag = 'internal scratch']
  %s0 = inlined_call_operand.vmem [shape: bf16[512,128], index: 0, kind: input, shape index: {}]
  %s1 = inlined_call_operand.vmem [shape: bf16[128,128], index: 1, kind: input, shape index: {}]
  %s2 = inlined_call_operand.vmem [shape: f32[1,128], index: 2, kind: input, shape index: {}]
  %s3 = inlined_call_operand.vmem [shape: bf16[512,128], index: 3, kind: output, shape index: {}]
  %s4 = sld [smem:[#allocation0]]
  $region45: #{conv_autoencoder_forward.13} parent=0
    _
  %s6 = ssub.s32 1, %s4
  %s7 = scalar_select 0, %s6, %s4
  loop: start=0, step=1, limit=4
  $region2: #{conv_autoencoder_forward.13} parent=0 // loop_pre_header
    _
  $region3: #{conv_autoencoder_forward.13} parent=0 // loop_header
    %s9 = sphi 0, %s13
    %p10 = scmp.ge.s32.totalorder %s9, 4
    %s16 = sphi 0, %s28
    %s17 = sphi 0, %s24
    %s18 = sphi 0, %s16
    %s19 = sphi 0, %s17
    %s20 = sphi 0, %s18
    %s21 = sphi 0, %s19
    %s31 = sphi 0, %s33
    %s34 = sphi 0, %s31
    %s35 = sphi 0, %s34
    %s51 = sphi 0, %s35
    %s57 = sphi 0, %s59
    %s60 = sphi 0, %s57
    %s61 = sphi 0, %s60
    %s77 = sphi 0, %s61
    %s83 = sphi 0, %s85
    %s86 = sphi 0, %s83
    %s87 = sphi 0, %s86
    %s103 = sphi 0, %s87
    %s111 = sphi 0, %s113
    %s114 = sphi 0, %s111
    %s115 = sphi 0, %s114
    %s131 = sphi 0, %s115
  $region4: #{conv_autoencoder_forward.13} parent=0 // loop_header_branch
    %12 = sbr.rel (%p10) target = $region8
  $region5: #{conv_autoencoder_forward.13} parent=0 // loop_body
    %s14 = ssub.s32 %s9, 1
    %s15 = ssub.s32 %s9, 2
    %s22 = sadd.s32 1, %s17
    %p23 = scmp.ge.s32.totalorder %s22, 1
    %s24 = scalar_select %p23, 0, %s22
    %s25 = sadd.s32 1, %s16
    %s26 = scalar_select %p23, %s25, %s16
    %p27 = scmp.ge.s32.totalorder %s26, 2
    %s28 = scalar_select %p27, 0, %s26
    %s29 = ssub.s32 %s16, %s28
    %p30 = scmp.eq.s32.totalorder %s29, 0
    %s32 = sadd.s32 %s31, 1
    %s33 = scalar_select %p30, %s31, %s32
    %p36 = pneg %p30
    %p37 = scmp.eq.s32.totalorder %s9, 1
    %p38 = por %p36, %p37
    %p39 = scmp.ne.s32.totalorder %s31, %s34
    %p40 = scmp.eq.s32.totalorder %s9, 0
    %p41 = por %p39, %p40
    %p42 = scmp.ne.s32.totalorder %s31, %s34
    %p43 = scmp.eq.s32.totalorder %s14, 1
    %p44 = por %p42, %p43
    %p45 = scmp.ne.s32.totalorder %s34, %s35
    %p46 = scmp.eq.s32.totalorder %s14, 0
    %p47 = por %p45, %p46
    %p48 = scmp.ne.s32.totalorder %s34, %s35
    %p49 = scmp.eq.s32.totalorder %s15, 1
    %p50 = por %p48, %p49
    %p52 = scmp.ne.s32.totalorder %s35, %s51
    %p53 = scmp.eq.s32.totalorder %s15, 0
    %p54 = por %p52, %p53
    %s55 = ssub.s32 %s17, %s24
    %p56 = scmp.eq.s32.totalorder %s55, 0
    %s58 = sadd.s32 %s57, 1
    %s59 = scalar_select %p56, %s57, %s58
    %p62 = pneg %p56
    %p63 = scmp.eq.s32.totalorder %s9, 1
    %p64 = por %p62, %p63
    %p65 = scmp.ne.s32.totalorder %s57, %s60
    %p66 = scmp.eq.s32.totalorder %s9, 0
    %p67 = por %p65, %p66
    %p68 = scmp.ne.s32.totalorder %s57, %s60
    %p69 = scmp.eq.s32.totalorder %s14, 1
    %p70 = por %p68, %p69
    %p71 = scmp.ne.s32.totalorder %s60, %s61
    %p72 = scmp.eq.s32.totalorder %s14, 0
    %p73 = por %p71, %p72
    %p74 = scmp.ne.s32.totalorder %s60, %s61
    %p75 = scmp.eq.s32.totalorder %s15, 1
    %p76 = por %p74, %p75
    %p78 = scmp.ne.s32.totalorder %s61, %s77
    %p79 = scmp.eq.s32.totalorder %s15, 0
    %p80 = por %p78, %p79
    %s81 = ssub.s32 %s17, %s24
    %p82 = scmp.eq.s32.totalorder %s81, 0
    %s84 = sadd.s32 %s83, 1
    %s85 = scalar_select %p82, %s83, %s84
    %p88 = pneg %p82
    %p89 = scmp.eq.s32.totalorder %s9, 1
    %p90 = por %p88, %p89
    %p91 = scmp.ne.s32.totalorder %s83, %s86
    %p92 = scmp.eq.s32.totalorder %s9, 0
    %p93 = por %p91, %p92
    %p94 = scmp.ne.s32.totalorder %s83, %s86
    %p95 = scmp.eq.s32.totalorder %s14, 1
    %p96 = por %p94, %p95
    %p97 = scmp.ne.s32.totalorder %s86, %s87
    %p98 = scmp.eq.s32.totalorder %s14, 0
    %p99 = por %p97, %p98
    %p100 = scmp.ne.s32.totalorder %s86, %s87
    %p101 = scmp.eq.s32.totalorder %s15, 1
    %p102 = por %p100, %p101
    %p104 = scmp.ne.s32.totalorder %s87, %s103
    %p105 = scmp.eq.s32.totalorder %s15, 0
    %p106 = por %p104, %p105
    %s107 = ssub.s32 %s16, %s28
    %s108 = ssub.s32 %s17, %s24
    %s109 = sor.u32 %s107, %s108
    %p110 = scmp.eq.s32.totalorder %s109, 0
    %s112 = sadd.s32 %s111, 1
    %s113 = scalar_select %p110, %s111, %s112
    %p116 = pneg %p110
    %p117 = scmp.eq.s32.totalorder %s9, 1
    %p118 = por %p116, %p117
    %p119 = scmp.ne.s32.totalorder %s111, %s114
    %p120 = scmp.eq.s32.totalorder %s9, 0
    %p121 = por %p119, %p120
    %p122 = scmp.ne.s32.totalorder %s111, %s114
    %p123 = scmp.eq.s32.totalorder %s14, 1
    %p124 = por %p122, %p123
    %p125 = scmp.ne.s32.totalorder %s114, %s115
    %p126 = scmp.eq.s32.totalorder %s14, 0
    %p127 = por %p125, %p126
    %p128 = scmp.ne.s32.totalorder %s114, %s115
    %p129 = scmp.eq.s32.totalorder %s15, 1
    %p130 = por %p128, %p129
    %p132 = scmp.ne.s32.totalorder %s115, %s131
    %p133 = scmp.eq.s32.totalorder %s15, 0
    %p134 = por %p132, %p133
    %p135 = scmp.le.s32.totalorder 1, %s9
    %p136 = scmp.lt.s32.totalorder %s9, 3
    %p137 = pnand %p135, %p136
    %p138 = pneg %p137
    // Predicated region
    $region9: #{conv_autoencoder_forward.13} parent=5 // pred_check
      _
    $region10: #{conv_autoencoder_forward.13} parent=5 // pred_check_branch
      %140 = sbr.rel (%p137) target = $region12
    $region11: #{conv_autoencoder_forward.13} parent=5 // pred_region
      %s141 = ssub.s32 %s9, 1
      // Predicated region
      $region13: #{conv_autoencoder_forward.13} parent=11 // pred_check
        %p142 = pneg %p73
      $region14: #{conv_autoencoder_forward.13} parent=11 // pred_check_branch
        %144 = sbr.rel (%p142) target = $region16
      $region15: #{conv_autoencoder_forward.13} parent=11 // pred_region
        %p145 = scmp.lt.s32.totalorder %s19, 0
        %s146 = scalar_select %p145, %s19, 0
        %s147 = smul.addr %s146, 4
        %s148 = scalar_lea.vmem %s1, %s147
      $region16: #{conv_autoencoder_forward.13} parent=11 // pred_fallthru
        _
      // Predicated region
      $region17: #{conv_autoencoder_forward.13} parent=11 // pred_check
        %p149 = pneg %p99
      $region18: #{conv_autoencoder_forward.13} parent=11 // pred_check_branch
        %151 = sbr.rel (%p149) target = $region20
      $region19: #{conv_autoencoder_forward.13} parent=11 // pred_region
        %p152 = scmp.lt.s32.totalorder %s19, 0
        %s153 = scalar_select %p152, %s19, 0
        %s154 = scalar_lea.vmem %s2, %s153
      $region20: #{conv_autoencoder_forward.13} parent=11 // pred_fallthru
        _
    $region12: #{conv_autoencoder_forward.13} parent=5 // pred_fallthru
      _
    %p155 = scmp.lt.s32.totalorder %s9, 2
    // Predicated region
    $region21: #{conv_autoencoder_forward.13} parent=5 // pred_check
      %p156 = pneg %p155
    $region22: #{conv_autoencoder_forward.13} parent=5 // pred_check_branch
      %158 = sbr.rel (%p156) target = $region24
    $region23: #{conv_autoencoder_forward.13} parent=5 // pred_region
      // Predicated region
      $region25: #{conv_autoencoder_forward.13} parent=23 // pred_check
        %p159 = pneg %p41
      $region26: #{conv_autoencoder_forward.13} parent=23 // pred_check_branch
        %161 = sbr.rel (%p159) target = $region28
      $region27: #{conv_autoencoder_forward.13} parent=23 // pred_region
        %s162 = smul.u32 32, %s16
        %p163 = scmp.lt.s32.totalorder %s162, 63
        %s164 = scalar_select %p163, %s162, 63
        %s165 = smul.addr %s164, 4
        %s166 = scalar_lea.vmem %s0, %s165
        %s167 = smul.u32 32, %s16
      $region28: #{conv_autoencoder_forward.13} parent=23 // pred_fallthru
        _
    $region24: #{conv_autoencoder_forward.13} parent=5 // pred_fallthru
      _
    %p168 = scmp.le.s32.totalorder 1, %s9
    %p169 = scmp.lt.s32.totalorder %s9, 3
    %p170 = pnand %p168, %p169
    %p171 = pneg %p170
    // Predicated region
    $region29: #{conv_autoencoder_forward.13} parent=5 // pred_check
      _
    $region30: #{conv_autoencoder_forward.13} parent=5 // pred_check_branch
      %173 = sbr.rel (%p170) target = $region32
    $region31: #{conv_autoencoder_forward.13} parent=5 // pred_region
      %s174 = ssub.s32 %s9, 1
      %s175 = smul.u32 32, %s18
      %p176 = scmp.lt.s32.totalorder %s175, 63
      %s177 = scalar_select %p176, %s175, 63
      %s178 = smul.addr %s177, 4
      %s179 = scalar_lea.vmem %s0, %s178
      %p180 = pneg %p47
      %p181 = pneg %p44
      %p182 = scmp.lt.s32.totalorder %s19, 0
      %s183 = scalar_select %p182, %s19, 0
      %s184 = smul.addr %s183, 4
      %s185 = scalar_lea.vmem %s1, %s184
      %p186 = pneg %p73
      %p187 = pneg %p70
      %p188 = scmp.lt.s32.totalorder %s19, 0
      %s189 = scalar_select %p188, %s19, 0
      %s190 = scalar_lea.vmem %s2, %s189
      %p191 = pneg %p99
      %p192 = pneg %p96
      %p193 = pneg %p127
      %p194 = pneg %p124
      %s195 = smul.u32 32, %s18
      %p196 = scmp.lt.s32.totalorder %s195, 63
      %s197 = scalar_select %p196, %s195, 63
      %p198 = scmp.lt.s32.totalorder %s19, 0
      %s199 = scalar_select %p198, %s19, 0
      %s200 = sadd.s32 %s199, %s197
      %s201 = smul.addr %s200, 4
      %s202 = scalar_lea.vmem %s3, %s201
      %s203 = smul.u32 32, %s18
      %p204 = scmp.lt.s32.totalorder %s203, 63
      %s205 = scalar_select %p204, %s203, 63
      %s206 = smul.addr %s205, 4
      %s207 = scalar_lea.vmem %s0, %s206
      %s208 = smul.u32 32, %s18
      %p209 = scmp.lt.s32.totalorder %s19, 0
      %s210 = scalar_select %p209, %s19, 0
      %s211 = smul.addr %s210, 4
      %s212 = scalar_lea.vmem %s1, %s211
      %p213 = scmp.lt.s32.totalorder %s19, 0
      %s214 = scalar_select %p213, %s19, 0
      %s215 = scalar_lea.vmem %s2, %s214
      %s216 = smul.u32 32, %s18
      %p217 = scmp.lt.s32.totalorder %s216, 63
      %s218 = scalar_select %p217, %s216, 63
      %p219 = scmp.lt.s32.totalorder %s19, 0
      %s220 = scalar_select %p219, %s19, 0
      %s221 = sadd.s32 %s220, %s218
      %s222 = smul.addr %s221, 4
      %s223 = scalar_lea.vmem %s3, %s222
      %s224 = smul.u32 32, %s18
      %v226 = vld [vmem:[%s207] sm:$0xf]
      %v227 = vld [vmem:[%s207 + $0x4] sm:$0xf]
      %v228 = vld [vmem:[%s207 + $0x8] sm:$0xf]
      %v229 = vld [vmem:[%s207 + $0xc] sm:$0xf]
      %v230 = vld [vmem:[%s207 + $0x10] sm:$0xf]
      %v231 = vld [vmem:[%s207 + $0x14] sm:$0xf]
      %v232 = vld [vmem:[%s207 + $0x18] sm:$0xf]
      %v233 = vld [vmem:[%s207 + $0x1c] sm:$0xf]
      %v234 = vld [vmem:[%s207 + $0x20] sm:$0xf]
      %v235 = vld [vmem:[%s207 + $0x24] sm:$0xf]
      %v236 = vld [vmem:[%s207 + $0x28] sm:$0xf]
      %v237 = vld [vmem:[%s207 + $0x2c] sm:$0xf]
      %v238 = vld [vmem:[%s207 + $0x30] sm:$0xf]
      %v239 = vld [vmem:[%s207 + $0x34] sm:$0xf]
      %v240 = vld [vmem:[%s207 + $0x38] sm:$0xf]
      %v241 = vld [vmem:[%s207 + $0x3c] sm:$0xf]
      %v242 = vld [vmem:[%s207 + $0x40] sm:$0xf]
      %v243 = vld [vmem:[%s207 + $0x44] sm:$0xf]
      %v244 = vld [vmem:[%s207 + $0x48] sm:$0xf]
      %v245 = vld [vmem:[%s207 + $0x4c] sm:$0xf]
      %v246 = vld [vmem:[%s207 + $0x50] sm:$0xf]
      %v247 = vld [vmem:[%s207 + $0x54] sm:$0xf]
      %v248 = vld [vmem:[%s207 + $0x58] sm:$0xf]
      %v249 = vld [vmem:[%s207 + $0x5c] sm:$0xf]
      %v250 = vld [vmem:[%s207 + $0x60] sm:$0xf]
      %v251 = vld [vmem:[%s207 + $0x64] sm:$0xf]
      %v252 = vld [vmem:[%s207 + $0x68] sm:$0xf]
      %v253 = vld [vmem:[%s207 + $0x6c] sm:$0xf]
      %v254 = vld [vmem:[%s207 + $0x70] sm:$0xf]
      %v255 = vld [vmem:[%s207 + $0x74] sm:$0xf]
      %v256 = vld [vmem:[%s207 + $0x78] sm:$0xf]
      %v257 = vld [vmem:[%s207 + $0x7c] sm:$0xf]
      %v258 = vld [vmem:[%s212] sm:$0xf]
      %v259 = vld [vmem:[%s212 + $0x4] sm:$0xf]
      %v260 = vld [vmem:[%s212 + $0x8] sm:$0xf]
      %v261 = vld [vmem:[%s212 + $0xc] sm:$0xf]
      %v262 = vld [vmem:[%s212 + $0x10] sm:$0xf]
      %v263 = vld [vmem:[%s212 + $0x14] sm:$0xf]
      %v264 = vld [vmem:[%s212 + $0x18] sm:$0xf]
      %v265 = vld [vmem:[%s212 + $0x1c] sm:$0xf]
      %v266 = vld [vmem:[%s212 + $0x20] sm:$0xf]
      %v267 = vld [vmem:[%s212 + $0x24] sm:$0xf]
      %v268 = vld [vmem:[%s212 + $0x28] sm:$0xf]
      %v269 = vld [vmem:[%s212 + $0x2c] sm:$0xf]
      %v270 = vld [vmem:[%s212 + $0x30] sm:$0xf]
      %v271 = vld [vmem:[%s212 + $0x34] sm:$0xf]
      %v272 = vld [vmem:[%s212 + $0x38] sm:$0xf]
      %v273 = vld [vmem:[%s212 + $0x3c] sm:$0xf]
      %v274 = vld [vmem:[%s215] sm:$0x1]
      %v276 = vlaneseq
      %v277 = vshrl.u32 %v276, 7
      %v278 = vsub.s32 0, %v277
      %v279 = vrot.slane %v274, %v278
      %v313 = vunpack.c.l.b16 %v226
      %v314 = vunpack.c.l.b16 %v227
      %v315 = vunpack.c.l.b16 %v228
      %v316 = vunpack.c.l.b16 %v229
      %v317 = vunpack.c.l.b16 %v230
      %v318 = vunpack.c.l.b16 %v231
      %v319 = vunpack.c.l.b16 %v232
      %v320 = vunpack.c.l.b16 %v233
      %v321 = vunpack.c.l.b16 %v234
      %v322 = vunpack.c.l.b16 %v235
      %v323 = vunpack.c.l.b16 %v236
      %v324 = vunpack.c.l.b16 %v237
      %v325 = vunpack.c.l.b16 %v238
      %v326 = vunpack.c.l.b16 %v239
      %v327 = vunpack.c.l.b16 %v240
      %v328 = vunpack.c.l.b16 %v241
      %v329 = vunpack.c.l.b16 %v242
      %v330 = vunpack.c.l.b16 %v243
      %v331 = vunpack.c.l.b16 %v244
      %v332 = vunpack.c.l.b16 %v245
      %v333 = vunpack.c.l.b16 %v246
      %v334 = vunpack.c.l.b16 %v247
      %v335 = vunpack.c.l.b16 %v248
      %v336 = vunpack.c.l.b16 %v249
      %v337 = vunpack.c.l.b16 %v250
      %v338 = vunpack.c.l.b16 %v251
      %v339 = vunpack.c.l.b16 %v252
      %v340 = vunpack.c.l.b16 %v253
      %v341 = vunpack.c.l.b16 %v254
      %v342 = vunpack.c.l.b16 %v255
      %v343 = vunpack.c.l.b16 %v256
      %v344 = vunpack.c.l.b16 %v257
      %v345 = vpack.c.b16 %v314, %v313
      %v346 = vpack.c.b16 %v316, %v315
      %v347 = vpack.c.b16 %v318, %v317
      %v348 = vpack.c.b16 %v320, %v319
      %v349 = vpack.c.b16 %v322, %v321
      %v350 = vpack.c.b16 %v324, %v323
      %v351 = vpack.c.b16 %v326, %v325
      %v352 = vpack.c.b16 %v328, %v327
      %v353 = vpack.c.b16 %v330, %v329
      %v354 = vpack.c.b16 %v332, %v331
      %v355 = vpack.c.b16 %v334, %v333
      %v356 = vpack.c.b16 %v336, %v335
      %v357 = vpack.c.b16 %v338, %v337
      %v358 = vpack.c.b16 %v340, %v339
      %v359 = vpack.c.b16 %v342, %v341
      %v360 = vpack.c.b16 %v344, %v343
      %v393 = vunpack.c.l.b16 %v258
      %v394 = vunpack.c.l.b16 %v259
      %v395 = vunpack.c.l.b16 %v260
      %v396 = vunpack.c.l.b16 %v261
      %v397 = vunpack.c.l.b16 %v262
      %v398 = vunpack.c.l.b16 %v263
      %v399 = vunpack.c.l.b16 %v264
      %v400 = vunpack.c.l.b16 %v265
      %v401 = vunpack.c.l.b16 %v266
      %v402 = vunpack.c.l.b16 %v267
      %v403 = vunpack.c.l.b16 %v268
      %v404 = vunpack.c.l.b16 %v269
      %v405 = vunpack.c.l.b16 %v270
      %v406 = vunpack.c.l.b16 %v271
      %v407 = vunpack.c.l.b16 %v272
      %v408 = vunpack.c.l.b16 %v273
      %v409 = vpack.c.b16 %v394, %v393
      %v410 = vpack.c.b16 %v396, %v395
      %v411 = vpack.c.b16 %v398, %v397
      %v412 = vpack.c.b16 %v400, %v399
      %v413 = vpack.c.b16 %v402, %v401
      %v414 = vpack.c.b16 %v404, %v403
      %v415 = vpack.c.b16 %v406, %v405
      %v416 = vpack.c.b16 %v408, %v407
      %425 = vmatprep.subr.bf16.mxu0 0
      %426 = vmatpush1.bf16.msra.mxu0 %v409
      %427 = vmatprep.subr.bf16.mxu0 0
      %428 = vmatpush1.bf16.msra.mxu0 %v410
      %429 = vmatprep.subr.bf16.mxu0 0
      %430 = vmatpush1.bf16.msra.mxu0 %v411
      %431 = vmatprep.subr.bf16.mxu0 0
      %432 = vmatpush1.bf16.msra.mxu0 %v412
      %433 = vmatprep.subr.bf16.mxu0 0
      %434 = vmatpush1.bf16.msra.mxu0 %v413
      %435 = vmatprep.subr.bf16.mxu0 0
      %436 = vmatpush1.bf16.msra.mxu0 %v414
      %437 = vmatprep.subr.bf16.mxu0 0
      %438 = vmatpush1.bf16.msra.mxu0 %v415
      %439 = vmatprep.subr.bf16.mxu0 0
      %440 = vmatpush1.bf16.msra.mxu0 %v416
      %441 = vmatprep.subr.bf16.mxu0 0
      %442 = vmatpush1.bf16.msra.mxu0 0
      %443 = vmatprep.subr.bf16.mxu0 0
      %444 = vmatpush1.bf16.msra.mxu0 0
      %445 = vmatprep.subr.bf16.mxu0 0
      %446 = vmatpush1.bf16.msra.mxu0 0
      %447 = vmatprep.subr.bf16.mxu0 0
      %448 = vmatpush1.bf16.msra.mxu0 0
      %449 = vmatprep.subr.bf16.mxu0 0
      %450 = vmatpush1.bf16.msra.mxu0 0
      %451 = vmatprep.subr.bf16.mxu0 0
      %452 = vmatpush1.bf16.msra.mxu0 0
      %453 = vmatprep.subr.bf16.mxu0 0
      %454 = vmatpush1.bf16.msra.mxu0 0
      %455 = vmatprep.subr.bf16.mxu0 0
      %456 = vmatpush1.bf16.msra.mxu0 0
      %457 = vmatprep.mubr.bf16.mxu0 0
      %458 = vmatmul.mubr.bf16.gmra.mrb[0].mxu0 %v345
      %v459 = vpop.f32.mrb[0].mxu0
      %v460 = vadd.f32 %v279, %v459
      %v461 = vpop.f32.mrb[0].mxu0
      %v462 = vpop.f32.mrb[0].mxu0
      %v463 = vadd.f32 %v279, %v462
      %v464 = vpop.f32.mrb[0].mxu0
      %465 = vmatprep.mubr.bf16.mxu0 0
      %466 = vmatmul.mubr.bf16.gmra.mrb[0].mxu0 %v346
      %v467 = vpop.f32.mrb[0].mxu0
      %v468 = vadd.f32 %v279, %v467
      %v469 = vpop.f32.mrb[0].mxu0
      %v470 = vpop.f32.mrb[0].mxu0
      %v471 = vadd.f32 %v279, %v470
      %v472 = vpop.f32.mrb[0].mxu0
      %473 = vmatprep.mubr.bf16.mxu0 0
      %474 = vmatmul.mubr.bf16.gmra.mrb[0].mxu0 %v347
      %v475 = vpop.f32.mrb[0].mxu0
      %v476 = vadd.f32 %v279, %v475
      %v477 = vpop.f32.mrb[0].mxu0
      %v478 = vpop.f32.mrb[0].mxu0
      %v479 = vadd.f32 %v279, %v478
      %v480 = vpop.f32.mrb[0].mxu0
      %481 = vmatprep.mubr.bf16.mxu0 0
      %482 = vmatmul.mubr.bf16.gmra.mrb[0].mxu0 %v348
      %v483 = vpop.f32.mrb[0].mxu0
      %v484 = vadd.f32 %v279, %v483
      %v485 = vpop.f32.mrb[0].mxu0
      %v486 = vpop.f32.mrb[0].mxu0
      %v487 = vadd.f32 %v279, %v486
      %v488 = vpop.f32.mrb[0].mxu0
      %489 = vmatprep.mubr.bf16.mxu0 0
      %490 = vmatmul.mubr.bf16.gmra.mrb[0].mxu0 %v349
      %v491 = vpop.f32.mrb[0].mxu0
      %v492 = vadd.f32 %v279, %v491
      %v493 = vpop.f32.mrb[0].mxu0
      %v494 = vpop.f32.mrb[0].mxu0
      %v495 = vadd.f32 %v279, %v494
      %v496 = vpop.f32.mrb[0].mxu0
      %497 = vmatprep.mubr.bf16.mxu0 0
      %498 = vmatmul.mubr.bf16.gmra.mrb[0].mxu0 %v350
      %v499 = vpop.f32.mrb[0].mxu0
      %v500 = vadd.f32 %v279, %v499
      %v501 = vpop.f32.mrb[0].mxu0
      %v502 = vpop.f32.mrb[0].mxu0
      %v503 = vadd.f32 %v279, %v502
      %v504 = vpop.f32.mrb[0].mxu0
      %505 = vmatprep.mubr.bf16.mxu0 0
      %506 = vmatmul.mubr.bf16.gmra.mrb[0].mxu0 %v351
      %v507 = vpop.f32.mrb[0].mxu0
      %v508 = vadd.f32 %v279, %v507
      %v509 = vpop.f32.mrb[0].mxu0
      %v510 = vpop.f32.mrb[0].mxu0
      %v511 = vadd.f32 %v279, %v510
      %v512 = vpop.f32.mrb[0].mxu0
      %513 = vmatprep.mubr.bf16.mxu0 0
      %514 = vmatmul.mubr.bf16.gmra.mrb[0].mxu0 %v352
      %v515 = vpop.f32.mrb[0].mxu0
      %v516 = vadd.f32 %v279, %v515
      %v517 = vpop.f32.mrb[0].mxu0
      %v518 = vpop.f32.mrb[0].mxu0
      %v519 = vadd.f32 %v279, %v518
      %v520 = vpop.f32.mrb[0].mxu0
      %521 = vmatprep.mubr.bf16.mxu0 0
      %522 = vmatmul.mubr.bf16.gmra.mrb[0].mxu0 %v353
      %v523 = vpop.f32.mrb[0].mxu0
      %v524 = vadd.f32 %v279, %v523
      %v525 = vpop.f32.mrb[0].mxu0
      %v526 = vpop.f32.mrb[0].mxu0
      %v527 = vadd.f32 %v279, %v526
      %v528 = vpop.f32.mrb[0].mxu0
      %529 = vmatprep.mubr.bf16.mxu0 0
      %530 = vmatmul.mubr.bf16.gmra.mrb[0].mxu0 %v354
      %v531 = vpop.f32.mrb[0].mxu0
      %v532 = vadd.f32 %v279, %v531
      %v533 = vpop.f32.mrb[0].mxu0
      %v534 = vpop.f32.mrb[0].mxu0
      %v535 = vadd.f32 %v279, %v534
      %v536 = vpop.f32.mrb[0].mxu0
      %537 = vmatprep.mubr.bf16.mxu0 0
      %538 = vmatmul.mubr.bf16.gmra.mrb[0].mxu0 %v355
      %v539 = vpop.f32.mrb[0].mxu0
      %v540 = vadd.f32 %v279, %v539
      %v541 = vpop.f32.mrb[0].mxu0
      %v542 = vpop.f32.mrb[0].mxu0
      %v543 = vadd.f32 %v279, %v542
      %v544 = vpop.f32.mrb[0].mxu0
      %545 = vmatprep.mubr.bf16.mxu0 0
      %546 = vmatmul.mubr.bf16.gmra.mrb[0].mxu0 %v356
      %v547 = vpop.f32.mrb[0].mxu0
      %v548 = vadd.f32 %v279, %v547
      %v549 = vpop.f32.mrb[0].mxu0
      %v550 = vpop.f32.mrb[0].mxu0
      %v551 = vadd.f32 %v279, %v550
      %v552 = vpop.f32.mrb[0].mxu0
      %553 = vmatprep.mubr.bf16.mxu0 0
      %554 = vmatmul.mubr.bf16.gmra.mrb[0].mxu0 %v357
      %v555 = vpop.f32.mrb[0].mxu0
      %v556 = vadd.f32 %v279, %v555
      %v557 = vpop.f32.mrb[0].mxu0
      %v558 = vpop.f32.mrb[0].mxu0
      %v559 = vadd.f32 %v279, %v558
      %v560 = vpop.f32.mrb[0].mxu0
      %561 = vmatprep.mubr.bf16.mxu0 0
      %562 = vmatmul.mubr.bf16.gmra.mrb[0].mxu0 %v358
      %v563 = vpop.f32.mrb[0].mxu0
      %v564 = vadd.f32 %v279, %v563
      %v565 = vpop.f32.mrb[0].mxu0
      %v566 = vpop.f32.mrb[0].mxu0
      %v567 = vadd.f32 %v279, %v566
      %v568 = vpop.f32.mrb[0].mxu0
      %569 = vmatprep.mubr.bf16.mxu0 0
      %570 = vmatmul.mubr.bf16.gmra.mrb[0].mxu0 %v359
      %v571 = vpop.f32.mrb[0].mxu0
      %v572 = vadd.f32 %v279, %v571
      %v573 = vpop.f32.mrb[0].mxu0
      %v574 = vpop.f32.mrb[0].mxu0
      %v575 = vadd.f32 %v279, %v574
      %v576 = vpop.f32.mrb[0].mxu0
      %577 = vmatprep.mubr.bf16.mxu0 0
      %578 = vmatmul.mubr.bf16.gmra.mrb[0].mxu0 %v360
      %v579 = vpop.f32.mrb[0].mxu0
      %v580 = vadd.f32 %v279, %v579
      %v581 = vpop.f32.mrb[0].mxu0
      %v582 = vpop.f32.mrb[0].mxu0
      %v583 = vadd.f32 %v279, %v582
      %v584 = vpop.f32.mrb[0].mxu0
      %585 = vdwg.mxu0
      %v586 = vmax.f32 %v460, 0.0
      %v587 = vmax.f32 %v463, 0.0
      %v588 = vmax.f32 %v468, 0.0
      %v589 = vmax.f32 %v471, 0.0
      %v590 = vmax.f32 %v476, 0.0
      %v591 = vmax.f32 %v479, 0.0
      %v592 = vmax.f32 %v484, 0.0
      %v593 = vmax.f32 %v487, 0.0
      %v594 = vmax.f32 %v492, 0.0
      %v595 = vmax.f32 %v495, 0.0
      %v596 = vmax.f32 %v500, 0.0
      %v597 = vmax.f32 %v503, 0.0
      %v598 = vmax.f32 %v508, 0.0
      %v599 = vmax.f32 %v511, 0.0
      %v600 = vmax.f32 %v516, 0.0
      %v601 = vmax.f32 %v519, 0.0
      %v602 = vmax.f32 %v524, 0.0
      %v603 = vmax.f32 %v527, 0.0
      %v604 = vmax.f32 %v532, 0.0
      %v605 = vmax.f32 %v535, 0.0
      %v606 = vmax.f32 %v540, 0.0
      %v607 = vmax.f32 %v543, 0.0
      %v608 = vmax.f32 %v548, 0.0
      %v609 = vmax.f32 %v551, 0.0
      %v610 = vmax.f32 %v556, 0.0
      %v611 = vmax.f32 %v559, 0.0
      %v612 = vmax.f32 %v564, 0.0
      %v613 = vmax.f32 %v567, 0.0
      %v614 = vmax.f32 %v572, 0.0
      %v615 = vmax.f32 %v575, 0.0
      %v616 = vmax.f32 %v580, 0.0
      %v617 = vmax.f32 %v583, 0.0
      %v618 = vpack.c.bf16 %v587, %v586
      %v619 = vpack.c.bf16 %v589, %v588
      %v620 = vpack.c.bf16 %v591, %v590
      %v621 = vpack.c.bf16 %v593, %v592
      %v622 = vpack.c.bf16 %v595, %v594
      %v623 = vpack.c.bf16 %v597, %v596
      %v624 = vpack.c.bf16 %v599, %v598
      %v625 = vpack.c.bf16 %v601, %v600
      %v626 = vpack.c.bf16 %v603, %v602
      %v627 = vpack.c.bf16 %v605, %v604
      %v628 = vpack.c.bf16 %v607, %v606
      %v629 = vpack.c.bf16 %v609, %v608
      %v630 = vpack.c.bf16 %v611, %v610
      %v631 = vpack.c.bf16 %v613, %v612
      %v632 = vpack.c.bf16 %v615, %v614
      %v633 = vpack.c.bf16 %v617, %v616
      %v650 = vunpack.c.l.b16 %v618
      %v651 = vunpack.c.h.b16 %v618
      %v652 = vunpack.c.l.b16 %v619
      %v653 = vunpack.c.h.b16 %v619
      %v654 = vunpack.c.l.b16 %v620
      %v655 = vunpack.c.h.b16 %v620
      %v656 = vunpack.c.l.b16 %v621
      %v657 = vunpack.c.h.b16 %v621
      %v658 = vunpack.c.l.b16 %v622
      %v659 = vunpack.c.h.b16 %v622
      %v660 = vunpack.c.l.b16 %v623
      %v661 = vunpack.c.h.b16 %v623
      %v662 = vunpack.c.l.b16 %v624
      %v663 = vunpack.c.h.b16 %v624
      %v664 = vunpack.c.l.b16 %v625
      %v665 = vunpack.c.h.b16 %v625
      %v666 = vunpack.c.l.b16 %v626
      %v667 = vunpack.c.h.b16 %v626
      %v668 = vunpack.c.l.b16 %v627
      %v669 = vunpack.c.h.b16 %v627
      %v670 = vunpack.c.l.b16 %v628
      %v671 = vunpack.c.h.b16 %v628
      %v672 = vunpack.c.l.b16 %v629
      %v673 = vunpack.c.h.b16 %v629
      %v674 = vunpack.c.l.b16 %v630
      %v675 = vunpack.c.h.b16 %v630
      %v676 = vunpack.c.l.b16 %v631
      %v677 = vunpack.c.h.b16 %v631
      %v678 = vunpack.c.l.b16 %v632
      %v679 = vunpack.c.h.b16 %v632
      %v680 = vunpack.c.l.b16 %v633
      %v681 = vunpack.c.h.b16 %v633
      %v682 = vpack.c.b16 %v650, %v650
      %v683 = vpack.c.b16 %v651, %v651
      %v684 = vpack.c.b16 %v652, %v652
      %v685 = vpack.c.b16 %v653, %v653
      %v686 = vpack.c.b16 %v654, %v654
      %v687 = vpack.c.b16 %v655, %v655
      %v688 = vpack.c.b16 %v656, %v656
      %v689 = vpack.c.b16 %v657, %v657
      %v690 = vpack.c.b16 %v658, %v658
      %v691 = vpack.c.b16 %v659, %v659
      %v692 = vpack.c.b16 %v660, %v660
      %v693 = vpack.c.b16 %v661, %v661
      %v694 = vpack.c.b16 %v662, %v662
      %v695 = vpack.c.b16 %v663, %v663
      %v696 = vpack.c.b16 %v664, %v664
      %v697 = vpack.c.b16 %v665, %v665
      %v698 = vpack.c.b16 %v666, %v666
      %v699 = vpack.c.b16 %v667, %v667
      %v700 = vpack.c.b16 %v668, %v668
      %v701 = vpack.c.b16 %v669, %v669
      %v702 = vpack.c.b16 %v670, %v670
      %v703 = vpack.c.b16 %v671, %v671
      %v704 = vpack.c.b16 %v672, %v672
      %v705 = vpack.c.b16 %v673, %v673
      %v706 = vpack.c.b16 %v674, %v674
      %v707 = vpack.c.b16 %v675, %v675
      %v708 = vpack.c.b16 %v676, %v676
      %v709 = vpack.c.b16 %v677, %v677
      %v710 = vpack.c.b16 %v678, %v678
      %v711 = vpack.c.b16 %v679, %v679
      %v712 = vpack.c.b16 %v680, %v680
      %v713 = vpack.c.b16 %v681, %v681
      %746 = vst [vmem:[%s223] sm:$0xf] %v682
      %747 = vst [vmem:[%s223 + $0x4] sm:$0xf] %v683
      %748 = vst [vmem:[%s223 + $0x8] sm:$0xf] %v684
      %749 = vst [vmem:[%s223 + $0xc] sm:$0xf] %v685
      %750 = vst [vmem:[%s223 + $0x10] sm:$0xf] %v686
      %751 = vst [vmem:[%s223 + $0x14] sm:$0xf] %v687
      %752 = vst [vmem:[%s223 + $0x18] sm:$0xf] %v688
      %753 = vst [vmem:[%s223 + $0x1c] sm:$0xf] %v689
      %754 = vst [vmem:[%s223 + $0x20] sm:$0xf] %v690
      %755 = vst [vmem:[%s223 + $0x24] sm:$0xf] %v691
      %756 = vst [vmem:[%s223 + $0x28] sm:$0xf] %v692
      %757 = vst [vmem:[%s223 + $0x2c] sm:$0xf] %v693
      %758 = vst [vmem:[%s223 + $0x30] sm:$0xf] %v694
      %759 = vst [vmem:[%s223 + $0x34] sm:$0xf] %v695
      %760 = vst [vmem:[%s223 + $0x38] sm:$0xf] %v696
      %761 = vst [vmem:[%s223 + $0x3c] sm:$0xf] %v697
      %762 = vst [vmem:[%s223 + $0x40] sm:$0xf] %v698
      %763 = vst [vmem:[%s223 + $0x44] sm:$0xf] %v699
      %764 = vst [vmem:[%s223 + $0x48] sm:$0xf] %v700
      %765 = vst [vmem:[%s223 + $0x4c] sm:$0xf] %v701
      %766 = vst [vmem:[%s223 + $0x50] sm:$0xf] %v702
      %767 = vst [vmem:[%s223 + $0x54] sm:$0xf] %v703
      %768 = vst [vmem:[%s223 + $0x58] sm:$0xf] %v704
      %769 = vst [vmem:[%s223 + $0x5c] sm:$0xf] %v705
      %770 = vst [vmem:[%s223 + $0x60] sm:$0xf] %v706
      %771 = vst [vmem:[%s223 + $0x64] sm:$0xf] %v707
      %772 = vst [vmem:[%s223 + $0x68] sm:$0xf] %v708
      %773 = vst [vmem:[%s223 + $0x6c] sm:$0xf] %v709
      %774 = vst [vmem:[%s223 + $0x70] sm:$0xf] %v710
      %775 = vst [vmem:[%s223 + $0x74] sm:$0xf] %v711
      %776 = vst [vmem:[%s223 + $0x78] sm:$0xf] %v712
      %777 = vst [vmem:[%s223 + $0x7c] sm:$0xf] %v713
      %s778 = smul.u32 32, %s18
      %p779 = scmp.lt.s32.totalorder %s778, 63
      %s780 = scalar_select %p779, %s778, 63
      %p781 = scmp.lt.s32.totalorder %s19, 0
      %s782 = scalar_select %p781, %s19, 0
      %s783 = sadd.s32 %s782, %s780
      %s784 = smul.addr %s783, 4
      %s785 = scalar_lea.vmem %s3, %s784
      // Predicated region
      $region33: #{conv_autoencoder_forward.13} parent=31 // pred_check
        %p786 = pneg %p124
      $region34: #{conv_autoencoder_forward.13} parent=31 // pred_check_branch
        %788 = sbr.rel (%p786) target = $region36
      $region35: #{conv_autoencoder_forward.13} parent=31 // pred_region
        %s789 = smul.u32 32, %s18
      $region36: #{conv_autoencoder_forward.13} parent=31 // pred_fallthru
        _
    $region32: #{conv_autoencoder_forward.13} parent=5 // pred_fallthru
      _
    %p790 = scmp.le.s32.totalorder 2, %s9
    // Predicated region
    $region37: #{conv_autoencoder_forward.13} parent=5 // pred_check
      %p791 = pneg %p790
    $region38: #{conv_autoencoder_forward.13} parent=5 // pred_check_branch
      %793 = sbr.rel (%p791) target = $region40
    $region39: #{conv_autoencoder_forward.13} parent=5 // pred_region
      %s794 = ssub.s32 %s9, 2
      // Predicated region
      $region41: #{conv_autoencoder_forward.13} parent=39 // pred_check
        %p795 = pneg %p130
      $region42: #{conv_autoencoder_forward.13} parent=39 // pred_check_branch
        %797 = sbr.rel (%p795) target = $region44
      $region43: #{conv_autoencoder_forward.13} parent=39 // pred_region
        %s798 = smul.u32 32, %s20
        %p799 = scmp.lt.s32.totalorder %s798, 63
        %s800 = scalar_select %p799, %s798, 63
        %p801 = scmp.lt.s32.totalorder %s21, 0
        %s802 = scalar_select %p801, %s21, 0
        %s803 = sadd.s32 %s802, %s800
        %s804 = smul.addr %s803, 4
        %s805 = scalar_lea.vmem %s3, %s804
      $region44: #{conv_autoencoder_forward.13} parent=39 // pred_fallthru
        _
    $region40: #{conv_autoencoder_forward.13} parent=5 // pred_fallthru
      _
  $region6: #{conv_autoencoder_forward.13} parent=0 // loop_footer
    %s13 = sadd.s32 1, %s9
  $region7: #{conv_autoencoder_forward.13} parent=0 // loop_footer_branch
    %8 = sbr.rel target = $region3
  $region8: #{conv_autoencoder_forward.13} parent=0 // loop_exit
    _

// kernel: conv_autoencoder_forward.14
$region0: #{conv_autoencoder_forward.14}
  #allocation0 [shape = 'u32[]', space=smem, size = 0x4, offset = 0x4, fixed_abs, tag = 'smem constant byte address 0x4 - core index']
  #allocation1 [shape = 'u32[144,128]{1,0:T(1,128)}', space=vmem, size = 0x12000, scoped, tag = 'internal scratch']
  %s0 = inlined_call_operand.vmem [shape: bf16[128,512], index: 0, kind: input, shape index: {}]
  %s1 = inlined_call_operand.vmem [shape: bf16[512,128], index: 1, kind: input, shape index: {}]
  %s2 = inlined_call_operand.vmem [shape: f32[1,128], index: 2, kind: input, shape index: {}]
  %s3 = inlined_call_operand.vmem [shape: bf16[128,128], index: 3, kind: output, shape index: {}]
  %s4 = sld [smem:[#allocation0]]
  $region45: #{conv_autoencoder_forward.14} parent=0
    _
  %s6 = ssub.s32 1, %s4
  %s7 = scalar_select 0, %s6, %s4
  loop: start=0, step=1, limit=4
  $region2: #{conv_autoencoder_forward.14} parent=0 // loop_pre_header
    _
  $region3: #{conv_autoencoder_forward.14} parent=0 // loop_header
    %s9 = sphi 0, %s13
    %p10 = scmp.ge.s32.totalorder %s9, 4
    %s16 = sphi 0, %s28
    %s17 = sphi 0, %s24
    %s18 = sphi 0, %s16
    %s19 = sphi 0, %s17
    %s20 = sphi 0, %s18
    %s21 = sphi 0, %s19
    %s31 = sphi 0, %s33
    %s34 = sphi 0, %s31
    %s35 = sphi 0, %s34
    %s51 = sphi 0, %s35
    %s57 = sphi 0, %s59
    %s60 = sphi 0, %s57
    %s61 = sphi 0, %s60
    %s77 = sphi 0, %s61
    %s83 = sphi 0, %s85
    %s86 = sphi 0, %s83
    %s87 = sphi 0, %s86
    %s103 = sphi 0, %s87
    %s111 = sphi 0, %s113
    %s114 = sphi 0, %s111
    %s115 = sphi 0, %s114
    %s131 = sphi 0, %s115
  $region4: #{conv_autoencoder_forward.14} parent=0 // loop_header_branch
    %12 = sbr.rel (%p10) target = $region8
  $region5: #{conv_autoencoder_forward.14} parent=0 // loop_body
    %s14 = ssub.s32 %s9, 1
    %s15 = ssub.s32 %s9, 2
    %s22 = sadd.s32 1, %s17
    %p23 = scmp.ge.s32.totalorder %s22, 1
    %s24 = scalar_select %p23, 0, %s22
    %s25 = sadd.s32 1, %s16
    %s26 = scalar_select %p23, %s25, %s16
    %p27 = scmp.ge.s32.totalorder %s26, 2
    %s28 = scalar_select %p27, 0, %s26
    %s29 = ssub.s32 %s16, %s28
    %p30 = scmp.eq.s32.totalorder %s29, 0
    %s32 = sadd.s32 %s31, 1
    %s33 = scalar_select %p30, %s31, %s32
    %p36 = pneg %p30
    %p37 = scmp.eq.s32.totalorder %s9, 1
    %p38 = por %p36, %p37
    %p39 = scmp.ne.s32.totalorder %s31, %s34
    %p40 = scmp.eq.s32.totalorder %s9, 0
    %p41 = por %p39, %p40
    %p42 = scmp.ne.s32.totalorder %s31, %s34
    %p43 = scmp.eq.s32.totalorder %s14, 1
    %p44 = por %p42, %p43
    %p45 = scmp.ne.s32.totalorder %s34, %s35
    %p46 = scmp.eq.s32.totalorder %s14, 0
    %p47 = por %p45, %p46
    %p48 = scmp.ne.s32.totalorder %s34, %s35
    %p49 = scmp.eq.s32.totalorder %s15, 1
    %p50 = por %p48, %p49
    %p52 = scmp.ne.s32.totalorder %s35, %s51
    %p53 = scmp.eq.s32.totalorder %s15, 0
    %p54 = por %p52, %p53
    %s55 = ssub.s32 %s17, %s24
    %p56 = scmp.eq.s32.totalorder %s55, 0
    %s58 = sadd.s32 %s57, 1
    %s59 = scalar_select %p56, %s57, %s58
    %p62 = pneg %p56
    %p63 = scmp.eq.s32.totalorder %s9, 1
    %p64 = por %p62, %p63
    %p65 = scmp.ne.s32.totalorder %s57, %s60
    %p66 = scmp.eq.s32.totalorder %s9, 0
    %p67 = por %p65, %p66
    %p68 = scmp.ne.s32.totalorder %s57, %s60
    %p69 = scmp.eq.s32.totalorder %s14, 1
    %p70 = por %p68, %p69
    %p71 = scmp.ne.s32.totalorder %s60, %s61
    %p72 = scmp.eq.s32.totalorder %s14, 0
    %p73 = por %p71, %p72
    %p74 = scmp.ne.s32.totalorder %s60, %s61
    %p75 = scmp.eq.s32.totalorder %s15, 1
    %p76 = por %p74, %p75
    %p78 = scmp.ne.s32.totalorder %s61, %s77
    %p79 = scmp.eq.s32.totalorder %s15, 0
    %p80 = por %p78, %p79
    %s81 = ssub.s32 %s17, %s24
    %p82 = scmp.eq.s32.totalorder %s81, 0
    %s84 = sadd.s32 %s83, 1
    %s85 = scalar_select %p82, %s83, %s84
    %p88 = pneg %p82
    %p89 = scmp.eq.s32.totalorder %s9, 1
    %p90 = por %p88, %p89
    %p91 = scmp.ne.s32.totalorder %s83, %s86
    %p92 = scmp.eq.s32.totalorder %s9, 0
    %p93 = por %p91, %p92
    %p94 = scmp.ne.s32.totalorder %s83, %s86
    %p95 = scmp.eq.s32.totalorder %s14, 1
    %p96 = por %p94, %p95
    %p97 = scmp.ne.s32.totalorder %s86, %s87
    %p98 = scmp.eq.s32.totalorder %s14, 0
    %p99 = por %p97, %p98
    %p100 = scmp.ne.s32.totalorder %s86, %s87
    %p101 = scmp.eq.s32.totalorder %s15, 1
    %p102 = por %p100, %p101
    %p104 = scmp.ne.s32.totalorder %s87, %s103
    %p105 = scmp.eq.s32.totalorder %s15, 0
    %p106 = por %p104, %p105
    %s107 = ssub.s32 %s16, %s28
    %s108 = ssub.s32 %s17, %s24
    %s109 = sor.u32 %s107, %s108
    %p110 = scmp.eq.s32.totalorder %s109, 0
    %s112 = sadd.s32 %s111, 1
    %s113 = scalar_select %p110, %s111, %s112
    %p116 = pneg %p110
    %p117 = scmp.eq.s32.totalorder %s9, 1
    %p118 = por %p116, %p117
    %p119 = scmp.ne.s32.totalorder %s111, %s114
    %p120 = scmp.eq.s32.totalorder %s9, 0
    %p121 = por %p119, %p120
    %p122 = scmp.ne.s32.totalorder %s111, %s114
    %p123 = scmp.eq.s32.totalorder %s14, 1
    %p124 = por %p122, %p123
    %p125 = scmp.ne.s32.totalorder %s114, %s115
    %p126 = scmp.eq.s32.totalorder %s14, 0
    %p127 = por %p125, %p126
    %p128 = scmp.ne.s32.totalorder %s114, %s115
    %p129 = scmp.eq.s32.totalorder %s15, 1
    %p130 = por %p128, %p129
    %p132 = scmp.ne.s32.totalorder %s115, %s131
    %p133 = scmp.eq.s32.totalorder %s15, 0
    %p134 = por %p132, %p133
    %p135 = scmp.le.s32.totalorder 1, %s9
    %p136 = scmp.lt.s32.totalorder %s9, 3
    %p137 = pnand %p135, %p136
    %p138 = pneg %p137
    // Predicated region
    $region9: #{conv_autoencoder_forward.14} parent=5 // pred_check
      _
    $region10: #{conv_autoencoder_forward.14} parent=5 // pred_check_branch
      %140 = sbr.rel (%p137) target = $region12
    $region11: #{conv_autoencoder_forward.14} parent=5 // pred_region
      %s141 = ssub.s32 %s9, 1
      // Predicated region
      $region13: #{conv_autoencoder_forward.14} parent=11 // pred_check
        %p142 = pneg %p73
      $region14: #{conv_autoencoder_forward.14} parent=11 // pred_check_branch
        %144 = sbr.rel (%p142) target = $region16
      $region15: #{conv_autoencoder_forward.14} parent=11 // pred_region
        %p145 = scmp.lt.s32.totalorder %s19, 0
        %s146 = scalar_select %p145, %s19, 0
        %s147 = smul.addr %s146, 4
        %s148 = scalar_lea.vmem %s1, %s147
      $region16: #{conv_autoencoder_forward.14} parent=11 // pred_fallthru
        _
      // Predicated region
      $region17: #{conv_autoencoder_forward.14} parent=11 // pred_check
        %p149 = pneg %p99
      $region18: #{conv_autoencoder_forward.14} parent=11 // pred_check_branch
        %151 = sbr.rel (%p149) target = $region20
      $region19: #{conv_autoencoder_forward.14} parent=11 // pred_region
        %p152 = scmp.lt.s32.totalorder %s19, 0
        %s153 = scalar_select %p152, %s19, 0
        %s154 = scalar_lea.vmem %s2, %s153
      $region20: #{conv_autoencoder_forward.14} parent=11 // pred_fallthru
        _
    $region12: #{conv_autoencoder_forward.14} parent=5 // pred_fallthru
      _
    %p155 = scmp.lt.s32.totalorder %s9, 2
    // Predicated region
    $region21: #{conv_autoencoder_forward.14} parent=5 // pred_check
      %p156 = pneg %p155
    $region22: #{conv_autoencoder_forward.14} parent=5 // pred_check_branch
      %158 = sbr.rel (%p156) target = $region24
    $region23: #{conv_autoencoder_forward.14} parent=5 // pred_region
      // Predicated region
      $region25: #{conv_autoencoder_forward.14} parent=23 // pred_check
        %p159 = pneg %p41
      $region26: #{conv_autoencoder_forward.14} parent=23 // pred_check_branch
        %161 = sbr.rel (%p159) target = $region28
      $region27: #{conv_autoencoder_forward.14} parent=23 // pred_region
        %s162 = smul.u32 8, %s16
        %p163 = scmp.lt.s32.totalorder %s162, 15
        %s164 = scalar_select %p163, %s162, 15
        %s165 = smul.addr %s164, 4
        %s166 = smul.addr %s165, 4
        %s167 = scalar_lea.vmem %s0, %s166
        %s168 = smul.u32 8, %s16
      $region28: #{conv_autoencoder_forward.14} parent=23 // pred_fallthru
        _
    $region24: #{conv_autoencoder_forward.14} parent=5 // pred_fallthru
      _
    %p169 = scmp.le.s32.totalorder 1, %s9
    %p170 = scmp.lt.s32.totalorder %s9, 3
    %p171 = pnand %p169, %p170
    %p172 = pneg %p171
    // Predicated region
    $region29: #{conv_autoencoder_forward.14} parent=5 // pred_check
      _
    $region30: #{conv_autoencoder_forward.14} parent=5 // pred_check_branch
      %174 = sbr.rel (%p171) target = $region32
    $region31: #{conv_autoencoder_forward.14} parent=5 // pred_region
      %s175 = ssub.s32 %s9, 1
      %s176 = smul.u32 8, %s18
      %p177 = scmp.lt.s32.totalorder %s176, 15
      %s178 = scalar_select %p177, %s176, 15
      %s179 = smul.addr %s178, 4
      %s180 = smul.addr %s179, 4
      %s181 = scalar_lea.vmem %s0, %s180
      %p182 = pneg %p47
      %p183 = pneg %p44
      %p184 = scmp.lt.s32.totalorder %s19, 0
      %s185 = scalar_select %p184, %s19, 0
      %s186 = smul.addr %s185, 4
      %s187 = scalar_lea.vmem %s1, %s186
      %p188 = pneg %p73
      %p189 = pneg %p70
      %p190 = scmp.lt.s32.totalorder %s19, 0
      %s191 = scalar_select %p190, %s19, 0
      %s192 = scalar_lea.vmem %s2, %s191
      %p193 = pneg %p99
      %p194 = pneg %p96
      %p195 = pneg %p127
      %p196 = pneg %p124
      %s197 = smul.u32 8, %s18
      %p198 = scmp.lt.s32.totalorder %s197, 15
      %s199 = scalar_select %p198, %s197, 15
      %p200 = scmp.lt.s32.totalorder %s19, 0
      %s201 = scalar_select %p200, %s19, 0
      %s202 = sadd.s32 %s201, %s199
      %s203 = smul.addr %s202, 4
      %s204 = scalar_lea.vmem %s3, %s203
      %s205 = smul.u32 8, %s18
      %p206 = scmp.lt.s32.totalorder %s205, 15
      %s207 = scalar_select %p206, %s205, 15
      %s208 = smul.addr %s207, 4
      %s209 = smul.addr %s208, 4
      %s210 = scalar_lea.vmem %s0, %s209
      %s211 = smul.u32 8, %s18
      %p212 = scmp.lt.s32.totalorder %s19, 0
      %s213 = scalar_select %p212, %s19, 0
      %s214 = smul.addr %s213, 4
      %s215 = scalar_lea.vmem %s1, %s214
      %p216 = scmp.lt.s32.totalorder %s19, 0
      %s217 = scalar_select %p216, %s19, 0
      %s218 = scalar_lea.vmem %s2, %s217
      %s219 = smul.u32 8, %s18
      %p220 = scmp.lt.s32.totalorder %s219, 15
      %s221 = scalar_select %p220, %s219, 15
      %p222 = scmp.lt.s32.totalorder %s19, 0
      %s223 = scalar_select %p222, %s19, 0
      %s224 = sadd.s32 %s223, %s221
      %s225 = smul.addr %s224, 4
      %s226 = scalar_lea.vmem %s3, %s225
      %s227 = smul.u32 8, %s18
      %v229 = vld [vmem:[%s210] sm:$0xff]
      %v230 = vld [vmem:[%s210 + $0x8] sm:$0xff]
      %v231 = vld [vmem:[%s210 + $0x10] sm:$0xff]
      %v232 = vld [vmem:[%s210 + $0x18] sm:$0xff]
      %v233 = vld [vmem:[%s210 + $0x20] sm:$0xff]
      %v234 = vld [vmem:[%s210 + $0x28] sm:$0xff]
      %v235 = vld [vmem:[%s210 + $0x30] sm:$0xff]
      %v236 = vld [vmem:[%s210 + $0x38] sm:$0xff]
      %v237 = vld [vmem:[%s210 + $0x40] sm:$0xff]
      %v238 = vld [vmem:[%s210 + $0x48] sm:$0xff]
      %v239 = vld [vmem:[%s210 + $0x50] sm:$0xff]
      %v240 = vld [vmem:[%s210 + $0x58] sm:$0xff]
      %v241 = vld [vmem:[%s210 + $0x60] sm:$0xff]
      %v242 = vld [vmem:[%s210 + $0x68] sm:$0xff]
      %v243 = vld [vmem:[%s210 + $0x70] sm:$0xff]
      %v244 = vld [vmem:[%s210 + $0x78] sm:$0xff]
      %v245 = vld [vmem:[%s215] sm:$0xf]
      %v246 = vld [vmem:[%s215 + $0x4] sm:$0xf]
      %v247 = vld [vmem:[%s215 + $0x8] sm:$0xf]
      %v248 = vld [vmem:[%s215 + $0xc] sm:$0xf]
      %v249 = vld [vmem:[%s215 + $0x10] sm:$0xf]
      %v250 = vld [vmem:[%s215 + $0x14] sm:$0xf]
      %v251 = vld [vmem:[%s215 + $0x18] sm:$0xf]
      %v252 = vld [vmem:[%s215 + $0x1c] sm:$0xf]
      %v253 = vld [vmem:[%s215 + $0x20] sm:$0xf]
      %v254 = vld [vmem:[%s215 + $0x24] sm:$0xf]
      %v255 = vld [vmem:[%s215 + $0x28] sm:$0xf]
      %v256 = vld [vmem:[%s215 + $0x2c] sm:$0xf]
      %v257 = vld [vmem:[%s215 + $0x30] sm:$0xf]
      %v258 = vld [vmem:[%s215 + $0x34] sm:$0xf]
      %v259 = vld [vmem:[%s215 + $0x38] sm:$0xf]
      %v260 = vld [vmem:[%s215 + $0x3c] sm:$0xf]
      %v261 = vld [vmem:[%s215 + $0x40] sm:$0xf]
      %v262 = vld [vmem:[%s215 + $0x44] sm:$0xf]
      %v263 = vld [vmem:[%s215 + $0x48] sm:$0xf]
      %v264 = vld [vmem:[%s215 + $0x4c] sm:$0xf]
      %v265 = vld [vmem:[%s215 + $0x50] sm:$0xf]
      %v266 = vld [vmem:[%s215 + $0x54] sm:$0xf]
      %v267 = vld [vmem:[%s215 + $0x58] sm:$0xf]
      %v268 = vld [vmem:[%s215 + $0x5c] sm:$0xf]
      %v269 = vld [vmem:[%s215 + $0x60] sm:$0xf]
      %v270 = vld [vmem:[%s215 + $0x64] sm:$0xf]
      %v271 = vld [vmem:[%s215 + $0x68] sm:$0xf]
      %v272 = vld [vmem:[%s215 + $0x6c] sm:$0xf]
      %v273 = vld [vmem:[%s215 + $0x70] sm:$0xf]
      %v274 = vld [vmem:[%s215 + $0x74] sm:$0xf]
      %v275 = vld [vmem:[%s215 + $0x78] sm:$0xf]
      %v276 = vld [vmem:[%s215 + $0x7c] sm:$0xf]
      %v277 = vld [vmem:[%s215 + $0x80] sm:$0xf]
      %v278 = vld [vmem:[%s215 + $0x84] sm:$0xf]
      %v279 = vld [vmem:[%s215 + $0x88] sm:$0xf]
      %v280 = vld [vmem:[%s215 + $0x8c] sm:$0xf]
      %v281 = vld [vmem:[%s215 + $0x90] sm:$0xf]
      %v282 = vld [vmem:[%s215 + $0x94] sm:$0xf]
      %v283 = vld [vmem:[%s215 + $0x98] sm:$0xf]
      %v284 = vld [vmem:[%s215 + $0x9c] sm:$0xf]
      %v285 = vld [vmem:[%s215 + $0xa0] sm:$0xf]
      %v286 = vld [vmem:[%s215 + $0xa4] sm:$0xf]
      %v287 = vld [vmem:[%s215 + $0xa8] sm:$0xf]
      %v288 = vld [vmem:[%s215 + $0xac] sm:$0xf]
      %v289 = vld [vmem:[%s215 + $0xb0] sm:$0xf]
      %v290 = vld [vmem:[%s215 + $0xb4] sm:$0xf]
      %v291 = vld [vmem:[%s215 + $0xb8] sm:$0xf]
      %v292 = vld [vmem:[%s215 + $0xbc] sm:$0xf]
      %v293 = vld [vmem:[%s215 + $0xc0] sm:$0xf]
      %v294 = vld [vmem:[%s215 + $0xc4] sm:$0xf]
      %v295 = vld [vmem:[%s215 + $0xc8] sm:$0xf]
      %v296 = vld [vmem:[%s215 + $0xcc] sm:$0xf]
      %v297 = vld [vmem:[%s215 + $0xd0] sm:$0xf]
      %v298 = vld [vmem:[%s215 + $0xd4] sm:$0xf]
      %v299 = vld [vmem:[%s215 + $0xd8] sm:$0xf]
      %v300 = vld [vmem:[%s215 + $0xdc] sm:$0xf]
      %v301 = vld [vmem:[%s215 + $0xe0] sm:$0xf]
      %v302 = vld [vmem:[%s215 + $0xe4] sm:$0xf]
      %v303 = vld [vmem:[%s215 + $0xe8] sm:$0xf]
      %v304 = vld [vmem:[%s215 + $0xec] sm:$0xf]
      %v305 = vld [vmem:[%s215 + $0xf0] sm:$0xf]
      %v306 = vld [vmem:[%s215 + $0xf4] sm:$0xf]
      %v307 = vld [vmem:[%s215 + $0xf8] sm:$0xf]
      %v308 = vld [vmem:[%s215 + $0xfc] sm:$0xf]
      %v309 = vld [vmem:[%s218] sm:$0x1]
      %v311 = vlaneseq
      %v312 = vshrl.u32 %v311, 7
      %v313 = vsub.s32 0, %v312
      %v314 = vrot.slane %v309, %v313
      %v332 = vunpack.c.l.b16 %v229
      %v333 = vunpack.c.h.b16 %v229
      %v334 = vunpack.c.l.b16 %v230
      %v335 = vunpack.c.h.b16 %v230
      %v336 = vunpack.c.l.b16 %v231
      %v337 = vunpack.c.h.b16 %v231
      %v338 = vunpack.c.l.b16 %v232
      %v339 = vunpack.c.h.b16 %v232
      %v340 = vunpack.c.l.b16 %v233
      %v341 = vunpack.c.h.b16 %v233
      %v342 = vunpack.c.l.b16 %v234
      %v343 = vunpack.c.h.b16 %v234
      %v344 = vunpack.c.l.b16 %v235
      %v345 = vunpack.c.h.b16 %v235
      %v346 = vunpack.c.l.b16 %v236
      %v347 = vunpack.c.h.b16 %v236
      %v348 = vunpack.c.l.b16 %v237
      %v349 = vunpack.c.h.b16 %v237
      %v350 = vunpack.c.l.b16 %v238
      %v351 = vunpack.c.h.b16 %v238
      %v352 = vunpack.c.l.b16 %v239
      %v353 = vunpack.c.h.b16 %v239
      %v354 = vunpack.c.l.b16 %v240
      %v355 = vunpack.c.h.b16 %v240
      %v356 = vunpack.c.l.b16 %v241
      %v357 = vunpack.c.h.b16 %v241
      %v358 = vunpack.c.l.b16 %v242
      %v359 = vunpack.c.h.b16 %v242
      %v360 = vunpack.c.l.b16 %v243
      %v361 = vunpack.c.h.b16 %v243
      %v362 = vunpack.c.l.b16 %v244
      %v363 = vunpack.c.h.b16 %v244
      %v364 = vpack.c.b16 %v336, %v332
      %v365 = vpack.c.b16 %v337, %v333
      %v366 = vpack.c.b16 %v338, %v334
      %v367 = vpack.c.b16 %v339, %v335
      %v368 = vpack.c.b16 %v344, %v340
      %v369 = vpack.c.b16 %v345, %v341
      %v370 = vpack.c.b16 %v346, %v342
      %v371 = vpack.c.b16 %v347, %v343
      %v372 = vpack.c.b16 %v352, %v348
      %v373 = vpack.c.b16 %v353, %v349
      %v374 = vpack.c.b16 %v354, %v350
      %v375 = vpack.c.b16 %v355, %v351
      %v376 = vpack.c.b16 %v360, %v356
      %v377 = vpack.c.b16 %v361, %v357
      %v378 = vpack.c.b16 %v362, %v358
      %v379 = vpack.c.b16 %v363, %v359
      %v460 = vunpack.c.l.b16 %v245
      %v461 = vunpack.c.l.b16 %v246
      %v462 = vunpack.c.l.b16 %v247
      %v463 = vunpack.c.l.b16 %v248
      %v464 = vunpack.c.l.b16 %v249
      %v465 = vunpack.c.l.b16 %v250
      %v466 = vunpack.c.l.b16 %v251
      %v467 = vunpack.c.l.b16 %v252
      %v468 = vunpack.c.l.b16 %v253
      %v469 = vunpack.c.l.b16 %v254
      %v470 = vunpack.c.l.b16 %v255
      %v471 = vunpack.c.l.b16 %v256
      %v472 = vunpack.c.l.b16 %v257
      %v473 = vunpack.c.l.b16 %v258
      %v474 = vunpack.c.l.b16 %v259
      %v475 = vunpack.c.l.b16 %v260
      %v476 = vunpack.c.l.b16 %v261
      %v477 = vunpack.c.l.b16 %v262
      %v478 = vunpack.c.l.b16 %v263
      %v479 = vunpack.c.l.b16 %v264
      %v480 = vunpack.c.l.b16 %v265
      %v481 = vunpack.c.l.b16 %v266
      %v482 = vunpack.c.l.b16 %v267
      %v483 = vunpack.c.l.b16 %v268
      %v484 = vunpack.c.l.b16 %v269
      %v485 = vunpack.c.l.b16 %v270
      %v486 = vunpack.c.l.b16 %v271
      %v487 = vunpack.c.l.b16 %v272
      %v488 = vunpack.c.l.b16 %v273
      %v489 = vunpack.c.l.b16 %v274
      %v490 = vunpack.c.l.b16 %v275
      %v491 = vunpack.c.l.b16 %v276
      %v492 = vunpack.c.l.b16 %v277
      %v493 = vunpack.c.l.b16 %v278
      %v494 = vunpack.c.l.b16 %v279
      %v495 = vunpack.c.l.b16 %v280
      %v496 = vunpack.c.l.b16 %v281
      %v497 = vunpack.c.l.b16 %v282
      %v498 = vunpack.c.l.b16 %v283
      %v499 = vunpack.c.l.b16 %v284
      %v500 = vunpack.c.l.b16 %v285
      %v501 = vunpack.c.l.b16 %v286
      %v502 = vunpack.c.l.b16 %v287
      %v503 = vunpack.c.l.b16 %v288
      %v504 = vunpack.c.l.b16 %v289
      %v505 = vunpack.c.l.b16 %v290
      %v506 = vunpack.c.l.b16 %v291
      %v507 = vunpack.c.l.b16 %v292
      %v508 = vunpack.c.l.b16 %v293
      %v509 = vunpack.c.l.b16 %v294
      %v510 = vunpack.c.l.b16 %v295
      %v511 = vunpack.c.l.b16 %v296
      %v512 = vunpack.c.l.b16 %v297
      %v513 = vunpack.c.l.b16 %v298
      %v514 = vunpack.c.l.b16 %v299
      %v515 = vunpack.c.l.b16 %v300
      %v516 = vunpack.c.l.b16 %v301
      %v517 = vunpack.c.l.b16 %v302
      %v518 = vunpack.c.l.b16 %v303
      %v519 = vunpack.c.l.b16 %v304
      %v520 = vunpack.c.l.b16 %v305
      %v521 = vunpack.c.l.b16 %v306
      %v522 = vunpack.c.l.b16 %v307
      %v523 = vunpack.c.l.b16 %v308
      %v524 = vpack.c.b16 %v461, %v460
      %v525 = vpack.c.b16 %v463, %v462
      %v526 = vpack.c.b16 %v465, %v464
      %v527 = vpack.c.b16 %v467, %v466
      %v528 = vpack.c.b16 %v469, %v468
      %v529 = vpack.c.b16 %v471, %v470
      %v530 = vpack.c.b16 %v473, %v472
      %v531 = vpack.c.b16 %v475, %v474
      %v532 = vpack.c.b16 %v477, %v476
      %v533 = vpack.c.b16 %v479, %v478
      %v534 = vpack.c.b16 %v481, %v480
      %v535 = vpack.c.b16 %v483, %v482
      %v536 = vpack.c.b16 %v485, %v484
      %v537 = vpack.c.b16 %v487, %v486
      %v538 = vpack.c.b16 %v489, %v488
      %v539 = vpack.c.b16 %v491, %v490
      %v540 = vpack.c.b16 %v493, %v492
      %v541 = vpack.c.b16 %v495, %v494
      %v542 = vpack.c.b16 %v497, %v496
      %v543 = vpack.c.b16 %v499, %v498
      %v544 = vpack.c.b16 %v501, %v500
      %v545 = vpack.c.b16 %v503, %v502
      %v546 = vpack.c.b16 %v505, %v504
      %v547 = vpack.c.b16 %v507, %v506
      %v548 = vpack.c.b16 %v509, %v508
      %v549 = vpack.c.b16 %v511, %v510
      %v550 = vpack.c.b16 %v513, %v512
      %v551 = vpack.c.b16 %v515, %v514
      %v552 = vpack.c.b16 %v517, %v516
      %v553 = vpack.c.b16 %v519, %v518
      %v554 = vpack.c.b16 %v521, %v520
      %v555 = vpack.c.b16 %v523, %v522
      %588 = vmatprep.subr.bf16.mxu0 0
      %589 = vmatpush1.bf16.msra.mxu0 %v524
      %590 = vmatprep.subr.bf16.mxu0 0
      %591 = vmatpush1.bf16.msra.mxu0 %v525
      %592 = vmatprep.subr.bf16.mxu0 0
      %593 = vmatpush1.bf16.msra.mxu0 %v526
      %594 = vmatprep.subr.bf16.mxu0 0
      %595 = vmatpush1.bf16.msra.mxu0 %v527
      %596 = vmatprep.subr.bf16.mxu0 0
      %597 = vmatpush1.bf16.msra.mxu0 %v528
      %598 = vmatprep.subr.bf16.mxu0 0
      %599 = vmatpush1.bf16.msra.mxu0 %v529
      %600 = vmatprep.subr.bf16.mxu0 0
      %601 = vmatpush1.bf16.msra.mxu0 %v530
      %602 = vmatprep.subr.bf16.mxu0 0
      %603 = vmatpush1.bf16.msra.mxu0 %v531
      %604 = vmatprep.subr.bf16.mxu0 0
      %605 = vmatpush1.bf16.msra.mxu0 %v532
      %606 = vmatprep.subr.bf16.mxu0 0
      %607 = vmatpush1.bf16.msra.mxu0 %v533
      %608 = vmatprep.subr.bf16.mxu0 0
      %609 = vmatpush1.bf16.msra.mxu0 %v534
      %610 = vmatprep.subr.bf16.mxu0 0
      %611 = vmatpush1.bf16.msra.mxu0 %v535
      %612 = vmatprep.subr.bf16.mxu0 0
      %613 = vmatpush1.bf16.msra.mxu0 %v536
      %614 = vmatprep.subr.bf16.mxu0 0
      %615 = vmatpush1.bf16.msra.mxu0 %v537
      %616 = vmatprep.subr.bf16.mxu0 0
      %617 = vmatpush1.bf16.msra.mxu0 %v538
      %618 = vmatprep.subr.bf16.mxu0 0
      %619 = vmatpush1.bf16.msra.mxu0 %v539
      %620 = vmatprep.mubr.bf16.mxu0 %v365
      %621 = vmatmul.mubr.bf16.gmra.mrb[0].mxu0 %v364
      %v622 = vpop.f32.mrb[0].mxu0
      %v623 = vadd.f32 %v314, %v622
      %v624 = vpop.f32.mrb[0].mxu0
      %v625 = vpop.f32.mrb[0].mxu0
      %v626 = vadd.f32 %v314, %v625
      %v627 = vpop.f32.mrb[0].mxu0
      %628 = vmatprep.mubr.bf16.mxu0 %v369
      %629 = vmatmul.mubr.bf16.gmra.mrb[0].mxu0 %v368
      %v630 = vpop.f32.mrb[0].mxu0
      %v631 = vadd.f32 %v314, %v630
      %v632 = vpop.f32.mrb[0].mxu0
      %v633 = vpop.f32.mrb[0].mxu0
      %v634 = vadd.f32 %v314, %v633
      %v635 = vpop.f32.mrb[0].mxu0
      %636 = vmatprep.mubr.bf16.mxu0 %v373
      %637 = vmatmul.mubr.bf16.gmra.mrb[0].mxu0 %v372
      %v638 = vpop.f32.mrb[0].mxu0
      %v639 = vadd.f32 %v314, %v638
      %v640 = vpop.f32.mrb[0].mxu0
      %v641 = vpop.f32.mrb[0].mxu0
      %v642 = vadd.f32 %v314, %v641
      %v643 = vpop.f32.mrb[0].mxu0
      %644 = vmatprep.mubr.bf16.mxu0 %v377
      %645 = vmatmul.mubr.bf16.gmra.mrb[0].mxu0 %v376
      %v646 = vpop.f32.mrb[0].mxu0
      %v647 = vadd.f32 %v314, %v646
      %v648 = vpop.f32.mrb[0].mxu0
      %v649 = vpop.f32.mrb[0].mxu0
      %v650 = vadd.f32 %v314, %v649
      %v651 = vpop.f32.mrb[0].mxu0
      %652 = vdwg.mxu0
      %653 = vmatprep.subr.bf16.mxu0 0
      %654 = vmatpush1.bf16.msra.mxu0 %v540
      %655 = vmatprep.subr.bf16.mxu0 0
      %656 = vmatpush1.bf16.msra.mxu0 %v541
      %657 = vmatprep.subr.bf16.mxu0 0
      %658 = vmatpush1.bf16.msra.mxu0 %v542
      %659 = vmatprep.subr.bf16.mxu0 0
      %660 = vmatpush1.bf16.msra.mxu0 %v543
      %661 = vmatprep.subr.bf16.mxu0 0
      %662 = vmatpush1.bf16.msra.mxu0 %v544
      %663 = vmatprep.subr.bf16.mxu0 0
      %664 = vmatpush1.bf16.msra.mxu0 %v545
      %665 = vmatprep.subr.bf16.mxu0 0
      %666 = vmatpush1.bf16.msra.mxu0 %v546
      %667 = vmatprep.subr.bf16.mxu0 0
      %668 = vmatpush1.bf16.msra.mxu0 %v547
      %669 = vmatprep.subr.bf16.mxu0 0
      %670 = vmatpush1.bf16.msra.mxu0 %v548
      %671 = vmatprep.subr.bf16.mxu0 0
      %672 = vmatpush1.bf16.msra.mxu0 %v549
      %673 = vmatprep.subr.bf16.mxu0 0
      %674 = vmatpush1.bf16.msra.mxu0 %v550
      %675 = vmatprep.subr.bf16.mxu0 0
      %676 = vmatpush1.bf16.msra.mxu0 %v551
      %677 = vmatprep.subr.bf16.mxu0 0
      %678 = vmatpush1.bf16.msra.mxu0 %v552
      %679 = vmatprep.subr.bf16.mxu0 0
      %680 = vmatpush1.bf16.msra.mxu0 %v553
      %681 = vmatprep.subr.bf16.mxu0 0
      %682 = vmatpush1.bf16.msra.mxu0 %v554
      %683 = vmatprep.subr.bf16.mxu0 0
      %684 = vmatpush1.bf16.msra.mxu0 %v555
      %685 = vmatprep.mubr.bf16.mxu0 %v367
      %686 = vmatmul.mubr.bf16.gmra.mrb[0].mxu0 %v366
      %v687 = vpop.f32.mrb[0].mxu0
      %v688 = vadd.f32 %v623, %v687
      %v689 = vpop.f32.mrb[0].mxu0
      %v690 = vpop.f32.mrb[0].mxu0
      %v691 = vadd.f32 %v626, %v690
      %v692 = vpop.f32.mrb[0].mxu0
      %693 = vmatprep.mubr.bf16.mxu0 %v371
      %694 = vmatmul.mubr.bf16.gmra.mrb[0].mxu0 %v370
      %v695 = vpop.f32.mrb[0].mxu0
      %v696 = vadd.f32 %v631, %v695
      %v697 = vpop.f32.mrb[0].mxu0
      %v698 = vpop.f32.mrb[0].mxu0
      %v699 = vadd.f32 %v634, %v698
      %v700 = vpop.f32.mrb[0].mxu0
      %701 = vmatprep.mubr.bf16.mxu0 %v375
      %702 = vmatmul.mubr.bf16.gmra.mrb[0].mxu0 %v374
      %v703 = vpop.f32.mrb[0].mxu0
      %v704 = vadd.f32 %v639, %v703
      %v705 = vpop.f32.mrb[0].mxu0
      %v706 = vpop.f32.mrb[0].mxu0
      %v707 = vadd.f32 %v642, %v706
      %v708 = vpop.f32.mrb[0].mxu0
      %709 = vmatprep.mubr.bf16.mxu0 %v379
      %710 = vmatmul.mubr.bf16.gmra.mrb[0].mxu0 %v378
      %v711 = vpop.f32.mrb[0].mxu0
      %v712 = vadd.f32 %v647, %v711
      %v713 = vpop.f32.mrb[0].mxu0
      %v714 = vpop.f32.mrb[0].mxu0
      %v715 = vadd.f32 %v650, %v714
      %v716 = vpop.f32.mrb[0].mxu0
      %717 = vdwg.mxu0
      %v718 = vmax.f32 %v688, 0.0
      %v719 = vmax.f32 %v691, 0.0
      %v720 = vmax.f32 %v696, 0.0
      %v721 = vmax.f32 %v699, 0.0
      %v722 = vmax.f32 %v704, 0.0
      %v723 = vmax.f32 %v707, 0.0
      %v724 = vmax.f32 %v712, 0.0
      %v725 = vmax.f32 %v715, 0.0
      %v726 = vpack.c.bf16 %v719, %v718
      %v727 = vpack.c.bf16 %v721, %v720
      %v728 = vpack.c.bf16 %v723, %v722
      %v729 = vpack.c.bf16 %v725, %v724
      %v734 = vunpack.c.l.b16 %v726
      %v735 = vunpack.c.h.b16 %v726
      %v736 = vunpack.c.l.b16 %v727
      %v737 = vunpack.c.h.b16 %v727
      %v738 = vunpack.c.l.b16 %v728
      %v739 = vunpack.c.h.b16 %v728
      %v740 = vunpack.c.l.b16 %v729
      %v741 = vunpack.c.h.b16 %v729
      %v742 = vpack.c.b16 %v734, %v734
      %v743 = vpack.c.b16 %v735, %v735
      %v744 = vpack.c.b16 %v736, %v736
      %v745 = vpack.c.b16 %v737, %v737
      %v746 = vpack.c.b16 %v738, %v738
      %v747 = vpack.c.b16 %v739, %v739
      %v748 = vpack.c.b16 %v740, %v740
      %v749 = vpack.c.b16 %v741, %v741
      %758 = vst [vmem:[%s226] sm:$0xf] %v742
      %759 = vst [vmem:[%s226 + $0x4] sm:$0xf] %v743
      %760 = vst [vmem:[%s226 + $0x8] sm:$0xf] %v744
      %761 = vst [vmem:[%s226 + $0xc] sm:$0xf] %v745
      %762 = vst [vmem:[%s226 + $0x10] sm:$0xf] %v746
      %763 = vst [vmem:[%s226 + $0x14] sm:$0xf] %v747
      %764 = vst [vmem:[%s226 + $0x18] sm:$0xf] %v748
      %765 = vst [vmem:[%s226 + $0x1c] sm:$0xf] %v749
      %s766 = smul.u32 8, %s18
      %p767 = scmp.lt.s32.totalorder %s766, 15
      %s768 = scalar_select %p767, %s766, 15
      %p769 = scmp.lt.s32.totalorder %s19, 0
      %s770 = scalar_select %p769, %s19, 0
      %s771 = sadd.s32 %s770, %s768
      %s772 = smul.addr %s771, 4
      %s773 = scalar_lea.vmem %s3, %s772
      // Predicated region
      $region33: #{conv_autoencoder_forward.14} parent=31 // pred_check
        %p774 = pneg %p124
      $region34: #{conv_autoencoder_forward.14} parent=31 // pred_check_branch
        %776 = sbr.rel (%p774) target = $region36
      $region35: #{conv_autoencoder_forward.14} parent=31 // pred_region
        %s777 = smul.u32 8, %s18
      $region36: #{conv_autoencoder_forward.14} parent=31 // pred_fallthru
        _
    $region32: #{conv_autoencoder_forward.14} parent=5 // pred_fallthru
      _
    %p778 = scmp.le.s32.totalorder 2, %s9
    // Predicated region
    $region37: #{conv_autoencoder_forward.14} parent=5 // pred_check
      %p779 = pneg %p778
    $region38: #{conv_autoencoder_forward.14} parent=5 // pred_check_branch
      %781 = sbr.rel (%p779) target = $region40
    $region39: #{conv_autoencoder_forward.14} parent=5 // pred_region
      %s782 = ssub.s32 %s9, 2
      // Predicated region
      $region41: #{conv_autoencoder_forward.14} parent=39 // pred_check
        %p783 = pneg %p130
      $region42: #{conv_autoencoder_forward.14} parent=39 // pred_check_branch
        %785 = sbr.rel (%p783) target = $region44
      $region43: #{conv_autoencoder_forward.14} parent=39 // pred_region
        %s786 = smul.u32 8, %s20
        %p787 = scmp.lt.s32.totalorder %s786, 15
        %s788 = scalar_select %p787, %s786, 15
        %p789 = scmp.lt.s32.totalorder %s21, 0
        %s790 = scalar_select %p789, %s21, 0
        %s791 = sadd.s32 %s790, %s788
        %s792 = smul.addr %s791, 4
        %s793 = scalar_lea.vmem %s3, %s792
      $region44: #{conv_autoencoder_forward.14} parent=39 // pred_fallthru
        _
    $region40: #{conv_autoencoder_forward.14} parent=5 // pred_fallthru
      _
  $region6: #{conv_autoencoder_forward.14} parent=0 // loop_footer
    %s13 = sadd.s32 1, %s9
  $region7: #{conv_autoencoder_forward.14} parent=0 // loop_footer_branch
    %8 = sbr.rel target = $region3
  $region8: #{conv_autoencoder_forward.14} parent=0 // loop_exit
    _

// kernel: conv_autoencoder_forward.15
$region0: #{conv_autoencoder_forward.15}
  #allocation0 [shape = 'u32[]', space=smem, size = 0x4, offset = 0x4, fixed_abs, tag = 'smem constant byte address 0x4 - core index']
  #allocation1 [shape = 'u32[144,128]{1,0:T(1,128)}', space=vmem, size = 0x12000, scoped, tag = 'internal scratch']
  %s0 = inlined_call_operand.vmem [shape: bf16[32,1024], index: 0, kind: input, shape index: {}]
  %s1 = inlined_call_operand.vmem [shape: bf16[1024,128], index: 1, kind: input, shape index: {}]
  %s2 = inlined_call_operand.vmem [shape: f32[1,128], index: 2, kind: input, shape index: {}]
  %s3 = inlined_call_operand.vmem [shape: bf16[32,128], index: 3, kind: output, shape index: {}]
  %s4 = sld [smem:[#allocation0]]
  $region45: #{conv_autoencoder_forward.15} parent=0
    _
  %s6 = ssub.s32 1, %s4
  %s7 = scalar_select 0, %s6, %s4
  loop: start=0, step=1, limit=4
  $region2: #{conv_autoencoder_forward.15} parent=0 // loop_pre_header
    _
  $region3: #{conv_autoencoder_forward.15} parent=0 // loop_header
    %s9 = sphi 0, %s13
    %p10 = scmp.ge.s32.totalorder %s9, 4
    %s16 = sphi 0, %s28
    %s17 = sphi 0, %s24
    %s18 = sphi 0, %s16
    %s19 = sphi 0, %s17
    %s20 = sphi 0, %s18
    %s21 = sphi 0, %s19
    %s31 = sphi 0, %s33
    %s34 = sphi 0, %s31
    %s35 = sphi 0, %s34
    %s51 = sphi 0, %s35
    %s57 = sphi 0, %s59
    %s60 = sphi 0, %s57
    %s61 = sphi 0, %s60
    %s77 = sphi 0, %s61
    %s83 = sphi 0, %s85
    %s86 = sphi 0, %s83
    %s87 = sphi 0, %s86
    %s103 = sphi 0, %s87
    %s111 = sphi 0, %s113
    %s114 = sphi 0, %s111
    %s115 = sphi 0, %s114
    %s131 = sphi 0, %s115
  $region4: #{conv_autoencoder_forward.15} parent=0 // loop_header_branch
    %12 = sbr.rel (%p10) target = $region8
  $region5: #{conv_autoencoder_forward.15} parent=0 // loop_body
    %s14 = ssub.s32 %s9, 1
    %s15 = ssub.s32 %s9, 2
    %s22 = sadd.s32 1, %s17
    %p23 = scmp.ge.s32.totalorder %s22, 1
    %s24 = scalar_select %p23, 0, %s22
    %s25 = sadd.s32 1, %s16
    %s26 = scalar_select %p23, %s25, %s16
    %p27 = scmp.ge.s32.totalorder %s26, 2
    %s28 = scalar_select %p27, 0, %s26
    %s29 = ssub.s32 %s16, %s28
    %p30 = scmp.eq.s32.totalorder %s29, 0
    %s32 = sadd.s32 %s31, 1
    %s33 = scalar_select %p30, %s31, %s32
    %p36 = pneg %p30
    %p37 = scmp.eq.s32.totalorder %s9, 1
    %p38 = por %p36, %p37
    %p39 = scmp.ne.s32.totalorder %s31, %s34
    %p40 = scmp.eq.s32.totalorder %s9, 0
    %p41 = por %p39, %p40
    %p42 = scmp.ne.s32.totalorder %s31, %s34
    %p43 = scmp.eq.s32.totalorder %s14, 1
    %p44 = por %p42, %p43
    %p45 = scmp.ne.s32.totalorder %s34, %s35
    %p46 = scmp.eq.s32.totalorder %s14, 0
    %p47 = por %p45, %p46
    %p48 = scmp.ne.s32.totalorder %s34, %s35
    %p49 = scmp.eq.s32.totalorder %s15, 1
    %p50 = por %p48, %p49
    %p52 = scmp.ne.s32.totalorder %s35, %s51
    %p53 = scmp.eq.s32.totalorder %s15, 0
    %p54 = por %p52, %p53
    %s55 = ssub.s32 %s17, %s24
    %p56 = scmp.eq.s32.totalorder %s55, 0
    %s58 = sadd.s32 %s57, 1
    %s59 = scalar_select %p56, %s57, %s58
    %p62 = pneg %p56
    %p63 = scmp.eq.s32.totalorder %s9, 1
    %p64 = por %p62, %p63
    %p65 = scmp.ne.s32.totalorder %s57, %s60
    %p66 = scmp.eq.s32.totalorder %s9, 0
    %p67 = por %p65, %p66
    %p68 = scmp.ne.s32.totalorder %s57, %s60
    %p69 = scmp.eq.s32.totalorder %s14, 1
    %p70 = por %p68, %p69
    %p71 = scmp.ne.s32.totalorder %s60, %s61
    %p72 = scmp.eq.s32.totalorder %s14, 0
    %p73 = por %p71, %p72
    %p74 = scmp.ne.s32.totalorder %s60, %s61
    %p75 = scmp.eq.s32.totalorder %s15, 1
    %p76 = por %p74, %p75
    %p78 = scmp.ne.s32.totalorder %s61, %s77
    %p79 = scmp.eq.s32.totalorder %s15, 0
    %p80 = por %p78, %p79
    %s81 = ssub.s32 %s17, %s24
    %p82 = scmp.eq.s32.totalorder %s81, 0
    %s84 = sadd.s32 %s83, 1
    %s85 = scalar_select %p82, %s83, %s84
    %p88 = pneg %p82
    %p89 = scmp.eq.s32.totalorder %s9, 1
    %p90 = por %p88, %p89
    %p91 = scmp.ne.s32.totalorder %s83, %s86
    %p92 = scmp.eq.s32.totalorder %s9, 0
    %p93 = por %p91, %p92
    %p94 = scmp.ne.s32.totalorder %s83, %s86
    %p95 = scmp.eq.s32.totalorder %s14, 1
    %p96 = por %p94, %p95
    %p97 = scmp.ne.s32.totalorder %s86, %s87
    %p98 = scmp.eq.s32.totalorder %s14, 0
    %p99 = por %p97, %p98
    %p100 = scmp.ne.s32.totalorder %s86, %s87
    %p101 = scmp.eq.s32.totalorder %s15, 1
    %p102 = por %p100, %p101
    %p104 = scmp.ne.s32.totalorder %s87, %s103
    %p105 = scmp.eq.s32.totalorder %s15, 0
    %p106 = por %p104, %p105
    %s107 = ssub.s32 %s16, %s28
    %s108 = ssub.s32 %s17, %s24
    %s109 = sor.u32 %s107, %s108
    %p110 = scmp.eq.s32.totalorder %s109, 0
    %s112 = sadd.s32 %s111, 1
    %s113 = scalar_select %p110, %s111, %s112
    %p116 = pneg %p110
    %p117 = scmp.eq.s32.totalorder %s9, 1
    %p118 = por %p116, %p117
    %p119 = scmp.ne.s32.totalorder %s111, %s114
    %p120 = scmp.eq.s32.totalorder %s9, 0
    %p121 = por %p119, %p120
    %p122 = scmp.ne.s32.totalorder %s111, %s114
    %p123 = scmp.eq.s32.totalorder %s14, 1
    %p124 = por %p122, %p123
    %p125 = scmp.ne.s32.totalorder %s114, %s115
    %p126 = scmp.eq.s32.totalorder %s14, 0
    %p127 = por %p125, %p126
    %p128 = scmp.ne.s32.totalorder %s114, %s115
    %p129 = scmp.eq.s32.totalorder %s15, 1
    %p130 = por %p128, %p129
    %p132 = scmp.ne.s32.totalorder %s115, %s131
    %p133 = scmp.eq.s32.totalorder %s15, 0
    %p134 = por %p132, %p133
    %p135 = scmp.le.s32.totalorder 1, %s9
    %p136 = scmp.lt.s32.totalorder %s9, 3
    %p137 = pnand %p135, %p136
    %p138 = pneg %p137
    // Predicated region
    $region9: #{conv_autoencoder_forward.15} parent=5 // pred_check
      _
    $region10: #{conv_autoencoder_forward.15} parent=5 // pred_check_branch
      %140 = sbr.rel (%p137) target = $region12
    $region11: #{conv_autoencoder_forward.15} parent=5 // pred_region
      %s141 = ssub.s32 %s9, 1
      // Predicated region
      $region13: #{conv_autoencoder_forward.15} parent=11 // pred_check
        %p142 = pneg %p73
      $region14: #{conv_autoencoder_forward.15} parent=11 // pred_check_branch
        %144 = sbr.rel (%p142) target = $region16
      $region15: #{conv_autoencoder_forward.15} parent=11 // pred_region
        %p145 = scmp.lt.s32.totalorder %s19, 0
        %s146 = scalar_select %p145, %s19, 0
        %s147 = smul.addr %s146, 4
        %s148 = scalar_lea.vmem %s1, %s147
      $region16: #{conv_autoencoder_forward.15} parent=11 // pred_fallthru
        _
      // Predicated region
      $region17: #{conv_autoencoder_forward.15} parent=11 // pred_check
        %p149 = pneg %p99
      $region18: #{conv_autoencoder_forward.15} parent=11 // pred_check_branch
        %151 = sbr.rel (%p149) target = $region20
      $region19: #{conv_autoencoder_forward.15} parent=11 // pred_region
        %p152 = scmp.lt.s32.totalorder %s19, 0
        %s153 = scalar_select %p152, %s19, 0
        %s154 = scalar_lea.vmem %s2, %s153
      $region20: #{conv_autoencoder_forward.15} parent=11 // pred_fallthru
        _
    $region12: #{conv_autoencoder_forward.15} parent=5 // pred_fallthru
      _
    %p155 = scmp.lt.s32.totalorder %s9, 2
    // Predicated region
    $region21: #{conv_autoencoder_forward.15} parent=5 // pred_check
      %p156 = pneg %p155
    $region22: #{conv_autoencoder_forward.15} parent=5 // pred_check_branch
      %158 = sbr.rel (%p156) target = $region24
    $region23: #{conv_autoencoder_forward.15} parent=5 // pred_region
      // Predicated region
      $region25: #{conv_autoencoder_forward.15} parent=23 // pred_check
        %p159 = pneg %p41
      $region26: #{conv_autoencoder_forward.15} parent=23 // pred_check_branch
        %161 = sbr.rel (%p159) target = $region28
      $region27: #{conv_autoencoder_forward.15} parent=23 // pred_region
        %s162 = smul.u32 2, %s16
        %p163 = scmp.lt.s32.totalorder %s162, 3
        %s164 = scalar_select %p163, %s162, 3
        %s165 = smul.addr %s164, 8
        %s166 = smul.addr %s165, 4
        %s167 = scalar_lea.vmem %s0, %s166
        %s168 = smul.u32 2, %s16
      $region28: #{conv_autoencoder_forward.15} parent=23 // pred_fallthru
        _
    $region24: #{conv_autoencoder_forward.15} parent=5 // pred_fallthru
      _
    %p169 = scmp.le.s32.totalorder 1, %s9
    %p170 = scmp.lt.s32.totalorder %s9, 3
    %p171 = pnand %p169, %p170
    %p172 = pneg %p171
    // Predicated region
    $region29: #{conv_autoencoder_forward.15} parent=5 // pred_check
      _
    $region30: #{conv_autoencoder_forward.15} parent=5 // pred_check_branch
      %174 = sbr.rel (%p171) target = $region32
    $region31: #{conv_autoencoder_forward.15} parent=5 // pred_region
      %s175 = ssub.s32 %s9, 1
      %s176 = smul.u32 2, %s18
      %p177 = scmp.lt.s32.totalorder %s176, 3
      %s178 = scalar_select %p177, %s176, 3
      %s179 = smul.addr %s178, 8
      %s180 = smul.addr %s179, 4
      %s181 = scalar_lea.vmem %s0, %s180
      %p182 = pneg %p47
      %p183 = pneg %p44
      %p184 = scmp.lt.s32.totalorder %s19, 0
      %s185 = scalar_select %p184, %s19, 0
      %s186 = smul.addr %s185, 4
      %s187 = scalar_lea.vmem %s1, %s186
      %p188 = pneg %p73
      %p189 = pneg %p70
      %p190 = scmp.lt.s32.totalorder %s19, 0
      %s191 = scalar_select %p190, %s19, 0
      %s192 = scalar_lea.vmem %s2, %s191
      %p193 = pneg %p99
      %p194 = pneg %p96
      %p195 = pneg %p127
      %p196 = pneg %p124
      %s197 = smul.u32 2, %s18
      %p198 = scmp.lt.s32.totalorder %s197, 3
      %s199 = scalar_select %p198, %s197, 3
      %p200 = scmp.lt.s32.totalorder %s19, 0
      %s201 = scalar_select %p200, %s19, 0
      %s202 = sadd.s32 %s201, %s199
      %s203 = smul.addr %s202, 4
      %s204 = scalar_lea.vmem %s3, %s203
      %s205 = smul.u32 2, %s18
      %p206 = scmp.lt.s32.totalorder %s205, 3
      %s207 = scalar_select %p206, %s205, 3
      %s208 = smul.addr %s207, 8
      %s209 = smul.addr %s208, 4
      %s210 = scalar_lea.vmem %s0, %s209
      %s211 = smul.u32 2, %s18
      %p212 = scmp.lt.s32.totalorder %s19, 0
      %s213 = scalar_select %p212, %s19, 0
      %s214 = smul.addr %s213, 4
      %s215 = scalar_lea.vmem %s1, %s214
      %p216 = scmp.lt.s32.totalorder %s19, 0
      %s217 = scalar_select %p216, %s19, 0
      %s218 = scalar_lea.vmem %s2, %s217
      %s219 = smul.u32 2, %s18
      %p220 = scmp.lt.s32.totalorder %s219, 3
      %s221 = scalar_select %p220, %s219, 3
      %p222 = scmp.lt.s32.totalorder %s19, 0
      %s223 = scalar_select %p222, %s19, 0
      %s224 = sadd.s32 %s223, %s221
      %s225 = smul.addr %s224, 4
      %s226 = scalar_lea.vmem %s3, %s225
      %s227 = smul.u32 2, %s18
      %v229 = vld [vmem:[%s210] sm:$0xff]
      %v230 = vld [vmem:[%s210 + $0x8] sm:$0xff]
      %v231 = vld [vmem:[%s210 + $0x10] sm:$0xff]
      %v232 = vld [vmem:[%s210 + $0x18] sm:$0xff]
      %v233 = vld [vmem:[%s210 + $0x20] sm:$0xff]
      %v234 = vld [vmem:[%s210 + $0x28] sm:$0xff]
      %v235 = vld [vmem:[%s210 + $0x30] sm:$0xff]
      %v236 = vld [vmem:[%s210 + $0x38] sm:$0xff]
      %v237 = vld [vmem:[%s215] sm:$0xf]
      %v238 = vld [vmem:[%s215 + $0x4] sm:$0xf]
      %v239 = vld [vmem:[%s215 + $0x8] sm:$0xf]
      %v240 = vld [vmem:[%s215 + $0xc] sm:$0xf]
      %v241 = vld [vmem:[%s215 + $0x10] sm:$0xf]
      %v242 = vld [vmem:[%s215 + $0x14] sm:$0xf]
      %v243 = vld [vmem:[%s215 + $0x18] sm:$0xf]
      %v244 = vld [vmem:[%s215 + $0x1c] sm:$0xf]
      %v245 = vld [vmem:[%s215 + $0x20] sm:$0xf]
      %v246 = vld [vmem:[%s215 + $0x24] sm:$0xf]
      %v247 = vld [vmem:[%s215 + $0x28] sm:$0xf]
      %v248 = vld [vmem:[%s215 + $0x2c] sm:$0xf]
      %v249 = vld [vmem:[%s215 + $0x30] sm:$0xf]
      %v250 = vld [vmem:[%s215 + $0x34] sm:$0xf]
      %v251 = vld [vmem:[%s215 + $0x38] sm:$0xf]
      %v252 = vld [vmem:[%s215 + $0x3c] sm:$0xf]
      %v253 = vld [vmem:[%s215 + $0x40] sm:$0xf]
      %v254 = vld [vmem:[%s215 + $0x44] sm:$0xf]
      %v255 = vld [vmem:[%s215 + $0x48] sm:$0xf]
      %v256 = vld [vmem:[%s215 + $0x4c] sm:$0xf]
      %v257 = vld [vmem:[%s215 + $0x50] sm:$0xf]
      %v258 = vld [vmem:[%s215 + $0x54] sm:$0xf]
      %v259 = vld [vmem:[%s215 + $0x58] sm:$0xf]
      %v260 = vld [vmem:[%s215 + $0x5c] sm:$0xf]
      %v261 = vld [vmem:[%s215 + $0x60] sm:$0xf]
      %v262 = vld [vmem:[%s215 + $0x64] sm:$0xf]
      %v263 = vld [vmem:[%s215 + $0x68] sm:$0xf]
      %v264 = vld [vmem:[%s215 + $0x6c] sm:$0xf]
      %v265 = vld [vmem:[%s215 + $0x70] sm:$0xf]
      %v266 = vld [vmem:[%s215 + $0x74] sm:$0xf]
      %v267 = vld [vmem:[%s215 + $0x78] sm:$0xf]
      %v268 = vld [vmem:[%s215 + $0x7c] sm:$0xf]
      %v269 = vld [vmem:[%s215 + $0x80] sm:$0xf]
      %v270 = vld [vmem:[%s215 + $0x84] sm:$0xf]
      %v271 = vld [vmem:[%s215 + $0x88] sm:$0xf]
      %v272 = vld [vmem:[%s215 + $0x8c] sm:$0xf]
      %v273 = vld [vmem:[%s215 + $0x90] sm:$0xf]
      %v274 = vld [vmem:[%s215 + $0x94] sm:$0xf]
      %v275 = vld [vmem:[%s215 + $0x98] sm:$0xf]
      %v276 = vld [vmem:[%s215 + $0x9c] sm:$0xf]
      %v277 = vld [vmem:[%s215 + $0xa0] sm:$0xf]
      %v278 = vld [vmem:[%s215 + $0xa4] sm:$0xf]
      %v279 = vld [vmem:[%s215 + $0xa8] sm:$0xf]
      %v280 = vld [vmem:[%s215 + $0xac] sm:$0xf]
      %v281 = vld [vmem:[%s215 + $0xb0] sm:$0xf]
      %v282 = vld [vmem:[%s215 + $0xb4] sm:$0xf]
      %v283 = vld [vmem:[%s215 + $0xb8] sm:$0xf]
      %v284 = vld [vmem:[%s215 + $0xbc] sm:$0xf]
      %v285 = vld [vmem:[%s215 + $0xc0] sm:$0xf]
      %v286 = vld [vmem:[%s215 + $0xc4] sm:$0xf]
      %v287 = vld [vmem:[%s215 + $0xc8] sm:$0xf]
      %v288 = vld [vmem:[%s215 + $0xcc] sm:$0xf]
      %v289 = vld [vmem:[%s215 + $0xd0] sm:$0xf]
      %v290 = vld [vmem:[%s215 + $0xd4] sm:$0xf]
      %v291 = vld [vmem:[%s215 + $0xd8] sm:$0xf]
      %v292 = vld [vmem:[%s215 + $0xdc] sm:$0xf]
      %v293 = vld [vmem:[%s215 + $0xe0] sm:$0xf]
      %v294 = vld [vmem:[%s215 + $0xe4] sm:$0xf]
      %v295 = vld [vmem:[%s215 + $0xe8] sm:$0xf]
      %v296 = vld [vmem:[%s215 + $0xec] sm:$0xf]
      %v297 = vld [vmem:[%s215 + $0xf0] sm:$0xf]
      %v298 = vld [vmem:[%s215 + $0xf4] sm:$0xf]
      %v299 = vld [vmem:[%s215 + $0xf8] sm:$0xf]
      %v300 = vld [vmem:[%s215 + $0xfc] sm:$0xf]
      %v301 = vld [vmem:[%s215 + $0x100] sm:$0xf]
      %v302 = vld [vmem:[%s215 + $0x104] sm:$0xf]
      %v303 = vld [vmem:[%s215 + $0x108] sm:$0xf]
      %v304 = vld [vmem:[%s215 + $0x10c] sm:$0xf]
      %v305 = vld [vmem:[%s215 + $0x110] sm:$0xf]
      %v306 = vld [vmem:[%s215 + $0x114] sm:$0xf]
      %v307 = vld [vmem:[%s215 + $0x118] sm:$0xf]
      %v308 = vld [vmem:[%s215 + $0x11c] sm:$0xf]
      %v309 = vld [vmem:[%s215 + $0x120] sm:$0xf]
      %v310 = vld [vmem:[%s215 + $0x124] sm:$0xf]
      %v311 = vld [vmem:[%s215 + $0x128] sm:$0xf]
      %v312 = vld [vmem:[%s215 + $0x12c] sm:$0xf]
      %v313 = vld [vmem:[%s215 + $0x130] sm:$0xf]
      %v314 = vld [vmem:[%s215 + $0x134] sm:$0xf]
      %v315 = vld [vmem:[%s215 + $0x138] sm:$0xf]
      %v316 = vld [vmem:[%s215 + $0x13c] sm:$0xf]
      %v317 = vld [vmem:[%s215 + $0x140] sm:$0xf]
      %v318 = vld [vmem:[%s215 + $0x144] sm:$0xf]
      %v319 = vld [vmem:[%s215 + $0x148] sm:$0xf]
      %v320 = vld [vmem:[%s215 + $0x14c] sm:$0xf]
      %v321 = vld [vmem:[%s215 + $0x150] sm:$0xf]
      %v322 = vld [vmem:[%s215 + $0x154] sm:$0xf]
      %v323 = vld [vmem:[%s215 + $0x158] sm:$0xf]
      %v324 = vld [vmem:[%s215 + $0x15c] sm:$0xf]
      %v325 = vld [vmem:[%s215 + $0x160] sm:$0xf]
      %v326 = vld [vmem:[%s215 + $0x164] sm:$0xf]
      %v327 = vld [vmem:[%s215 + $0x168] sm:$0xf]
      %v328 = vld [vmem:[%s215 + $0x16c] sm:$0xf]
      %v329 = vld [vmem:[%s215 + $0x170] sm:$0xf]
      %v330 = vld [vmem:[%s215 + $0x174] sm:$0xf]
      %v331 = vld [vmem:[%s215 + $0x178] sm:$0xf]
      %v332 = vld [vmem:[%s215 + $0x17c] sm:$0xf]
      %v333 = vld [vmem:[%s215 + $0x180] sm:$0xf]
      %v334 = vld [vmem:[%s215 + $0x184] sm:$0xf]
      %v335 = vld [vmem:[%s215 + $0x188] sm:$0xf]
      %v336 = vld [vmem:[%s215 + $0x18c] sm:$0xf]
      %v337 = vld [vmem:[%s215 + $0x190] sm:$0xf]
      %v338 = vld [vmem:[%s215 + $0x194] sm:$0xf]
      %v339 = vld [vmem:[%s215 + $0x198] sm:$0xf]
      %v340 = vld [vmem:[%s215 + $0x19c] sm:$0xf]
      %v341 = vld [vmem:[%s215 + $0x1a0] sm:$0xf]
      %v342 = vld [vmem:[%s215 + $0x1a4] sm:$0xf]
      %v343 = vld [vmem:[%s215 + $0x1a8] sm:$0xf]
      %v344 = vld [vmem:[%s215 + $0x1ac] sm:$0xf]
      %v345 = vld [vmem:[%s215 + $0x1b0] sm:$0xf]
      %v346 = vld [vmem:[%s215 + $0x1b4] sm:$0xf]
      %v347 = vld [vmem:[%s215 + $0x1b8] sm:$0xf]
      %v348 = vld [vmem:[%s215 + $0x1bc] sm:$0xf]
      %v349 = vld [vmem:[%s215 + $0x1c0] sm:$0xf]
      %v350 = vld [vmem:[%s215 + $0x1c4] sm:$0xf]
      %v351 = vld [vmem:[%s215 + $0x1c8] sm:$0xf]
      %v352 = vld [vmem:[%s215 + $0x1cc] sm:$0xf]
      %v353 = vld [vmem:[%s215 + $0x1d0] sm:$0xf]
      %v354 = vld [vmem:[%s215 + $0x1d4] sm:$0xf]
      %v355 = vld [vmem:[%s215 + $0x1d8] sm:$0xf]
      %v356 = vld [vmem:[%s215 + $0x1dc] sm:$0xf]
      %v357 = vld [vmem:[%s215 + $0x1e0] sm:$0xf]
      %v358 = vld [vmem:[%s215 + $0x1e4] sm:$0xf]
      %v359 = vld [vmem:[%s215 + $0x1e8] sm:$0xf]
      %v360 = vld [vmem:[%s215 + $0x1ec] sm:$0xf]
      %v361 = vld [vmem:[%s215 + $0x1f0] sm:$0xf]
      %v362 = vld [vmem:[%s215 + $0x1f4] sm:$0xf]
      %v363 = vld [vmem:[%s215 + $0x1f8] sm:$0xf]
      %v364 = vld [vmem:[%s215 + $0x1fc] sm:$0xf]
      %v365 = vld [vmem:[%s218] sm:$0x1]
      %v367 = vlaneseq
      %v368 = vshrl.u32 %v367, 7
      %v369 = vsub.s32 0, %v368
      %v370 = vrot.slane %v365, %v369
      %v380 = vunpack.c.l.b16 %v229
      %v381 = vunpack.c.h.b16 %v229
      %v382 = vunpack.c.l.b16 %v230
      %v383 = vunpack.c.h.b16 %v230
      %v384 = vunpack.c.l.b16 %v231
      %v385 = vunpack.c.h.b16 %v231
      %v386 = vunpack.c.l.b16 %v232
      %v387 = vunpack.c.h.b16 %v232
      %v388 = vunpack.c.l.b16 %v233
      %v389 = vunpack.c.h.b16 %v233
      %v390 = vunpack.c.l.b16 %v234
      %v391 = vunpack.c.h.b16 %v234
      %v392 = vunpack.c.l.b16 %v235
      %v393 = vunpack.c.h.b16 %v235
      %v394 = vunpack.c.l.b16 %v236
      %v395 = vunpack.c.h.b16 %v236
      %v396 = vpack.c.b16 %v388, %v380
      %v397 = vpack.c.b16 %v389, %v381
      %v398 = vpack.c.b16 %v390, %v382
      %v399 = vpack.c.b16 %v391, %v383
      %v400 = vpack.c.b16 %v392, %v384
      %v401 = vpack.c.b16 %v393, %v385
      %v402 = vpack.c.b16 %v394, %v386
      %v403 = vpack.c.b16 %v395, %v387
      %v540 = vunpack.c.l.b16 %v237
      %v541 = vunpack.c.l.b16 %v238
      %v542 = vunpack.c.l.b16 %v239
      %v543 = vunpack.c.l.b16 %v240
      %v544 = vunpack.c.l.b16 %v241
      %v545 = vunpack.c.l.b16 %v242
      %v546 = vunpack.c.l.b16 %v243
      %v547 = vunpack.c.l.b16 %v244
      %v548 = vunpack.c.l.b16 %v245
      %v549 = vunpack.c.l.b16 %v246
      %v550 = vunpack.c.l.b16 %v247
      %v551 = vunpack.c.l.b16 %v248
      %v552 = vunpack.c.l.b16 %v249
      %v553 = vunpack.c.l.b16 %v250
      %v554 = vunpack.c.l.b16 %v251
      %v555 = vunpack.c.l.b16 %v252
      %v556 = vunpack.c.l.b16 %v253
      %v557 = vunpack.c.l.b16 %v254
      %v558 = vunpack.c.l.b16 %v255
      %v559 = vunpack.c.l.b16 %v256
      %v560 = vunpack.c.l.b16 %v257
      %v561 = vunpack.c.l.b16 %v258
      %v562 = vunpack.c.l.b16 %v259
      %v563 = vunpack.c.l.b16 %v260
      %v564 = vunpack.c.l.b16 %v261
      %v565 = vunpack.c.l.b16 %v262
      %v566 = vunpack.c.l.b16 %v263
      %v567 = vunpack.c.l.b16 %v264
      %v568 = vunpack.c.l.b16 %v265
      %v569 = vunpack.c.l.b16 %v266
      %v570 = vunpack.c.l.b16 %v267
      %v571 = vunpack.c.l.b16 %v268
      %v572 = vunpack.c.l.b16 %v269
      %v573 = vunpack.c.l.b16 %v270
      %v574 = vunpack.c.l.b16 %v271
      %v575 = vunpack.c.l.b16 %v272
      %v576 = vunpack.c.l.b16 %v273
      %v577 = vunpack.c.l.b16 %v274
      %v578 = vunpack.c.l.b16 %v275
      %v579 = vunpack.c.l.b16 %v276
      %v580 = vunpack.c.l.b16 %v277
      %v581 = vunpack.c.l.b16 %v278
      %v582 = vunpack.c.l.b16 %v279
      %v583 = vunpack.c.l.b16 %v280
      %v584 = vunpack.c.l.b16 %v281
      %v585 = vunpack.c.l.b16 %v282
      %v586 = vunpack.c.l.b16 %v283
      %v587 = vunpack.c.l.b16 %v284
      %v588 = vunpack.c.l.b16 %v285
      %v589 = vunpack.c.l.b16 %v286
      %v590 = vunpack.c.l.b16 %v287
      %v591 = vunpack.c.l.b16 %v288
      %v592 = vunpack.c.l.b16 %v289
      %v593 = vunpack.c.l.b16 %v290
      %v594 = vunpack.c.l.b16 %v291
      %v595 = vunpack.c.l.b16 %v292
      %v596 = vunpack.c.l.b16 %v293
      %v597 = vunpack.c.l.b16 %v294
      %v598 = vunpack.c.l.b16 %v295
      %v599 = vunpack.c.l.b16 %v296
      %v600 = vunpack.c.l.b16 %v297
      %v601 = vunpack.c.l.b16 %v298
      %v602 = vunpack.c.l.b16 %v299
      %v603 = vunpack.c.l.b16 %v300
      %v604 = vunpack.c.l.b16 %v301
      %v605 = vunpack.c.l.b16 %v302
      %v606 = vunpack.c.l.b16 %v303
      %v607 = vunpack.c.l.b16 %v304
      %v608 = vunpack.c.l.b16 %v305
      %v609 = vunpack.c.l.b16 %v306
      %v610 = vunpack.c.l.b16 %v307
      %v611 = vunpack.c.l.b16 %v308
      %v612 = vunpack.c.l.b16 %v309
      %v613 = vunpack.c.l.b16 %v310
      %v614 = vunpack.c.l.b16 %v311
      %v615 = vunpack.c.l.b16 %v312
      %v616 = vunpack.c.l.b16 %v313
      %v617 = vunpack.c.l.b16 %v314
      %v618 = vunpack.c.l.b16 %v315
      %v619 = vunpack.c.l.b16 %v316
      %v620 = vunpack.c.l.b16 %v317
      %v621 = vunpack.c.l.b16 %v318
      %v622 = vunpack.c.l.b16 %v319
      %v623 = vunpack.c.l.b16 %v320
      %v624 = vunpack.c.l.b16 %v321
      %v625 = vunpack.c.l.b16 %v322
      %v626 = vunpack.c.l.b16 %v323
      %v627 = vunpack.c.l.b16 %v324
      %v628 = vunpack.c.l.b16 %v325
      %v629 = vunpack.c.l.b16 %v326
      %v630 = vunpack.c.l.b16 %v327
      %v631 = vunpack.c.l.b16 %v328
      %v632 = vunpack.c.l.b16 %v329
      %v633 = vunpack.c.l.b16 %v330
      %v634 = vunpack.c.l.b16 %v331
      %v635 = vunpack.c.l.b16 %v332
      %v636 = vunpack.c.l.b16 %v333
      %v637 = vunpack.c.l.b16 %v334
      %v638 = vunpack.c.l.b16 %v335
      %v639 = vunpack.c.l.b16 %v336
      %v640 = vunpack.c.l.b16 %v337
      %v641 = vunpack.c.l.b16 %v338
      %v642 = vunpack.c.l.b16 %v339
      %v643 = vunpack.c.l.b16 %v340
      %v644 = vunpack.c.l.b16 %v341
      %v645 = vunpack.c.l.b16 %v342
      %v646 = vunpack.c.l.b16 %v343
      %v647 = vunpack.c.l.b16 %v344
      %v648 = vunpack.c.l.b16 %v345
      %v649 = vunpack.c.l.b16 %v346
      %v650 = vunpack.c.l.b16 %v347
      %v651 = vunpack.c.l.b16 %v348
      %v652 = vunpack.c.l.b16 %v349
      %v653 = vunpack.c.l.b16 %v350
      %v654 = vunpack.c.l.b16 %v351
      %v655 = vunpack.c.l.b16 %v352
      %v656 = vunpack.c.l.b16 %v353
      %v657 = vunpack.c.l.b16 %v354
      %v658 = vunpack.c.l.b16 %v355
      %v659 = vunpack.c.l.b16 %v356
      %v660 = vunpack.c.l.b16 %v357
      %v661 = vunpack.c.l.b16 %v358
      %v662 = vunpack.c.l.b16 %v359
      %v663 = vunpack.c.l.b16 %v360
      %v664 = vunpack.c.l.b16 %v361
      %v665 = vunpack.c.l.b16 %v362
      %v666 = vunpack.c.l.b16 %v363
      %v667 = vunpack.c.l.b16 %v364
      %v668 = vpack.c.b16 %v541, %v540
      %v669 = vpack.c.b16 %v543, %v542
      %v670 = vpack.c.b16 %v545, %v544
      %v671 = vpack.c.b16 %v547, %v546
      %v672 = vpack.c.b16 %v549, %v548
      %v673 = vpack.c.b16 %v551, %v550
      %v674 = vpack.c.b16 %v553, %v552
      %v675 = vpack.c.b16 %v555, %v554
      %v676 = vpack.c.b16 %v557, %v556
      %v677 = vpack.c.b16 %v559, %v558
      %v678 = vpack.c.b16 %v561, %v560
      %v679 = vpack.c.b16 %v563, %v562
      %v680 = vpack.c.b16 %v565, %v564
      %v681 = vpack.c.b16 %v567, %v566
      %v682 = vpack.c.b16 %v569, %v568
      %v683 = vpack.c.b16 %v571, %v570
      %v684 = vpack.c.b16 %v573, %v572
      %v685 = vpack.c.b16 %v575, %v574
      %v686 = vpack.c.b16 %v577, %v576
      %v687 = vpack.c.b16 %v579, %v578
      %v688 = vpack.c.b16 %v581, %v580
      %v689 = vpack.c.b16 %v583, %v582
      %v690 = vpack.c.b16 %v585, %v584
      %v691 = vpack.c.b16 %v587, %v586
      %v692 = vpack.c.b16 %v589, %v588
      %v693 = vpack.c.b16 %v591, %v590
      %v694 = vpack.c.b16 %v593, %v592
      %v695 = vpack.c.b16 %v595, %v594
      %v696 = vpack.c.b16 %v597, %v596
      %v697 = vpack.c.b16 %v599, %v598
      %v698 = vpack.c.b16 %v601, %v600
      %v699 = vpack.c.b16 %v603, %v602
      %v700 = vpack.c.b16 %v605, %v604
      %v701 = vpack.c.b16 %v607, %v606
      %v702 = vpack.c.b16 %v609, %v608
      %v703 = vpack.c.b16 %v611, %v610
      %v704 = vpack.c.b16 %v613, %v612
      %v705 = vpack.c.b16 %v615, %v614
      %v706 = vpack.c.b16 %v617, %v616
      %v707 = vpack.c.b16 %v619, %v618
      %v708 = vpack.c.b16 %v621, %v620
      %v709 = vpack.c.b16 %v623, %v622
      %v710 = vpack.c.b16 %v625, %v624
      %v711 = vpack.c.b16 %v627, %v626
      %v712 = vpack.c.b16 %v629, %v628
      %v713 = vpack.c.b16 %v631, %v630
      %v714 = vpack.c.b16 %v633, %v632
      %v715 = vpack.c.b16 %v635, %v634
      %v716 = vpack.c.b16 %v637, %v636
      %v717 = vpack.c.b16 %v639, %v638
      %v718 = vpack.c.b16 %v641, %v640
      %v719 = vpack.c.b16 %v643, %v642
      %v720 = vpack.c.b16 %v645, %v644
      %v721 = vpack.c.b16 %v647, %v646
      %v722 = vpack.c.b16 %v649, %v648
      %v723 = vpack.c.b16 %v651, %v650
      %v724 = vpack.c.b16 %v653, %v652
      %v725 = vpack.c.b16 %v655, %v654
      %v726 = vpack.c.b16 %v657, %v656
      %v727 = vpack.c.b16 %v659, %v658
      %v728 = vpack.c.b16 %v661, %v660
      %v729 = vpack.c.b16 %v663, %v662
      %v730 = vpack.c.b16 %v665, %v664
      %v731 = vpack.c.b16 %v667, %v666
      %796 = vmatprep.subr.bf16.mxu0 0
      %797 = vmatpush1.bf16.msra.mxu0 %v668
      %798 = vmatprep.subr.bf16.mxu0 0
      %799 = vmatpush1.bf16.msra.mxu0 %v669
      %800 = vmatprep.subr.bf16.mxu0 0
      %801 = vmatpush1.bf16.msra.mxu0 %v670
      %802 = vmatprep.subr.bf16.mxu0 0
      %803 = vmatpush1.bf16.msra.mxu0 %v671
      %804 = vmatprep.subr.bf16.mxu0 0
      %805 = vmatpush1.bf16.msra.mxu0 %v672
      %806 = vmatprep.subr.bf16.mxu0 0
      %807 = vmatpush1.bf16.msra.mxu0 %v673
      %808 = vmatprep.subr.bf16.mxu0 0
      %809 = vmatpush1.bf16.msra.mxu0 %v674
      %810 = vmatprep.subr.bf16.mxu0 0
      %811 = vmatpush1.bf16.msra.mxu0 %v675
      %812 = vmatprep.subr.bf16.mxu0 0
      %813 = vmatpush1.bf16.msra.mxu0 %v676
      %814 = vmatprep.subr.bf16.mxu0 0
      %815 = vmatpush1.bf16.msra.mxu0 %v677
      %816 = vmatprep.subr.bf16.mxu0 0
      %817 = vmatpush1.bf16.msra.mxu0 %v678
      %818 = vmatprep.subr.bf16.mxu0 0
      %819 = vmatpush1.bf16.msra.mxu0 %v679
      %820 = vmatprep.subr.bf16.mxu0 0
      %821 = vmatpush1.bf16.msra.mxu0 %v680
      %822 = vmatprep.subr.bf16.mxu0 0
      %823 = vmatpush1.bf16.msra.mxu0 %v681
      %824 = vmatprep.subr.bf16.mxu0 0
      %825 = vmatpush1.bf16.msra.mxu0 %v682
      %826 = vmatprep.subr.bf16.mxu0 0
      %827 = vmatpush1.bf16.msra.mxu0 %v683
      %828 = vmatprep.mubr.bf16.mxu0 %v397
      %829 = vmatmul.mubr.bf16.gmra.mrb[0].mxu0 %v396
      %v830 = vpop.f32.mrb[0].mxu0
      %v831 = vadd.f32 %v370, %v830
      %v832 = vpop.f32.mrb[0].mxu0
      %v833 = vpop.f32.mrb[0].mxu0
      %v834 = vadd.f32 %v370, %v833
      %v835 = vpop.f32.mrb[0].mxu0
      %836 = vdwg.mxu0
      %837 = vmatprep.subr.bf16.mxu0 0
      %838 = vmatpush1.bf16.msra.mxu0 %v684
      %839 = vmatprep.subr.bf16.mxu0 0
      %840 = vmatpush1.bf16.msra.mxu0 %v685
      %841 = vmatprep.subr.bf16.mxu0 0
      %842 = vmatpush1.bf16.msra.mxu0 %v686
      %843 = vmatprep.subr.bf16.mxu0 0
      %844 = vmatpush1.bf16.msra.mxu0 %v687
      %845 = vmatprep.subr.bf16.mxu0 0
      %846 = vmatpush1.bf16.msra.mxu0 %v688
      %847 = vmatprep.subr.bf16.mxu0 0
      %848 = vmatpush1.bf16.msra.mxu0 %v689
      %849 = vmatprep.subr.bf16.mxu0 0
      %850 = vmatpush1.bf16.msra.mxu0 %v690
      %851 = vmatprep.subr.bf16.mxu0 0
      %852 = vmatpush1.bf16.msra.mxu0 %v691
      %853 = vmatprep.subr.bf16.mxu0 0
      %854 = vmatpush1.bf16.msra.mxu0 %v692
      %855 = vmatprep.subr.bf16.mxu0 0
      %856 = vmatpush1.bf16.msra.mxu0 %v693
      %857 = vmatprep.subr.bf16.mxu0 0
      %858 = vmatpush1.bf16.msra.mxu0 %v694
      %859 = vmatprep.subr.bf16.mxu0 0
      %860 = vmatpush1.bf16.msra.mxu0 %v695
      %861 = vmatprep.subr.bf16.mxu0 0
      %862 = vmatpush1.bf16.msra.mxu0 %v696
      %863 = vmatprep.subr.bf16.mxu0 0
      %864 = vmatpush1.bf16.msra.mxu0 %v697
      %865 = vmatprep.subr.bf16.mxu0 0
      %866 = vmatpush1.bf16.msra.mxu0 %v698
      %867 = vmatprep.subr.bf16.mxu0 0
      %868 = vmatpush1.bf16.msra.mxu0 %v699
      %869 = vmatprep.mubr.bf16.mxu0 %v399
      %870 = vmatmul.mubr.bf16.gmra.mrb[0].mxu0 %v398
      %v871 = vpop.f32.mrb[0].mxu0
      %v872 = vadd.f32 %v831, %v871
      %v873 = vpop.f32.mrb[0].mxu0
      %v874 = vpop.f32.mrb[0].mxu0
      %v875 = vadd.f32 %v834, %v874
      %v876 = vpop.f32.mrb[0].mxu0
      %877 = vdwg.mxu0
      %878 = vmatprep.subr.bf16.mxu0 0
      %879 = vmatpush1.bf16.msra.mxu0 %v700
      %880 = vmatprep.subr.bf16.mxu0 0
      %881 = vmatpush1.bf16.msra.mxu0 %v701
      %882 = vmatprep.subr.bf16.mxu0 0
      %883 = vmatpush1.bf16.msra.mxu0 %v702
      %884 = vmatprep.subr.bf16.mxu0 0
      %885 = vmatpush1.bf16.msra.mxu0 %v703
      %886 = vmatprep.subr.bf16.mxu0 0
      %887 = vmatpush1.bf16.msra.mxu0 %v704
      %888 = vmatprep.subr.bf16.mxu0 0
      %889 = vmatpush1.bf16.msra.mxu0 %v705
      %890 = vmatprep.subr.bf16.mxu0 0
      %891 = vmatpush1.bf16.msra.mxu0 %v706
      %892 = vmatprep.subr.bf16.mxu0 0
      %893 = vmatpush1.bf16.msra.mxu0 %v707
      %894 = vmatprep.subr.bf16.mxu0 0
      %895 = vmatpush1.bf16.msra.mxu0 %v708
      %896 = vmatprep.subr.bf16.mxu0 0
      %897 = vmatpush1.bf16.msra.mxu0 %v709
      %898 = vmatprep.subr.bf16.mxu0 0
      %899 = vmatpush1.bf16.msra.mxu0 %v710
      %900 = vmatprep.subr.bf16.mxu0 0
      %901 = vmatpush1.bf16.msra.mxu0 %v711
      %902 = vmatprep.subr.bf16.mxu0 0
      %903 = vmatpush1.bf16.msra.mxu0 %v712
      %904 = vmatprep.subr.bf16.mxu0 0
      %905 = vmatpush1.bf16.msra.mxu0 %v713
      %906 = vmatprep.subr.bf16.mxu0 0
      %907 = vmatpush1.bf16.msra.mxu0 %v714
      %908 = vmatprep.subr.bf16.mxu0 0
      %909 = vmatpush1.bf16.msra.mxu0 %v715
      %910 = vmatprep.mubr.bf16.mxu0 %v401
      %911 = vmatmul.mubr.bf16.gmra.mrb[0].mxu0 %v400
      %v912 = vpop.f32.mrb[0].mxu0
      %v913 = vadd.f32 %v872, %v912
      %v914 = vpop.f32.mrb[0].mxu0
      %v915 = vpop.f32.mrb[0].mxu0
      %v916 = vadd.f32 %v875, %v915
      %v917 = vpop.f32.mrb[0].mxu0
      %918 = vdwg.mxu0
      %919 = vmatprep.subr.bf16.mxu0 0
      %920 = vmatpush1.bf16.msra.mxu0 %v716
      %921 = vmatprep.subr.bf16.mxu0 0
      %922 = vmatpush1.bf16.msra.mxu0 %v717
      %923 = vmatprep.subr.bf16.mxu0 0
      %924 = vmatpush1.bf16.msra.mxu0 %v718
      %925 = vmatprep.subr.bf16.mxu0 0
      %926 = vmatpush1.bf16.msra.mxu0 %v719
      %927 = vmatprep.subr.bf16.mxu0 0
      %928 = vmatpush1.bf16.msra.mxu0 %v720
      %929 = vmatprep.subr.bf16.mxu0 0
      %930 = vmatpush1.bf16.msra.mxu0 %v721
      %931 = vmatprep.subr.bf16.mxu0 0
      %932 = vmatpush1.bf16.msra.mxu0 %v722
      %933 = vmatprep.subr.bf16.mxu0 0
      %934 = vmatpush1.bf16.msra.mxu0 %v723
      %935 = vmatprep.subr.bf16.mxu0 0
      %936 = vmatpush1.bf16.msra.mxu0 %v724
      %937 = vmatprep.subr.bf16.mxu0 0
      %938 = vmatpush1.bf16.msra.mxu0 %v725
      %939 = vmatprep.subr.bf16.mxu0 0
      %940 = vmatpush1.bf16.msra.mxu0 %v726
      %941 = vmatprep.subr.bf16.mxu0 0
      %942 = vmatpush1.bf16.msra.mxu0 %v727
      %943 = vmatprep.subr.bf16.mxu0 0
      %944 = vmatpush1.bf16.msra.mxu0 %v728
      %945 = vmatprep.subr.bf16.mxu0 0
      %946 = vmatpush1.bf16.msra.mxu0 %v729
      %947 = vmatprep.subr.bf16.mxu0 0
      %948 = vmatpush1.bf16.msra.mxu0 %v730
      %949 = vmatprep.subr.bf16.mxu0 0
      %950 = vmatpush1.bf16.msra.mxu0 %v731
      %951 = vmatprep.mubr.bf16.mxu0 %v403
      %952 = vmatmul.mubr.bf16.gmra.mrb[0].mxu0 %v402
      %v953 = vpop.f32.mrb[0].mxu0
      %v954 = vadd.f32 %v913, %v953
      %v955 = vpop.f32.mrb[0].mxu0
      %v956 = vpop.f32.mrb[0].mxu0
      %v957 = vadd.f32 %v916, %v956
      %v958 = vpop.f32.mrb[0].mxu0
      %959 = vdwg.mxu0
      %v960 = vmax.f32 %v954, 0.0
      %v961 = vmax.f32 %v957, 0.0
      %v962 = vpack.c.bf16 %v961, %v960
      %v964 = vunpack.c.l.b16 %v962
      %v965 = vunpack.c.h.b16 %v962
      %v966 = vpack.c.b16 %v964, %v964
      %v967 = vpack.c.b16 %v965, %v965
      %970 = vst [vmem:[%s226] sm:$0xf] %v966
      %971 = vst [vmem:[%s226 + $0x4] sm:$0xf] %v967
      %s972 = smul.u32 2, %s18
      %p973 = scmp.lt.s32.totalorder %s972, 3
      %s974 = scalar_select %p973, %s972, 3
      %p975 = scmp.lt.s32.totalorder %s19, 0
      %s976 = scalar_select %p975, %s19, 0
      %s977 = sadd.s32 %s976, %s974
      %s978 = smul.addr %s977, 4
      %s979 = scalar_lea.vmem %s3, %s978
      // Predicated region
      $region33: #{conv_autoencoder_forward.15} parent=31 // pred_check
        %p980 = pneg %p124
      $region34: #{conv_autoencoder_forward.15} parent=31 // pred_check_branch
        %982 = sbr.rel (%p980) target = $region36
      $region35: #{conv_autoencoder_forward.15} parent=31 // pred_region
        %s983 = smul.u32 2, %s18
      $region36: #{conv_autoencoder_forward.15} parent=31 // pred_fallthru
        _
    $region32: #{conv_autoencoder_forward.15} parent=5 // pred_fallthru
      _
    %p984 = scmp.le.s32.totalorder 2, %s9
    // Predicated region
    $region37: #{conv_autoencoder_forward.15} parent=5 // pred_check
      %p985 = pneg %p984
    $region38: #{conv_autoencoder_forward.15} parent=5 // pred_check_branch
      %987 = sbr.rel (%p985) target = $region40
    $region39: #{conv_autoencoder_forward.15} parent=5 // pred_region
      %s988 = ssub.s32 %s9, 2
      // Predicated region
      $region41: #{conv_autoencoder_forward.15} parent=39 // pred_check
        %p989 = pneg %p130
      $region42: #{conv_autoencoder_forward.15} parent=39 // pred_check_branch
        %991 = sbr.rel (%p989) target = $region44
      $region43: #{conv_autoencoder_forward.15} parent=39 // pred_region
        %s992 = smul.u32 2, %s20
        %p993 = scmp.lt.s32.totalorder %s992, 3
        %s994 = scalar_select %p993, %s992, 3
        %p995 = scmp.lt.s32.totalorder %s21, 0
        %s996 = scalar_select %p995, %s21, 0
        %s997 = sadd.s32 %s996, %s994
        %s998 = smul.addr %s997, 4
        %s999 = scalar_lea.vmem %s3, %s998
      $region44: #{conv_autoencoder_forward.15} parent=39 // pred_fallthru
        _
    $region40: #{conv_autoencoder_forward.15} parent=5 // pred_fallthru
      _
  $region6: #{conv_autoencoder_forward.15} parent=0 // loop_footer
    %s13 = sadd.s32 1, %s9
  $region7: #{conv_autoencoder_forward.15} parent=0 // loop_footer_branch
    %8 = sbr.rel target = $region3
  $region8: #{conv_autoencoder_forward.15} parent=0 // loop_exit
    _

// kernel: conv_autoencoder_forward.16
$region0: #{conv_autoencoder_forward.16}
  #allocation0 [shape = 'u32[]', space=smem, size = 0x4, offset = 0x4, fixed_abs, tag = 'smem constant byte address 0x4 - core index']
  #allocation1 [shape = 'u32[144,128]{1,0:T(1,128)}', space=vmem, size = 0x12000, scoped, tag = 'internal scratch']
  %s0 = inlined_call_operand.vmem [shape: bf16[16,2048], index: 0, kind: input, shape index: {}]
  %s1 = inlined_call_operand.vmem [shape: bf16[2048,256], index: 1, kind: input, shape index: {}]
  %s2 = inlined_call_operand.vmem [shape: f32[1,256], index: 2, kind: input, shape index: {}]
  %s3 = inlined_call_operand.vmem [shape: bf16[16,256], index: 3, kind: output, shape index: {}]
  %s4 = sld [smem:[#allocation0]]
  $region22: #{conv_autoencoder_forward.16} parent=0
    _
  %s6 = ssub.s32 1, %s4
  %s7 = scalar_select 0, %s6, %s4
  // Predicated region
  $region2: #{conv_autoencoder_forward.16} parent=0 // pred_check
    _
  $region3: #{conv_autoencoder_forward.16} parent=0 // pred_check_branch
    %9 = sbr.rel (0) target = $region5
  $region4: #{conv_autoencoder_forward.16} parent=0 // pred_region
    _
  $region5: #{conv_autoencoder_forward.16} parent=0 // pred_fallthru
    _
  // Predicated region
  $region6: #{conv_autoencoder_forward.16} parent=0 // pred_check
    _
  $region7: #{conv_autoencoder_forward.16} parent=0 // pred_check_branch
    %11 = sbr.rel (0) target = $region9
  $region8: #{conv_autoencoder_forward.16} parent=0 // pred_region
    _
  $region9: #{conv_autoencoder_forward.16} parent=0 // pred_fallthru
    _
  // Predicated region
  $region10: #{conv_autoencoder_forward.16} parent=0 // pred_check
    _
  $region11: #{conv_autoencoder_forward.16} parent=0 // pred_check_branch
    %13 = sbr.rel (0) target = $region13
  $region12: #{conv_autoencoder_forward.16} parent=0 // pred_region
    _
  $region13: #{conv_autoencoder_forward.16} parent=0 // pred_fallthru
    _
  %v14 = vld [vmem:[%s0] sm:$0xff]
  %v15 = vld [vmem:[%s0 + $0x8] sm:$0xff]
  %v16 = vld [vmem:[%s0 + $0x10] sm:$0xff]
  %v17 = vld [vmem:[%s0 + $0x18] sm:$0xff]
  %v18 = vld [vmem:[%s0 + $0x20] sm:$0xff]
  %v19 = vld [vmem:[%s0 + $0x28] sm:$0xff]
  %v20 = vld [vmem:[%s0 + $0x30] sm:$0xff]
  %v21 = vld [vmem:[%s0 + $0x38] sm:$0xff]
  %v22 = vld [vmem:[%s0 + $0x40] sm:$0xff]
  %v23 = vld [vmem:[%s0 + $0x48] sm:$0xff]
  %v24 = vld [vmem:[%s0 + $0x50] sm:$0xff]
  %v25 = vld [vmem:[%s0 + $0x58] sm:$0xff]
  %v26 = vld [vmem:[%s0 + $0x60] sm:$0xff]
  %v27 = vld [vmem:[%s0 + $0x68] sm:$0xff]
  %v28 = vld [vmem:[%s0 + $0x70] sm:$0xff]
  %v29 = vld [vmem:[%s0 + $0x78] sm:$0xff]
  %v30 = vld [vmem:[%s1] sm:$0xff]
  %v31 = vld [vmem:[%s1 + $0x8] sm:$0xff]
  %v32 = vld [vmem:[%s1 + $0x10] sm:$0xff]
  %v33 = vld [vmem:[%s1 + $0x18] sm:$0xff]
  %v34 = vld [vmem:[%s1 + $0x20] sm:$0xff]
  %v35 = vld [vmem:[%s1 + $0x28] sm:$0xff]
  %v36 = vld [vmem:[%s1 + $0x30] sm:$0xff]
  %v37 = vld [vmem:[%s1 + $0x38] sm:$0xff]
  %v38 = vld [vmem:[%s1 + $0x40] sm:$0xff]
  %v39 = vld [vmem:[%s1 + $0x48] sm:$0xff]
  %v40 = vld [vmem:[%s1 + $0x50] sm:$0xff]
  %v41 = vld [vmem:[%s1 + $0x58] sm:$0xff]
  %v42 = vld [vmem:[%s1 + $0x60] sm:$0xff]
  %v43 = vld [vmem:[%s1 + $0x68] sm:$0xff]
  %v44 = vld [vmem:[%s1 + $0x70] sm:$0xff]
  %v45 = vld [vmem:[%s1 + $0x78] sm:$0xff]
  %v46 = vld [vmem:[%s1 + $0x80] sm:$0xff]
  %v47 = vld [vmem:[%s1 + $0x88] sm:$0xff]
  %v48 = vld [vmem:[%s1 + $0x90] sm:$0xff]
  %v49 = vld [vmem:[%s1 + $0x98] sm:$0xff]
  %v50 = vld [vmem:[%s1 + $0xa0] sm:$0xff]
  %v51 = vld [vmem:[%s1 + $0xa8] sm:$0xff]
  %v52 = vld [vmem:[%s1 + $0xb0] sm:$0xff]
  %v53 = vld [vmem:[%s1 + $0xb8] sm:$0xff]
  %v54 = vld [vmem:[%s1 + $0xc0] sm:$0xff]
  %v55 = vld [vmem:[%s1 + $0xc8] sm:$0xff]
  %v56 = vld [vmem:[%s1 + $0xd0] sm:$0xff]
  %v57 = vld [vmem:[%s1 + $0xd8] sm:$0xff]
  %v58 = vld [vmem:[%s1 + $0xe0] sm:$0xff]
  %v59 = vld [vmem:[%s1 + $0xe8] sm:$0xff]
  %v60 = vld [vmem:[%s1 + $0xf0] sm:$0xff]
  %v61 = vld [vmem:[%s1 + $0xf8] sm:$0xff]
  %v62 = vld [vmem:[%s1 + $0x100] sm:$0xff]
  %v63 = vld [vmem:[%s1 + $0x108] sm:$0xff]
  %v64 = vld [vmem:[%s1 + $0x110] sm:$0xff]
  %v65 = vld [vmem:[%s1 + $0x118] sm:$0xff]
  %v66 = vld [vmem:[%s1 + $0x120] sm:$0xff]
  %v67 = vld [vmem:[%s1 + $0x128] sm:$0xff]
  %v68 = vld [vmem:[%s1 + $0x130] sm:$0xff]
  %v69 = vld [vmem:[%s1 + $0x138] sm:$0xff]
  %v70 = vld [vmem:[%s1 + $0x140] sm:$0xff]
  %v71 = vld [vmem:[%s1 + $0x148] sm:$0xff]
  %v72 = vld [vmem:[%s1 + $0x150] sm:$0xff]
  %v73 = vld [vmem:[%s1 + $0x158] sm:$0xff]
  %v74 = vld [vmem:[%s1 + $0x160] sm:$0xff]
  %v75 = vld [vmem:[%s1 + $0x168] sm:$0xff]
  %v76 = vld [vmem:[%s1 + $0x170] sm:$0xff]
  %v77 = vld [vmem:[%s1 + $0x178] sm:$0xff]
  %v78 = vld [vmem:[%s1 + $0x180] sm:$0xff]
  %v79 = vld [vmem:[%s1 + $0x188] sm:$0xff]
  %v80 = vld [vmem:[%s1 + $0x190] sm:$0xff]
  %v81 = vld [vmem:[%s1 + $0x198] sm:$0xff]
  %v82 = vld [vmem:[%s1 + $0x1a0] sm:$0xff]
  %v83 = vld [vmem:[%s1 + $0x1a8] sm:$0xff]
  %v84 = vld [vmem:[%s1 + $0x1b0] sm:$0xff]
  %v85 = vld [vmem:[%s1 + $0x1b8] sm:$0xff]
  %v86 = vld [vmem:[%s1 + $0x1c0] sm:$0xff]
  %v87 = vld [vmem:[%s1 + $0x1c8] sm:$0xff]
  %v88 = vld [vmem:[%s1 + $0x1d0] sm:$0xff]
  %v89 = vld [vmem:[%s1 + $0x1d8] sm:$0xff]
  %v90 = vld [vmem:[%s1 + $0x1e0] sm:$0xff]
  %v91 = vld [vmem:[%s1 + $0x1e8] sm:$0xff]
  %v92 = vld [vmem:[%s1 + $0x1f0] sm:$0xff]
  %v93 = vld [vmem:[%s1 + $0x1f8] sm:$0xff]
  %v94 = vld [vmem:[%s1 + $0x200] sm:$0xff]
  %v95 = vld [vmem:[%s1 + $0x208] sm:$0xff]
  %v96 = vld [vmem:[%s1 + $0x210] sm:$0xff]
  %v97 = vld [vmem:[%s1 + $0x218] sm:$0xff]
  %v98 = vld [vmem:[%s1 + $0x220] sm:$0xff]
  %v99 = vld [vmem:[%s1 + $0x228] sm:$0xff]
  %v100 = vld [vmem:[%s1 + $0x230] sm:$0xff]
  %v101 = vld [vmem:[%s1 + $0x238] sm:$0xff]
  %v102 = vld [vmem:[%s1 + $0x240] sm:$0xff]
  %v103 = vld [vmem:[%s1 + $0x248] sm:$0xff]
  %v104 = vld [vmem:[%s1 + $0x250] sm:$0xff]
  %v105 = vld [vmem:[%s1 + $0x258] sm:$0xff]
  %v106 = vld [vmem:[%s1 + $0x260] sm:$0xff]
  %v107 = vld [vmem:[%s1 + $0x268] sm:$0xff]
  %v108 = vld [vmem:[%s1 + $0x270] sm:$0xff]
  %v109 = vld [vmem:[%s1 + $0x278] sm:$0xff]
  %v110 = vld [vmem:[%s1 + $0x280] sm:$0xff]
  %v111 = vld [vmem:[%s1 + $0x288] sm:$0xff]
  %v112 = vld [vmem:[%s1 + $0x290] sm:$0xff]
  %v113 = vld [vmem:[%s1 + $0x298] sm:$0xff]
  %v114 = vld [vmem:[%s1 + $0x2a0] sm:$0xff]
  %v115 = vld [vmem:[%s1 + $0x2a8] sm:$0xff]
  %v116 = vld [vmem:[%s1 + $0x2b0] sm:$0xff]
  %v117 = vld [vmem:[%s1 + $0x2b8] sm:$0xff]
  %v118 = vld [vmem:[%s1 + $0x2c0] sm:$0xff]
  %v119 = vld [vmem:[%s1 + $0x2c8] sm:$0xff]
  %v120 = vld [vmem:[%s1 + $0x2d0] sm:$0xff]
  %v121 = vld [vmem:[%s1 + $0x2d8] sm:$0xff]
  %v122 = vld [vmem:[%s1 + $0x2e0] sm:$0xff]
  %v123 = vld [vmem:[%s1 + $0x2e8] sm:$0xff]
  %v124 = vld [vmem:[%s1 + $0x2f0] sm:$0xff]
  %v125 = vld [vmem:[%s1 + $0x2f8] sm:$0xff]
  %v126 = vld [vmem:[%s1 + $0x300] sm:$0xff]
  %v127 = vld [vmem:[%s1 + $0x308] sm:$0xff]
  %v128 = vld [vmem:[%s1 + $0x310] sm:$0xff]
  %v129 = vld [vmem:[%s1 + $0x318] sm:$0xff]
  %v130 = vld [vmem:[%s1 + $0x320] sm:$0xff]
  %v131 = vld [vmem:[%s1 + $0x328] sm:$0xff]
  %v132 = vld [vmem:[%s1 + $0x330] sm:$0xff]
  %v133 = vld [vmem:[%s1 + $0x338] sm:$0xff]
  %v134 = vld [vmem:[%s1 + $0x340] sm:$0xff]
  %v135 = vld [vmem:[%s1 + $0x348] sm:$0xff]
  %v136 = vld [vmem:[%s1 + $0x350] sm:$0xff]
  %v137 = vld [vmem:[%s1 + $0x358] sm:$0xff]
  %v138 = vld [vmem:[%s1 + $0x360] sm:$0xff]
  %v139 = vld [vmem:[%s1 + $0x368] sm:$0xff]
  %v140 = vld [vmem:[%s1 + $0x370] sm:$0xff]
  %v141 = vld [vmem:[%s1 + $0x378] sm:$0xff]
  %v142 = vld [vmem:[%s1 + $0x380] sm:$0xff]
  %v143 = vld [vmem:[%s1 + $0x388] sm:$0xff]
  %v144 = vld [vmem:[%s1 + $0x390] sm:$0xff]
  %v145 = vld [vmem:[%s1 + $0x398] sm:$0xff]
  %v146 = vld [vmem:[%s1 + $0x3a0] sm:$0xff]
  %v147 = vld [vmem:[%s1 + $0x3a8] sm:$0xff]
  %v148 = vld [vmem:[%s1 + $0x3b0] sm:$0xff]
  %v149 = vld [vmem:[%s1 + $0x3b8] sm:$0xff]
  %v150 = vld [vmem:[%s1 + $0x3c0] sm:$0xff]
  %v151 = vld [vmem:[%s1 + $0x3c8] sm:$0xff]
  %v152 = vld [vmem:[%s1 + $0x3d0] sm:$0xff]
  %v153 = vld [vmem:[%s1 + $0x3d8] sm:$0xff]
  %v154 = vld [vmem:[%s1 + $0x3e0] sm:$0xff]
  %v155 = vld [vmem:[%s1 + $0x3e8] sm:$0xff]
  %v156 = vld [vmem:[%s1 + $0x3f0] sm:$0xff]
  %v157 = vld [vmem:[%s1 + $0x3f8] sm:$0xff]
  %v158 = vld [vmem:[%s1 + $0x400] sm:$0xff]
  %v159 = vld [vmem:[%s1 + $0x408] sm:$0xff]
  %v160 = vld [vmem:[%s1 + $0x410] sm:$0xff]
  %v161 = vld [vmem:[%s1 + $0x418] sm:$0xff]
  %v162 = vld [vmem:[%s1 + $0x420] sm:$0xff]
  %v163 = vld [vmem:[%s1 + $0x428] sm:$0xff]
  %v164 = vld [vmem:[%s1 + $0x430] sm:$0xff]
  %v165 = vld [vmem:[%s1 + $0x438] sm:$0xff]
  %v166 = vld [vmem:[%s1 + $0x440] sm:$0xff]
  %v167 = vld [vmem:[%s1 + $0x448] sm:$0xff]
  %v168 = vld [vmem:[%s1 + $0x450] sm:$0xff]
  %v169 = vld [vmem:[%s1 + $0x458] sm:$0xff]
  %v170 = vld [vmem:[%s1 + $0x460] sm:$0xff]
  %v171 = vld [vmem:[%s1 + $0x468] sm:$0xff]
  %v172 = vld [vmem:[%s1 + $0x470] sm:$0xff]
  %v173 = vld [vmem:[%s1 + $0x478] sm:$0xff]
  %v174 = vld [vmem:[%s1 + $0x480] sm:$0xff]
  %v175 = vld [vmem:[%s1 + $0x488] sm:$0xff]
  %v176 = vld [vmem:[%s1 + $0x490] sm:$0xff]
  %v177 = vld [vmem:[%s1 + $0x498] sm:$0xff]
  %v178 = vld [vmem:[%s1 + $0x4a0] sm:$0xff]
  %v179 = vld [vmem:[%s1 + $0x4a8] sm:$0xff]
  %v180 = vld [vmem:[%s1 + $0x4b0] sm:$0xff]
  %v181 = vld [vmem:[%s1 + $0x4b8] sm:$0xff]
  %v182 = vld [vmem:[%s1 + $0x4c0] sm:$0xff]
  %v183 = vld [vmem:[%s1 + $0x4c8] sm:$0xff]
  %v184 = vld [vmem:[%s1 + $0x4d0] sm:$0xff]
  %v185 = vld [vmem:[%s1 + $0x4d8] sm:$0xff]
  %v186 = vld [vmem:[%s1 + $0x4e0] sm:$0xff]
  %v187 = vld [vmem:[%s1 + $0x4e8] sm:$0xff]
  %v188 = vld [vmem:[%s1 + $0x4f0] sm:$0xff]
  %v189 = vld [vmem:[%s1 + $0x4f8] sm:$0xff]
  %v190 = vld [vmem:[%s1 + $0x500] sm:$0xff]
  %v191 = vld [vmem:[%s1 + $0x508] sm:$0xff]
  %v192 = vld [vmem:[%s1 + $0x510] sm:$0xff]
  %v193 = vld [vmem:[%s1 + $0x518] sm:$0xff]
  %v194 = vld [vmem:[%s1 + $0x520] sm:$0xff]
  %v195 = vld [vmem:[%s1 + $0x528] sm:$0xff]
  %v196 = vld [vmem:[%s1 + $0x530] sm:$0xff]
  %v197 = vld [vmem:[%s1 + $0x538] sm:$0xff]
  %v198 = vld [vmem:[%s1 + $0x540] sm:$0xff]
  %v199 = vld [vmem:[%s1 + $0x548] sm:$0xff]
  %v200 = vld [vmem:[%s1 + $0x550] sm:$0xff]
  %v201 = vld [vmem:[%s1 + $0x558] sm:$0xff]
  %v202 = vld [vmem:[%s1 + $0x560] sm:$0xff]
  %v203 = vld [vmem:[%s1 + $0x568] sm:$0xff]
  %v204 = vld [vmem:[%s1 + $0x570] sm:$0xff]
  %v205 = vld [vmem:[%s1 + $0x578] sm:$0xff]
  %v206 = vld [vmem:[%s1 + $0x580] sm:$0xff]
  %v207 = vld [vmem:[%s1 + $0x588] sm:$0xff]
  %v208 = vld [vmem:[%s1 + $0x590] sm:$0xff]
  %v209 = vld [vmem:[%s1 + $0x598] sm:$0xff]
  %v210 = vld [vmem:[%s1 + $0x5a0] sm:$0xff]
  %v211 = vld [vmem:[%s1 + $0x5a8] sm:$0xff]
  %v212 = vld [vmem:[%s1 + $0x5b0] sm:$0xff]
  %v213 = vld [vmem:[%s1 + $0x5b8] sm:$0xff]
  %v214 = vld [vmem:[%s1 + $0x5c0] sm:$0xff]
  %v215 = vld [vmem:[%s1 + $0x5c8] sm:$0xff]
  %v216 = vld [vmem:[%s1 + $0x5d0] sm:$0xff]
  %v217 = vld [vmem:[%s1 + $0x5d8] sm:$0xff]
  %v218 = vld [vmem:[%s1 + $0x5e0] sm:$0xff]
  %v219 = vld [vmem:[%s1 + $0x5e8] sm:$0xff]
  %v220 = vld [vmem:[%s1 + $0x5f0] sm:$0xff]
  %v221 = vld [vmem:[%s1 + $0x5f8] sm:$0xff]
  %v222 = vld [vmem:[%s1 + $0x600] sm:$0xff]
  %v223 = vld [vmem:[%s1 + $0x608] sm:$0xff]
  %v224 = vld [vmem:[%s1 + $0x610] sm:$0xff]
  %v225 = vld [vmem:[%s1 + $0x618] sm:$0xff]
  %v226 = vld [vmem:[%s1 + $0x620] sm:$0xff]
  %v227 = vld [vmem:[%s1 + $0x628] sm:$0xff]
  %v228 = vld [vmem:[%s1 + $0x630] sm:$0xff]
  %v229 = vld [vmem:[%s1 + $0x638] sm:$0xff]
  %v230 = vld [vmem:[%s1 + $0x640] sm:$0xff]
  %v231 = vld [vmem:[%s1 + $0x648] sm:$0xff]
  %v232 = vld [vmem:[%s1 + $0x650] sm:$0xff]
  %v233 = vld [vmem:[%s1 + $0x658] sm:$0xff]
  %v234 = vld [vmem:[%s1 + $0x660] sm:$0xff]
  %v235 = vld [vmem:[%s1 + $0x668] sm:$0xff]
  %v236 = vld [vmem:[%s1 + $0x670] sm:$0xff]
  %v237 = vld [vmem:[%s1 + $0x678] sm:$0xff]
  %v238 = vld [vmem:[%s1 + $0x680] sm:$0xff]
  %v239 = vld [vmem:[%s1 + $0x688] sm:$0xff]
  %v240 = vld [vmem:[%s1 + $0x690] sm:$0xff]
  %v241 = vld [vmem:[%s1 + $0x698] sm:$0xff]
  %v242 = vld [vmem:[%s1 + $0x6a0] sm:$0xff]
  %v243 = vld [vmem:[%s1 + $0x6a8] sm:$0xff]
  %v244 = vld [vmem:[%s1 + $0x6b0] sm:$0xff]
  %v245 = vld [vmem:[%s1 + $0x6b8] sm:$0xff]
  %v246 = vld [vmem:[%s1 + $0x6c0] sm:$0xff]
  %v247 = vld [vmem:[%s1 + $0x6c8] sm:$0xff]
  %v248 = vld [vmem:[%s1 + $0x6d0] sm:$0xff]
  %v249 = vld [vmem:[%s1 + $0x6d8] sm:$0xff]
  %v250 = vld [vmem:[%s1 + $0x6e0] sm:$0xff]
  %v251 = vld [vmem:[%s1 + $0x6e8] sm:$0xff]
  %v252 = vld [vmem:[%s1 + $0x6f0] sm:$0xff]
  %v253 = vld [vmem:[%s1 + $0x6f8] sm:$0xff]
  %v254 = vld [vmem:[%s1 + $0x700] sm:$0xff]
  %v255 = vld [vmem:[%s1 + $0x708] sm:$0xff]
  %v256 = vld [vmem:[%s1 + $0x710] sm:$0xff]
  %v257 = vld [vmem:[%s1 + $0x718] sm:$0xff]
  %v258 = vld [vmem:[%s1 + $0x720] sm:$0xff]
  %v259 = vld [vmem:[%s1 + $0x728] sm:$0xff]
  %v260 = vld [vmem:[%s1 + $0x730] sm:$0xff]
  %v261 = vld [vmem:[%s1 + $0x738] sm:$0xff]
  %v262 = vld [vmem:[%s1 + $0x740] sm:$0xff]
  %v263 = vld [vmem:[%s1 + $0x748] sm:$0xff]
  %v264 = vld [vmem:[%s1 + $0x750] sm:$0xff]
  %v265 = vld [vmem:[%s1 + $0x758] sm:$0xff]
  %v266 = vld [vmem:[%s1 + $0x760] sm:$0xff]
  %v267 = vld [vmem:[%s1 + $0x768] sm:$0xff]
  %v268 = vld [vmem:[%s1 + $0x770] sm:$0xff]
  %v269 = vld [vmem:[%s1 + $0x778] sm:$0xff]
  %v270 = vld [vmem:[%s1 + $0x780] sm:$0xff]
  %v271 = vld [vmem:[%s1 + $0x788] sm:$0xff]
  %v272 = vld [vmem:[%s1 + $0x790] sm:$0xff]
  %v273 = vld [vmem:[%s1 + $0x798] sm:$0xff]
  %v274 = vld [vmem:[%s1 + $0x7a0] sm:$0xff]
  %v275 = vld [vmem:[%s1 + $0x7a8] sm:$0xff]
  %v276 = vld [vmem:[%s1 + $0x7b0] sm:$0xff]
  %v277 = vld [vmem:[%s1 + $0x7b8] sm:$0xff]
  %v278 = vld [vmem:[%s1 + $0x7c0] sm:$0xff]
  %v279 = vld [vmem:[%s1 + $0x7c8] sm:$0xff]
  %v280 = vld [vmem:[%s1 + $0x7d0] sm:$0xff]
  %v281 = vld [vmem:[%s1 + $0x7d8] sm:$0xff]
  %v282 = vld [vmem:[%s1 + $0x7e0] sm:$0xff]
  %v283 = vld [vmem:[%s1 + $0x7e8] sm:$0xff]
  %v284 = vld [vmem:[%s1 + $0x7f0] sm:$0xff]
  %v285 = vld [vmem:[%s1 + $0x7f8] sm:$0xff]
  %v286 = vld [vmem:[%s2] sm:$0x3]
  %v288 = vlaneseq
  %v289 = vshrl.u32 %v288, 7
  %v290 = vsub.s32 0, %v289
  %v291 = vrot.slane %v286, %v290
  %v292 = vlaneseq
  %v293 = vshrl.u32 %v292, 7
  %v294 = vsub.s32 1, %v293
  %v295 = vrot.slane %v286, %v294
  %v314 = vunpack.c.l.b16 %v14
  %v315 = vunpack.c.h.b16 %v14
  %v316 = vunpack.c.l.b16 %v15
  %v317 = vunpack.c.h.b16 %v15
  %v318 = vunpack.c.l.b16 %v16
  %v319 = vunpack.c.h.b16 %v16
  %v320 = vunpack.c.l.b16 %v17
  %v321 = vunpack.c.h.b16 %v17
  %v322 = vunpack.c.l.b16 %v18
  %v323 = vunpack.c.h.b16 %v18
  %v324 = vunpack.c.l.b16 %v19
  %v325 = vunpack.c.h.b16 %v19
  %v326 = vunpack.c.l.b16 %v20
  %v327 = vunpack.c.h.b16 %v20
  %v328 = vunpack.c.l.b16 %v21
  %v329 = vunpack.c.h.b16 %v21
  %v330 = vunpack.c.l.b16 %v22
  %v331 = vunpack.c.h.b16 %v22
  %v332 = vunpack.c.l.b16 %v23
  %v333 = vunpack.c.h.b16 %v23
  %v334 = vunpack.c.l.b16 %v24
  %v335 = vunpack.c.h.b16 %v24
  %v336 = vunpack.c.l.b16 %v25
  %v337 = vunpack.c.h.b16 %v25
  %v338 = vunpack.c.l.b16 %v26
  %v339 = vunpack.c.h.b16 %v26
  %v340 = vunpack.c.l.b16 %v27
  %v341 = vunpack.c.h.b16 %v27
  %v342 = vunpack.c.l.b16 %v28
  %v343 = vunpack.c.h.b16 %v28
  %v344 = vunpack.c.l.b16 %v29
  %v345 = vunpack.c.h.b16 %v29
  %v346 = vpack.c.b16 %v330, %v314
  %v347 = vpack.c.b16 %v331, %v315
  %v348 = vpack.c.b16 %v332, %v316
  %v349 = vpack.c.b16 %v333, %v317
  %v350 = vpack.c.b16 %v334, %v318
  %v351 = vpack.c.b16 %v335, %v319
  %v352 = vpack.c.b16 %v336, %v320
  %v353 = vpack.c.b16 %v337, %v321
  %v354 = vpack.c.b16 %v338, %v322
  %v355 = vpack.c.b16 %v339, %v323
  %v356 = vpack.c.b16 %v340, %v324
  %v357 = vpack.c.b16 %v341, %v325
  %v358 = vpack.c.b16 %v342, %v326
  %v359 = vpack.c.b16 %v343, %v327
  %v360 = vpack.c.b16 %v344, %v328
  %v361 = vpack.c.b16 %v345, %v329
  %v634 = vunpack.c.l.b16 %v30
  %v635 = vunpack.c.h.b16 %v30
  %v636 = vunpack.c.l.b16 %v31
  %v637 = vunpack.c.h.b16 %v31
  %v638 = vunpack.c.l.b16 %v32
  %v639 = vunpack.c.h.b16 %v32
  %v640 = vunpack.c.l.b16 %v33
  %v641 = vunpack.c.h.b16 %v33
  %v642 = vunpack.c.l.b16 %v34
  %v643 = vunpack.c.h.b16 %v34
  %v644 = vunpack.c.l.b16 %v35
  %v645 = vunpack.c.h.b16 %v35
  %v646 = vunpack.c.l.b16 %v36
  %v647 = vunpack.c.h.b16 %v36
  %v648 = vunpack.c.l.b16 %v37
  %v649 = vunpack.c.h.b16 %v37
  %v650 = vunpack.c.l.b16 %v38
  %v651 = vunpack.c.h.b16 %v38
  %v652 = vunpack.c.l.b16 %v39
  %v653 = vunpack.c.h.b16 %v39
  %v654 = vunpack.c.l.b16 %v40
  %v655 = vunpack.c.h.b16 %v40
  %v656 = vunpack.c.l.b16 %v41
  %v657 = vunpack.c.h.b16 %v41
  %v658 = vunpack.c.l.b16 %v42
  %v659 = vunpack.c.h.b16 %v42
  %v660 = vunpack.c.l.b16 %v43
  %v661 = vunpack.c.h.b16 %v43
  %v662 = vunpack.c.l.b16 %v44
  %v663 = vunpack.c.h.b16 %v44
  %v664 = vunpack.c.l.b16 %v45
  %v665 = vunpack.c.h.b16 %v45
  %v666 = vunpack.c.l.b16 %v46
  %v667 = vunpack.c.h.b16 %v46
  %v668 = vunpack.c.l.b16 %v47
  %v669 = vunpack.c.h.b16 %v47
  %v670 = vunpack.c.l.b16 %v48
  %v671 = vunpack.c.h.b16 %v48
  %v672 = vunpack.c.l.b16 %v49
  %v673 = vunpack.c.h.b16 %v49
  %v674 = vunpack.c.l.b16 %v50
  %v675 = vunpack.c.h.b16 %v50
  %v676 = vunpack.c.l.b16 %v51
  %v677 = vunpack.c.h.b16 %v51
  %v678 = vunpack.c.l.b16 %v52
  %v679 = vunpack.c.h.b16 %v52
  %v680 = vunpack.c.l.b16 %v53
  %v681 = vunpack.c.h.b16 %v53
  %v682 = vunpack.c.l.b16 %v54
  %v683 = vunpack.c.h.b16 %v54
  %v684 = vunpack.c.l.b16 %v55
  %v685 = vunpack.c.h.b16 %v55
  %v686 = vunpack.c.l.b16 %v56
  %v687 = vunpack.c.h.b16 %v56
  %v688 = vunpack.c.l.b16 %v57
  %v689 = vunpack.c.h.b16 %v57
  %v690 = vunpack.c.l.b16 %v58
  %v691 = vunpack.c.h.b16 %v58
  %v692 = vunpack.c.l.b16 %v59
  %v693 = vunpack.c.h.b16 %v59
  %v694 = vunpack.c.l.b16 %v60
  %v695 = vunpack.c.h.b16 %v60
  %v696 = vunpack.c.l.b16 %v61
  %v697 = vunpack.c.h.b16 %v61
  %v698 = vunpack.c.l.b16 %v62
  %v699 = vunpack.c.h.b16 %v62
  %v700 = vunpack.c.l.b16 %v63
  %v701 = vunpack.c.h.b16 %v63
  %v702 = vunpack.c.l.b16 %v64
  %v703 = vunpack.c.h.b16 %v64
  %v704 = vunpack.c.l.b16 %v65
  %v705 = vunpack.c.h.b16 %v65
  %v706 = vunpack.c.l.b16 %v66
  %v707 = vunpack.c.h.b16 %v66
  %v708 = vunpack.c.l.b16 %v67
  %v709 = vunpack.c.h.b16 %v67
  %v710 = vunpack.c.l.b16 %v68
  %v711 = vunpack.c.h.b16 %v68
  %v712 = vunpack.c.l.b16 %v69
  %v713 = vunpack.c.h.b16 %v69
  %v714 = vunpack.c.l.b16 %v70
  %v715 = vunpack.c.h.b16 %v70
  %v716 = vunpack.c.l.b16 %v71
  %v717 = vunpack.c.h.b16 %v71
  %v718 = vunpack.c.l.b16 %v72
  %v719 = vunpack.c.h.b16 %v72
  %v720 = vunpack.c.l.b16 %v73
  %v721 = vunpack.c.h.b16 %v73
  %v722 = vunpack.c.l.b16 %v74
  %v723 = vunpack.c.h.b16 %v74
  %v724 = vunpack.c.l.b16 %v75
  %v725 = vunpack.c.h.b16 %v75
  %v726 = vunpack.c.l.b16 %v76
  %v727 = vunpack.c.h.b16 %v76
  %v728 = vunpack.c.l.b16 %v77
  %v729 = vunpack.c.h.b16 %v77
  %v730 = vunpack.c.l.b16 %v78
  %v731 = vunpack.c.h.b16 %v78
  %v732 = vunpack.c.l.b16 %v79
  %v733 = vunpack.c.h.b16 %v79
  %v734 = vunpack.c.l.b16 %v80
  %v735 = vunpack.c.h.b16 %v80
  %v736 = vunpack.c.l.b16 %v81
  %v737 = vunpack.c.h.b16 %v81
  %v738 = vunpack.c.l.b16 %v82
  %v739 = vunpack.c.h.b16 %v82
  %v740 = vunpack.c.l.b16 %v83
  %v741 = vunpack.c.h.b16 %v83
  %v742 = vunpack.c.l.b16 %v84
  %v743 = vunpack.c.h.b16 %v84
  %v744 = vunpack.c.l.b16 %v85
  %v745 = vunpack.c.h.b16 %v85
  %v746 = vunpack.c.l.b16 %v86
  %v747 = vunpack.c.h.b16 %v86
  %v748 = vunpack.c.l.b16 %v87
  %v749 = vunpack.c.h.b16 %v87
  %v750 = vunpack.c.l.b16 %v88
  %v751 = vunpack.c.h.b16 %v88
  %v752 = vunpack.c.l.b16 %v89
  %v753 = vunpack.c.h.b16 %v89
  %v754 = vunpack.c.l.b16 %v90
  %v755 = vunpack.c.h.b16 %v90
  %v756 = vunpack.c.l.b16 %v91
  %v757 = vunpack.c.h.b16 %v91
  %v758 = vunpack.c.l.b16 %v92
  %v759 = vunpack.c.h.b16 %v92
  %v760 = vunpack.c.l.b16 %v93
  %v761 = vunpack.c.h.b16 %v93
  %v762 = vunpack.c.l.b16 %v94
  %v763 = vunpack.c.h.b16 %v94
  %v764 = vunpack.c.l.b16 %v95
  %v765 = vunpack.c.h.b16 %v95
  %v766 = vunpack.c.l.b16 %v96
  %v767 = vunpack.c.h.b16 %v96
  %v768 = vunpack.c.l.b16 %v97
  %v769 = vunpack.c.h.b16 %v97
  %v770 = vunpack.c.l.b16 %v98
  %v771 = vunpack.c.h.b16 %v98
  %v772 = vunpack.c.l.b16 %v99
  %v773 = vunpack.c.h.b16 %v99
  %v774 = vunpack.c.l.b16 %v100
  %v775 = vunpack.c.h.b16 %v100
  %v776 = vunpack.c.l.b16 %v101
  %v777 = vunpack.c.h.b16 %v101
  %v778 = vunpack.c.l.b16 %v102
  %v779 = vunpack.c.h.b16 %v102
  %v780 = vunpack.c.l.b16 %v103
  %v781 = vunpack.c.h.b16 %v103
  %v782 = vunpack.c.l.b16 %v104
  %v783 = vunpack.c.h.b16 %v104
  %v784 = vunpack.c.l.b16 %v105
  %v785 = vunpack.c.h.b16 %v105
  %v786 = vunpack.c.l.b16 %v106
  %v787 = vunpack.c.h.b16 %v106
  %v788 = vunpack.c.l.b16 %v107
  %v789 = vunpack.c.h.b16 %v107
  %v790 = vunpack.c.l.b16 %v108
  %v791 = vunpack.c.h.b16 %v108
  %v792 = vunpack.c.l.b16 %v109
  %v793 = vunpack.c.h.b16 %v109
  %v794 = vunpack.c.l.b16 %v110
  %v795 = vunpack.c.h.b16 %v110
  %v796 = vunpack.c.l.b16 %v111
  %v797 = vunpack.c.h.b16 %v111
  %v798 = vunpack.c.l.b16 %v112
  %v799 = vunpack.c.h.b16 %v112
  %v800 = vunpack.c.l.b16 %v113
  %v801 = vunpack.c.h.b16 %v113
  %v802 = vunpack.c.l.b16 %v114
  %v803 = vunpack.c.h.b16 %v114
  %v804 = vunpack.c.l.b16 %v115
  %v805 = vunpack.c.h.b16 %v115
  %v806 = vunpack.c.l.b16 %v116
  %v807 = vunpack.c.h.b16 %v116
  %v808 = vunpack.c.l.b16 %v117
  %v809 = vunpack.c.h.b16 %v117
  %v810 = vunpack.c.l.b16 %v118
  %v811 = vunpack.c.h.b16 %v118
  %v812 = vunpack.c.l.b16 %v119
  %v813 = vunpack.c.h.b16 %v119
  %v814 = vunpack.c.l.b16 %v120
  %v815 = vunpack.c.h.b16 %v120
  %v816 = vunpack.c.l.b16 %v121
  %v817 = vunpack.c.h.b16 %v121
  %v818 = vunpack.c.l.b16 %v122
  %v819 = vunpack.c.h.b16 %v122
  %v820 = vunpack.c.l.b16 %v123
  %v821 = vunpack.c.h.b16 %v123
  %v822 = vunpack.c.l.b16 %v124
  %v823 = vunpack.c.h.b16 %v124
  %v824 = vunpack.c.l.b16 %v125
  %v825 = vunpack.c.h.b16 %v125
  %v826 = vunpack.c.l.b16 %v126
  %v827 = vunpack.c.h.b16 %v126
  %v828 = vunpack.c.l.b16 %v127
  %v829 = vunpack.c.h.b16 %v127
  %v830 = vunpack.c.l.b16 %v128
  %v831 = vunpack.c.h.b16 %v128
  %v832 = vunpack.c.l.b16 %v129
  %v833 = vunpack.c.h.b16 %v129
  %v834 = vunpack.c.l.b16 %v130
  %v835 = vunpack.c.h.b16 %v130
  %v836 = vunpack.c.l.b16 %v131
  %v837 = vunpack.c.h.b16 %v131
  %v838 = vunpack.c.l.b16 %v132
  %v839 = vunpack.c.h.b16 %v132
  %v840 = vunpack.c.l.b16 %v133
  %v841 = vunpack.c.h.b16 %v133
  %v842 = vunpack.c.l.b16 %v134
  %v843 = vunpack.c.h.b16 %v134
  %v844 = vunpack.c.l.b16 %v135
  %v845 = vunpack.c.h.b16 %v135
  %v846 = vunpack.c.l.b16 %v136
  %v847 = vunpack.c.h.b16 %v136
  %v848 = vunpack.c.l.b16 %v137
  %v849 = vunpack.c.h.b16 %v137
  %v850 = vunpack.c.l.b16 %v138
  %v851 = vunpack.c.h.b16 %v138
  %v852 = vunpack.c.l.b16 %v139
  %v853 = vunpack.c.h.b16 %v139
  %v854 = vunpack.c.l.b16 %v140
  %v855 = vunpack.c.h.b16 %v140
  %v856 = vunpack.c.l.b16 %v141
  %v857 = vunpack.c.h.b16 %v141
  %v858 = vunpack.c.l.b16 %v142
  %v859 = vunpack.c.h.b16 %v142
  %v860 = vunpack.c.l.b16 %v143
  %v861 = vunpack.c.h.b16 %v143
  %v862 = vunpack.c.l.b16 %v144
  %v863 = vunpack.c.h.b16 %v144
  %v864 = vunpack.c.l.b16 %v145
  %v865 = vunpack.c.h.b16 %v145
  %v866 = vunpack.c.l.b16 %v146
  %v867 = vunpack.c.h.b16 %v146
  %v868 = vunpack.c.l.b16 %v147
  %v869 = vunpack.c.h.b16 %v147
  %v870 = vunpack.c.l.b16 %v148
  %v871 = vunpack.c.h.b16 %v148
  %v872 = vunpack.c.l.b16 %v149
  %v873 = vunpack.c.h.b16 %v149
  %v874 = vunpack.c.l.b16 %v150
  %v875 = vunpack.c.h.b16 %v150
  %v876 = vunpack.c.l.b16 %v151
  %v877 = vunpack.c.h.b16 %v151
  %v878 = vunpack.c.l.b16 %v152
  %v879 = vunpack.c.h.b16 %v152
  %v880 = vunpack.c.l.b16 %v153
  %v881 = vunpack.c.h.b16 %v153
  %v882 = vunpack.c.l.b16 %v154
  %v883 = vunpack.c.h.b16 %v154
  %v884 = vunpack.c.l.b16 %v155
  %v885 = vunpack.c.h.b16 %v155
  %v886 = vunpack.c.l.b16 %v156
  %v887 = vunpack.c.h.b16 %v156
  %v888 = vunpack.c.l.b16 %v157
  %v889 = vunpack.c.h.b16 %v157
  %v890 = vunpack.c.l.b16 %v158
  %v891 = vunpack.c.h.b16 %v158
  %v892 = vunpack.c.l.b16 %v159
  %v893 = vunpack.c.h.b16 %v159
  %v894 = vunpack.c.l.b16 %v160
  %v895 = vunpack.c.h.b16 %v160
  %v896 = vunpack.c.l.b16 %v161
  %v897 = vunpack.c.h.b16 %v161
  %v898 = vunpack.c.l.b16 %v162
  %v899 = vunpack.c.h.b16 %v162
  %v900 = vunpack.c.l.b16 %v163
  %v901 = vunpack.c.h.b16 %v163
  %v902 = vunpack.c.l.b16 %v164
  %v903 = vunpack.c.h.b16 %v164
  %v904 = vunpack.c.l.b16 %v165
  %v905 = vunpack.c.h.b16 %v165
  %v906 = vunpack.c.l.b16 %v166
  %v907 = vunpack.c.h.b16 %v166
  %v908 = vunpack.c.l.b16 %v167
  %v909 = vunpack.c.h.b16 %v167
  %v910 = vunpack.c.l.b16 %v168
  %v911 = vunpack.c.h.b16 %v168
  %v912 = vunpack.c.l.b16 %v169
  %v913 = vunpack.c.h.b16 %v169
  %v914 = vunpack.c.l.b16 %v170
  %v915 = vunpack.c.h.b16 %v170
  %v916 = vunpack.c.l.b16 %v171
  %v917 = vunpack.c.h.b16 %v171
  %v918 = vunpack.c.l.b16 %v172
  %v919 = vunpack.c.h.b16 %v172
  %v920 = vunpack.c.l.b16 %v173
  %v921 = vunpack.c.h.b16 %v173
  %v922 = vunpack.c.l.b16 %v174
  %v923 = vunpack.c.h.b16 %v174
  %v924 = vunpack.c.l.b16 %v175
  %v925 = vunpack.c.h.b16 %v175
  %v926 = vunpack.c.l.b16 %v176
  %v927 = vunpack.c.h.b16 %v176
  %v928 = vunpack.c.l.b16 %v177
  %v929 = vunpack.c.h.b16 %v177
  %v930 = vunpack.c.l.b16 %v178
  %v931 = vunpack.c.h.b16 %v178
  %v932 = vunpack.c.l.b16 %v179
  %v933 = vunpack.c.h.b16 %v179
  %v934 = vunpack.c.l.b16 %v180
  %v935 = vunpack.c.h.b16 %v180
  %v936 = vunpack.c.l.b16 %v181
  %v937 = vunpack.c.h.b16 %v181
  %v938 = vunpack.c.l.b16 %v182
  %v939 = vunpack.c.h.b16 %v182
  %v940 = vunpack.c.l.b16 %v183
  %v941 = vunpack.c.h.b16 %v183
  %v942 = vunpack.c.l.b16 %v184
  %v943 = vunpack.c.h.b16 %v184
  %v944 = vunpack.c.l.b16 %v185
  %v945 = vunpack.c.h.b16 %v185
  %v946 = vunpack.c.l.b16 %v186
  %v947 = vunpack.c.h.b16 %v186
  %v948 = vunpack.c.l.b16 %v187
  %v949 = vunpack.c.h.b16 %v187
  %v950 = vunpack.c.l.b16 %v188
  %v951 = vunpack.c.h.b16 %v188
  %v952 = vunpack.c.l.b16 %v189
  %v953 = vunpack.c.h.b16 %v189
  %v954 = vunpack.c.l.b16 %v190
  %v955 = vunpack.c.h.b16 %v190
  %v956 = vunpack.c.l.b16 %v191
  %v957 = vunpack.c.h.b16 %v191
  %v958 = vunpack.c.l.b16 %v192
  %v959 = vunpack.c.h.b16 %v192
  %v960 = vunpack.c.l.b16 %v193
  %v961 = vunpack.c.h.b16 %v193
  %v962 = vunpack.c.l.b16 %v194
  %v963 = vunpack.c.h.b16 %v194
  %v964 = vunpack.c.l.b16 %v195
  %v965 = vunpack.c.h.b16 %v195
  %v966 = vunpack.c.l.b16 %v196
  %v967 = vunpack.c.h.b16 %v196
  %v968 = vunpack.c.l.b16 %v197
  %v969 = vunpack.c.h.b16 %v197
  %v970 = vunpack.c.l.b16 %v198
  %v971 = vunpack.c.h.b16 %v198
  %v972 = vunpack.c.l.b16 %v199
  %v973 = vunpack.c.h.b16 %v199
  %v974 = vunpack.c.l.b16 %v200
  %v975 = vunpack.c.h.b16 %v200
  %v976 = vunpack.c.l.b16 %v201
  %v977 = vunpack.c.h.b16 %v201
  %v978 = vunpack.c.l.b16 %v202
  %v979 = vunpack.c.h.b16 %v202
  %v980 = vunpack.c.l.b16 %v203
  %v981 = vunpack.c.h.b16 %v203
  %v982 = vunpack.c.l.b16 %v204
  %v983 = vunpack.c.h.b16 %v204
  %v984 = vunpack.c.l.b16 %v205
  %v985 = vunpack.c.h.b16 %v205
  %v986 = vunpack.c.l.b16 %v206
  %v987 = vunpack.c.h.b16 %v206
  %v988 = vunpack.c.l.b16 %v207
  %v989 = vunpack.c.h.b16 %v207
  %v990 = vunpack.c.l.b16 %v208
  %v991 = vunpack.c.h.b16 %v208
  %v992 = vunpack.c.l.b16 %v209
  %v993 = vunpack.c.h.b16 %v209
  %v994 = vunpack.c.l.b16 %v210
  %v995 = vunpack.c.h.b16 %v210
  %v996 = vunpack.c.l.b16 %v211
  %v997 = vunpack.c.h.b16 %v211
  %v998 = vunpack.c.l.b16 %v212
  %v999 = vunpack.c.h.b16 %v212
  %v1000 = vunpack.c.l.b16 %v213
  %v1001 = vunpack.c.h.b16 %v213
  %v1002 = vunpack.c.l.b16 %v214
  %v1003 = vunpack.c.h.b16 %v214
  %v1004 = vunpack.c.l.b16 %v215
  %v1005 = vunpack.c.h.b16 %v215
  %v1006 = vunpack.c.l.b16 %v216
  %v1007 = vunpack.c.h.b16 %v216
  %v1008 = vunpack.c.l.b16 %v217
  %v1009 = vunpack.c.h.b16 %v217
  %v1010 = vunpack.c.l.b16 %v218
  %v1011 = vunpack.c.h.b16 %v218
  %v1012 = vunpack.c.l.b16 %v219
  %v1013 = vunpack.c.h.b16 %v219
  %v1014 = vunpack.c.l.b16 %v220
  %v1015 = vunpack.c.h.b16 %v220
  %v1016 = vunpack.c.l.b16 %v221
  %v1017 = vunpack.c.h.b16 %v221
  %v1018 = vunpack.c.l.b16 %v222
  %v1019 = vunpack.c.h.b16 %v222
  %v1020 = vunpack.c.l.b16 %v223
  %v1021 = vunpack.c.h.b16 %v223
  %v1022 = vunpack.c.l.b16 %v224
  %v1023 = vunpack.c.h.b16 %v224
  %v1024 = vunpack.c.l.b16 %v225
  %v1025 = vunpack.c.h.b16 %v225
  %v1026 = vunpack.c.l.b16 %v226
  %v1027 = vunpack.c.h.b16 %v226
  %v1028 = vunpack.c.l.b16 %v227
  %v1029 = vunpack.c.h.b16 %v227
  %v1030 = vunpack.c.l.b16 %v228
  %v1031 = vunpack.c.h.b16 %v228
  %v1032 = vunpack.c.l.b16 %v229
  %v1033 = vunpack.c.h.b16 %v229
  %v1034 = vunpack.c.l.b16 %v230
  %v1035 = vunpack.c.h.b16 %v230
  %v1036 = vunpack.c.l.b16 %v231
  %v1037 = vunpack.c.h.b16 %v231
  %v1038 = vunpack.c.l.b16 %v232
  %v1039 = vunpack.c.h.b16 %v232
  %v1040 = vunpack.c.l.b16 %v233
  %v1041 = vunpack.c.h.b16 %v233
  %v1042 = vunpack.c.l.b16 %v234
  %v1043 = vunpack.c.h.b16 %v234
  %v1044 = vunpack.c.l.b16 %v235
  %v1045 = vunpack.c.h.b16 %v235
  %v1046 = vunpack.c.l.b16 %v236
  %v1047 = vunpack.c.h.b16 %v236
  %v1048 = vunpack.c.l.b16 %v237
  %v1049 = vunpack.c.h.b16 %v237
  %v1050 = vunpack.c.l.b16 %v238
  %v1051 = vunpack.c.h.b16 %v238
  %v1052 = vunpack.c.l.b16 %v239
  %v1053 = vunpack.c.h.b16 %v239
  %v1054 = vunpack.c.l.b16 %v240
  %v1055 = vunpack.c.h.b16 %v240
  %v1056 = vunpack.c.l.b16 %v241
  %v1057 = vunpack.c.h.b16 %v241
  %v1058 = vunpack.c.l.b16 %v242
  %v1059 = vunpack.c.h.b16 %v242
  %v1060 = vunpack.c.l.b16 %v243
  %v1061 = vunpack.c.h.b16 %v243
  %v1062 = vunpack.c.l.b16 %v244
  %v1063 = vunpack.c.h.b16 %v244
  %v1064 = vunpack.c.l.b16 %v245
  %v1065 = vunpack.c.h.b16 %v245
  %v1066 = vunpack.c.l.b16 %v246
  %v1067 = vunpack.c.h.b16 %v246
  %v1068 = vunpack.c.l.b16 %v247
  %v1069 = vunpack.c.h.b16 %v247
  %v1070 = vunpack.c.l.b16 %v248
  %v1071 = vunpack.c.h.b16 %v248
  %v1072 = vunpack.c.l.b16 %v249
  %v1073 = vunpack.c.h.b16 %v249
  %v1074 = vunpack.c.l.b16 %v250
  %v1075 = vunpack.c.h.b16 %v250
  %v1076 = vunpack.c.l.b16 %v251
  %v1077 = vunpack.c.h.b16 %v251
  %v1078 = vunpack.c.l.b16 %v252
  %v1079 = vunpack.c.h.b16 %v252
  %v1080 = vunpack.c.l.b16 %v253
  %v1081 = vunpack.c.h.b16 %v253
  %v1082 = vunpack.c.l.b16 %v254
  %v1083 = vunpack.c.h.b16 %v254
  %v1084 = vunpack.c.l.b16 %v255
  %v1085 = vunpack.c.h.b16 %v255
  %v1086 = vunpack.c.l.b16 %v256
  %v1087 = vunpack.c.h.b16 %v256
  %v1088 = vunpack.c.l.b16 %v257
  %v1089 = vunpack.c.h.b16 %v257
  %v1090 = vunpack.c.l.b16 %v258
  %v1091 = vunpack.c.h.b16 %v258
  %v1092 = vunpack.c.l.b16 %v259
  %v1093 = vunpack.c.h.b16 %v259
  %v1094 = vunpack.c.l.b16 %v260
  %v1095 = vunpack.c.h.b16 %v260
  %v1096 = vunpack.c.l.b16 %v261
  %v1097 = vunpack.c.h.b16 %v261
  %v1098 = vunpack.c.l.b16 %v262
  %v1099 = vunpack.c.h.b16 %v262
  %v1100 = vunpack.c.l.b16 %v263
  %v1101 = vunpack.c.h.b16 %v263
  %v1102 = vunpack.c.l.b16 %v264
  %v1103 = vunpack.c.h.b16 %v264
  %v1104 = vunpack.c.l.b16 %v265
  %v1105 = vunpack.c.h.b16 %v265
  %v1106 = vunpack.c.l.b16 %v266
  %v1107 = vunpack.c.h.b16 %v266
  %v1108 = vunpack.c.l.b16 %v267
  %v1109 = vunpack.c.h.b16 %v267
  %v1110 = vunpack.c.l.b16 %v268
  %v1111 = vunpack.c.h.b16 %v268
  %v1112 = vunpack.c.l.b16 %v269
  %v1113 = vunpack.c.h.b16 %v269
  %v1114 = vunpack.c.l.b16 %v270
  %v1115 = vunpack.c.h.b16 %v270
  %v1116 = vunpack.c.l.b16 %v271
  %v1117 = vunpack.c.h.b16 %v271
  %v1118 = vunpack.c.l.b16 %v272
  %v1119 = vunpack.c.h.b16 %v272
  %v1120 = vunpack.c.l.b16 %v273
  %v1121 = vunpack.c.h.b16 %v273
  %v1122 = vunpack.c.l.b16 %v274
  %v1123 = vunpack.c.h.b16 %v274
  %v1124 = vunpack.c.l.b16 %v275
  %v1125 = vunpack.c.h.b16 %v275
  %v1126 = vunpack.c.l.b16 %v276
  %v1127 = vunpack.c.h.b16 %v276
  %v1128 = vunpack.c.l.b16 %v277
  %v1129 = vunpack.c.h.b16 %v277
  %v1130 = vunpack.c.l.b16 %v278
  %v1131 = vunpack.c.h.b16 %v278
  %v1132 = vunpack.c.l.b16 %v279
  %v1133 = vunpack.c.h.b16 %v279
  %v1134 = vunpack.c.l.b16 %v280
  %v1135 = vunpack.c.h.b16 %v280
  %v1136 = vunpack.c.l.b16 %v281
  %v1137 = vunpack.c.h.b16 %v281
  %v1138 = vunpack.c.l.b16 %v282
  %v1139 = vunpack.c.h.b16 %v282
  %v1140 = vunpack.c.l.b16 %v283
  %v1141 = vunpack.c.h.b16 %v283
  %v1142 = vunpack.c.l.b16 %v284
  %v1143 = vunpack.c.h.b16 %v284
  %v1144 = vunpack.c.l.b16 %v285
  %v1145 = vunpack.c.h.b16 %v285
  %v1146 = vpack.c.b16 %v636, %v634
  %v1147 = vpack.c.b16 %v637, %v635
  %v1148 = vpack.c.b16 %v640, %v638
  %v1149 = vpack.c.b16 %v641, %v639
  %v1150 = vpack.c.b16 %v644, %v642
  %v1151 = vpack.c.b16 %v645, %v643
  %v1152 = vpack.c.b16 %v648, %v646
  %v1153 = vpack.c.b16 %v649, %v647
  %v1154 = vpack.c.b16 %v652, %v650
  %v1155 = vpack.c.b16 %v653, %v651
  %v1156 = vpack.c.b16 %v656, %v654
  %v1157 = vpack.c.b16 %v657, %v655
  %v1158 = vpack.c.b16 %v660, %v658
  %v1159 = vpack.c.b16 %v661, %v659
  %v1160 = vpack.c.b16 %v664, %v662
  %v1161 = vpack.c.b16 %v665, %v663
  %v1162 = vpack.c.b16 %v668, %v666
  %v1163 = vpack.c.b16 %v669, %v667
  %v1164 = vpack.c.b16 %v672, %v670
  %v1165 = vpack.c.b16 %v673, %v671
  %v1166 = vpack.c.b16 %v676, %v674
  %v1167 = vpack.c.b16 %v677, %v675
  %v1168 = vpack.c.b16 %v680, %v678
  %v1169 = vpack.c.b16 %v681, %v679
  %v1170 = vpack.c.b16 %v684, %v682
  %v1171 = vpack.c.b16 %v685, %v683
  %v1172 = vpack.c.b16 %v688, %v686
  %v1173 = vpack.c.b16 %v689, %v687
  %v1174 = vpack.c.b16 %v692, %v690
  %v1175 = vpack.c.b16 %v693, %v691
  %v1176 = vpack.c.b16 %v696, %v694
  %v1177 = vpack.c.b16 %v697, %v695
  %v1178 = vpack.c.b16 %v700, %v698
  %v1179 = vpack.c.b16 %v701, %v699
  %v1180 = vpack.c.b16 %v704, %v702
  %v1181 = vpack.c.b16 %v705, %v703
  %v1182 = vpack.c.b16 %v708, %v706
  %v1183 = vpack.c.b16 %v709, %v707
  %v1184 = vpack.c.b16 %v712, %v710
  %v1185 = vpack.c.b16 %v713, %v711
  %v1186 = vpack.c.b16 %v716, %v714
  %v1187 = vpack.c.b16 %v717, %v715
  %v1188 = vpack.c.b16 %v720, %v718
  %v1189 = vpack.c.b16 %v721, %v719
  %v1190 = vpack.c.b16 %v724, %v722
  %v1191 = vpack.c.b16 %v725, %v723
  %v1192 = vpack.c.b16 %v728, %v726
  %v1193 = vpack.c.b16 %v729, %v727
  %v1194 = vpack.c.b16 %v732, %v730
  %v1195 = vpack.c.b16 %v733, %v731
  %v1196 = vpack.c.b16 %v736, %v734
  %v1197 = vpack.c.b16 %v737, %v735
  %v1198 = vpack.c.b16 %v740, %v738
  %v1199 = vpack.c.b16 %v741, %v739
  %v1200 = vpack.c.b16 %v744, %v742
  %v1201 = vpack.c.b16 %v745, %v743
  %v1202 = vpack.c.b16 %v748, %v746
  %v1203 = vpack.c.b16 %v749, %v747
  %v1204 = vpack.c.b16 %v752, %v750
  %v1205 = vpack.c.b16 %v753, %v751
  %v1206 = vpack.c.b16 %v756, %v754
  %v1207 = vpack.c.b16 %v757, %v755
  %v1208 = vpack.c.b16 %v760, %v758
  %v1209 = vpack.c.b16 %v761, %v759
  %v1210 = vpack.c.b16 %v764, %v762
  %v1211 = vpack.c.b16 %v765, %v763
  %v1212 = vpack.c.b16 %v768, %v766
  %v1213 = vpack.c.b16 %v769, %v767
  %v1214 = vpack.c.b16 %v772, %v770
  %v1215 = vpack.c.b16 %v773, %v771
  %v1216 = vpack.c.b16 %v776, %v774
  %v1217 = vpack.c.b16 %v777, %v775
  %v1218 = vpack.c.b16 %v780, %v778
  %v1219 = vpack.c.b16 %v781, %v779
  %v1220 = vpack.c.b16 %v784, %v782
  %v1221 = vpack.c.b16 %v785, %v783
  %v1222 = vpack.c.b16 %v788, %v786
  %v1223 = vpack.c.b16 %v789, %v787
  %v1224 = vpack.c.b16 %v792, %v790
  %v1225 = vpack.c.b16 %v793, %v791
  %v1226 = vpack.c.b16 %v796, %v794
  %v1227 = vpack.c.b16 %v797, %v795
  %v1228 = vpack.c.b16 %v800, %v798
  %v1229 = vpack.c.b16 %v801, %v799
  %v1230 = vpack.c.b16 %v804, %v802
  %v1231 = vpack.c.b16 %v805, %v803
  %v1232 = vpack.c.b16 %v808, %v806
  %v1233 = vpack.c.b16 %v809, %v807
  %v1234 = vpack.c.b16 %v812, %v810
  %v1235 = vpack.c.b16 %v813, %v811
  %v1236 = vpack.c.b16 %v816, %v814
  %v1237 = vpack.c.b16 %v817, %v815
  %v1238 = vpack.c.b16 %v820, %v818
  %v1239 = vpack.c.b16 %v821, %v819
  %v1240 = vpack.c.b16 %v824, %v822
  %v1241 = vpack.c.b16 %v825, %v823
  %v1242 = vpack.c.b16 %v828, %v826
  %v1243 = vpack.c.b16 %v829, %v827
  %v1244 = vpack.c.b16 %v832, %v830
  %v1245 = vpack.c.b16 %v833, %v831
  %v1246 = vpack.c.b16 %v836, %v834
  %v1247 = vpack.c.b16 %v837, %v835
  %v1248 = vpack.c.b16 %v840, %v838
  %v1249 = vpack.c.b16 %v841, %v839
  %v1250 = vpack.c.b16 %v844, %v842
  %v1251 = vpack.c.b16 %v845, %v843
  %v1252 = vpack.c.b16 %v848, %v846
  %v1253 = vpack.c.b16 %v849, %v847
  %v1254 = vpack.c.b16 %v852, %v850
  %v1255 = vpack.c.b16 %v853, %v851
  %v1256 = vpack.c.b16 %v856, %v854
  %v1257 = vpack.c.b16 %v857, %v855
  %v1258 = vpack.c.b16 %v860, %v858
  %v1259 = vpack.c.b16 %v861, %v859
  %v1260 = vpack.c.b16 %v864, %v862
  %v1261 = vpack.c.b16 %v865, %v863
  %v1262 = vpack.c.b16 %v868, %v866
  %v1263 = vpack.c.b16 %v869, %v867
  %v1264 = vpack.c.b16 %v872, %v870
  %v1265 = vpack.c.b16 %v873, %v871
  %v1266 = vpack.c.b16 %v876, %v874
  %v1267 = vpack.c.b16 %v877, %v875
  %v1268 = vpack.c.b16 %v880, %v878
  %v1269 = vpack.c.b16 %v881, %v879
  %v1270 = vpack.c.b16 %v884, %v882
  %v1271 = vpack.c.b16 %v885, %v883
  %v1272 = vpack.c.b16 %v888, %v886
  %v1273 = vpack.c.b16 %v889, %v887
  %v1274 = vpack.c.b16 %v892, %v890
  %v1275 = vpack.c.b16 %v893, %v891
  %v1276 = vpack.c.b16 %v896, %v894
  %v1277 = vpack.c.b16 %v897, %v895
  %v1278 = vpack.c.b16 %v900, %v898
  %v1279 = vpack.c.b16 %v901, %v899
  %v1280 = vpack.c.b16 %v904, %v902
  %v1281 = vpack.c.b16 %v905, %v903
  %v1282 = vpack.c.b16 %v908, %v906
  %v1283 = vpack.c.b16 %v909, %v907
  %v1284 = vpack.c.b16 %v912, %v910
  %v1285 = vpack.c.b16 %v913, %v911
  %v1286 = vpack.c.b16 %v916, %v914
  %v1287 = vpack.c.b16 %v917, %v915
  %v1288 = vpack.c.b16 %v920, %v918
  %v1289 = vpack.c.b16 %v921, %v919
  %v1290 = vpack.c.b16 %v924, %v922
  %v1291 = vpack.c.b16 %v925, %v923
  %v1292 = vpack.c.b16 %v928, %v926
  %v1293 = vpack.c.b16 %v929, %v927
  %v1294 = vpack.c.b16 %v932, %v930
  %v1295 = vpack.c.b16 %v933, %v931
  %v1296 = vpack.c.b16 %v936, %v934
  %v1297 = vpack.c.b16 %v937, %v935
  %v1298 = vpack.c.b16 %v940, %v938
  %v1299 = vpack.c.b16 %v941, %v939
  %v1300 = vpack.c.b16 %v944, %v942
  %v1301 = vpack.c.b16 %v945, %v943
  %v1302 = vpack.c.b16 %v948, %v946
  %v1303 = vpack.c.b16 %v949, %v947
  %v1304 = vpack.c.b16 %v952, %v950
  %v1305 = vpack.c.b16 %v953, %v951
  %v1306 = vpack.c.b16 %v956, %v954
  %v1307 = vpack.c.b16 %v957, %v955
  %v1308 = vpack.c.b16 %v960, %v958
  %v1309 = vpack.c.b16 %v961, %v959
  %v1310 = vpack.c.b16 %v964, %v962
  %v1311 = vpack.c.b16 %v965, %v963
  %v1312 = vpack.c.b16 %v968, %v966
  %v1313 = vpack.c.b16 %v969, %v967
  %v1314 = vpack.c.b16 %v972, %v970
  %v1315 = vpack.c.b16 %v973, %v971
  %v1316 = vpack.c.b16 %v976, %v974
  %v1317 = vpack.c.b16 %v977, %v975
  %v1318 = vpack.c.b16 %v980, %v978
  %v1319 = vpack.c.b16 %v981, %v979
  %v1320 = vpack.c.b16 %v984, %v982
  %v1321 = vpack.c.b16 %v985, %v983
  %v1322 = vpack.c.b16 %v988, %v986
  %v1323 = vpack.c.b16 %v989, %v987
  %v1324 = vpack.c.b16 %v992, %v990
  %v1325 = vpack.c.b16 %v993, %v991
  %v1326 = vpack.c.b16 %v996, %v994
  %v1327 = vpack.c.b16 %v997, %v995
  %v1328 = vpack.c.b16 %v1000, %v998
  %v1329 = vpack.c.b16 %v1001, %v999
  %v1330 = vpack.c.b16 %v1004, %v1002
  %v1331 = vpack.c.b16 %v1005, %v1003
  %v1332 = vpack.c.b16 %v1008, %v1006
  %v1333 = vpack.c.b16 %v1009, %v1007
  %v1334 = vpack.c.b16 %v1012, %v1010
  %v1335 = vpack.c.b16 %v1013, %v1011
  %v1336 = vpack.c.b16 %v1016, %v1014
  %v1337 = vpack.c.b16 %v1017, %v1015
  %v1338 = vpack.c.b16 %v1020, %v1018
  %v1339 = vpack.c.b16 %v1021, %v1019
  %v1340 = vpack.c.b16 %v1024, %v1022
  %v1341 = vpack.c.b16 %v1025, %v1023
  %v1342 = vpack.c.b16 %v1028, %v1026
  %v1343 = vpack.c.b16 %v1029, %v1027
  %v1344 = vpack.c.b16 %v1032, %v1030
  %v1345 = vpack.c.b16 %v1033, %v1031
  %v1346 = vpack.c.b16 %v1036, %v1034
  %v1347 = vpack.c.b16 %v1037, %v1035
  %v1348 = vpack.c.b16 %v1040, %v1038
  %v1349 = vpack.c.b16 %v1041, %v1039
  %v1350 = vpack.c.b16 %v1044, %v1042
  %v1351 = vpack.c.b16 %v1045, %v1043
  %v1352 = vpack.c.b16 %v1048, %v1046
  %v1353 = vpack.c.b16 %v1049, %v1047
  %v1354 = vpack.c.b16 %v1052, %v1050
  %v1355 = vpack.c.b16 %v1053, %v1051
  %v1356 = vpack.c.b16 %v1056, %v1054
  %v1357 = vpack.c.b16 %v1057, %v1055
  %v1358 = vpack.c.b16 %v1060, %v1058
  %v1359 = vpack.c.b16 %v1061, %v1059
  %v1360 = vpack.c.b16 %v1064, %v1062
  %v1361 = vpack.c.b16 %v1065, %v1063
  %v1362 = vpack.c.b16 %v1068, %v1066
  %v1363 = vpack.c.b16 %v1069, %v1067
  %v1364 = vpack.c.b16 %v1072, %v1070
  %v1365 = vpack.c.b16 %v1073, %v1071
  %v1366 = vpack.c.b16 %v1076, %v1074
  %v1367 = vpack.c.b16 %v1077, %v1075
  %v1368 = vpack.c.b16 %v1080, %v1078
  %v1369 = vpack.c.b16 %v1081, %v1079
  %v1370 = vpack.c.b16 %v1084, %v1082
  %v1371 = vpack.c.b16 %v1085, %v1083
  %v1372 = vpack.c.b16 %v1088, %v1086
  %v1373 = vpack.c.b16 %v1089, %v1087
  %v1374 = vpack.c.b16 %v1092, %v1090
  %v1375 = vpack.c.b16 %v1093, %v1091
  %v1376 = vpack.c.b16 %v1096, %v1094
  %v1377 = vpack.c.b16 %v1097, %v1095
  %v1378 = vpack.c.b16 %v1100, %v1098
  %v1379 = vpack.c.b16 %v1101, %v1099
  %v1380 = vpack.c.b16 %v1104, %v1102
  %v1381 = vpack.c.b16 %v1105, %v1103
  %v1382 = vpack.c.b16 %v1108, %v1106
  %v1383 = vpack.c.b16 %v1109, %v1107
  %v1384 = vpack.c.b16 %v1112, %v1110
  %v1385 = vpack.c.b16 %v1113, %v1111
  %v1386 = vpack.c.b16 %v1116, %v1114
  %v1387 = vpack.c.b16 %v1117, %v1115
  %v1388 = vpack.c.b16 %v1120, %v1118
  %v1389 = vpack.c.b16 %v1121, %v1119
  %v1390 = vpack.c.b16 %v1124, %v1122
  %v1391 = vpack.c.b16 %v1125, %v1123
  %v1392 = vpack.c.b16 %v1128, %v1126
  %v1393 = vpack.c.b16 %v1129, %v1127
  %v1394 = vpack.c.b16 %v1132, %v1130
  %v1395 = vpack.c.b16 %v1133, %v1131
  %v1396 = vpack.c.b16 %v1136, %v1134
  %v1397 = vpack.c.b16 %v1137, %v1135
  %v1398 = vpack.c.b16 %v1140, %v1138
  %v1399 = vpack.c.b16 %v1141, %v1139
  %v1400 = vpack.c.b16 %v1144, %v1142
  %v1401 = vpack.c.b16 %v1145, %v1143
  %1658 = vmatprep.subr.bf16.mxu0 %v1147
  %1659 = vmatpush1.bf16.msra.mxu0 %v1146
  %1660 = vmatprep.subr.bf16.mxu0 %v1149
  %1661 = vmatpush1.bf16.msra.mxu0 %v1148
  %1662 = vmatprep.subr.bf16.mxu0 %v1151
  %1663 = vmatpush1.bf16.msra.mxu0 %v1150
  %1664 = vmatprep.subr.bf16.mxu0 %v1153
  %1665 = vmatpush1.bf16.msra.mxu0 %v1152
  %1666 = vmatprep.subr.bf16.mxu0 %v1155
  %1667 = vmatpush1.bf16.msra.mxu0 %v1154
  %1668 = vmatprep.subr.bf16.mxu0 %v1157
  %1669 = vmatpush1.bf16.msra.mxu0 %v1156
  %1670 = vmatprep.subr.bf16.mxu0 %v1159
  %1671 = vmatpush1.bf16.msra.mxu0 %v1158
  %1672 = vmatprep.subr.bf16.mxu0 %v1161
  %1673 = vmatpush1.bf16.msra.mxu0 %v1160
  %1674 = vmatprep.subr.bf16.mxu0 %v1163
  %1675 = vmatpush1.bf16.msra.mxu0 %v1162
  %1676 = vmatprep.subr.bf16.mxu0 %v1165
  %1677 = vmatpush1.bf16.msra.mxu0 %v1164
  %1678 = vmatprep.subr.bf16.mxu0 %v1167
  %1679 = vmatpush1.bf16.msra.mxu0 %v1166
  %1680 = vmatprep.subr.bf16.mxu0 %v1169
  %1681 = vmatpush1.bf16.msra.mxu0 %v1168
  %1682 = vmatprep.subr.bf16.mxu0 %v1171
  %1683 = vmatpush1.bf16.msra.mxu0 %v1170
  %1684 = vmatprep.subr.bf16.mxu0 %v1173
  %1685 = vmatpush1.bf16.msra.mxu0 %v1172
  %1686 = vmatprep.subr.bf16.mxu0 %v1175
  %1687 = vmatpush1.bf16.msra.mxu0 %v1174
  %1688 = vmatprep.subr.bf16.mxu0 %v1177
  %1689 = vmatpush1.bf16.msra.mxu0 %v1176
  %1690 = vmatprep.mubr.bf16.mxu0 %v347
  %1691 = vmatmul.mubr.bf16.gmra.mrb[0].mxu0 %v346
  %v1692 = vpop.f32.mrb[0].mxu0
  %v1693 = vadd.f32 %v291, %v1692
  %v1694 = vpop.f32.mrb[0].mxu0
  %v1695 = vadd.f32 %v295, %v1694
  %v1696 = vpop.f32.mrb[0].mxu0
  %v1697 = vadd.f32 %v291, %v1696
  %v1698 = vpop.f32.mrb[0].mxu0
  %v1699 = vadd.f32 %v295, %v1698
  %1700 = vdwg.mxu0
  %1701 = vmatprep.subr.bf16.mxu0 %v1179
  %1702 = vmatpush1.bf16.msra.mxu0 %v1178
  %1703 = vmatprep.subr.bf16.mxu0 %v1181
  %1704 = vmatpush1.bf16.msra.mxu0 %v1180
  %1705 = vmatprep.subr.bf16.mxu0 %v1183
  %1706 = vmatpush1.bf16.msra.mxu0 %v1182
  %1707 = vmatprep.subr.bf16.mxu0 %v1185
  %1708 = vmatpush1.bf16.msra.mxu0 %v1184
  %1709 = vmatprep.subr.bf16.mxu0 %v1187
  %1710 = vmatpush1.bf16.msra.mxu0 %v1186
  %1711 = vmatprep.subr.bf16.mxu0 %v1189
  %1712 = vmatpush1.bf16.msra.mxu0 %v1188
  %1713 = vmatprep.subr.bf16.mxu0 %v1191
  %1714 = vmatpush1.bf16.msra.mxu0 %v1190
  %1715 = vmatprep.subr.bf16.mxu0 %v1193
  %1716 = vmatpush1.bf16.msra.mxu0 %v1192
  %1717 = vmatprep.subr.bf16.mxu0 %v1195
  %1718 = vmatpush1.bf16.msra.mxu0 %v1194
  %1719 = vmatprep.subr.bf16.mxu0 %v1197
  %1720 = vmatpush1.bf16.msra.mxu0 %v1196
  %1721 = vmatprep.subr.bf16.mxu0 %v1199
  %1722 = vmatpush1.bf16.msra.mxu0 %v1198
  %1723 = vmatprep.subr.bf16.mxu0 %v1201
  %1724 = vmatpush1.bf16.msra.mxu0 %v1200
  %1725 = vmatprep.subr.bf16.mxu0 %v1203
  %1726 = vmatpush1.bf16.msra.mxu0 %v1202
  %1727 = vmatprep.subr.bf16.mxu0 %v1205
  %1728 = vmatpush1.bf16.msra.mxu0 %v1204
  %1729 = vmatprep.subr.bf16.mxu0 %v1207
  %1730 = vmatpush1.bf16.msra.mxu0 %v1206
  %1731 = vmatprep.subr.bf16.mxu0 %v1209
  %1732 = vmatpush1.bf16.msra.mxu0 %v1208
  %1733 = vmatprep.mubr.bf16.mxu0 %v349
  %1734 = vmatmul.mubr.bf16.gmra.mrb[0].mxu0 %v348
  %v1735 = vpop.f32.mrb[0].mxu0
  %v1736 = vadd.f32 %v1693, %v1735
  %v1737 = vpop.f32.mrb[0].mxu0
  %v1738 = vadd.f32 %v1695, %v1737
  %v1739 = vpop.f32.mrb[0].mxu0
  %v1740 = vadd.f32 %v1697, %v1739
  %v1741 = vpop.f32.mrb[0].mxu0
  %v1742 = vadd.f32 %v1699, %v1741
  %1743 = vdwg.mxu0
  %1744 = vmatprep.subr.bf16.mxu0 %v1211
  %1745 = vmatpush1.bf16.msra.mxu0 %v1210
  %1746 = vmatprep.subr.bf16.mxu0 %v1213
  %1747 = vmatpush1.bf16.msra.mxu0 %v1212
  %1748 = vmatprep.subr.bf16.mxu0 %v1215
  %1749 = vmatpush1.bf16.msra.mxu0 %v1214
  %1750 = vmatprep.subr.bf16.mxu0 %v1217
  %1751 = vmatpush1.bf16.msra.mxu0 %v1216
  %1752 = vmatprep.subr.bf16.mxu0 %v1219
  %1753 = vmatpush1.bf16.msra.mxu0 %v1218
  %1754 = vmatprep.subr.bf16.mxu0 %v1221
  %1755 = vmatpush1.bf16.msra.mxu0 %v1220
  %1756 = vmatprep.subr.bf16.mxu0 %v1223
  %1757 = vmatpush1.bf16.msra.mxu0 %v1222
  %1758 = vmatprep.subr.bf16.mxu0 %v1225
  %1759 = vmatpush1.bf16.msra.mxu0 %v1224
  %1760 = vmatprep.subr.bf16.mxu0 %v1227
  %1761 = vmatpush1.bf16.msra.mxu0 %v1226
  %1762 = vmatprep.subr.bf16.mxu0 %v1229
  %1763 = vmatpush1.bf16.msra.mxu0 %v1228
  %1764 = vmatprep.subr.bf16.mxu0 %v1231
  %1765 = vmatpush1.bf16.msra.mxu0 %v1230
  %1766 = vmatprep.subr.bf16.mxu0 %v1233
  %1767 = vmatpush1.bf16.msra.mxu0 %v1232
  %1768 = vmatprep.subr.bf16.mxu0 %v1235
  %1769 = vmatpush1.bf16.msra.mxu0 %v1234
  %1770 = vmatprep.subr.bf16.mxu0 %v1237
  %1771 = vmatpush1.bf16.msra.mxu0 %v1236
  %1772 = vmatprep.subr.bf16.mxu0 %v1239
  %1773 = vmatpush1.bf16.msra.mxu0 %v1238
  %1774 = vmatprep.subr.bf16.mxu0 %v1241
  %1775 = vmatpush1.bf16.msra.mxu0 %v1240
  %1776 = vmatprep.mubr.bf16.mxu0 %v351
  %1777 = vmatmul.mubr.bf16.gmra.mrb[0].mxu0 %v350
  %v1778 = vpop.f32.mrb[0].mxu0
  %v1779 = vadd.f32 %v1736, %v1778
  %v1780 = vpop.f32.mrb[0].mxu0
  %v1781 = vadd.f32 %v1738, %v1780
  %v1782 = vpop.f32.mrb[0].mxu0
  %v1783 = vadd.f32 %v1740, %v1782
  %v1784 = vpop.f32.mrb[0].mxu0
  %v1785 = vadd.f32 %v1742, %v1784
  %1786 = vdwg.mxu0
  %1787 = vmatprep.subr.bf16.mxu0 %v1243
  %1788 = vmatpush1.bf16.msra.mxu0 %v1242
  %1789 = vmatprep.subr.bf16.mxu0 %v1245
  %1790 = vmatpush1.bf16.msra.mxu0 %v1244
  %1791 = vmatprep.subr.bf16.mxu0 %v1247
  %1792 = vmatpush1.bf16.msra.mxu0 %v1246
  %1793 = vmatprep.subr.bf16.mxu0 %v1249
  %1794 = vmatpush1.bf16.msra.mxu0 %v1248
  %1795 = vmatprep.subr.bf16.mxu0 %v1251
  %1796 = vmatpush1.bf16.msra.mxu0 %v1250
  %1797 = vmatprep.subr.bf16.mxu0 %v1253
  %1798 = vmatpush1.bf16.msra.mxu0 %v1252
  %1799 = vmatprep.subr.bf16.mxu0 %v1255
  %1800 = vmatpush1.bf16.msra.mxu0 %v1254
  %1801 = vmatprep.subr.bf16.mxu0 %v1257
  %1802 = vmatpush1.bf16.msra.mxu0 %v1256
  %1803 = vmatprep.subr.bf16.mxu0 %v1259
  %1804 = vmatpush1.bf16.msra.mxu0 %v1258
  %1805 = vmatprep.subr.bf16.mxu0 %v1261
  %1806 = vmatpush1.bf16.msra.mxu0 %v1260
  %1807 = vmatprep.subr.bf16.mxu0 %v1263
  %1808 = vmatpush1.bf16.msra.mxu0 %v1262
  %1809 = vmatprep.subr.bf16.mxu0 %v1265
  %1810 = vmatpush1.bf16.msra.mxu0 %v1264
  %1811 = vmatprep.subr.bf16.mxu0 %v1267
  %1812 = vmatpush1.bf16.msra.mxu0 %v1266
  %1813 = vmatprep.subr.bf16.mxu0 %v1269
  %1814 = vmatpush1.bf16.msra.mxu0 %v1268
  %1815 = vmatprep.subr.bf16.mxu0 %v1271
  %1816 = vmatpush1.bf16.msra.mxu0 %v1270
  %1817 = vmatprep.subr.bf16.mxu0 %v1273
  %1818 = vmatpush1.bf16.msra.mxu0 %v1272
  %1819 = vmatprep.mubr.bf16.mxu0 %v353
  %1820 = vmatmul.mubr.bf16.gmra.mrb[0].mxu0 %v352
  %v1821 = vpop.f32.mrb[0].mxu0
  %v1822 = vadd.f32 %v1779, %v1821
  %v1823 = vpop.f32.mrb[0].mxu0
  %v1824 = vadd.f32 %v1781, %v1823
  %v1825 = vpop.f32.mrb[0].mxu0
  %v1826 = vadd.f32 %v1783, %v1825
  %v1827 = vpop.f32.mrb[0].mxu0
  %v1828 = vadd.f32 %v1785, %v1827
  %1829 = vdwg.mxu0
  %1830 = vmatprep.subr.bf16.mxu0 %v1275
  %1831 = vmatpush1.bf16.msra.mxu0 %v1274
  %1832 = vmatprep.subr.bf16.mxu0 %v1277
  %1833 = vmatpush1.bf16.msra.mxu0 %v1276
  %1834 = vmatprep.subr.bf16.mxu0 %v1279
  %1835 = vmatpush1.bf16.msra.mxu0 %v1278
  %1836 = vmatprep.subr.bf16.mxu0 %v1281
  %1837 = vmatpush1.bf16.msra.mxu0 %v1280
  %1838 = vmatprep.subr.bf16.mxu0 %v1283
  %1839 = vmatpush1.bf16.msra.mxu0 %v1282
  %1840 = vmatprep.subr.bf16.mxu0 %v1285
  %1841 = vmatpush1.bf16.msra.mxu0 %v1284
  %1842 = vmatprep.subr.bf16.mxu0 %v1287
  %1843 = vmatpush1.bf16.msra.mxu0 %v1286
  %1844 = vmatprep.subr.bf16.mxu0 %v1289
  %1845 = vmatpush1.bf16.msra.mxu0 %v1288
  %1846 = vmatprep.subr.bf16.mxu0 %v1291
  %1847 = vmatpush1.bf16.msra.mxu0 %v1290
  %1848 = vmatprep.subr.bf16.mxu0 %v1293
  %1849 = vmatpush1.bf16.msra.mxu0 %v1292
  %1850 = vmatprep.subr.bf16.mxu0 %v1295
  %1851 = vmatpush1.bf16.msra.mxu0 %v1294
  %1852 = vmatprep.subr.bf16.mxu0 %v1297
  %1853 = vmatpush1.bf16.msra.mxu0 %v1296
  %1854 = vmatprep.subr.bf16.mxu0 %v1299
  %1855 = vmatpush1.bf16.msra.mxu0 %v1298
  %1856 = vmatprep.subr.bf16.mxu0 %v1301
  %1857 = vmatpush1.bf16.msra.mxu0 %v1300
  %1858 = vmatprep.subr.bf16.mxu0 %v1303
  %1859 = vmatpush1.bf16.msra.mxu0 %v1302
  %1860 = vmatprep.subr.bf16.mxu0 %v1305
  %1861 = vmatpush1.bf16.msra.mxu0 %v1304
  %1862 = vmatprep.mubr.bf16.mxu0 %v355
  %1863 = vmatmul.mubr.bf16.gmra.mrb[0].mxu0 %v354
  %v1864 = vpop.f32.mrb[0].mxu0
  %v1865 = vadd.f32 %v1822, %v1864
  %v1866 = vpop.f32.mrb[0].mxu0
  %v1867 = vadd.f32 %v1824, %v1866
  %v1868 = vpop.f32.mrb[0].mxu0
  %v1869 = vadd.f32 %v1826, %v1868
  %v1870 = vpop.f32.mrb[0].mxu0
  %v1871 = vadd.f32 %v1828, %v1870
  %1872 = vdwg.mxu0
  %1873 = vmatprep.subr.bf16.mxu0 %v1307
  %1874 = vmatpush1.bf16.msra.mxu0 %v1306
  %1875 = vmatprep.subr.bf16.mxu0 %v1309
  %1876 = vmatpush1.bf16.msra.mxu0 %v1308
  %1877 = vmatprep.subr.bf16.mxu0 %v1311
  %1878 = vmatpush1.bf16.msra.mxu0 %v1310
  %1879 = vmatprep.subr.bf16.mxu0 %v1313
  %1880 = vmatpush1.bf16.msra.mxu0 %v1312
  %1881 = vmatprep.subr.bf16.mxu0 %v1315
  %1882 = vmatpush1.bf16.msra.mxu0 %v1314
  %1883 = vmatprep.subr.bf16.mxu0 %v1317
  %1884 = vmatpush1.bf16.msra.mxu0 %v1316
  %1885 = vmatprep.subr.bf16.mxu0 %v1319
  %1886 = vmatpush1.bf16.msra.mxu0 %v1318
  %1887 = vmatprep.subr.bf16.mxu0 %v1321
  %1888 = vmatpush1.bf16.msra.mxu0 %v1320
  %1889 = vmatprep.subr.bf16.mxu0 %v1323
  %1890 = vmatpush1.bf16.msra.mxu0 %v1322
  %1891 = vmatprep.subr.bf16.mxu0 %v1325
  %1892 = vmatpush1.bf16.msra.mxu0 %v1324
  %1893 = vmatprep.subr.bf16.mxu0 %v1327
  %1894 = vmatpush1.bf16.msra.mxu0 %v1326
  %1895 = vmatprep.subr.bf16.mxu0 %v1329
  %1896 = vmatpush1.bf16.msra.mxu0 %v1328
  %1897 = vmatprep.subr.bf16.mxu0 %v1331
  %1898 = vmatpush1.bf16.msra.mxu0 %v1330
  %1899 = vmatprep.subr.bf16.mxu0 %v1333
  %1900 = vmatpush1.bf16.msra.mxu0 %v1332
  %1901 = vmatprep.subr.bf16.mxu0 %v1335
  %1902 = vmatpush1.bf16.msra.mxu0 %v1334
  %1903 = vmatprep.subr.bf16.mxu0 %v1337
  %1904 = vmatpush1.bf16.msra.mxu0 %v1336
  %1905 = vmatprep.mubr.bf16.mxu0 %v357
  %1906 = vmatmul.mubr.bf16.gmra.mrb[0].mxu0 %v356
  %v1907 = vpop.f32.mrb[0].mxu0
  %v1908 = vadd.f32 %v1865, %v1907
  %v1909 = vpop.f32.mrb[0].mxu0
  %v1910 = vadd.f32 %v1867, %v1909
  %v1911 = vpop.f32.mrb[0].mxu0
  %v1912 = vadd.f32 %v1869, %v1911
  %v1913 = vpop.f32.mrb[0].mxu0
  %v1914 = vadd.f32 %v1871, %v1913
  %1915 = vdwg.mxu0
  %1916 = vmatprep.subr.bf16.mxu0 %v1339
  %1917 = vmatpush1.bf16.msra.mxu0 %v1338
  %1918 = vmatprep.subr.bf16.mxu0 %v1341
  %1919 = vmatpush1.bf16.msra.mxu0 %v1340
  %1920 = vmatprep.subr.bf16.mxu0 %v1343
  %1921 = vmatpush1.bf16.msra.mxu0 %v1342
  %1922 = vmatprep.subr.bf16.mxu0 %v1345
  %1923 = vmatpush1.bf16.msra.mxu0 %v1344
  %1924 = vmatprep.subr.bf16.mxu0 %v1347
  %1925 = vmatpush1.bf16.msra.mxu0 %v1346
  %1926 = vmatprep.subr.bf16.mxu0 %v1349
  %1927 = vmatpush1.bf16.msra.mxu0 %v1348
  %1928 = vmatprep.subr.bf16.mxu0 %v1351
  %1929 = vmatpush1.bf16.msra.mxu0 %v1350
  %1930 = vmatprep.subr.bf16.mxu0 %v1353
  %1931 = vmatpush1.bf16.msra.mxu0 %v1352
  %1932 = vmatprep.subr.bf16.mxu0 %v1355
  %1933 = vmatpush1.bf16.msra.mxu0 %v1354
  %1934 = vmatprep.subr.bf16.mxu0 %v1357
  %1935 = vmatpush1.bf16.msra.mxu0 %v1356
  %1936 = vmatprep.subr.bf16.mxu0 %v1359
  %1937 = vmatpush1.bf16.msra.mxu0 %v1358
  %1938 = vmatprep.subr.bf16.mxu0 %v1361
  %1939 = vmatpush1.bf16.msra.mxu0 %v1360
  %1940 = vmatprep.subr.bf16.mxu0 %v1363
  %1941 = vmatpush1.bf16.msra.mxu0 %v1362
  %1942 = vmatprep.subr.bf16.mxu0 %v1365
  %1943 = vmatpush1.bf16.msra.mxu0 %v1364
  %1944 = vmatprep.subr.bf16.mxu0 %v1367
  %1945 = vmatpush1.bf16.msra.mxu0 %v1366
  %1946 = vmatprep.subr.bf16.mxu0 %v1369
  %1947 = vmatpush1.bf16.msra.mxu0 %v1368
  %1948 = vmatprep.mubr.bf16.mxu0 %v359
  %1949 = vmatmul.mubr.bf16.gmra.mrb[0].mxu0 %v358
  %v1950 = vpop.f32.mrb[0].mxu0
  %v1951 = vadd.f32 %v1908, %v1950
  %v1952 = vpop.f32.mrb[0].mxu0
  %v1953 = vadd.f32 %v1910, %v1952
  %v1954 = vpop.f32.mrb[0].mxu0
  %v1955 = vadd.f32 %v1912, %v1954
  %v1956 = vpop.f32.mrb[0].mxu0
  %v1957 = vadd.f32 %v1914, %v1956
  %1958 = vdwg.mxu0
  %1959 = vmatprep.subr.bf16.mxu0 %v1371
  %1960 = vmatpush1.bf16.msra.mxu0 %v1370
  %1961 = vmatprep.subr.bf16.mxu0 %v1373
  %1962 = vmatpush1.bf16.msra.mxu0 %v1372
  %1963 = vmatprep.subr.bf16.mxu0 %v1375
  %1964 = vmatpush1.bf16.msra.mxu0 %v1374
  %1965 = vmatprep.subr.bf16.mxu0 %v1377
  %1966 = vmatpush1.bf16.msra.mxu0 %v1376
  %1967 = vmatprep.subr.bf16.mxu0 %v1379
  %1968 = vmatpush1.bf16.msra.mxu0 %v1378
  %1969 = vmatprep.subr.bf16.mxu0 %v1381
  %1970 = vmatpush1.bf16.msra.mxu0 %v1380
  %1971 = vmatprep.subr.bf16.mxu0 %v1383
  %1972 = vmatpush1.bf16.msra.mxu0 %v1382
  %1973 = vmatprep.subr.bf16.mxu0 %v1385
  %1974 = vmatpush1.bf16.msra.mxu0 %v1384
  %1975 = vmatprep.subr.bf16.mxu0 %v1387
  %1976 = vmatpush1.bf16.msra.mxu0 %v1386
  %1977 = vmatprep.subr.bf16.mxu0 %v1389
  %1978 = vmatpush1.bf16.msra.mxu0 %v1388
  %1979 = vmatprep.subr.bf16.mxu0 %v1391
  %1980 = vmatpush1.bf16.msra.mxu0 %v1390
  %1981 = vmatprep.subr.bf16.mxu0 %v1393
  %1982 = vmatpush1.bf16.msra.mxu0 %v1392
  %1983 = vmatprep.subr.bf16.mxu0 %v1395
  %1984 = vmatpush1.bf16.msra.mxu0 %v1394
  %1985 = vmatprep.subr.bf16.mxu0 %v1397
  %1986 = vmatpush1.bf16.msra.mxu0 %v1396
  %1987 = vmatprep.subr.bf16.mxu0 %v1399
  %1988 = vmatpush1.bf16.msra.mxu0 %v1398
  %1989 = vmatprep.subr.bf16.mxu0 %v1401
  %1990 = vmatpush1.bf16.msra.mxu0 %v1400
  %1991 = vmatprep.mubr.bf16.mxu0 %v361
  %1992 = vmatmul.mubr.bf16.gmra.mrb[0].mxu0 %v360
  %v1993 = vpop.f32.mrb[0].mxu0
  %v1994 = vadd.f32 %v1951, %v1993
  %v1995 = vpop.f32.mrb[0].mxu0
  %v1996 = vadd.f32 %v1953, %v1995
  %v1997 = vpop.f32.mrb[0].mxu0
  %v1998 = vadd.f32 %v1955, %v1997
  %v1999 = vpop.f32.mrb[0].mxu0
  %v2000 = vadd.f32 %v1957, %v1999
  %2001 = vdwg.mxu0
  %v2002 = vmax.f32 %v1994, 0.0
  %v2003 = vmax.f32 %v1996, 0.0
  %v2004 = vmax.f32 %v1998, 0.0
  %v2005 = vmax.f32 %v2000, 0.0
  %v2006 = vpack.c.bf16 %v2004, %v2002
  %v2007 = vpack.c.bf16 %v2005, %v2003
  %v2010 = vunpack.c.l.b16 %v2006
  %v2011 = vunpack.c.l.b16 %v2007
  %v2012 = vunpack.c.h.b16 %v2006
  %v2013 = vunpack.c.h.b16 %v2007
  %v2014 = vpack.c.b16 %v2011, %v2010
  %v2015 = vpack.c.b16 %v2013, %v2012
  %2018 = vst [vmem:[%s3] sm:$0xff] %v2014
  %2019 = vst [vmem:[%s3 + $0x8] sm:$0xff] %v2015
  // Predicated region
  $region14: #{conv_autoencoder_forward.16} parent=0 // pred_check
    _
  $region15: #{conv_autoencoder_forward.16} parent=0 // pred_check_branch
    %2021 = sbr.rel (0) target = $region17
  $region16: #{conv_autoencoder_forward.16} parent=0 // pred_region
    _
  $region17: #{conv_autoencoder_forward.16} parent=0 // pred_fallthru
    _
  // Predicated region
  $region18: #{conv_autoencoder_forward.16} parent=0 // pred_check
    _
  $region19: #{conv_autoencoder_forward.16} parent=0 // pred_check_branch
    %2023 = sbr.rel (0) target = $region21
  $region20: #{conv_autoencoder_forward.16} parent=0 // pred_region
    _
  $region21: #{conv_autoencoder_forward.16} parent=0 // pred_fallthru
    _

// kernel: conv_autoencoder_forward.17
$region0: #{conv_autoencoder_forward.17}
  #allocation0 [shape = 'u32[]', space=smem, size = 0x4, offset = 0x4, fixed_abs, tag = 'smem constant byte address 0x4 - core index']
  #allocation1 [shape = 'u32[144,128]{1,0:T(1,128)}', space=vmem, size = 0x12000, scoped, tag = 'internal scratch']
  %s0 = inlined_call_operand.vmem [shape: bf16[16,2304], index: 0, kind: input, shape index: {}]
  %s1 = inlined_call_operand.vmem [shape: bf16[2304,256], index: 1, kind: input, shape index: {}]
  %s2 = inlined_call_operand.vmem [shape: f32[1,256], index: 2, kind: input, shape index: {}]
  %s3 = inlined_call_operand.vmem [shape: bf16[16,256], index: 3, kind: output, shape index: {}]
  %s4 = sld [smem:[#allocation0]]
  $region22: #{conv_autoencoder_forward.17} parent=0
    _
  %s6 = ssub.s32 1, %s4
  %s7 = scalar_select 0, %s6, %s4
  // Predicated region
  $region2: #{conv_autoencoder_forward.17} parent=0 // pred_check
    _
  $region3: #{conv_autoencoder_forward.17} parent=0 // pred_check_branch
    %9 = sbr.rel (0) target = $region5
  $region4: #{conv_autoencoder_forward.17} parent=0 // pred_region
    _
  $region5: #{conv_autoencoder_forward.17} parent=0 // pred_fallthru
    _
  // Predicated region
  $region6: #{conv_autoencoder_forward.17} parent=0 // pred_check
    _
  $region7: #{conv_autoencoder_forward.17} parent=0 // pred_check_branch
    %11 = sbr.rel (0) target = $region9
  $region8: #{conv_autoencoder_forward.17} parent=0 // pred_region
    _
  $region9: #{conv_autoencoder_forward.17} parent=0 // pred_fallthru
    _
  // Predicated region
  $region10: #{conv_autoencoder_forward.17} parent=0 // pred_check
    _
  $region11: #{conv_autoencoder_forward.17} parent=0 // pred_check_branch
    %13 = sbr.rel (0) target = $region13
  $region12: #{conv_autoencoder_forward.17} parent=0 // pred_region
    _
  $region13: #{conv_autoencoder_forward.17} parent=0 // pred_fallthru
    _
  %v14 = vld [vmem:[%s0] sm:$0xff]
  %v15 = vld [vmem:[%s0 + $0x8] sm:$0xff]
  %v16 = vld [vmem:[%s0 + $0x10] sm:$0xff]
  %v17 = vld [vmem:[%s0 + $0x18] sm:$0xff]
  %v18 = vld [vmem:[%s0 + $0x20] sm:$0xff]
  %v19 = vld [vmem:[%s0 + $0x28] sm:$0xff]
  %v20 = vld [vmem:[%s0 + $0x30] sm:$0xff]
  %v21 = vld [vmem:[%s0 + $0x38] sm:$0xff]
  %v22 = vld [vmem:[%s0 + $0x40] sm:$0xff]
  %v23 = vld [vmem:[%s0 + $0x48] sm:$0xff]
  %v24 = vld [vmem:[%s0 + $0x50] sm:$0xff]
  %v25 = vld [vmem:[%s0 + $0x58] sm:$0xff]
  %v26 = vld [vmem:[%s0 + $0x60] sm:$0xff]
  %v27 = vld [vmem:[%s0 + $0x68] sm:$0xff]
  %v28 = vld [vmem:[%s0 + $0x70] sm:$0xff]
  %v29 = vld [vmem:[%s0 + $0x78] sm:$0xff]
  %v30 = vld [vmem:[%s0 + $0x80] sm:$0xff]
  %v31 = vld [vmem:[%s0 + $0x88] sm:$0xff]
  %v32 = vld [vmem:[%s1] sm:$0xff]
  %v33 = vld [vmem:[%s1 + $0x8] sm:$0xff]
  %v34 = vld [vmem:[%s1 + $0x10] sm:$0xff]
  %v35 = vld [vmem:[%s1 + $0x18] sm:$0xff]
  %v36 = vld [vmem:[%s1 + $0x20] sm:$0xff]
  %v37 = vld [vmem:[%s1 + $0x28] sm:$0xff]
  %v38 = vld [vmem:[%s1 + $0x30] sm:$0xff]
  %v39 = vld [vmem:[%s1 + $0x38] sm:$0xff]
  %v40 = vld [vmem:[%s1 + $0x40] sm:$0xff]
  %v41 = vld [vmem:[%s1 + $0x48] sm:$0xff]
  %v42 = vld [vmem:[%s1 + $0x50] sm:$0xff]
  %v43 = vld [vmem:[%s1 + $0x58] sm:$0xff]
  %v44 = vld [vmem:[%s1 + $0x60] sm:$0xff]
  %v45 = vld [vmem:[%s1 + $0x68] sm:$0xff]
  %v46 = vld [vmem:[%s1 + $0x70] sm:$0xff]
  %v47 = vld [vmem:[%s1 + $0x78] sm:$0xff]
  %v48 = vld [vmem:[%s1 + $0x80] sm:$0xff]
  %v49 = vld [vmem:[%s1 + $0x88] sm:$0xff]
  %v50 = vld [vmem:[%s1 + $0x90] sm:$0xff]
  %v51 = vld [vmem:[%s1 + $0x98] sm:$0xff]
  %v52 = vld [vmem:[%s1 + $0xa0] sm:$0xff]
  %v53 = vld [vmem:[%s1 + $0xa8] sm:$0xff]
  %v54 = vld [vmem:[%s1 + $0xb0] sm:$0xff]
  %v55 = vld [vmem:[%s1 + $0xb8] sm:$0xff]
  %v56 = vld [vmem:[%s1 + $0xc0] sm:$0xff]
  %v57 = vld [vmem:[%s1 + $0xc8] sm:$0xff]
  %v58 = vld [vmem:[%s1 + $0xd0] sm:$0xff]
  %v59 = vld [vmem:[%s1 + $0xd8] sm:$0xff]
  %v60 = vld [vmem:[%s1 + $0xe0] sm:$0xff]
  %v61 = vld [vmem:[%s1 + $0xe8] sm:$0xff]
  %v62 = vld [vmem:[%s1 + $0xf0] sm:$0xff]
  %v63 = vld [vmem:[%s1 + $0xf8] sm:$0xff]
  %v64 = vld [vmem:[%s1 + $0x100] sm:$0xff]
  %v65 = vld [vmem:[%s1 + $0x108] sm:$0xff]
  %v66 = vld [vmem:[%s1 + $0x110] sm:$0xff]
  %v67 = vld [vmem:[%s1 + $0x118] sm:$0xff]
  %v68 = vld [vmem:[%s1 + $0x120] sm:$0xff]
  %v69 = vld [vmem:[%s1 + $0x128] sm:$0xff]
  %v70 = vld [vmem:[%s1 + $0x130] sm:$0xff]
  %v71 = vld [vmem:[%s1 + $0x138] sm:$0xff]
  %v72 = vld [vmem:[%s1 + $0x140] sm:$0xff]
  %v73 = vld [vmem:[%s1 + $0x148] sm:$0xff]
  %v74 = vld [vmem:[%s1 + $0x150] sm:$0xff]
  %v75 = vld [vmem:[%s1 + $0x158] sm:$0xff]
  %v76 = vld [vmem:[%s1 + $0x160] sm:$0xff]
  %v77 = vld [vmem:[%s1 + $0x168] sm:$0xff]
  %v78 = vld [vmem:[%s1 + $0x170] sm:$0xff]
  %v79 = vld [vmem:[%s1 + $0x178] sm:$0xff]
  %v80 = vld [vmem:[%s1 + $0x180] sm:$0xff]
  %v81 = vld [vmem:[%s1 + $0x188] sm:$0xff]
  %v82 = vld [vmem:[%s1 + $0x190] sm:$0xff]
  %v83 = vld [vmem:[%s1 + $0x198] sm:$0xff]
  %v84 = vld [vmem:[%s1 + $0x1a0] sm:$0xff]
  %v85 = vld [vmem:[%s1 + $0x1a8] sm:$0xff]
  %v86 = vld [vmem:[%s1 + $0x1b0] sm:$0xff]
  %v87 = vld [vmem:[%s1 + $0x1b8] sm:$0xff]
  %v88 = vld [vmem:[%s1 + $0x1c0] sm:$0xff]
  %v89 = vld [vmem:[%s1 + $0x1c8] sm:$0xff]
  %v90 = vld [vmem:[%s1 + $0x1d0] sm:$0xff]
  %v91 = vld [vmem:[%s1 + $0x1d8] sm:$0xff]
  %v92 = vld [vmem:[%s1 + $0x1e0] sm:$0xff]
  %v93 = vld [vmem:[%s1 + $0x1e8] sm:$0xff]
  %v94 = vld [vmem:[%s1 + $0x1f0] sm:$0xff]
  %v95 = vld [vmem:[%s1 + $0x1f8] sm:$0xff]
  %v96 = vld [vmem:[%s1 + $0x200] sm:$0xff]
  %v97 = vld [vmem:[%s1 + $0x208] sm:$0xff]
  %v98 = vld [vmem:[%s1 + $0x210] sm:$0xff]
  %v99 = vld [vmem:[%s1 + $0x218] sm:$0xff]
  %v100 = vld [vmem:[%s1 + $0x220] sm:$0xff]
  %v101 = vld [vmem:[%s1 + $0x228] sm:$0xff]
  %v102 = vld [vmem:[%s1 + $0x230] sm:$0xff]
  %v103 = vld [vmem:[%s1 + $0x238] sm:$0xff]
  %v104 = vld [vmem:[%s1 + $0x240] sm:$0xff]
  %v105 = vld [vmem:[%s1 + $0x248] sm:$0xff]
  %v106 = vld [vmem:[%s1 + $0x250] sm:$0xff]
  %v107 = vld [vmem:[%s1 + $0x258] sm:$0xff]
  %v108 = vld [vmem:[%s1 + $0x260] sm:$0xff]
  %v109 = vld [vmem:[%s1 + $0x268] sm:$0xff]
  %v110 = vld [vmem:[%s1 + $0x270] sm:$0xff]
  %v111 = vld [vmem:[%s1 + $0x278] sm:$0xff]
  %v112 = vld [vmem:[%s1 + $0x280] sm:$0xff]
  %v113 = vld [vmem:[%s1 + $0x288] sm:$0xff]
  %v114 = vld [vmem:[%s1 + $0x290] sm:$0xff]
  %v115 = vld [vmem:[%s1 + $0x298] sm:$0xff]
  %v116 = vld [vmem:[%s1 + $0x2a0] sm:$0xff]
  %v117 = vld [vmem:[%s1 + $0x2a8] sm:$0xff]
  %v118 = vld [vmem:[%s1 + $0x2b0] sm:$0xff]
  %v119 = vld [vmem:[%s1 + $0x2b8] sm:$0xff]
  %v120 = vld [vmem:[%s1 + $0x2c0] sm:$0xff]
  %v121 = vld [vmem:[%s1 + $0x2c8] sm:$0xff]
  %v122 = vld [vmem:[%s1 + $0x2d0] sm:$0xff]
  %v123 = vld [vmem:[%s1 + $0x2d8] sm:$0xff]
  %v124 = vld [vmem:[%s1 + $0x2e0] sm:$0xff]
  %v125 = vld [vmem:[%s1 + $0x2e8] sm:$0xff]
  %v126 = vld [vmem:[%s1 + $0x2f0] sm:$0xff]
  %v127 = vld [vmem:[%s1 + $0x2f8] sm:$0xff]
  %v128 = vld [vmem:[%s1 + $0x300] sm:$0xff]
  %v129 = vld [vmem:[%s1 + $0x308] sm:$0xff]
  %v130 = vld [vmem:[%s1 + $0x310] sm:$0xff]
  %v131 = vld [vmem:[%s1 + $0x318] sm:$0xff]
  %v132 = vld [vmem:[%s1 + $0x320] sm:$0xff]
  %v133 = vld [vmem:[%s1 + $0x328] sm:$0xff]
  %v134 = vld [vmem:[%s1 + $0x330] sm:$0xff]
  %v135 = vld [vmem:[%s1 + $0x338] sm:$0xff]
  %v136 = vld [vmem:[%s1 + $0x340] sm:$0xff]
  %v137 = vld [vmem:[%s1 + $0x348] sm:$0xff]
  %v138 = vld [vmem:[%s1 + $0x350] sm:$0xff]
  %v139 = vld [vmem:[%s1 + $0x358] sm:$0xff]
  %v140 = vld [vmem:[%s1 + $0x360] sm:$0xff]
  %v141 = vld [vmem:[%s1 + $0x368] sm:$0xff]
  %v142 = vld [vmem:[%s1 + $0x370] sm:$0xff]
  %v143 = vld [vmem:[%s1 + $0x378] sm:$0xff]
  %v144 = vld [vmem:[%s1 + $0x380] sm:$0xff]
  %v145 = vld [vmem:[%s1 + $0x388] sm:$0xff]
  %v146 = vld [vmem:[%s1 + $0x390] sm:$0xff]
  %v147 = vld [vmem:[%s1 + $0x398] sm:$0xff]
  %v148 = vld [vmem:[%s1 + $0x3a0] sm:$0xff]
  %v149 = vld [vmem:[%s1 + $0x3a8] sm:$0xff]
  %v150 = vld [vmem:[%s1 + $0x3b0] sm:$0xff]
  %v151 = vld [vmem:[%s1 + $0x3b8] sm:$0xff]
  %v152 = vld [vmem:[%s1 + $0x3c0] sm:$0xff]
  %v153 = vld [vmem:[%s1 + $0x3c8] sm:$0xff]
  %v154 = vld [vmem:[%s1 + $0x3d0] sm:$0xff]
  %v155 = vld [vmem:[%s1 + $0x3d8] sm:$0xff]
  %v156 = vld [vmem:[%s1 + $0x3e0] sm:$0xff]
  %v157 = vld [vmem:[%s1 + $0x3e8] sm:$0xff]
  %v158 = vld [vmem:[%s1 + $0x3f0] sm:$0xff]
  %v159 = vld [vmem:[%s1 + $0x3f8] sm:$0xff]
  %v160 = vld [vmem:[%s1 + $0x400] sm:$0xff]
  %v161 = vld [vmem:[%s1 + $0x408] sm:$0xff]
  %v162 = vld [vmem:[%s1 + $0x410] sm:$0xff]
  %v163 = vld [vmem:[%s1 + $0x418] sm:$0xff]
  %v164 = vld [vmem:[%s1 + $0x420] sm:$0xff]
  %v165 = vld [vmem:[%s1 + $0x428] sm:$0xff]
  %v166 = vld [vmem:[%s1 + $0x430] sm:$0xff]
  %v167 = vld [vmem:[%s1 + $0x438] sm:$0xff]
  %v168 = vld [vmem:[%s1 + $0x440] sm:$0xff]
  %v169 = vld [vmem:[%s1 + $0x448] sm:$0xff]
  %v170 = vld [vmem:[%s1 + $0x450] sm:$0xff]
  %v171 = vld [vmem:[%s1 + $0x458] sm:$0xff]
  %v172 = vld [vmem:[%s1 + $0x460] sm:$0xff]
  %v173 = vld [vmem:[%s1 + $0x468] sm:$0xff]
  %v174 = vld [vmem:[%s1 + $0x470] sm:$0xff]
  %v175 = vld [vmem:[%s1 + $0x478] sm:$0xff]
  %v176 = vld [vmem:[%s1 + $0x480] sm:$0xff]
  %v177 = vld [vmem:[%s1 + $0x488] sm:$0xff]
  %v178 = vld [vmem:[%s1 + $0x490] sm:$0xff]
  %v179 = vld [vmem:[%s1 + $0x498] sm:$0xff]
  %v180 = vld [vmem:[%s1 + $0x4a0] sm:$0xff]
  %v181 = vld [vmem:[%s1 + $0x4a8] sm:$0xff]
  %v182 = vld [vmem:[%s1 + $0x4b0] sm:$0xff]
  %v183 = vld [vmem:[%s1 + $0x4b8] sm:$0xff]
  %v184 = vld [vmem:[%s1 + $0x4c0] sm:$0xff]
  %v185 = vld [vmem:[%s1 + $0x4c8] sm:$0xff]
  %v186 = vld [vmem:[%s1 + $0x4d0] sm:$0xff]
  %v187 = vld [vmem:[%s1 + $0x4d8] sm:$0xff]
  %v188 = vld [vmem:[%s1 + $0x4e0] sm:$0xff]
  %v189 = vld [vmem:[%s1 + $0x4e8] sm:$0xff]
  %v190 = vld [vmem:[%s1 + $0x4f0] sm:$0xff]
  %v191 = vld [vmem:[%s1 + $0x4f8] sm:$0xff]
  %v192 = vld [vmem:[%s1 + $0x500] sm:$0xff]
  %v193 = vld [vmem:[%s1 + $0x508] sm:$0xff]
  %v194 = vld [vmem:[%s1 + $0x510] sm:$0xff]
  %v195 = vld [vmem:[%s1 + $0x518] sm:$0xff]
  %v196 = vld [vmem:[%s1 + $0x520] sm:$0xff]
  %v197 = vld [vmem:[%s1 + $0x528] sm:$0xff]
  %v198 = vld [vmem:[%s1 + $0x530] sm:$0xff]
  %v199 = vld [vmem:[%s1 + $0x538] sm:$0xff]
  %v200 = vld [vmem:[%s1 + $0x540] sm:$0xff]
  %v201 = vld [vmem:[%s1 + $0x548] sm:$0xff]
  %v202 = vld [vmem:[%s1 + $0x550] sm:$0xff]
  %v203 = vld [vmem:[%s1 + $0x558] sm:$0xff]
  %v204 = vld [vmem:[%s1 + $0x560] sm:$0xff]
  %v205 = vld [vmem:[%s1 + $0x568] sm:$0xff]
  %v206 = vld [vmem:[%s1 + $0x570] sm:$0xff]
  %v207 = vld [vmem:[%s1 + $0x578] sm:$0xff]
  %v208 = vld [vmem:[%s1 + $0x580] sm:$0xff]
  %v209 = vld [vmem:[%s1 + $0x588] sm:$0xff]
  %v210 = vld [vmem:[%s1 + $0x590] sm:$0xff]
  %v211 = vld [vmem:[%s1 + $0x598] sm:$0xff]
  %v212 = vld [vmem:[%s1 + $0x5a0] sm:$0xff]
  %v213 = vld [vmem:[%s1 + $0x5a8] sm:$0xff]
  %v214 = vld [vmem:[%s1 + $0x5b0] sm:$0xff]
  %v215 = vld [vmem:[%s1 + $0x5b8] sm:$0xff]
  %v216 = vld [vmem:[%s1 + $0x5c0] sm:$0xff]
  %v217 = vld [vmem:[%s1 + $0x5c8] sm:$0xff]
  %v218 = vld [vmem:[%s1 + $0x5d0] sm:$0xff]
  %v219 = vld [vmem:[%s1 + $0x5d8] sm:$0xff]
  %v220 = vld [vmem:[%s1 + $0x5e0] sm:$0xff]
  %v221 = vld [vmem:[%s1 + $0x5e8] sm:$0xff]
  %v222 = vld [vmem:[%s1 + $0x5f0] sm:$0xff]
  %v223 = vld [vmem:[%s1 + $0x5f8] sm:$0xff]
  %v224 = vld [vmem:[%s1 + $0x600] sm:$0xff]
  %v225 = vld [vmem:[%s1 + $0x608] sm:$0xff]
  %v226 = vld [vmem:[%s1 + $0x610] sm:$0xff]
  %v227 = vld [vmem:[%s1 + $0x618] sm:$0xff]
  %v228 = vld [vmem:[%s1 + $0x620] sm:$0xff]
  %v229 = vld [vmem:[%s1 + $0x628] sm:$0xff]
  %v230 = vld [vmem:[%s1 + $0x630] sm:$0xff]
  %v231 = vld [vmem:[%s1 + $0x638] sm:$0xff]
  %v232 = vld [vmem:[%s1 + $0x640] sm:$0xff]
  %v233 = vld [vmem:[%s1 + $0x648] sm:$0xff]
  %v234 = vld [vmem:[%s1 + $0x650] sm:$0xff]
  %v235 = vld [vmem:[%s1 + $0x658] sm:$0xff]
  %v236 = vld [vmem:[%s1 + $0x660] sm:$0xff]
  %v237 = vld [vmem:[%s1 + $0x668] sm:$0xff]
  %v238 = vld [vmem:[%s1 + $0x670] sm:$0xff]
  %v239 = vld [vmem:[%s1 + $0x678] sm:$0xff]
  %v240 = vld [vmem:[%s1 + $0x680] sm:$0xff]
  %v241 = vld [vmem:[%s1 + $0x688] sm:$0xff]
  %v242 = vld [vmem:[%s1 + $0x690] sm:$0xff]
  %v243 = vld [vmem:[%s1 + $0x698] sm:$0xff]
  %v244 = vld [vmem:[%s1 + $0x6a0] sm:$0xff]
  %v245 = vld [vmem:[%s1 + $0x6a8] sm:$0xff]
  %v246 = vld [vmem:[%s1 + $0x6b0] sm:$0xff]
  %v247 = vld [vmem:[%s1 + $0x6b8] sm:$0xff]
  %v248 = vld [vmem:[%s1 + $0x6c0] sm:$0xff]
  %v249 = vld [vmem:[%s1 + $0x6c8] sm:$0xff]
  %v250 = vld [vmem:[%s1 + $0x6d0] sm:$0xff]
  %v251 = vld [vmem:[%s1 + $0x6d8] sm:$0xff]
  %v252 = vld [vmem:[%s1 + $0x6e0] sm:$0xff]
  %v253 = vld [vmem:[%s1 + $0x6e8] sm:$0xff]
  %v254 = vld [vmem:[%s1 + $0x6f0] sm:$0xff]
  %v255 = vld [vmem:[%s1 + $0x6f8] sm:$0xff]
  %v256 = vld [vmem:[%s1 + $0x700] sm:$0xff]
  %v257 = vld [vmem:[%s1 + $0x708] sm:$0xff]
  %v258 = vld [vmem:[%s1 + $0x710] sm:$0xff]
  %v259 = vld [vmem:[%s1 + $0x718] sm:$0xff]
  %v260 = vld [vmem:[%s1 + $0x720] sm:$0xff]
  %v261 = vld [vmem:[%s1 + $0x728] sm:$0xff]
  %v262 = vld [vmem:[%s1 + $0x730] sm:$0xff]
  %v263 = vld [vmem:[%s1 + $0x738] sm:$0xff]
  %v264 = vld [vmem:[%s1 + $0x740] sm:$0xff]
  %v265 = vld [vmem:[%s1 + $0x748] sm:$0xff]
  %v266 = vld [vmem:[%s1 + $0x750] sm:$0xff]
  %v267 = vld [vmem:[%s1 + $0x758] sm:$0xff]
  %v268 = vld [vmem:[%s1 + $0x760] sm:$0xff]
  %v269 = vld [vmem:[%s1 + $0x768] sm:$0xff]
  %v270 = vld [vmem:[%s1 + $0x770] sm:$0xff]
  %v271 = vld [vmem:[%s1 + $0x778] sm:$0xff]
  %v272 = vld [vmem:[%s1 + $0x780] sm:$0xff]
  %v273 = vld [vmem:[%s1 + $0x788] sm:$0xff]
  %v274 = vld [vmem:[%s1 + $0x790] sm:$0xff]
  %v275 = vld [vmem:[%s1 + $0x798] sm:$0xff]
  %v276 = vld [vmem:[%s1 + $0x7a0] sm:$0xff]
  %v277 = vld [vmem:[%s1 + $0x7a8] sm:$0xff]
  %v278 = vld [vmem:[%s1 + $0x7b0] sm:$0xff]
  %v279 = vld [vmem:[%s1 + $0x7b8] sm:$0xff]
  %v280 = vld [vmem:[%s1 + $0x7c0] sm:$0xff]
  %v281 = vld [vmem:[%s1 + $0x7c8] sm:$0xff]
  %v282 = vld [vmem:[%s1 + $0x7d0] sm:$0xff]
  %v283 = vld [vmem:[%s1 + $0x7d8] sm:$0xff]
  %v284 = vld [vmem:[%s1 + $0x7e0] sm:$0xff]
  %v285 = vld [vmem:[%s1 + $0x7e8] sm:$0xff]
  %v286 = vld [vmem:[%s1 + $0x7f0] sm:$0xff]
  %v287 = vld [vmem:[%s1 + $0x7f8] sm:$0xff]
  %v288 = vld [vmem:[%s1 + $0x800] sm:$0xff]
  %v289 = vld [vmem:[%s1 + $0x808] sm:$0xff]
  %v290 = vld [vmem:[%s1 + $0x810] sm:$0xff]
  %v291 = vld [vmem:[%s1 + $0x818] sm:$0xff]
  %v292 = vld [vmem:[%s1 + $0x820] sm:$0xff]
  %v293 = vld [vmem:[%s1 + $0x828] sm:$0xff]
  %v294 = vld [vmem:[%s1 + $0x830] sm:$0xff]
  %v295 = vld [vmem:[%s1 + $0x838] sm:$0xff]
  %v296 = vld [vmem:[%s1 + $0x840] sm:$0xff]
  %v297 = vld [vmem:[%s1 + $0x848] sm:$0xff]
  %v298 = vld [vmem:[%s1 + $0x850] sm:$0xff]
  %v299 = vld [vmem:[%s1 + $0x858] sm:$0xff]
  %v300 = vld [vmem:[%s1 + $0x860] sm:$0xff]
  %v301 = vld [vmem:[%s1 + $0x868] sm:$0xff]
  %v302 = vld [vmem:[%s1 + $0x870] sm:$0xff]
  %v303 = vld [vmem:[%s1 + $0x878] sm:$0xff]
  %v304 = vld [vmem:[%s1 + $0x880] sm:$0xff]
  %v305 = vld [vmem:[%s1 + $0x888] sm:$0xff]
  %v306 = vld [vmem:[%s1 + $0x890] sm:$0xff]
  %v307 = vld [vmem:[%s1 + $0x898] sm:$0xff]
  %v308 = vld [vmem:[%s1 + $0x8a0] sm:$0xff]
  %v309 = vld [vmem:[%s1 + $0x8a8] sm:$0xff]
  %v310 = vld [vmem:[%s1 + $0x8b0] sm:$0xff]
  %v311 = vld [vmem:[%s1 + $0x8b8] sm:$0xff]
  %v312 = vld [vmem:[%s1 + $0x8c0] sm:$0xff]
  %v313 = vld [vmem:[%s1 + $0x8c8] sm:$0xff]
  %v314 = vld [vmem:[%s1 + $0x8d0] sm:$0xff]
  %v315 = vld [vmem:[%s1 + $0x8d8] sm:$0xff]
  %v316 = vld [vmem:[%s1 + $0x8e0] sm:$0xff]
  %v317 = vld [vmem:[%s1 + $0x8e8] sm:$0xff]
  %v318 = vld [vmem:[%s1 + $0x8f0] sm:$0xff]
  %v319 = vld [vmem:[%s1 + $0x8f8] sm:$0xff]
  %v320 = vld [vmem:[%s2] sm:$0x3]
  %v322 = vlaneseq
  %v323 = vshrl.u32 %v322, 7
  %v324 = vsub.s32 0, %v323
  %v325 = vrot.slane %v320, %v324
  %v326 = vlaneseq
  %v327 = vshrl.u32 %v326, 7
  %v328 = vsub.s32 1, %v327
  %v329 = vrot.slane %v320, %v328
  %v350 = vunpack.c.l.b16 %v14
  %v351 = vunpack.c.h.b16 %v14
  %v352 = vunpack.c.l.b16 %v15
  %v353 = vunpack.c.h.b16 %v15
  %v354 = vunpack.c.l.b16 %v16
  %v355 = vunpack.c.h.b16 %v16
  %v356 = vunpack.c.l.b16 %v17
  %v357 = vunpack.c.h.b16 %v17
  %v358 = vunpack.c.l.b16 %v18
  %v359 = vunpack.c.h.b16 %v18
  %v360 = vunpack.c.l.b16 %v19
  %v361 = vunpack.c.h.b16 %v19
  %v362 = vunpack.c.l.b16 %v20
  %v363 = vunpack.c.h.b16 %v20
  %v364 = vunpack.c.l.b16 %v21
  %v365 = vunpack.c.h.b16 %v21
  %v366 = vunpack.c.l.b16 %v22
  %v367 = vunpack.c.h.b16 %v22
  %v368 = vunpack.c.l.b16 %v23
  %v369 = vunpack.c.h.b16 %v23
  %v370 = vunpack.c.l.b16 %v24
  %v371 = vunpack.c.h.b16 %v24
  %v372 = vunpack.c.l.b16 %v25
  %v373 = vunpack.c.h.b16 %v25
  %v374 = vunpack.c.l.b16 %v26
  %v375 = vunpack.c.h.b16 %v26
  %v376 = vunpack.c.l.b16 %v27
  %v377 = vunpack.c.h.b16 %v27
  %v378 = vunpack.c.l.b16 %v28
  %v379 = vunpack.c.h.b16 %v28
  %v380 = vunpack.c.l.b16 %v29
  %v381 = vunpack.c.h.b16 %v29
  %v382 = vunpack.c.l.b16 %v30
  %v383 = vunpack.c.h.b16 %v30
  %v384 = vunpack.c.l.b16 %v31
  %v385 = vunpack.c.h.b16 %v31
  %v386 = vpack.c.b16 %v368, %v350
  %v387 = vpack.c.b16 %v369, %v351
  %v388 = vpack.c.b16 %v370, %v352
  %v389 = vpack.c.b16 %v371, %v353
  %v390 = vpack.c.b16 %v372, %v354
  %v391 = vpack.c.b16 %v373, %v355
  %v392 = vpack.c.b16 %v374, %v356
  %v393 = vpack.c.b16 %v375, %v357
  %v394 = vpack.c.b16 %v376, %v358
  %v395 = vpack.c.b16 %v377, %v359
  %v396 = vpack.c.b16 %v378, %v360
  %v397 = vpack.c.b16 %v379, %v361
  %v398 = vpack.c.b16 %v380, %v362
  %v399 = vpack.c.b16 %v381, %v363
  %v400 = vpack.c.b16 %v382, %v364
  %v401 = vpack.c.b16 %v383, %v365
  %v402 = vpack.c.b16 %v384, %v366
  %v403 = vpack.c.b16 %v385, %v367
  %v710 = vunpack.c.l.b16 %v32
  %v711 = vunpack.c.h.b16 %v32
  %v712 = vunpack.c.l.b16 %v33
  %v713 = vunpack.c.h.b16 %v33
  %v714 = vunpack.c.l.b16 %v34
  %v715 = vunpack.c.h.b16 %v34
  %v716 = vunpack.c.l.b16 %v35
  %v717 = vunpack.c.h.b16 %v35
  %v718 = vunpack.c.l.b16 %v36
  %v719 = vunpack.c.h.b16 %v36
  %v720 = vunpack.c.l.b16 %v37
  %v721 = vunpack.c.h.b16 %v37
  %v722 = vunpack.c.l.b16 %v38
  %v723 = vunpack.c.h.b16 %v38
  %v724 = vunpack.c.l.b16 %v39
  %v725 = vunpack.c.h.b16 %v39
  %v726 = vunpack.c.l.b16 %v40
  %v727 = vunpack.c.h.b16 %v40
  %v728 = vunpack.c.l.b16 %v41
  %v729 = vunpack.c.h.b16 %v41
  %v730 = vunpack.c.l.b16 %v42
  %v731 = vunpack.c.h.b16 %v42
  %v732 = vunpack.c.l.b16 %v43
  %v733 = vunpack.c.h.b16 %v43
  %v734 = vunpack.c.l.b16 %v44
  %v735 = vunpack.c.h.b16 %v44
  %v736 = vunpack.c.l.b16 %v45
  %v737 = vunpack.c.h.b16 %v45
  %v738 = vunpack.c.l.b16 %v46
  %v739 = vunpack.c.h.b16 %v46
  %v740 = vunpack.c.l.b16 %v47
  %v741 = vunpack.c.h.b16 %v47
  %v742 = vunpack.c.l.b16 %v48
  %v743 = vunpack.c.h.b16 %v48
  %v744 = vunpack.c.l.b16 %v49
  %v745 = vunpack.c.h.b16 %v49
  %v746 = vunpack.c.l.b16 %v50
  %v747 = vunpack.c.h.b16 %v50
  %v748 = vunpack.c.l.b16 %v51
  %v749 = vunpack.c.h.b16 %v51
  %v750 = vunpack.c.l.b16 %v52
  %v751 = vunpack.c.h.b16 %v52
  %v752 = vunpack.c.l.b16 %v53
  %v753 = vunpack.c.h.b16 %v53
  %v754 = vunpack.c.l.b16 %v54
  %v755 = vunpack.c.h.b16 %v54
  %v756 = vunpack.c.l.b16 %v55
  %v757 = vunpack.c.h.b16 %v55
  %v758 = vunpack.c.l.b16 %v56
  %v759 = vunpack.c.h.b16 %v56
  %v760 = vunpack.c.l.b16 %v57
  %v761 = vunpack.c.h.b16 %v57
  %v762 = vunpack.c.l.b16 %v58
  %v763 = vunpack.c.h.b16 %v58
  %v764 = vunpack.c.l.b16 %v59
  %v765 = vunpack.c.h.b16 %v59
  %v766 = vunpack.c.l.b16 %v60
  %v767 = vunpack.c.h.b16 %v60
  %v768 = vunpack.c.l.b16 %v61
  %v769 = vunpack.c.h.b16 %v61
  %v770 = vunpack.c.l.b16 %v62
  %v771 = vunpack.c.h.b16 %v62
  %v772 = vunpack.c.l.b16 %v63
  %v773 = vunpack.c.h.b16 %v63
  %v774 = vunpack.c.l.b16 %v64
  %v775 = vunpack.c.h.b16 %v64
  %v776 = vunpack.c.l.b16 %v65
  %v777 = vunpack.c.h.b16 %v65
  %v778 = vunpack.c.l.b16 %v66
  %v779 = vunpack.c.h.b16 %v66
  %v780 = vunpack.c.l.b16 %v67
  %v781 = vunpack.c.h.b16 %v67
  %v782 = vunpack.c.l.b16 %v68
  %v783 = vunpack.c.h.b16 %v68
  %v784 = vunpack.c.l.b16 %v69
  %v785 = vunpack.c.h.b16 %v69
  %v786 = vunpack.c.l.b16 %v70
  %v787 = vunpack.c.h.b16 %v70
  %v788 = vunpack.c.l.b16 %v71
  %v789 = vunpack.c.h.b16 %v71
  %v790 = vunpack.c.l.b16 %v72
  %v791 = vunpack.c.h.b16 %v72
  %v792 = vunpack.c.l.b16 %v73
  %v793 = vunpack.c.h.b16 %v73
  %v794 = vunpack.c.l.b16 %v74
  %v795 = vunpack.c.h.b16 %v74
  %v796 = vunpack.c.l.b16 %v75
  %v797 = vunpack.c.h.b16 %v75
  %v798 = vunpack.c.l.b16 %v76
  %v799 = vunpack.c.h.b16 %v76
  %v800 = vunpack.c.l.b16 %v77
  %v801 = vunpack.c.h.b16 %v77
  %v802 = vunpack.c.l.b16 %v78
  %v803 = vunpack.c.h.b16 %v78
  %v804 = vunpack.c.l.b16 %v79
  %v805 = vunpack.c.h.b16 %v79
  %v806 = vunpack.c.l.b16 %v80
  %v807 = vunpack.c.h.b16 %v80
  %v808 = vunpack.c.l.b16 %v81
  %v809 = vunpack.c.h.b16 %v81
  %v810 = vunpack.c.l.b16 %v82
  %v811 = vunpack.c.h.b16 %v82
  %v812 = vunpack.c.l.b16 %v83
  %v813 = vunpack.c.h.b16 %v83
  %v814 = vunpack.c.l.b16 %v84
  %v815 = vunpack.c.h.b16 %v84
  %v816 = vunpack.c.l.b16 %v85
  %v817 = vunpack.c.h.b16 %v85
  %v818 = vunpack.c.l.b16 %v86
  %v819 = vunpack.c.h.b16 %v86
  %v820 = vunpack.c.l.b16 %v87
  %v821 = vunpack.c.h.b16 %v87
  %v822 = vunpack.c.l.b16 %v88
  %v823 = vunpack.c.h.b16 %v88
  %v824 = vunpack.c.l.b16 %v89
  %v825 = vunpack.c.h.b16 %v89
  %v826 = vunpack.c.l.b16 %v90
  %v827 = vunpack.c.h.b16 %v90
  %v828 = vunpack.c.l.b16 %v91
  %v829 = vunpack.c.h.b16 %v91
  %v830 = vunpack.c.l.b16 %v92
  %v831 = vunpack.c.h.b16 %v92
  %v832 = vunpack.c.l.b16 %v93
  %v833 = vunpack.c.h.b16 %v93
  %v834 = vunpack.c.l.b16 %v94
  %v835 = vunpack.c.h.b16 %v94
  %v836 = vunpack.c.l.b16 %v95
  %v837 = vunpack.c.h.b16 %v95
  %v838 = vunpack.c.l.b16 %v96
  %v839 = vunpack.c.h.b16 %v96
  %v840 = vunpack.c.l.b16 %v97
  %v841 = vunpack.c.h.b16 %v97
  %v842 = vunpack.c.l.b16 %v98
  %v843 = vunpack.c.h.b16 %v98
  %v844 = vunpack.c.l.b16 %v99
  %v845 = vunpack.c.h.b16 %v99
  %v846 = vunpack.c.l.b16 %v100
  %v847 = vunpack.c.h.b16 %v100
  %v848 = vunpack.c.l.b16 %v101
  %v849 = vunpack.c.h.b16 %v101
  %v850 = vunpack.c.l.b16 %v102
  %v851 = vunpack.c.h.b16 %v102
  %v852 = vunpack.c.l.b16 %v103
  %v853 = vunpack.c.h.b16 %v103
  %v854 = vunpack.c.l.b16 %v104
  %v855 = vunpack.c.h.b16 %v104
  %v856 = vunpack.c.l.b16 %v105
  %v857 = vunpack.c.h.b16 %v105
  %v858 = vunpack.c.l.b16 %v106
  %v859 = vunpack.c.h.b16 %v106
  %v860 = vunpack.c.l.b16 %v107
  %v861 = vunpack.c.h.b16 %v107
  %v862 = vunpack.c.l.b16 %v108
  %v863 = vunpack.c.h.b16 %v108
  %v864 = vunpack.c.l.b16 %v109
  %v865 = vunpack.c.h.b16 %v109
  %v866 = vunpack.c.l.b16 %v110
  %v867 = vunpack.c.h.b16 %v110
  %v868 = vunpack.c.l.b16 %v111
  %v869 = vunpack.c.h.b16 %v111
  %v870 = vunpack.c.l.b16 %v112
  %v871 = vunpack.c.h.b16 %v112
  %v872 = vunpack.c.l.b16 %v113
  %v873 = vunpack.c.h.b16 %v113
  %v874 = vunpack.c.l.b16 %v114
  %v875 = vunpack.c.h.b16 %v114
  %v876 = vunpack.c.l.b16 %v115
  %v877 = vunpack.c.h.b16 %v115
  %v878 = vunpack.c.l.b16 %v116
  %v879 = vunpack.c.h.b16 %v116
  %v880 = vunpack.c.l.b16 %v117
  %v881 = vunpack.c.h.b16 %v117
  %v882 = vunpack.c.l.b16 %v118
  %v883 = vunpack.c.h.b16 %v118
  %v884 = vunpack.c.l.b16 %v119
  %v885 = vunpack.c.h.b16 %v119
  %v886 = vunpack.c.l.b16 %v120
  %v887 = vunpack.c.h.b16 %v120
  %v888 = vunpack.c.l.b16 %v121
  %v889 = vunpack.c.h.b16 %v121
  %v890 = vunpack.c.l.b16 %v122
  %v891 = vunpack.c.h.b16 %v122
  %v892 = vunpack.c.l.b16 %v123
  %v893 = vunpack.c.h.b16 %v123
  %v894 = vunpack.c.l.b16 %v124
  %v895 = vunpack.c.h.b16 %v124
  %v896 = vunpack.c.l.b16 %v125
  %v897 = vunpack.c.h.b16 %v125
  %v898 = vunpack.c.l.b16 %v126
  %v899 = vunpack.c.h.b16 %v126
  %v900 = vunpack.c.l.b16 %v127
  %v901 = vunpack.c.h.b16 %v127
  %v902 = vunpack.c.l.b16 %v128
  %v903 = vunpack.c.h.b16 %v128
  %v904 = vunpack.c.l.b16 %v129
  %v905 = vunpack.c.h.b16 %v129
  %v906 = vunpack.c.l.b16 %v130
  %v907 = vunpack.c.h.b16 %v130
  %v908 = vunpack.c.l.b16 %v131
  %v909 = vunpack.c.h.b16 %v131
  %v910 = vunpack.c.l.b16 %v132
  %v911 = vunpack.c.h.b16 %v132
  %v912 = vunpack.c.l.b16 %v133
  %v913 = vunpack.c.h.b16 %v133
  %v914 = vunpack.c.l.b16 %v134
  %v915 = vunpack.c.h.b16 %v134
  %v916 = vunpack.c.l.b16 %v135
  %v917 = vunpack.c.h.b16 %v135
  %v918 = vunpack.c.l.b16 %v136
  %v919 = vunpack.c.h.b16 %v136
  %v920 = vunpack.c.l.b16 %v137
  %v921 = vunpack.c.h.b16 %v137
  %v922 = vunpack.c.l.b16 %v138
  %v923 = vunpack.c.h.b16 %v138
  %v924 = vunpack.c.l.b16 %v139
  %v925 = vunpack.c.h.b16 %v139
  %v926 = vunpack.c.l.b16 %v140
  %v927 = vunpack.c.h.b16 %v140
  %v928 = vunpack.c.l.b16 %v141
  %v929 = vunpack.c.h.b16 %v141
  %v930 = vunpack.c.l.b16 %v142
  %v931 = vunpack.c.h.b16 %v142
  %v932 = vunpack.c.l.b16 %v143
  %v933 = vunpack.c.h.b16 %v143
  %v934 = vunpack.c.l.b16 %v144
  %v935 = vunpack.c.h.b16 %v144
  %v936 = vunpack.c.l.b16 %v145
  %v937 = vunpack.c.h.b16 %v145
  %v938 = vunpack.c.l.b16 %v146
  %v939 = vunpack.c.h.b16 %v146
  %v940 = vunpack.c.l.b16 %v147
  %v941 = vunpack.c.h.b16 %v147
  %v942 = vunpack.c.l.b16 %v148
  %v943 = vunpack.c.h.b16 %v148
  %v944 = vunpack.c.l.b16 %v149
  %v945 = vunpack.c.h.b16 %v149
  %v946 = vunpack.c.l.b16 %v150
  %v947 = vunpack.c.h.b16 %v150
  %v948 = vunpack.c.l.b16 %v151
  %v949 = vunpack.c.h.b16 %v151
  %v950 = vunpack.c.l.b16 %v152
  %v951 = vunpack.c.h.b16 %v152
  %v952 = vunpack.c.l.b16 %v153
  %v953 = vunpack.c.h.b16 %v153
  %v954 = vunpack.c.l.b16 %v154
  %v955 = vunpack.c.h.b16 %v154
  %v956 = vunpack.c.l.b16 %v155
  %v957 = vunpack.c.h.b16 %v155
  %v958 = vunpack.c.l.b16 %v156
  %v959 = vunpack.c.h.b16 %v156
  %v960 = vunpack.c.l.b16 %v157
  %v961 = vunpack.c.h.b16 %v157
  %v962 = vunpack.c.l.b16 %v158
  %v963 = vunpack.c.h.b16 %v158
  %v964 = vunpack.c.l.b16 %v159
  %v965 = vunpack.c.h.b16 %v159
  %v966 = vunpack.c.l.b16 %v160
  %v967 = vunpack.c.h.b16 %v160
  %v968 = vunpack.c.l.b16 %v161
  %v969 = vunpack.c.h.b16 %v161
  %v970 = vunpack.c.l.b16 %v162
  %v971 = vunpack.c.h.b16 %v162
  %v972 = vunpack.c.l.b16 %v163
  %v973 = vunpack.c.h.b16 %v163
  %v974 = vunpack.c.l.b16 %v164
  %v975 = vunpack.c.h.b16 %v164
  %v976 = vunpack.c.l.b16 %v165
  %v977 = vunpack.c.h.b16 %v165
  %v978 = vunpack.c.l.b16 %v166
  %v979 = vunpack.c.h.b16 %v166
  %v980 = vunpack.c.l.b16 %v167
  %v981 = vunpack.c.h.b16 %v167
  %v982 = vunpack.c.l.b16 %v168
  %v983 = vunpack.c.h.b16 %v168
  %v984 = vunpack.c.l.b16 %v169
  %v985 = vunpack.c.h.b16 %v169
  %v986 = vunpack.c.l.b16 %v170
  %v987 = vunpack.c.h.b16 %v170
  %v988 = vunpack.c.l.b16 %v171
  %v989 = vunpack.c.h.b16 %v171
  %v990 = vunpack.c.l.b16 %v172
  %v991 = vunpack.c.h.b16 %v172
  %v992 = vunpack.c.l.b16 %v173
  %v993 = vunpack.c.h.b16 %v173
  %v994 = vunpack.c.l.b16 %v174
  %v995 = vunpack.c.h.b16 %v174
  %v996 = vunpack.c.l.b16 %v175
  %v997 = vunpack.c.h.b16 %v175
  %v998 = vunpack.c.l.b16 %v176
  %v999 = vunpack.c.h.b16 %v176
  %v1000 = vunpack.c.l.b16 %v177
  %v1001 = vunpack.c.h.b16 %v177
  %v1002 = vunpack.c.l.b16 %v178
  %v1003 = vunpack.c.h.b16 %v178
  %v1004 = vunpack.c.l.b16 %v179
  %v1005 = vunpack.c.h.b16 %v179
  %v1006 = vunpack.c.l.b16 %v180
  %v1007 = vunpack.c.h.b16 %v180
  %v1008 = vunpack.c.l.b16 %v181
  %v1009 = vunpack.c.h.b16 %v181
  %v1010 = vunpack.c.l.b16 %v182
  %v1011 = vunpack.c.h.b16 %v182
  %v1012 = vunpack.c.l.b16 %v183
  %v1013 = vunpack.c.h.b16 %v183
  %v1014 = vunpack.c.l.b16 %v184
  %v1015 = vunpack.c.h.b16 %v184
  %v1016 = vunpack.c.l.b16 %v185
  %v1017 = vunpack.c.h.b16 %v185
  %v1018 = vunpack.c.l.b16 %v186
  %v1019 = vunpack.c.h.b16 %v186
  %v1020 = vunpack.c.l.b16 %v187
  %v1021 = vunpack.c.h.b16 %v187
  %v1022 = vunpack.c.l.b16 %v188
  %v1023 = vunpack.c.h.b16 %v188
  %v1024 = vunpack.c.l.b16 %v189
  %v1025 = vunpack.c.h.b16 %v189
  %v1026 = vunpack.c.l.b16 %v190
  %v1027 = vunpack.c.h.b16 %v190
  %v1028 = vunpack.c.l.b16 %v191
  %v1029 = vunpack.c.h.b16 %v191
  %v1030 = vunpack.c.l.b16 %v192
  %v1031 = vunpack.c.h.b16 %v192
  %v1032 = vunpack.c.l.b16 %v193
  %v1033 = vunpack.c.h.b16 %v193
  %v1034 = vunpack.c.l.b16 %v194
  %v1035 = vunpack.c.h.b16 %v194
  %v1036 = vunpack.c.l.b16 %v195
  %v1037 = vunpack.c.h.b16 %v195
  %v1038 = vunpack.c.l.b16 %v196
  %v1039 = vunpack.c.h.b16 %v196
  %v1040 = vunpack.c.l.b16 %v197
  %v1041 = vunpack.c.h.b16 %v197
  %v1042 = vunpack.c.l.b16 %v198
  %v1043 = vunpack.c.h.b16 %v198
  %v1044 = vunpack.c.l.b16 %v199
  %v1045 = vunpack.c.h.b16 %v199
  %v1046 = vunpack.c.l.b16 %v200
  %v1047 = vunpack.c.h.b16 %v200
  %v1048 = vunpack.c.l.b16 %v201
  %v1049 = vunpack.c.h.b16 %v201
  %v1050 = vunpack.c.l.b16 %v202
  %v1051 = vunpack.c.h.b16 %v202
  %v1052 = vunpack.c.l.b16 %v203
  %v1053 = vunpack.c.h.b16 %v203
  %v1054 = vunpack.c.l.b16 %v204
  %v1055 = vunpack.c.h.b16 %v204
  %v1056 = vunpack.c.l.b16 %v205
  %v1057 = vunpack.c.h.b16 %v205
  %v1058 = vunpack.c.l.b16 %v206
  %v1059 = vunpack.c.h.b16 %v206
  %v1060 = vunpack.c.l.b16 %v207
  %v1061 = vunpack.c.h.b16 %v207
  %v1062 = vunpack.c.l.b16 %v208
  %v1063 = vunpack.c.h.b16 %v208
  %v1064 = vunpack.c.l.b16 %v209
  %v1065 = vunpack.c.h.b16 %v209
  %v1066 = vunpack.c.l.b16 %v210
  %v1067 = vunpack.c.h.b16 %v210
  %v1068 = vunpack.c.l.b16 %v211
  %v1069 = vunpack.c.h.b16 %v211
  %v1070 = vunpack.c.l.b16 %v212
  %v1071 = vunpack.c.h.b16 %v212
  %v1072 = vunpack.c.l.b16 %v213
  %v1073 = vunpack.c.h.b16 %v213
  %v1074 = vunpack.c.l.b16 %v214
  %v1075 = vunpack.c.h.b16 %v214
  %v1076 = vunpack.c.l.b16 %v215
  %v1077 = vunpack.c.h.b16 %v215
  %v1078 = vunpack.c.l.b16 %v216
  %v1079 = vunpack.c.h.b16 %v216
  %v1080 = vunpack.c.l.b16 %v217
  %v1081 = vunpack.c.h.b16 %v217
  %v1082 = vunpack.c.l.b16 %v218
  %v1083 = vunpack.c.h.b16 %v218
  %v1084 = vunpack.c.l.b16 %v219
  %v1085 = vunpack.c.h.b16 %v219
  %v1086 = vunpack.c.l.b16 %v220
  %v1087 = vunpack.c.h.b16 %v220
  %v1088 = vunpack.c.l.b16 %v221
  %v1089 = vunpack.c.h.b16 %v221
  %v1090 = vunpack.c.l.b16 %v222
  %v1091 = vunpack.c.h.b16 %v222
  %v1092 = vunpack.c.l.b16 %v223
  %v1093 = vunpack.c.h.b16 %v223
  %v1094 = vunpack.c.l.b16 %v224
  %v1095 = vunpack.c.h.b16 %v224
  %v1096 = vunpack.c.l.b16 %v225
  %v1097 = vunpack.c.h.b16 %v225
  %v1098 = vunpack.c.l.b16 %v226
  %v1099 = vunpack.c.h.b16 %v226
  %v1100 = vunpack.c.l.b16 %v227
  %v1101 = vunpack.c.h.b16 %v227
  %v1102 = vunpack.c.l.b16 %v228
  %v1103 = vunpack.c.h.b16 %v228
  %v1104 = vunpack.c.l.b16 %v229
  %v1105 = vunpack.c.h.b16 %v229
  %v1106 = vunpack.c.l.b16 %v230
  %v1107 = vunpack.c.h.b16 %v230
  %v1108 = vunpack.c.l.b16 %v231
  %v1109 = vunpack.c.h.b16 %v231
  %v1110 = vunpack.c.l.b16 %v232
  %v1111 = vunpack.c.h.b16 %v232
  %v1112 = vunpack.c.l.b16 %v233
  %v1113 = vunpack.c.h.b16 %v233
  %v1114 = vunpack.c.l.b16 %v234
  %v1115 = vunpack.c.h.b16 %v234
  %v1116 = vunpack.c.l.b16 %v235
  %v1117 = vunpack.c.h.b16 %v235
  %v1118 = vunpack.c.l.b16 %v236
  %v1119 = vunpack.c.h.b16 %v236
  %v1120 = vunpack.c.l.b16 %v237
  %v1121 = vunpack.c.h.b16 %v237
  %v1122 = vunpack.c.l.b16 %v238
  %v1123 = vunpack.c.h.b16 %v238
  %v1124 = vunpack.c.l.b16 %v239
  %v1125 = vunpack.c.h.b16 %v239
  %v1126 = vunpack.c.l.b16 %v240
  %v1127 = vunpack.c.h.b16 %v240
  %v1128 = vunpack.c.l.b16 %v241
  %v1129 = vunpack.c.h.b16 %v241
  %v1130 = vunpack.c.l.b16 %v242
  %v1131 = vunpack.c.h.b16 %v242
  %v1132 = vunpack.c.l.b16 %v243
  %v1133 = vunpack.c.h.b16 %v243
  %v1134 = vunpack.c.l.b16 %v244
  %v1135 = vunpack.c.h.b16 %v244
  %v1136 = vunpack.c.l.b16 %v245
  %v1137 = vunpack.c.h.b16 %v245
  %v1138 = vunpack.c.l.b16 %v246
  %v1139 = vunpack.c.h.b16 %v246
  %v1140 = vunpack.c.l.b16 %v247
  %v1141 = vunpack.c.h.b16 %v247
  %v1142 = vunpack.c.l.b16 %v248
  %v1143 = vunpack.c.h.b16 %v248
  %v1144 = vunpack.c.l.b16 %v249
  %v1145 = vunpack.c.h.b16 %v249
  %v1146 = vunpack.c.l.b16 %v250
  %v1147 = vunpack.c.h.b16 %v250
  %v1148 = vunpack.c.l.b16 %v251
  %v1149 = vunpack.c.h.b16 %v251
  %v1150 = vunpack.c.l.b16 %v252
  %v1151 = vunpack.c.h.b16 %v252
  %v1152 = vunpack.c.l.b16 %v253
  %v1153 = vunpack.c.h.b16 %v253
  %v1154 = vunpack.c.l.b16 %v254
  %v1155 = vunpack.c.h.b16 %v254
  %v1156 = vunpack.c.l.b16 %v255
  %v1157 = vunpack.c.h.b16 %v255
  %v1158 = vunpack.c.l.b16 %v256
  %v1159 = vunpack.c.h.b16 %v256
  %v1160 = vunpack.c.l.b16 %v257
  %v1161 = vunpack.c.h.b16 %v257
  %v1162 = vunpack.c.l.b16 %v258
  %v1163 = vunpack.c.h.b16 %v258
  %v1164 = vunpack.c.l.b16 %v259
  %v1165 = vunpack.c.h.b16 %v259
  %v1166 = vunpack.c.l.b16 %v260
  %v1167 = vunpack.c.h.b16 %v260
  %v1168 = vunpack.c.l.b16 %v261
  %v1169 = vunpack.c.h.b16 %v261
  %v1170 = vunpack.c.l.b16 %v262
  %v1171 = vunpack.c.h.b16 %v262
  %v1172 = vunpack.c.l.b16 %v263
  %v1173 = vunpack.c.h.b16 %v263
  %v1174 = vunpack.c.l.b16 %v264
  %v1175 = vunpack.c.h.b16 %v264
  %v1176 = vunpack.c.l.b16 %v265
  %v1177 = vunpack.c.h.b16 %v265
  %v1178 = vunpack.c.l.b16 %v266
  %v1179 = vunpack.c.h.b16 %v266
  %v1180 = vunpack.c.l.b16 %v267
  %v1181 = vunpack.c.h.b16 %v267
  %v1182 = vunpack.c.l.b16 %v268
  %v1183 = vunpack.c.h.b16 %v268
  %v1184 = vunpack.c.l.b16 %v269
  %v1185 = vunpack.c.h.b16 %v269
  %v1186 = vunpack.c.l.b16 %v270
  %v1187 = vunpack.c.h.b16 %v270
  %v1188 = vunpack.c.l.b16 %v271
  %v1189 = vunpack.c.h.b16 %v271
  %v1190 = vunpack.c.l.b16 %v272
  %v1191 = vunpack.c.h.b16 %v272
  %v1192 = vunpack.c.l.b16 %v273
  %v1193 = vunpack.c.h.b16 %v273
  %v1194 = vunpack.c.l.b16 %v274
  %v1195 = vunpack.c.h.b16 %v274
  %v1196 = vunpack.c.l.b16 %v275
  %v1197 = vunpack.c.h.b16 %v275
  %v1198 = vunpack.c.l.b16 %v276
  %v1199 = vunpack.c.h.b16 %v276
  %v1200 = vunpack.c.l.b16 %v277
  %v1201 = vunpack.c.h.b16 %v277
  %v1202 = vunpack.c.l.b16 %v278
  %v1203 = vunpack.c.h.b16 %v278
  %v1204 = vunpack.c.l.b16 %v279
  %v1205 = vunpack.c.h.b16 %v279
  %v1206 = vunpack.c.l.b16 %v280
  %v1207 = vunpack.c.h.b16 %v280
  %v1208 = vunpack.c.l.b16 %v281
  %v1209 = vunpack.c.h.b16 %v281
  %v1210 = vunpack.c.l.b16 %v282
  %v1211 = vunpack.c.h.b16 %v282
  %v1212 = vunpack.c.l.b16 %v283
  %v1213 = vunpack.c.h.b16 %v283
  %v1214 = vunpack.c.l.b16 %v284
  %v1215 = vunpack.c.h.b16 %v284
  %v1216 = vunpack.c.l.b16 %v285
  %v1217 = vunpack.c.h.b16 %v285
  %v1218 = vunpack.c.l.b16 %v286
  %v1219 = vunpack.c.h.b16 %v286
  %v1220 = vunpack.c.l.b16 %v287
  %v1221 = vunpack.c.h.b16 %v287
  %v1222 = vunpack.c.l.b16 %v288
  %v1223 = vunpack.c.h.b16 %v288
  %v1224 = vunpack.c.l.b16 %v289
  %v1225 = vunpack.c.h.b16 %v289
  %v1226 = vunpack.c.l.b16 %v290
  %v1227 = vunpack.c.h.b16 %v290
  %v1228 = vunpack.c.l.b16 %v291
  %v1229 = vunpack.c.h.b16 %v291
  %v1230 = vunpack.c.l.b16 %v292
  %v1231 = vunpack.c.h.b16 %v292
  %v1232 = vunpack.c.l.b16 %v293
  %v1233 = vunpack.c.h.b16 %v293
  %v1234 = vunpack.c.l.b16 %v294
  %v1235 = vunpack.c.h.b16 %v294
  %v1236 = vunpack.c.l.b16 %v295
  %v1237 = vunpack.c.h.b16 %v295
  %v1238 = vunpack.c.l.b16 %v296
  %v1239 = vunpack.c.h.b16 %v296
  %v1240 = vunpack.c.l.b16 %v297
  %v1241 = vunpack.c.h.b16 %v297
  %v1242 = vunpack.c.l.b16 %v298
  %v1243 = vunpack.c.h.b16 %v298
  %v1244 = vunpack.c.l.b16 %v299
  %v1245 = vunpack.c.h.b16 %v299
  %v1246 = vunpack.c.l.b16 %v300
  %v1247 = vunpack.c.h.b16 %v300
  %v1248 = vunpack.c.l.b16 %v301
  %v1249 = vunpack.c.h.b16 %v301
  %v1250 = vunpack.c.l.b16 %v302
  %v1251 = vunpack.c.h.b16 %v302
  %v1252 = vunpack.c.l.b16 %v303
  %v1253 = vunpack.c.h.b16 %v303
  %v1254 = vunpack.c.l.b16 %v304
  %v1255 = vunpack.c.h.b16 %v304
  %v1256 = vunpack.c.l.b16 %v305
  %v1257 = vunpack.c.h.b16 %v305
  %v1258 = vunpack.c.l.b16 %v306
  %v1259 = vunpack.c.h.b16 %v306
  %v1260 = vunpack.c.l.b16 %v307
  %v1261 = vunpack.c.h.b16 %v307
  %v1262 = vunpack.c.l.b16 %v308
  %v1263 = vunpack.c.h.b16 %v308
  %v1264 = vunpack.c.l.b16 %v309
  %v1265 = vunpack.c.h.b16 %v309
  %v1266 = vunpack.c.l.b16 %v310
  %v1267 = vunpack.c.h.b16 %v310
  %v1268 = vunpack.c.l.b16 %v311
  %v1269 = vunpack.c.h.b16 %v311
  %v1270 = vunpack.c.l.b16 %v312
  %v1271 = vunpack.c.h.b16 %v312
  %v1272 = vunpack.c.l.b16 %v313
  %v1273 = vunpack.c.h.b16 %v313
  %v1274 = vunpack.c.l.b16 %v314
  %v1275 = vunpack.c.h.b16 %v314
  %v1276 = vunpack.c.l.b16 %v315
  %v1277 = vunpack.c.h.b16 %v315
  %v1278 = vunpack.c.l.b16 %v316
  %v1279 = vunpack.c.h.b16 %v316
  %v1280 = vunpack.c.l.b16 %v317
  %v1281 = vunpack.c.h.b16 %v317
  %v1282 = vunpack.c.l.b16 %v318
  %v1283 = vunpack.c.h.b16 %v318
  %v1284 = vunpack.c.l.b16 %v319
  %v1285 = vunpack.c.h.b16 %v319
  %v1286 = vpack.c.b16 %v712, %v710
  %v1287 = vpack.c.b16 %v713, %v711
  %v1288 = vpack.c.b16 %v716, %v714
  %v1289 = vpack.c.b16 %v717, %v715
  %v1290 = vpack.c.b16 %v720, %v718
  %v1291 = vpack.c.b16 %v721, %v719
  %v1292 = vpack.c.b16 %v724, %v722
  %v1293 = vpack.c.b16 %v725, %v723
  %v1294 = vpack.c.b16 %v728, %v726
  %v1295 = vpack.c.b16 %v729, %v727
  %v1296 = vpack.c.b16 %v732, %v730
  %v1297 = vpack.c.b16 %v733, %v731
  %v1298 = vpack.c.b16 %v736, %v734
  %v1299 = vpack.c.b16 %v737, %v735
  %v1300 = vpack.c.b16 %v740, %v738
  %v1301 = vpack.c.b16 %v741, %v739
  %v1302 = vpack.c.b16 %v744, %v742
  %v1303 = vpack.c.b16 %v745, %v743
  %v1304 = vpack.c.b16 %v748, %v746
  %v1305 = vpack.c.b16 %v749, %v747
  %v1306 = vpack.c.b16 %v752, %v750
  %v1307 = vpack.c.b16 %v753, %v751
  %v1308 = vpack.c.b16 %v756, %v754
  %v1309 = vpack.c.b16 %v757, %v755
  %v1310 = vpack.c.b16 %v760, %v758
  %v1311 = vpack.c.b16 %v761, %v759
  %v1312 = vpack.c.b16 %v764, %v762
  %v1313 = vpack.c.b16 %v765, %v763
  %v1314 = vpack.c.b16 %v768, %v766
  %v1315 = vpack.c.b16 %v769, %v767
  %v1316 = vpack.c.b16 %v772, %v770
  %v1317 = vpack.c.b16 %v773, %v771
  %v1318 = vpack.c.b16 %v776, %v774
  %v1319 = vpack.c.b16 %v777, %v775
  %v1320 = vpack.c.b16 %v780, %v778
  %v1321 = vpack.c.b16 %v781, %v779
  %v1322 = vpack.c.b16 %v784, %v782
  %v1323 = vpack.c.b16 %v785, %v783
  %v1324 = vpack.c.b16 %v788, %v786
  %v1325 = vpack.c.b16 %v789, %v787
  %v1326 = vpack.c.b16 %v792, %v790
  %v1327 = vpack.c.b16 %v793, %v791
  %v1328 = vpack.c.b16 %v796, %v794
  %v1329 = vpack.c.b16 %v797, %v795
  %v1330 = vpack.c.b16 %v800, %v798
  %v1331 = vpack.c.b16 %v801, %v799
  %v1332 = vpack.c.b16 %v804, %v802
  %v1333 = vpack.c.b16 %v805, %v803
  %v1334 = vpack.c.b16 %v808, %v806
  %v1335 = vpack.c.b16 %v809, %v807
  %v1336 = vpack.c.b16 %v812, %v810
  %v1337 = vpack.c.b16 %v813, %v811
  %v1338 = vpack.c.b16 %v816, %v814
  %v1339 = vpack.c.b16 %v817, %v815
  %v1340 = vpack.c.b16 %v820, %v818
  %v1341 = vpack.c.b16 %v821, %v819
  %v1342 = vpack.c.b16 %v824, %v822
  %v1343 = vpack.c.b16 %v825, %v823
  %v1344 = vpack.c.b16 %v828, %v826
  %v1345 = vpack.c.b16 %v829, %v827
  %v1346 = vpack.c.b16 %v832, %v830
  %v1347 = vpack.c.b16 %v833, %v831
  %v1348 = vpack.c.b16 %v836, %v834
  %v1349 = vpack.c.b16 %v837, %v835
  %v1350 = vpack.c.b16 %v840, %v838
  %v1351 = vpack.c.b16 %v841, %v839
  %v1352 = vpack.c.b16 %v844, %v842
  %v1353 = vpack.c.b16 %v845, %v843
  %v1354 = vpack.c.b16 %v848, %v846
  %v1355 = vpack.c.b16 %v849, %v847
  %v1356 = vpack.c.b16 %v852, %v850
  %v1357 = vpack.c.b16 %v853, %v851
  %v1358 = vpack.c.b16 %v856, %v854
  %v1359 = vpack.c.b16 %v857, %v855
  %v1360 = vpack.c.b16 %v860, %v858
  %v1361 = vpack.c.b16 %v861, %v859
  %v1362 = vpack.c.b16 %v864, %v862
  %v1363 = vpack.c.b16 %v865, %v863
  %v1364 = vpack.c.b16 %v868, %v866
  %v1365 = vpack.c.b16 %v869, %v867
  %v1366 = vpack.c.b16 %v872, %v870
  %v1367 = vpack.c.b16 %v873, %v871
  %v1368 = vpack.c.b16 %v876, %v874
  %v1369 = vpack.c.b16 %v877, %v875
  %v1370 = vpack.c.b16 %v880, %v878
  %v1371 = vpack.c.b16 %v881, %v879
  %v1372 = vpack.c.b16 %v884, %v882
  %v1373 = vpack.c.b16 %v885, %v883
  %v1374 = vpack.c.b16 %v888, %v886
  %v1375 = vpack.c.b16 %v889, %v887
  %v1376 = vpack.c.b16 %v892, %v890
  %v1377 = vpack.c.b16 %v893, %v891
  %v1378 = vpack.c.b16 %v896, %v894
  %v1379 = vpack.c.b16 %v897, %v895
  %v1380 = vpack.c.b16 %v900, %v898
  %v1381 = vpack.c.b16 %v901, %v899
  %v1382 = vpack.c.b16 %v904, %v902
  %v1383 = vpack.c.b16 %v905, %v903
  %v1384 = vpack.c.b16 %v908, %v906
  %v1385 = vpack.c.b16 %v909, %v907
  %v1386 = vpack.c.b16 %v912, %v910
  %v1387 = vpack.c.b16 %v913, %v911
  %v1388 = vpack.c.b16 %v916, %v914
  %v1389 = vpack.c.b16 %v917, %v915
  %v1390 = vpack.c.b16 %v920, %v918
  %v1391 = vpack.c.b16 %v921, %v919
  %v1392 = vpack.c.b16 %v924, %v922
  %v1393 = vpack.c.b16 %v925, %v923
  %v1394 = vpack.c.b16 %v928, %v926
  %v1395 = vpack.c.b16 %v929, %v927
  %v1396 = vpack.c.b16 %v932, %v930
  %v1397 = vpack.c.b16 %v933, %v931
  %v1398 = vpack.c.b16 %v936, %v934
  %v1399 = vpack.c.b16 %v937, %v935
  %v1400 = vpack.c.b16 %v940, %v938
  %v1401 = vpack.c.b16 %v941, %v939
  %v1402 = vpack.c.b16 %v944, %v942
  %v1403 = vpack.c.b16 %v945, %v943
  %v1404 = vpack.c.b16 %v948, %v946
  %v1405 = vpack.c.b16 %v949, %v947
  %v1406 = vpack.c.b16 %v952, %v950
  %v1407 = vpack.c.b16 %v953, %v951
  %v1408 = vpack.c.b16 %v956, %v954
  %v1409 = vpack.c.b16 %v957, %v955
  %v1410 = vpack.c.b16 %v960, %v958
  %v1411 = vpack.c.b16 %v961, %v959
  %v1412 = vpack.c.b16 %v964, %v962
  %v1413 = vpack.c.b16 %v965, %v963
  %v1414 = vpack.c.b16 %v968, %v966
  %v1415 = vpack.c.b16 %v969, %v967
  %v1416 = vpack.c.b16 %v972, %v970
  %v1417 = vpack.c.b16 %v973, %v971
  %v1418 = vpack.c.b16 %v976, %v974
  %v1419 = vpack.c.b16 %v977, %v975
  %v1420 = vpack.c.b16 %v980, %v978
  %v1421 = vpack.c.b16 %v981, %v979
  %v1422 = vpack.c.b16 %v984, %v982
  %v1423 = vpack.c.b16 %v985, %v983
  %v1424 = vpack.c.b16 %v988, %v986
  %v1425 = vpack.c.b16 %v989, %v987
  %v1426 = vpack.c.b16 %v992, %v990
  %v1427 = vpack.c.b16 %v993, %v991
  %v1428 = vpack.c.b16 %v996, %v994
  %v1429 = vpack.c.b16 %v997, %v995
  %v1430 = vpack.c.b16 %v1000, %v998
  %v1431 = vpack.c.b16 %v1001, %v999
  %v1432 = vpack.c.b16 %v1004, %v1002
  %v1433 = vpack.c.b16 %v1005, %v1003
  %v1434 = vpack.c.b16 %v1008, %v1006
  %v1435 = vpack.c.b16 %v1009, %v1007
  %v1436 = vpack.c.b16 %v1012, %v1010
  %v1437 = vpack.c.b16 %v1013, %v1011
  %v1438 = vpack.c.b16 %v1016, %v1014
  %v1439 = vpack.c.b16 %v1017, %v1015
  %v1440 = vpack.c.b16 %v1020, %v1018
  %v1441 = vpack.c.b16 %v1021, %v1019
  %v1442 = vpack.c.b16 %v1024, %v1022
  %v1443 = vpack.c.b16 %v1025, %v1023
  %v1444 = vpack.c.b16 %v1028, %v1026
  %v1445 = vpack.c.b16 %v1029, %v1027
  %v1446 = vpack.c.b16 %v1032, %v1030
  %v1447 = vpack.c.b16 %v1033, %v1031
  %v1448 = vpack.c.b16 %v1036, %v1034
  %v1449 = vpack.c.b16 %v1037, %v1035
  %v1450 = vpack.c.b16 %v1040, %v1038
  %v1451 = vpack.c.b16 %v1041, %v1039
  %v1452 = vpack.c.b16 %v1044, %v1042
  %v1453 = vpack.c.b16 %v1045, %v1043
  %v1454 = vpack.c.b16 %v1048, %v1046
  %v1455 = vpack.c.b16 %v1049, %v1047
  %v1456 = vpack.c.b16 %v1052, %v1050
  %v1457 = vpack.c.b16 %v1053, %v1051
  %v1458 = vpack.c.b16 %v1056, %v1054
  %v1459 = vpack.c.b16 %v1057, %v1055
  %v1460 = vpack.c.b16 %v1060, %v1058
  %v1461 = vpack.c.b16 %v1061, %v1059
  %v1462 = vpack.c.b16 %v1064, %v1062
  %v1463 = vpack.c.b16 %v1065, %v1063
  %v1464 = vpack.c.b16 %v1068, %v1066
  %v1465 = vpack.c.b16 %v1069, %v1067
  %v1466 = vpack.c.b16 %v1072, %v1070
  %v1467 = vpack.c.b16 %v1073, %v1071
  %v1468 = vpack.c.b16 %v1076, %v1074
  %v1469 = vpack.c.b16 %v1077, %v1075
  %v1470 = vpack.c.b16 %v1080, %v1078
  %v1471 = vpack.c.b16 %v1081, %v1079
  %v1472 = vpack.c.b16 %v1084, %v1082
  %v1473 = vpack.c.b16 %v1085, %v1083
  %v1474 = vpack.c.b16 %v1088, %v1086
  %v1475 = vpack.c.b16 %v1089, %v1087
  %v1476 = vpack.c.b16 %v1092, %v1090
  %v1477 = vpack.c.b16 %v1093, %v1091
  %v1478 = vpack.c.b16 %v1096, %v1094
  %v1479 = vpack.c.b16 %v1097, %v1095
  %v1480 = vpack.c.b16 %v1100, %v1098
  %v1481 = vpack.c.b16 %v1101, %v1099
  %v1482 = vpack.c.b16 %v1104, %v1102
  %v1483 = vpack.c.b16 %v1105, %v1103
  %v1484 = vpack.c.b16 %v1108, %v1106
  %v1485 = vpack.c.b16 %v1109, %v1107
  %v1486 = vpack.c.b16 %v1112, %v1110
  %v1487 = vpack.c.b16 %v1113, %v1111
  %v1488 = vpack.c.b16 %v1116, %v1114
  %v1489 = vpack.c.b16 %v1117, %v1115
  %v1490 = vpack.c.b16 %v1120, %v1118
  %v1491 = vpack.c.b16 %v1121, %v1119
  %v1492 = vpack.c.b16 %v1124, %v1122
  %v1493 = vpack.c.b16 %v1125, %v1123
  %v1494 = vpack.c.b16 %v1128, %v1126
  %v1495 = vpack.c.b16 %v1129, %v1127
  %v1496 = vpack.c.b16 %v1132, %v1130
  %v1497 = vpack.c.b16 %v1133, %v1131
  %v1498 = vpack.c.b16 %v1136, %v1134
  %v1499 = vpack.c.b16 %v1137, %v1135
  %v1500 = vpack.c.b16 %v1140, %v1138
  %v1501 = vpack.c.b16 %v1141, %v1139
  %v1502 = vpack.c.b16 %v1144, %v1142
  %v1503 = vpack.c.b16 %v1145, %v1143
  %v1504 = vpack.c.b16 %v1148, %v1146
  %v1505 = vpack.c.b16 %v1149, %v1147
  %v1506 = vpack.c.b16 %v1152, %v1150
  %v1507 = vpack.c.b16 %v1153, %v1151
  %v1508 = vpack.c.b16 %v1156, %v1154
  %v1509 = vpack.c.b16 %v1157, %v1155
  %v1510 = vpack.c.b16 %v1160, %v1158
  %v1511 = vpack.c.b16 %v1161, %v1159
  %v1512 = vpack.c.b16 %v1164, %v1162
  %v1513 = vpack.c.b16 %v1165, %v1163
  %v1514 = vpack.c.b16 %v1168, %v1166
  %v1515 = vpack.c.b16 %v1169, %v1167
  %v1516 = vpack.c.b16 %v1172, %v1170
  %v1517 = vpack.c.b16 %v1173, %v1171
  %v1518 = vpack.c.b16 %v1176, %v1174
  %v1519 = vpack.c.b16 %v1177, %v1175
  %v1520 = vpack.c.b16 %v1180, %v1178
  %v1521 = vpack.c.b16 %v1181, %v1179
  %v1522 = vpack.c.b16 %v1184, %v1182
  %v1523 = vpack.c.b16 %v1185, %v1183
  %v1524 = vpack.c.b16 %v1188, %v1186
  %v1525 = vpack.c.b16 %v1189, %v1187
  %v1526 = vpack.c.b16 %v1192, %v1190
  %v1527 = vpack.c.b16 %v1193, %v1191
  %v1528 = vpack.c.b16 %v1196, %v1194
  %v1529 = vpack.c.b16 %v1197, %v1195
  %v1530 = vpack.c.b16 %v1200, %v1198
  %v1531 = vpack.c.b16 %v1201, %v1199
  %v1532 = vpack.c.b16 %v1204, %v1202
  %v1533 = vpack.c.b16 %v1205, %v1203
  %v1534 = vpack.c.b16 %v1208, %v1206
  %v1535 = vpack.c.b16 %v1209, %v1207
  %v1536 = vpack.c.b16 %v1212, %v1210
  %v1537 = vpack.c.b16 %v1213, %v1211
  %v1538 = vpack.c.b16 %v1216, %v1214
  %v1539 = vpack.c.b16 %v1217, %v1215
  %v1540 = vpack.c.b16 %v1220, %v1218
  %v1541 = vpack.c.b16 %v1221, %v1219
  %v1542 = vpack.c.b16 %v1224, %v1222
  %v1543 = vpack.c.b16 %v1225, %v1223
  %v1544 = vpack.c.b16 %v1228, %v1226
  %v1545 = vpack.c.b16 %v1229, %v1227
  %v1546 = vpack.c.b16 %v1232, %v1230
  %v1547 = vpack.c.b16 %v1233, %v1231
  %v1548 = vpack.c.b16 %v1236, %v1234
  %v1549 = vpack.c.b16 %v1237, %v1235
  %v1550 = vpack.c.b16 %v1240, %v1238
  %v1551 = vpack.c.b16 %v1241, %v1239
  %v1552 = vpack.c.b16 %v1244, %v1242
  %v1553 = vpack.c.b16 %v1245, %v1243
  %v1554 = vpack.c.b16 %v1248, %v1246
  %v1555 = vpack.c.b16 %v1249, %v1247
  %v1556 = vpack.c.b16 %v1252, %v1250
  %v1557 = vpack.c.b16 %v1253, %v1251
  %v1558 = vpack.c.b16 %v1256, %v1254
  %v1559 = vpack.c.b16 %v1257, %v1255
  %v1560 = vpack.c.b16 %v1260, %v1258
  %v1561 = vpack.c.b16 %v1261, %v1259
  %v1562 = vpack.c.b16 %v1264, %v1262
  %v1563 = vpack.c.b16 %v1265, %v1263
  %v1564 = vpack.c.b16 %v1268, %v1266
  %v1565 = vpack.c.b16 %v1269, %v1267
  %v1566 = vpack.c.b16 %v1272, %v1270
  %v1567 = vpack.c.b16 %v1273, %v1271
  %v1568 = vpack.c.b16 %v1276, %v1274
  %v1569 = vpack.c.b16 %v1277, %v1275
  %v1570 = vpack.c.b16 %v1280, %v1278
  %v1571 = vpack.c.b16 %v1281, %v1279
  %v1572 = vpack.c.b16 %v1284, %v1282
  %v1573 = vpack.c.b16 %v1285, %v1283
  %1862 = vmatprep.subr.bf16.mxu0 %v1287
  %1863 = vmatpush1.bf16.msra.mxu0 %v1286
  %1864 = vmatprep.subr.bf16.mxu0 %v1289
  %1865 = vmatpush1.bf16.msra.mxu0 %v1288
  %1866 = vmatprep.subr.bf16.mxu0 %v1291
  %1867 = vmatpush1.bf16.msra.mxu0 %v1290
  %1868 = vmatprep.subr.bf16.mxu0 %v1293
  %1869 = vmatpush1.bf16.msra.mxu0 %v1292
  %1870 = vmatprep.subr.bf16.mxu0 %v1295
  %1871 = vmatpush1.bf16.msra.mxu0 %v1294
  %1872 = vmatprep.subr.bf16.mxu0 %v1297
  %1873 = vmatpush1.bf16.msra.mxu0 %v1296
  %1874 = vmatprep.subr.bf16.mxu0 %v1299
  %1875 = vmatpush1.bf16.msra.mxu0 %v1298
  %1876 = vmatprep.subr.bf16.mxu0 %v1301
  %1877 = vmatpush1.bf16.msra.mxu0 %v1300
  %1878 = vmatprep.subr.bf16.mxu0 %v1303
  %1879 = vmatpush1.bf16.msra.mxu0 %v1302
  %1880 = vmatprep.subr.bf16.mxu0 %v1305
  %1881 = vmatpush1.bf16.msra.mxu0 %v1304
  %1882 = vmatprep.subr.bf16.mxu0 %v1307
  %1883 = vmatpush1.bf16.msra.mxu0 %v1306
  %1884 = vmatprep.subr.bf16.mxu0 %v1309
  %1885 = vmatpush1.bf16.msra.mxu0 %v1308
  %1886 = vmatprep.subr.bf16.mxu0 %v1311
  %1887 = vmatpush1.bf16.msra.mxu0 %v1310
  %1888 = vmatprep.subr.bf16.mxu0 %v1313
  %1889 = vmatpush1.bf16.msra.mxu0 %v1312
  %1890 = vmatprep.subr.bf16.mxu0 %v1315
  %1891 = vmatpush1.bf16.msra.mxu0 %v1314
  %1892 = vmatprep.subr.bf16.mxu0 %v1317
  %1893 = vmatpush1.bf16.msra.mxu0 %v1316
  %1894 = vmatprep.mubr.bf16.mxu0 %v387
  %1895 = vmatmul.mubr.bf16.gmra.mrb[0].mxu0 %v386
  %v1896 = vpop.f32.mrb[0].mxu0
  %v1897 = vadd.f32 %v325, %v1896
  %v1898 = vpop.f32.mrb[0].mxu0
  %v1899 = vadd.f32 %v329, %v1898
  %v1900 = vpop.f32.mrb[0].mxu0
  %v1901 = vadd.f32 %v325, %v1900
  %v1902 = vpop.f32.mrb[0].mxu0
  %v1903 = vadd.f32 %v329, %v1902
  %1904 = vdwg.mxu0
  %1905 = vmatprep.subr.bf16.mxu0 %v1319
  %1906 = vmatpush1.bf16.msra.mxu0 %v1318
  %1907 = vmatprep.subr.bf16.mxu0 %v1321
  %1908 = vmatpush1.bf16.msra.mxu0 %v1320
  %1909 = vmatprep.subr.bf16.mxu0 %v1323
  %1910 = vmatpush1.bf16.msra.mxu0 %v1322
  %1911 = vmatprep.subr.bf16.mxu0 %v1325
  %1912 = vmatpush1.bf16.msra.mxu0 %v1324
  %1913 = vmatprep.subr.bf16.mxu0 %v1327
  %1914 = vmatpush1.bf16.msra.mxu0 %v1326
  %1915 = vmatprep.subr.bf16.mxu0 %v1329
  %1916 = vmatpush1.bf16.msra.mxu0 %v1328
  %1917 = vmatprep.subr.bf16.mxu0 %v1331
  %1918 = vmatpush1.bf16.msra.mxu0 %v1330
  %1919 = vmatprep.subr.bf16.mxu0 %v1333
  %1920 = vmatpush1.bf16.msra.mxu0 %v1332
  %1921 = vmatprep.subr.bf16.mxu0 %v1335
  %1922 = vmatpush1.bf16.msra.mxu0 %v1334
  %1923 = vmatprep.subr.bf16.mxu0 %v1337
  %1924 = vmatpush1.bf16.msra.mxu0 %v1336
  %1925 = vmatprep.subr.bf16.mxu0 %v1339
  %1926 = vmatpush1.bf16.msra.mxu0 %v1338
  %1927 = vmatprep.subr.bf16.mxu0 %v1341
  %1928 = vmatpush1.bf16.msra.mxu0 %v1340
  %1929 = vmatprep.subr.bf16.mxu0 %v1343
  %1930 = vmatpush1.bf16.msra.mxu0 %v1342
  %1931 = vmatprep.subr.bf16.mxu0 %v1345
  %1932 = vmatpush1.bf16.msra.mxu0 %v1344
  %1933 = vmatprep.subr.bf16.mxu0 %v1347
  %1934 = vmatpush1.bf16.msra.mxu0 %v1346
  %1935 = vmatprep.subr.bf16.mxu0 %v1349
  %1936 = vmatpush1.bf16.msra.mxu0 %v1348
  %1937 = vmatprep.mubr.bf16.mxu0 %v389
  %1938 = vmatmul.mubr.bf16.gmra.mrb[0].mxu0 %v388
  %v1939 = vpop.f32.mrb[0].mxu0
  %v1940 = vadd.f32 %v1897, %v1939
  %v1941 = vpop.f32.mrb[0].mxu0
  %v1942 = vadd.f32 %v1899, %v1941
  %v1943 = vpop.f32.mrb[0].mxu0
  %v1944 = vadd.f32 %v1901, %v1943
  %v1945 = vpop.f32.mrb[0].mxu0
  %v1946 = vadd.f32 %v1903, %v1945
  %1947 = vdwg.mxu0
  %1948 = vmatprep.subr.bf16.mxu0 %v1351
  %1949 = vmatpush1.bf16.msra.mxu0 %v1350
  %1950 = vmatprep.subr.bf16.mxu0 %v1353
  %1951 = vmatpush1.bf16.msra.mxu0 %v1352
  %1952 = vmatprep.subr.bf16.mxu0 %v1355
  %1953 = vmatpush1.bf16.msra.mxu0 %v1354
  %1954 = vmatprep.subr.bf16.mxu0 %v1357
  %1955 = vmatpush1.bf16.msra.mxu0 %v1356
  %1956 = vmatprep.subr.bf16.mxu0 %v1359
  %1957 = vmatpush1.bf16.msra.mxu0 %v1358
  %1958 = vmatprep.subr.bf16.mxu0 %v1361
  %1959 = vmatpush1.bf16.msra.mxu0 %v1360
  %1960 = vmatprep.subr.bf16.mxu0 %v1363
  %1961 = vmatpush1.bf16.msra.mxu0 %v1362
  %1962 = vmatprep.subr.bf16.mxu0 %v1365
  %1963 = vmatpush1.bf16.msra.mxu0 %v1364
  %1964 = vmatprep.subr.bf16.mxu0 %v1367
  %1965 = vmatpush1.bf16.msra.mxu0 %v1366
  %1966 = vmatprep.subr.bf16.mxu0 %v1369
  %1967 = vmatpush1.bf16.msra.mxu0 %v1368
  %1968 = vmatprep.subr.bf16.mxu0 %v1371
  %1969 = vmatpush1.bf16.msra.mxu0 %v1370
  %1970 = vmatprep.subr.bf16.mxu0 %v1373
  %1971 = vmatpush1.bf16.msra.mxu0 %v1372
  %1972 = vmatprep.subr.bf16.mxu0 %v1375
  %1973 = vmatpush1.bf16.msra.mxu0 %v1374
  %1974 = vmatprep.subr.bf16.mxu0 %v1377
  %1975 = vmatpush1.bf16.msra.mxu0 %v1376
  %1976 = vmatprep.subr.bf16.mxu0 %v1379
  %1977 = vmatpush1.bf16.msra.mxu0 %v1378
  %1978 = vmatprep.subr.bf16.mxu0 %v1381
  %1979 = vmatpush1.bf16.msra.mxu0 %v1380
  %1980 = vmatprep.mubr.bf16.mxu0 %v391
  %1981 = vmatmul.mubr.bf16.gmra.mrb[0].mxu0 %v390
  %v1982 = vpop.f32.mrb[0].mxu0
  %v1983 = vadd.f32 %v1940, %v1982
  %v1984 = vpop.f32.mrb[0].mxu0
  %v1985 = vadd.f32 %v1942, %v1984
  %v1986 = vpop.f32.mrb[0].mxu0
  %v1987 = vadd.f32 %v1944, %v1986
  %v1988 = vpop.f32.mrb[0].mxu0
  %v1989 = vadd.f32 %v1946, %v1988
  %1990 = vdwg.mxu0
  %1991 = vmatprep.subr.bf16.mxu0 %v1383
  %1992 = vmatpush1.bf16.msra.mxu0 %v1382
  %1993 = vmatprep.subr.bf16.mxu0 %v1385
  %1994 = vmatpush1.bf16.msra.mxu0 %v1384
  %1995 = vmatprep.subr.bf16.mxu0 %v1387
  %1996 = vmatpush1.bf16.msra.mxu0 %v1386
  %1997 = vmatprep.subr.bf16.mxu0 %v1389
  %1998 = vmatpush1.bf16.msra.mxu0 %v1388
  %1999 = vmatprep.subr.bf16.mxu0 %v1391
  %2000 = vmatpush1.bf16.msra.mxu0 %v1390
  %2001 = vmatprep.subr.bf16.mxu0 %v1393
  %2002 = vmatpush1.bf16.msra.mxu0 %v1392
  %2003 = vmatprep.subr.bf16.mxu0 %v1395
  %2004 = vmatpush1.bf16.msra.mxu0 %v1394
  %2005 = vmatprep.subr.bf16.mxu0 %v1397
  %2006 = vmatpush1.bf16.msra.mxu0 %v1396
  %2007 = vmatprep.subr.bf16.mxu0 %v1399
  %2008 = vmatpush1.bf16.msra.mxu0 %v1398
  %2009 = vmatprep.subr.bf16.mxu0 %v1401
  %2010 = vmatpush1.bf16.msra.mxu0 %v1400
  %2011 = vmatprep.subr.bf16.mxu0 %v1403
  %2012 = vmatpush1.bf16.msra.mxu0 %v1402
  %2013 = vmatprep.subr.bf16.mxu0 %v1405
  %2014 = vmatpush1.bf16.msra.mxu0 %v1404
  %2015 = vmatprep.subr.bf16.mxu0 %v1407
  %2016 = vmatpush1.bf16.msra.mxu0 %v1406
  %2017 = vmatprep.subr.bf16.mxu0 %v1409
  %2018 = vmatpush1.bf16.msra.mxu0 %v1408
  %2019 = vmatprep.subr.bf16.mxu0 %v1411
  %2020 = vmatpush1.bf16.msra.mxu0 %v1410
  %2021 = vmatprep.subr.bf16.mxu0 %v1413
  %2022 = vmatpush1.bf16.msra.mxu0 %v1412
  %2023 = vmatprep.mubr.bf16.mxu0 %v393
  %2024 = vmatmul.mubr.bf16.gmra.mrb[0].mxu0 %v392
  %v2025 = vpop.f32.mrb[0].mxu0
  %v2026 = vadd.f32 %v1983, %v2025
  %v2027 = vpop.f32.mrb[0].mxu0
  %v2028 = vadd.f32 %v1985, %v2027
  %v2029 = vpop.f32.mrb[0].mxu0
  %v2030 = vadd.f32 %v1987, %v2029
  %v2031 = vpop.f32.mrb[0].mxu0
  %v2032 = vadd.f32 %v1989, %v2031
  %2033 = vdwg.mxu0
  %2034 = vmatprep.subr.bf16.mxu0 %v1415
  %2035 = vmatpush1.bf16.msra.mxu0 %v1414
  %2036 = vmatprep.subr.bf16.mxu0 %v1417
  %2037 = vmatpush1.bf16.msra.mxu0 %v1416
  %2038 = vmatprep.subr.bf16.mxu0 %v1419
  %2039 = vmatpush1.bf16.msra.mxu0 %v1418
  %2040 = vmatprep.subr.bf16.mxu0 %v1421
  %2041 = vmatpush1.bf16.msra.mxu0 %v1420
  %2042 = vmatprep.subr.bf16.mxu0 %v1423
  %2043 = vmatpush1.bf16.msra.mxu0 %v1422
  %2044 = vmatprep.subr.bf16.mxu0 %v1425
  %2045 = vmatpush1.bf16.msra.mxu0 %v1424
  %2046 = vmatprep.subr.bf16.mxu0 %v1427
  %2047 = vmatpush1.bf16.msra.mxu0 %v1426
  %2048 = vmatprep.subr.bf16.mxu0 %v1429
  %2049 = vmatpush1.bf16.msra.mxu0 %v1428
  %2050 = vmatprep.subr.bf16.mxu0 %v1431
  %2051 = vmatpush1.bf16.msra.mxu0 %v1430
  %2052 = vmatprep.subr.bf16.mxu0 %v1433
  %2053 = vmatpush1.bf16.msra.mxu0 %v1432
  %2054 = vmatprep.subr.bf16.mxu0 %v1435
  %2055 = vmatpush1.bf16.msra.mxu0 %v1434
  %2056 = vmatprep.subr.bf16.mxu0 %v1437
  %2057 = vmatpush1.bf16.msra.mxu0 %v1436
  %2058 = vmatprep.subr.bf16.mxu0 %v1439
  %2059 = vmatpush1.bf16.msra.mxu0 %v1438
  %2060 = vmatprep.subr.bf16.mxu0 %v1441
  %2061 = vmatpush1.bf16.msra.mxu0 %v1440
  %2062 = vmatprep.subr.bf16.mxu0 %v1443
  %2063 = vmatpush1.bf16.msra.mxu0 %v1442
  %2064 = vmatprep.subr.bf16.mxu0 %v1445
  %2065 = vmatpush1.bf16.msra.mxu0 %v1444
  %2066 = vmatprep.mubr.bf16.mxu0 %v395
  %2067 = vmatmul.mubr.bf16.gmra.mrb[0].mxu0 %v394
  %v2068 = vpop.f32.mrb[0].mxu0
  %v2069 = vadd.f32 %v2026, %v2068
  %v2070 = vpop.f32.mrb[0].mxu0
  %v2071 = vadd.f32 %v2028, %v2070
  %v2072 = vpop.f32.mrb[0].mxu0
  %v2073 = vadd.f32 %v2030, %v2072
  %v2074 = vpop.f32.mrb[0].mxu0
  %v2075 = vadd.f32 %v2032, %v2074
  %2076 = vdwg.mxu0
  %2077 = vmatprep.subr.bf16.mxu0 %v1447
  %2078 = vmatpush1.bf16.msra.mxu0 %v1446
  %2079 = vmatprep.subr.bf16.mxu0 %v1449
  %2080 = vmatpush1.bf16.msra.mxu0 %v1448
  %2081 = vmatprep.subr.bf16.mxu0 %v1451
  %2082 = vmatpush1.bf16.msra.mxu0 %v1450
  %2083 = vmatprep.subr.bf16.mxu0 %v1453
  %2084 = vmatpush1.bf16.msra.mxu0 %v1452
  %2085 = vmatprep.subr.bf16.mxu0 %v1455
  %2086 = vmatpush1.bf16.msra.mxu0 %v1454
  %2087 = vmatprep.subr.bf16.mxu0 %v1457
  %2088 = vmatpush1.bf16.msra.mxu0 %v1456
  %2089 = vmatprep.subr.bf16.mxu0 %v1459
  %2090 = vmatpush1.bf16.msra.mxu0 %v1458
  %2091 = vmatprep.subr.bf16.mxu0 %v1461
  %2092 = vmatpush1.bf16.msra.mxu0 %v1460
  %2093 = vmatprep.subr.bf16.mxu0 %v1463
  %2094 = vmatpush1.bf16.msra.mxu0 %v1462
  %2095 = vmatprep.subr.bf16.mxu0 %v1465
  %2096 = vmatpush1.bf16.msra.mxu0 %v1464
  %2097 = vmatprep.subr.bf16.mxu0 %v1467
  %2098 = vmatpush1.bf16.msra.mxu0 %v1466
  %2099 = vmatprep.subr.bf16.mxu0 %v1469
  %2100 = vmatpush1.bf16.msra.mxu0 %v1468
  %2101 = vmatprep.subr.bf16.mxu0 %v1471
  %2102 = vmatpush1.bf16.msra.mxu0 %v1470
  %2103 = vmatprep.subr.bf16.mxu0 %v1473
  %2104 = vmatpush1.bf16.msra.mxu0 %v1472
  %2105 = vmatprep.subr.bf16.mxu0 %v1475
  %2106 = vmatpush1.bf16.msra.mxu0 %v1474
  %2107 = vmatprep.subr.bf16.mxu0 %v1477
  %2108 = vmatpush1.bf16.msra.mxu0 %v1476
  %2109 = vmatprep.mubr.bf16.mxu0 %v397
  %2110 = vmatmul.mubr.bf16.gmra.mrb[0].mxu0 %v396
  %v2111 = vpop.f32.mrb[0].mxu0
  %v2112 = vadd.f32 %v2069, %v2111
  %v2113 = vpop.f32.mrb[0].mxu0
  %v2114 = vadd.f32 %v2071, %v2113
  %v2115 = vpop.f32.mrb[0].mxu0
  %v2116 = vadd.f32 %v2073, %v2115
  %v2117 = vpop.f32.mrb[0].mxu0
  %v2118 = vadd.f32 %v2075, %v2117
  %2119 = vdwg.mxu0
  %2120 = vmatprep.subr.bf16.mxu0 %v1479
  %2121 = vmatpush1.bf16.msra.mxu0 %v1478
  %2122 = vmatprep.subr.bf16.mxu0 %v1481
  %2123 = vmatpush1.bf16.msra.mxu0 %v1480
  %2124 = vmatprep.subr.bf16.mxu0 %v1483
  %2125 = vmatpush1.bf16.msra.mxu0 %v1482
  %2126 = vmatprep.subr.bf16.mxu0 %v1485
  %2127 = vmatpush1.bf16.msra.mxu0 %v1484
  %2128 = vmatprep.subr.bf16.mxu0 %v1487
  %2129 = vmatpush1.bf16.msra.mxu0 %v1486
  %2130 = vmatprep.subr.bf16.mxu0 %v1489
  %2131 = vmatpush1.bf16.msra.mxu0 %v1488
  %2132 = vmatprep.subr.bf16.mxu0 %v1491
  %2133 = vmatpush1.bf16.msra.mxu0 %v1490
  %2134 = vmatprep.subr.bf16.mxu0 %v1493
  %2135 = vmatpush1.bf16.msra.mxu0 %v1492
  %2136 = vmatprep.subr.bf16.mxu0 %v1495
  %2137 = vmatpush1.bf16.msra.mxu0 %v1494
  %2138 = vmatprep.subr.bf16.mxu0 %v1497
  %2139 = vmatpush1.bf16.msra.mxu0 %v1496
  %2140 = vmatprep.subr.bf16.mxu0 %v1499
  %2141 = vmatpush1.bf16.msra.mxu0 %v1498
  %2142 = vmatprep.subr.bf16.mxu0 %v1501
  %2143 = vmatpush1.bf16.msra.mxu0 %v1500
  %2144 = vmatprep.subr.bf16.mxu0 %v1503
  %2145 = vmatpush1.bf16.msra.mxu0 %v1502
  %2146 = vmatprep.subr.bf16.mxu0 %v1505
  %2147 = vmatpush1.bf16.msra.mxu0 %v1504
  %2148 = vmatprep.subr.bf16.mxu0 %v1507
  %2149 = vmatpush1.bf16.msra.mxu0 %v1506
  %2150 = vmatprep.subr.bf16.mxu0 %v1509
  %2151 = vmatpush1.bf16.msra.mxu0 %v1508
  %2152 = vmatprep.mubr.bf16.mxu0 %v399
  %2153 = vmatmul.mubr.bf16.gmra.mrb[0].mxu0 %v398
  %v2154 = vpop.f32.mrb[0].mxu0
  %v2155 = vadd.f32 %v2112, %v2154
  %v2156 = vpop.f32.mrb[0].mxu0
  %v2157 = vadd.f32 %v2114, %v2156
  %v2158 = vpop.f32.mrb[0].mxu0
  %v2159 = vadd.f32 %v2116, %v2158
  %v2160 = vpop.f32.mrb[0].mxu0
  %v2161 = vadd.f32 %v2118, %v2160
  %2162 = vdwg.mxu0
  %2163 = vmatprep.subr.bf16.mxu0 %v1511
  %2164 = vmatpush1.bf16.msra.mxu0 %v1510
  %2165 = vmatprep.subr.bf16.mxu0 %v1513
  %2166 = vmatpush1.bf16.msra.mxu0 %v1512
  %2167 = vmatprep.subr.bf16.mxu0 %v1515
  %2168 = vmatpush1.bf16.msra.mxu0 %v1514
  %2169 = vmatprep.subr.bf16.mxu0 %v1517
  %2170 = vmatpush1.bf16.msra.mxu0 %v1516
  %2171 = vmatprep.subr.bf16.mxu0 %v1519
  %2172 = vmatpush1.bf16.msra.mxu0 %v1518
  %2173 = vmatprep.subr.bf16.mxu0 %v1521
  %2174 = vmatpush1.bf16.msra.mxu0 %v1520
  %2175 = vmatprep.subr.bf16.mxu0 %v1523
  %2176 = vmatpush1.bf16.msra.mxu0 %v1522
  %2177 = vmatprep.subr.bf16.mxu0 %v1525
  %2178 = vmatpush1.bf16.msra.mxu0 %v1524
  %2179 = vmatprep.subr.bf16.mxu0 %v1527
  %2180 = vmatpush1.bf16.msra.mxu0 %v1526
  %2181 = vmatprep.subr.bf16.mxu0 %v1529
  %2182 = vmatpush1.bf16.msra.mxu0 %v1528
  %2183 = vmatprep.subr.bf16.mxu0 %v1531
  %2184 = vmatpush1.bf16.msra.mxu0 %v1530
  %2185 = vmatprep.subr.bf16.mxu0 %v1533
  %2186 = vmatpush1.bf16.msra.mxu0 %v1532
  %2187 = vmatprep.subr.bf16.mxu0 %v1535
  %2188 = vmatpush1.bf16.msra.mxu0 %v1534
  %2189 = vmatprep.subr.bf16.mxu0 %v1537
  %2190 = vmatpush1.bf16.msra.mxu0 %v1536
  %2191 = vmatprep.subr.bf16.mxu0 %v1539
  %2192 = vmatpush1.bf16.msra.mxu0 %v1538
  %2193 = vmatprep.subr.bf16.mxu0 %v1541
  %2194 = vmatpush1.bf16.msra.mxu0 %v1540
  %2195 = vmatprep.mubr.bf16.mxu0 %v401
  %2196 = vmatmul.mubr.bf16.gmra.mrb[0].mxu0 %v400
  %v2197 = vpop.f32.mrb[0].mxu0
  %v2198 = vadd.f32 %v2155, %v2197
  %v2199 = vpop.f32.mrb[0].mxu0
  %v2200 = vadd.f32 %v2157, %v2199
  %v2201 = vpop.f32.mrb[0].mxu0
  %v2202 = vadd.f32 %v2159, %v2201
  %v2203 = vpop.f32.mrb[0].mxu0
  %v2204 = vadd.f32 %v2161, %v2203
  %2205 = vdwg.mxu0
  %2206 = vmatprep.subr.bf16.mxu0 %v1543
  %2207 = vmatpush1.bf16.msra.mxu0 %v1542
  %2208 = vmatprep.subr.bf16.mxu0 %v1545
  %2209 = vmatpush1.bf16.msra.mxu0 %v1544
  %2210 = vmatprep.subr.bf16.mxu0 %v1547
  %2211 = vmatpush1.bf16.msra.mxu0 %v1546
  %2212 = vmatprep.subr.bf16.mxu0 %v1549
  %2213 = vmatpush1.bf16.msra.mxu0 %v1548
  %2214 = vmatprep.subr.bf16.mxu0 %v1551
  %2215 = vmatpush1.bf16.msra.mxu0 %v1550
  %2216 = vmatprep.subr.bf16.mxu0 %v1553
  %2217 = vmatpush1.bf16.msra.mxu0 %v1552
  %2218 = vmatprep.subr.bf16.mxu0 %v1555
  %2219 = vmatpush1.bf16.msra.mxu0 %v1554
  %2220 = vmatprep.subr.bf16.mxu0 %v1557
  %2221 = vmatpush1.bf16.msra.mxu0 %v1556
  %2222 = vmatprep.subr.bf16.mxu0 %v1559
  %2223 = vmatpush1.bf16.msra.mxu0 %v1558
  %2224 = vmatprep.subr.bf16.mxu0 %v1561
  %2225 = vmatpush1.bf16.msra.mxu0 %v1560
  %2226 = vmatprep.subr.bf16.mxu0 %v1563
  %2227 = vmatpush1.bf16.msra.mxu0 %v1562
  %2228 = vmatprep.subr.bf16.mxu0 %v1565
  %2229 = vmatpush1.bf16.msra.mxu0 %v1564
  %2230 = vmatprep.subr.bf16.mxu0 %v1567
  %2231 = vmatpush1.bf16.msra.mxu0 %v1566
  %2232 = vmatprep.subr.bf16.mxu0 %v1569
  %2233 = vmatpush1.bf16.msra.mxu0 %v1568
  %2234 = vmatprep.subr.bf16.mxu0 %v1571
  %2235 = vmatpush1.bf16.msra.mxu0 %v1570
  %2236 = vmatprep.subr.bf16.mxu0 %v1573
  %2237 = vmatpush1.bf16.msra.mxu0 %v1572
  %2238 = vmatprep.mubr.bf16.mxu0 %v403
  %2239 = vmatmul.mubr.bf16.gmra.mrb[0].mxu0 %v402
  %v2240 = vpop.f32.mrb[0].mxu0
  %v2241 = vadd.f32 %v2198, %v2240
  %v2242 = vpop.f32.mrb[0].mxu0
  %v2243 = vadd.f32 %v2200, %v2242
  %v2244 = vpop.f32.mrb[0].mxu0
  %v2245 = vadd.f32 %v2202, %v2244
  %v2246 = vpop.f32.mrb[0].mxu0
  %v2247 = vadd.f32 %v2204, %v2246
  %2248 = vdwg.mxu0
  %v2249 = vmax.f32 %v2241, 0.0
  %v2250 = vmax.f32 %v2243, 0.0
  %v2251 = vmax.f32 %v2245, 0.0
  %v2252 = vmax.f32 %v2247, 0.0
  %v2253 = vpack.c.bf16 %v2251, %v2249
  %v2254 = vpack.c.bf16 %v2252, %v2250
  %v2257 = vunpack.c.l.b16 %v2253
  %v2258 = vunpack.c.l.b16 %v2254
  %v2259 = vunpack.c.h.b16 %v2253
  %v2260 = vunpack.c.h.b16 %v2254
  %v2261 = vpack.c.b16 %v2258, %v2257
  %v2262 = vpack.c.b16 %v2260, %v2259
  %2265 = vst [vmem:[%s3] sm:$0xff] %v2261
  %2266 = vst [vmem:[%s3 + $0x8] sm:$0xff] %v2262
  // Predicated region
  $region14: #{conv_autoencoder_forward.17} parent=0 // pred_check
    _
  $region15: #{conv_autoencoder_forward.17} parent=0 // pred_check_branch
    %2268 = sbr.rel (0) target = $region17
  $region16: #{conv_autoencoder_forward.17} parent=0 // pred_region
    _
  $region17: #{conv_autoencoder_forward.17} parent=0 // pred_fallthru
    _
  // Predicated region
  $region18: #{conv_autoencoder_forward.17} parent=0 // pred_check
    _
  $region19: #{conv_autoencoder_forward.17} parent=0 // pred_check_branch
    %2270 = sbr.rel (0) target = $region21
  $region20: #{conv_autoencoder_forward.17} parent=0 // pred_region
    _
  $region21: #{conv_autoencoder_forward.17} parent=0 // pred_fallthru
    _

// kernel: conv_autoencoder_forward.19
$region0: #{conv_autoencoder_forward.19}
  #allocation0 [shape = 'u32[]', space=smem, size = 0x4, offset = 0x4, fixed_abs, tag = 'smem constant byte address 0x4 - core index']
  #allocation1 [shape = 'u32[144,128]{1,0:T(1,128)}', space=vmem, size = 0x12000, scoped, tag = 'internal scratch']
  %s0 = inlined_call_operand.vmem [shape: bf16[16,1024], index: 0, kind: input, shape index: {}]
  %s1 = inlined_call_operand.vmem [shape: bf16[1024,128], index: 1, kind: input, shape index: {}]
  %s2 = inlined_call_operand.vmem [shape: f32[1,128], index: 2, kind: input, shape index: {}]
  %s3 = inlined_call_operand.vmem [shape: bf16[128,1024], index: 3, kind: input, shape index: {}]
  %s4 = inlined_call_operand.vmem [shape: f32[1,1024], index: 4, kind: input, shape index: {}]
  %s5 = inlined_call_operand.vmem [shape: bf16[16,1024], index: 5, kind: output, shape index: {}]
  %s6 = sld [smem:[#allocation0]]
  $region30: #{conv_autoencoder_forward.19} parent=0
    _
  %s8 = ssub.s32 1, %s6
  %s9 = scalar_select 0, %s8, %s6
  // Predicated region
  $region2: #{conv_autoencoder_forward.19} parent=0 // pred_check
    _
  $region3: #{conv_autoencoder_forward.19} parent=0 // pred_check_branch
    %11 = sbr.rel (0) target = $region5
  $region4: #{conv_autoencoder_forward.19} parent=0 // pred_region
    _
  $region5: #{conv_autoencoder_forward.19} parent=0 // pred_fallthru
    _
  // Predicated region
  $region6: #{conv_autoencoder_forward.19} parent=0 // pred_check
    _
  $region7: #{conv_autoencoder_forward.19} parent=0 // pred_check_branch
    %13 = sbr.rel (0) target = $region9
  $region8: #{conv_autoencoder_forward.19} parent=0 // pred_region
    _
  $region9: #{conv_autoencoder_forward.19} parent=0 // pred_fallthru
    _
  // Predicated region
  $region10: #{conv_autoencoder_forward.19} parent=0 // pred_check
    _
  $region11: #{conv_autoencoder_forward.19} parent=0 // pred_check_branch
    %15 = sbr.rel (0) target = $region13
  $region12: #{conv_autoencoder_forward.19} parent=0 // pred_region
    _
  $region13: #{conv_autoencoder_forward.19} parent=0 // pred_fallthru
    _
  // Predicated region
  $region14: #{conv_autoencoder_forward.19} parent=0 // pred_check
    _
  $region15: #{conv_autoencoder_forward.19} parent=0 // pred_check_branch
    %17 = sbr.rel (0) target = $region17
  $region16: #{conv_autoencoder_forward.19} parent=0 // pred_region
    _
  $region17: #{conv_autoencoder_forward.19} parent=0 // pred_fallthru
    _
  // Predicated region
  $region18: #{conv_autoencoder_forward.19} parent=0 // pred_check
    _
  $region19: #{conv_autoencoder_forward.19} parent=0 // pred_check_branch
    %19 = sbr.rel (0) target = $region21
  $region20: #{conv_autoencoder_forward.19} parent=0 // pred_region
    _
  $region21: #{conv_autoencoder_forward.19} parent=0 // pred_fallthru
    _
  %v21 = vld [vmem:[%s0] sm:$0xff]
  %v22 = vld [vmem:[%s0 + $0x8] sm:$0xff]
  %v23 = vld [vmem:[%s0 + $0x10] sm:$0xff]
  %v24 = vld [vmem:[%s0 + $0x18] sm:$0xff]
  %v25 = vld [vmem:[%s0 + $0x20] sm:$0xff]
  %v26 = vld [vmem:[%s0 + $0x28] sm:$0xff]
  %v27 = vld [vmem:[%s0 + $0x30] sm:$0xff]
  %v28 = vld [vmem:[%s0 + $0x38] sm:$0xff]
  %v29 = vld [vmem:[%s1] sm:$0xf]
  %v30 = vld [vmem:[%s1 + $0x4] sm:$0xf]
  %v31 = vld [vmem:[%s1 + $0x8] sm:$0xf]
  %v32 = vld [vmem:[%s1 + $0xc] sm:$0xf]
  %v33 = vld [vmem:[%s1 + $0x10] sm:$0xf]
  %v34 = vld [vmem:[%s1 + $0x14] sm:$0xf]
  %v35 = vld [vmem:[%s1 + $0x18] sm:$0xf]
  %v36 = vld [vmem:[%s1 + $0x1c] sm:$0xf]
  %v37 = vld [vmem:[%s1 + $0x20] sm:$0xf]
  %v38 = vld [vmem:[%s1 + $0x24] sm:$0xf]
  %v39 = vld [vmem:[%s1 + $0x28] sm:$0xf]
  %v40 = vld [vmem:[%s1 + $0x2c] sm:$0xf]
  %v41 = vld [vmem:[%s1 + $0x30] sm:$0xf]
  %v42 = vld [vmem:[%s1 + $0x34] sm:$0xf]
  %v43 = vld [vmem:[%s1 + $0x38] sm:$0xf]
  %v44 = vld [vmem:[%s1 + $0x3c] sm:$0xf]
  %v45 = vld [vmem:[%s1 + $0x40] sm:$0xf]
  %v46 = vld [vmem:[%s1 + $0x44] sm:$0xf]
  %v47 = vld [vmem:[%s1 + $0x48] sm:$0xf]
  %v48 = vld [vmem:[%s1 + $0x4c] sm:$0xf]
  %v49 = vld [vmem:[%s1 + $0x50] sm:$0xf]
  %v50 = vld [vmem:[%s1 + $0x54] sm:$0xf]
  %v51 = vld [vmem:[%s1 + $0x58] sm:$0xf]
  %v52 = vld [vmem:[%s1 + $0x5c] sm:$0xf]
  %v53 = vld [vmem:[%s1 + $0x60] sm:$0xf]
  %v54 = vld [vmem:[%s1 + $0x64] sm:$0xf]
  %v55 = vld [vmem:[%s1 + $0x68] sm:$0xf]
  %v56 = vld [vmem:[%s1 + $0x6c] sm:$0xf]
  %v57 = vld [vmem:[%s1 + $0x70] sm:$0xf]
  %v58 = vld [vmem:[%s1 + $0x74] sm:$0xf]
  %v59 = vld [vmem:[%s1 + $0x78] sm:$0xf]
  %v60 = vld [vmem:[%s1 + $0x7c] sm:$0xf]
  %v61 = vld [vmem:[%s1 + $0x80] sm:$0xf]
  %v62 = vld [vmem:[%s1 + $0x84] sm:$0xf]
  %v63 = vld [vmem:[%s1 + $0x88] sm:$0xf]
  %v64 = vld [vmem:[%s1 + $0x8c] sm:$0xf]
  %v65 = vld [vmem:[%s1 + $0x90] sm:$0xf]
  %v66 = vld [vmem:[%s1 + $0x94] sm:$0xf]
  %v67 = vld [vmem:[%s1 + $0x98] sm:$0xf]
  %v68 = vld [vmem:[%s1 + $0x9c] sm:$0xf]
  %v69 = vld [vmem:[%s1 + $0xa0] sm:$0xf]
  %v70 = vld [vmem:[%s1 + $0xa4] sm:$0xf]
  %v71 = vld [vmem:[%s1 + $0xa8] sm:$0xf]
  %v72 = vld [vmem:[%s1 + $0xac] sm:$0xf]
  %v73 = vld [vmem:[%s1 + $0xb0] sm:$0xf]
  %v74 = vld [vmem:[%s1 + $0xb4] sm:$0xf]
  %v75 = vld [vmem:[%s1 + $0xb8] sm:$0xf]
  %v76 = vld [vmem:[%s1 + $0xbc] sm:$0xf]
  %v77 = vld [vmem:[%s1 + $0xc0] sm:$0xf]
  %v78 = vld [vmem:[%s1 + $0xc4] sm:$0xf]
  %v79 = vld [vmem:[%s1 + $0xc8] sm:$0xf]
  %v80 = vld [vmem:[%s1 + $0xcc] sm:$0xf]
  %v81 = vld [vmem:[%s1 + $0xd0] sm:$0xf]
  %v82 = vld [vmem:[%s1 + $0xd4] sm:$0xf]
  %v83 = vld [vmem:[%s1 + $0xd8] sm:$0xf]
  %v84 = vld [vmem:[%s1 + $0xdc] sm:$0xf]
  %v85 = vld [vmem:[%s1 + $0xe0] sm:$0xf]
  %v86 = vld [vmem:[%s1 + $0xe4] sm:$0xf]
  %v87 = vld [vmem:[%s1 + $0xe8] sm:$0xf]
  %v88 = vld [vmem:[%s1 + $0xec] sm:$0xf]
  %v89 = vld [vmem:[%s1 + $0xf0] sm:$0xf]
  %v90 = vld [vmem:[%s1 + $0xf4] sm:$0xf]
  %v91 = vld [vmem:[%s1 + $0xf8] sm:$0xf]
  %v92 = vld [vmem:[%s1 + $0xfc] sm:$0xf]
  %v93 = vld [vmem:[%s1 + $0x100] sm:$0xf]
  %v94 = vld [vmem:[%s1 + $0x104] sm:$0xf]
  %v95 = vld [vmem:[%s1 + $0x108] sm:$0xf]
  %v96 = vld [vmem:[%s1 + $0x10c] sm:$0xf]
  %v97 = vld [vmem:[%s1 + $0x110] sm:$0xf]
  %v98 = vld [vmem:[%s1 + $0x114] sm:$0xf]
  %v99 = vld [vmem:[%s1 + $0x118] sm:$0xf]
  %v100 = vld [vmem:[%s1 + $0x11c] sm:$0xf]
  %v101 = vld [vmem:[%s1 + $0x120] sm:$0xf]
  %v102 = vld [vmem:[%s1 + $0x124] sm:$0xf]
  %v103 = vld [vmem:[%s1 + $0x128] sm:$0xf]
  %v104 = vld [vmem:[%s1 + $0x12c] sm:$0xf]
  %v105 = vld [vmem:[%s1 + $0x130] sm:$0xf]
  %v106 = vld [vmem:[%s1 + $0x134] sm:$0xf]
  %v107 = vld [vmem:[%s1 + $0x138] sm:$0xf]
  %v108 = vld [vmem:[%s1 + $0x13c] sm:$0xf]
  %v109 = vld [vmem:[%s1 + $0x140] sm:$0xf]
  %v110 = vld [vmem:[%s1 + $0x144] sm:$0xf]
  %v111 = vld [vmem:[%s1 + $0x148] sm:$0xf]
  %v112 = vld [vmem:[%s1 + $0x14c] sm:$0xf]
  %v113 = vld [vmem:[%s1 + $0x150] sm:$0xf]
  %v114 = vld [vmem:[%s1 + $0x154] sm:$0xf]
  %v115 = vld [vmem:[%s1 + $0x158] sm:$0xf]
  %v116 = vld [vmem:[%s1 + $0x15c] sm:$0xf]
  %v117 = vld [vmem:[%s1 + $0x160] sm:$0xf]
  %v118 = vld [vmem:[%s1 + $0x164] sm:$0xf]
  %v119 = vld [vmem:[%s1 + $0x168] sm:$0xf]
  %v120 = vld [vmem:[%s1 + $0x16c] sm:$0xf]
  %v121 = vld [vmem:[%s1 + $0x170] sm:$0xf]
  %v122 = vld [vmem:[%s1 + $0x174] sm:$0xf]
  %v123 = vld [vmem:[%s1 + $0x178] sm:$0xf]
  %v124 = vld [vmem:[%s1 + $0x17c] sm:$0xf]
  %v125 = vld [vmem:[%s1 + $0x180] sm:$0xf]
  %v126 = vld [vmem:[%s1 + $0x184] sm:$0xf]
  %v127 = vld [vmem:[%s1 + $0x188] sm:$0xf]
  %v128 = vld [vmem:[%s1 + $0x18c] sm:$0xf]
  %v129 = vld [vmem:[%s1 + $0x190] sm:$0xf]
  %v130 = vld [vmem:[%s1 + $0x194] sm:$0xf]
  %v131 = vld [vmem:[%s1 + $0x198] sm:$0xf]
  %v132 = vld [vmem:[%s1 + $0x19c] sm:$0xf]
  %v133 = vld [vmem:[%s1 + $0x1a0] sm:$0xf]
  %v134 = vld [vmem:[%s1 + $0x1a4] sm:$0xf]
  %v135 = vld [vmem:[%s1 + $0x1a8] sm:$0xf]
  %v136 = vld [vmem:[%s1 + $0x1ac] sm:$0xf]
  %v137 = vld [vmem:[%s1 + $0x1b0] sm:$0xf]
  %v138 = vld [vmem:[%s1 + $0x1b4] sm:$0xf]
  %v139 = vld [vmem:[%s1 + $0x1b8] sm:$0xf]
  %v140 = vld [vmem:[%s1 + $0x1bc] sm:$0xf]
  %v141 = vld [vmem:[%s1 + $0x1c0] sm:$0xf]
  %v142 = vld [vmem:[%s1 + $0x1c4] sm:$0xf]
  %v143 = vld [vmem:[%s1 + $0x1c8] sm:$0xf]
  %v144 = vld [vmem:[%s1 + $0x1cc] sm:$0xf]
  %v145 = vld [vmem:[%s1 + $0x1d0] sm:$0xf]
  %v146 = vld [vmem:[%s1 + $0x1d4] sm:$0xf]
  %v147 = vld [vmem:[%s1 + $0x1d8] sm:$0xf]
  %v148 = vld [vmem:[%s1 + $0x1dc] sm:$0xf]
  %v149 = vld [vmem:[%s1 + $0x1e0] sm:$0xf]
  %v150 = vld [vmem:[%s1 + $0x1e4] sm:$0xf]
  %v151 = vld [vmem:[%s1 + $0x1e8] sm:$0xf]
  %v152 = vld [vmem:[%s1 + $0x1ec] sm:$0xf]
  %v153 = vld [vmem:[%s1 + $0x1f0] sm:$0xf]
  %v154 = vld [vmem:[%s1 + $0x1f4] sm:$0xf]
  %v155 = vld [vmem:[%s1 + $0x1f8] sm:$0xf]
  %v156 = vld [vmem:[%s1 + $0x1fc] sm:$0xf]
  %v157 = vld [vmem:[%s2] sm:$0x1]
  %v159 = vlaneseq
  %v160 = vshrl.u32 %v159, 7
  %v161 = vsub.s32 0, %v160
  %v162 = vrot.slane %v157, %v161
  %v172 = vunpack.c.l.b16 %v21
  %v173 = vunpack.c.h.b16 %v21
  %v174 = vunpack.c.l.b16 %v22
  %v175 = vunpack.c.h.b16 %v22
  %v176 = vunpack.c.l.b16 %v23
  %v177 = vunpack.c.h.b16 %v23
  %v178 = vunpack.c.l.b16 %v24
  %v179 = vunpack.c.h.b16 %v24
  %v180 = vunpack.c.l.b16 %v25
  %v181 = vunpack.c.h.b16 %v25
  %v182 = vunpack.c.l.b16 %v26
  %v183 = vunpack.c.h.b16 %v26
  %v184 = vunpack.c.l.b16 %v27
  %v185 = vunpack.c.h.b16 %v27
  %v186 = vunpack.c.l.b16 %v28
  %v187 = vunpack.c.h.b16 %v28
  %v188 = vpack.c.b16 %v180, %v172
  %v189 = vpack.c.b16 %v181, %v173
  %v190 = vpack.c.b16 %v182, %v174
  %v191 = vpack.c.b16 %v183, %v175
  %v192 = vpack.c.b16 %v184, %v176
  %v193 = vpack.c.b16 %v185, %v177
  %v194 = vpack.c.b16 %v186, %v178
  %v195 = vpack.c.b16 %v187, %v179
  %v332 = vunpack.c.l.b16 %v29
  %v333 = vunpack.c.l.b16 %v30
  %v334 = vunpack.c.l.b16 %v31
  %v335 = vunpack.c.l.b16 %v32
  %v336 = vunpack.c.l.b16 %v33
  %v337 = vunpack.c.l.b16 %v34
  %v338 = vunpack.c.l.b16 %v35
  %v339 = vunpack.c.l.b16 %v36
  %v340 = vunpack.c.l.b16 %v37
  %v341 = vunpack.c.l.b16 %v38
  %v342 = vunpack.c.l.b16 %v39
  %v343 = vunpack.c.l.b16 %v40
  %v344 = vunpack.c.l.b16 %v41
  %v345 = vunpack.c.l.b16 %v42
  %v346 = vunpack.c.l.b16 %v43
  %v347 = vunpack.c.l.b16 %v44
  %v348 = vunpack.c.l.b16 %v45
  %v349 = vunpack.c.l.b16 %v46
  %v350 = vunpack.c.l.b16 %v47
  %v351 = vunpack.c.l.b16 %v48
  %v352 = vunpack.c.l.b16 %v49
  %v353 = vunpack.c.l.b16 %v50
  %v354 = vunpack.c.l.b16 %v51
  %v355 = vunpack.c.l.b16 %v52
  %v356 = vunpack.c.l.b16 %v53
  %v357 = vunpack.c.l.b16 %v54
  %v358 = vunpack.c.l.b16 %v55
  %v359 = vunpack.c.l.b16 %v56
  %v360 = vunpack.c.l.b16 %v57
  %v361 = vunpack.c.l.b16 %v58
  %v362 = vunpack.c.l.b16 %v59
  %v363 = vunpack.c.l.b16 %v60
  %v364 = vunpack.c.l.b16 %v61
  %v365 = vunpack.c.l.b16 %v62
  %v366 = vunpack.c.l.b16 %v63
  %v367 = vunpack.c.l.b16 %v64
  %v368 = vunpack.c.l.b16 %v65
  %v369 = vunpack.c.l.b16 %v66
  %v370 = vunpack.c.l.b16 %v67
  %v371 = vunpack.c.l.b16 %v68
  %v372 = vunpack.c.l.b16 %v69
  %v373 = vunpack.c.l.b16 %v70
  %v374 = vunpack.c.l.b16 %v71
  %v375 = vunpack.c.l.b16 %v72
  %v376 = vunpack.c.l.b16 %v73
  %v377 = vunpack.c.l.b16 %v74
  %v378 = vunpack.c.l.b16 %v75
  %v379 = vunpack.c.l.b16 %v76
  %v380 = vunpack.c.l.b16 %v77
  %v381 = vunpack.c.l.b16 %v78
  %v382 = vunpack.c.l.b16 %v79
  %v383 = vunpack.c.l.b16 %v80
  %v384 = vunpack.c.l.b16 %v81
  %v385 = vunpack.c.l.b16 %v82
  %v386 = vunpack.c.l.b16 %v83
  %v387 = vunpack.c.l.b16 %v84
  %v388 = vunpack.c.l.b16 %v85
  %v389 = vunpack.c.l.b16 %v86
  %v390 = vunpack.c.l.b16 %v87
  %v391 = vunpack.c.l.b16 %v88
  %v392 = vunpack.c.l.b16 %v89
  %v393 = vunpack.c.l.b16 %v90
  %v394 = vunpack.c.l.b16 %v91
  %v395 = vunpack.c.l.b16 %v92
  %v396 = vunpack.c.l.b16 %v93
  %v397 = vunpack.c.l.b16 %v94
  %v398 = vunpack.c.l.b16 %v95
  %v399 = vunpack.c.l.b16 %v96
  %v400 = vunpack.c.l.b16 %v97
  %v401 = vunpack.c.l.b16 %v98
  %v402 = vunpack.c.l.b16 %v99
  %v403 = vunpack.c.l.b16 %v100
  %v404 = vunpack.c.l.b16 %v101
  %v405 = vunpack.c.l.b16 %v102
  %v406 = vunpack.c.l.b16 %v103
  %v407 = vunpack.c.l.b16 %v104
  %v408 = vunpack.c.l.b16 %v105
  %v409 = vunpack.c.l.b16 %v106
  %v410 = vunpack.c.l.b16 %v107
  %v411 = vunpack.c.l.b16 %v108
  %v412 = vunpack.c.l.b16 %v109
  %v413 = vunpack.c.l.b16 %v110
  %v414 = vunpack.c.l.b16 %v111
  %v415 = vunpack.c.l.b16 %v112
  %v416 = vunpack.c.l.b16 %v113
  %v417 = vunpack.c.l.b16 %v114
  %v418 = vunpack.c.l.b16 %v115
  %v419 = vunpack.c.l.b16 %v116
  %v420 = vunpack.c.l.b16 %v117
  %v421 = vunpack.c.l.b16 %v118
  %v422 = vunpack.c.l.b16 %v119
  %v423 = vunpack.c.l.b16 %v120
  %v424 = vunpack.c.l.b16 %v121
  %v425 = vunpack.c.l.b16 %v122
  %v426 = vunpack.c.l.b16 %v123
  %v427 = vunpack.c.l.b16 %v124
  %v428 = vunpack.c.l.b16 %v125
  %v429 = vunpack.c.l.b16 %v126
  %v430 = vunpack.c.l.b16 %v127
  %v431 = vunpack.c.l.b16 %v128
  %v432 = vunpack.c.l.b16 %v129
  %v433 = vunpack.c.l.b16 %v130
  %v434 = vunpack.c.l.b16 %v131
  %v435 = vunpack.c.l.b16 %v132
  %v436 = vunpack.c.l.b16 %v133
  %v437 = vunpack.c.l.b16 %v134
  %v438 = vunpack.c.l.b16 %v135
  %v439 = vunpack.c.l.b16 %v136
  %v440 = vunpack.c.l.b16 %v137
  %v441 = vunpack.c.l.b16 %v138
  %v442 = vunpack.c.l.b16 %v139
  %v443 = vunpack.c.l.b16 %v140
  %v444 = vunpack.c.l.b16 %v141
  %v445 = vunpack.c.l.b16 %v142
  %v446 = vunpack.c.l.b16 %v143
  %v447 = vunpack.c.l.b16 %v144
  %v448 = vunpack.c.l.b16 %v145
  %v449 = vunpack.c.l.b16 %v146
  %v450 = vunpack.c.l.b16 %v147
  %v451 = vunpack.c.l.b16 %v148
  %v452 = vunpack.c.l.b16 %v149
  %v453 = vunpack.c.l.b16 %v150
  %v454 = vunpack.c.l.b16 %v151
  %v455 = vunpack.c.l.b16 %v152
  %v456 = vunpack.c.l.b16 %v153
  %v457 = vunpack.c.l.b16 %v154
  %v458 = vunpack.c.l.b16 %v155
  %v459 = vunpack.c.l.b16 %v156
  %v460 = vpack.c.b16 %v333, %v332
  %v461 = vpack.c.b16 %v335, %v334
  %v462 = vpack.c.b16 %v337, %v336
  %v463 = vpack.c.b16 %v339, %v338
  %v464 = vpack.c.b16 %v341, %v340
  %v465 = vpack.c.b16 %v343, %v342
  %v466 = vpack.c.b16 %v345, %v344
  %v467 = vpack.c.b16 %v347, %v346
  %v468 = vpack.c.b16 %v349, %v348
  %v469 = vpack.c.b16 %v351, %v350
  %v470 = vpack.c.b16 %v353, %v352
  %v471 = vpack.c.b16 %v355, %v354
  %v472 = vpack.c.b16 %v357, %v356
  %v473 = vpack.c.b16 %v359, %v358
  %v474 = vpack.c.b16 %v361, %v360
  %v475 = vpack.c.b16 %v363, %v362
  %v476 = vpack.c.b16 %v365, %v364
  %v477 = vpack.c.b16 %v367, %v366
  %v478 = vpack.c.b16 %v369, %v368
  %v479 = vpack.c.b16 %v371, %v370
  %v480 = vpack.c.b16 %v373, %v372
  %v481 = vpack.c.b16 %v375, %v374
  %v482 = vpack.c.b16 %v377, %v376
  %v483 = vpack.c.b16 %v379, %v378
  %v484 = vpack.c.b16 %v381, %v380
  %v485 = vpack.c.b16 %v383, %v382
  %v486 = vpack.c.b16 %v385, %v384
  %v487 = vpack.c.b16 %v387, %v386
  %v488 = vpack.c.b16 %v389, %v388
  %v489 = vpack.c.b16 %v391, %v390
  %v490 = vpack.c.b16 %v393, %v392
  %v491 = vpack.c.b16 %v395, %v394
  %v492 = vpack.c.b16 %v397, %v396
  %v493 = vpack.c.b16 %v399, %v398
  %v494 = vpack.c.b16 %v401, %v400
  %v495 = vpack.c.b16 %v403, %v402
  %v496 = vpack.c.b16 %v405, %v404
  %v497 = vpack.c.b16 %v407, %v406
  %v498 = vpack.c.b16 %v409, %v408
  %v499 = vpack.c.b16 %v411, %v410
  %v500 = vpack.c.b16 %v413, %v412
  %v501 = vpack.c.b16 %v415, %v414
  %v502 = vpack.c.b16 %v417, %v416
  %v503 = vpack.c.b16 %v419, %v418
  %v504 = vpack.c.b16 %v421, %v420
  %v505 = vpack.c.b16 %v423, %v422
  %v506 = vpack.c.b16 %v425, %v424
  %v507 = vpack.c.b16 %v427, %v426
  %v508 = vpack.c.b16 %v429, %v428
  %v509 = vpack.c.b16 %v431, %v430
  %v510 = vpack.c.b16 %v433, %v432
  %v511 = vpack.c.b16 %v435, %v434
  %v512 = vpack.c.b16 %v437, %v436
  %v513 = vpack.c.b16 %v439, %v438
  %v514 = vpack.c.b16 %v441, %v440
  %v515 = vpack.c.b16 %v443, %v442
  %v516 = vpack.c.b16 %v445, %v444
  %v517 = vpack.c.b16 %v447, %v446
  %v518 = vpack.c.b16 %v449, %v448
  %v519 = vpack.c.b16 %v451, %v450
  %v520 = vpack.c.b16 %v453, %v452
  %v521 = vpack.c.b16 %v455, %v454
  %v522 = vpack.c.b16 %v457, %v456
  %v523 = vpack.c.b16 %v459, %v458
  %588 = vmatprep.subr.bf16.mxu0 0
  %589 = vmatpush1.bf16.msra.mxu0 %v460
  %590 = vmatprep.subr.bf16.mxu0 0
  %591 = vmatpush1.bf16.msra.mxu0 %v461
  %592 = vmatprep.subr.bf16.mxu0 0
  %593 = vmatpush1.bf16.msra.mxu0 %v462
  %594 = vmatprep.subr.bf16.mxu0 0
  %595 = vmatpush1.bf16.msra.mxu0 %v463
  %596 = vmatprep.subr.bf16.mxu0 0
  %597 = vmatpush1.bf16.msra.mxu0 %v464
  %598 = vmatprep.subr.bf16.mxu0 0
  %599 = vmatpush1.bf16.msra.mxu0 %v465
  %600 = vmatprep.subr.bf16.mxu0 0
  %601 = vmatpush1.bf16.msra.mxu0 %v466
  %602 = vmatprep.subr.bf16.mxu0 0
  %603 = vmatpush1.bf16.msra.mxu0 %v467
  %604 = vmatprep.subr.bf16.mxu0 0
  %605 = vmatpush1.bf16.msra.mxu0 %v468
  %606 = vmatprep.subr.bf16.mxu0 0
  %607 = vmatpush1.bf16.msra.mxu0 %v469
  %608 = vmatprep.subr.bf16.mxu0 0
  %609 = vmatpush1.bf16.msra.mxu0 %v470
  %610 = vmatprep.subr.bf16.mxu0 0
  %611 = vmatpush1.bf16.msra.mxu0 %v471
  %612 = vmatprep.subr.bf16.mxu0 0
  %613 = vmatpush1.bf16.msra.mxu0 %v472
  %614 = vmatprep.subr.bf16.mxu0 0
  %615 = vmatpush1.bf16.msra.mxu0 %v473
  %616 = vmatprep.subr.bf16.mxu0 0
  %617 = vmatpush1.bf16.msra.mxu0 %v474
  %618 = vmatprep.subr.bf16.mxu0 0
  %619 = vmatpush1.bf16.msra.mxu0 %v475
  %620 = vmatprep.mubr.bf16.mxu0 %v189
  %621 = vmatmul.mubr.bf16.gmra.mrb[0].mxu0 %v188
  %v622 = vpop.f32.mrb[0].mxu0
  %v623 = vadd.f32 %v162, %v622
  %v624 = vpop.f32.mrb[0].mxu0
  %v625 = vpop.f32.mrb[0].mxu0
  %v626 = vadd.f32 %v162, %v625
  %v627 = vpop.f32.mrb[0].mxu0
  %628 = vdwg.mxu0
  %629 = vmatprep.subr.bf16.mxu0 0
  %630 = vmatpush1.bf16.msra.mxu0 %v476
  %631 = vmatprep.subr.bf16.mxu0 0
  %632 = vmatpush1.bf16.msra.mxu0 %v477
  %633 = vmatprep.subr.bf16.mxu0 0
  %634 = vmatpush1.bf16.msra.mxu0 %v478
  %635 = vmatprep.subr.bf16.mxu0 0
  %636 = vmatpush1.bf16.msra.mxu0 %v479
  %637 = vmatprep.subr.bf16.mxu0 0
  %638 = vmatpush1.bf16.msra.mxu0 %v480
  %639 = vmatprep.subr.bf16.mxu0 0
  %640 = vmatpush1.bf16.msra.mxu0 %v481
  %641 = vmatprep.subr.bf16.mxu0 0
  %642 = vmatpush1.bf16.msra.mxu0 %v482
  %643 = vmatprep.subr.bf16.mxu0 0
  %644 = vmatpush1.bf16.msra.mxu0 %v483
  %645 = vmatprep.subr.bf16.mxu0 0
  %646 = vmatpush1.bf16.msra.mxu0 %v484
  %647 = vmatprep.subr.bf16.mxu0 0
  %648 = vmatpush1.bf16.msra.mxu0 %v485
  %649 = vmatprep.subr.bf16.mxu0 0
  %650 = vmatpush1.bf16.msra.mxu0 %v486
  %651 = vmatprep.subr.bf16.mxu0 0
  %652 = vmatpush1.bf16.msra.mxu0 %v487
  %653 = vmatprep.subr.bf16.mxu0 0
  %654 = vmatpush1.bf16.msra.mxu0 %v488
  %655 = vmatprep.subr.bf16.mxu0 0
  %656 = vmatpush1.bf16.msra.mxu0 %v489
  %657 = vmatprep.subr.bf16.mxu0 0
  %658 = vmatpush1.bf16.msra.mxu0 %v490
  %659 = vmatprep.subr.bf16.mxu0 0
  %660 = vmatpush1.bf16.msra.mxu0 %v491
  %661 = vmatprep.mubr.bf16.mxu0 %v191
  %662 = vmatmul.mubr.bf16.gmra.mrb[0].mxu0 %v190
  %v663 = vpop.f32.mrb[0].mxu0
  %v664 = vadd.f32 %v623, %v663
  %v665 = vpop.f32.mrb[0].mxu0
  %v666 = vpop.f32.mrb[0].mxu0
  %v667 = vadd.f32 %v626, %v666
  %v668 = vpop.f32.mrb[0].mxu0
  %669 = vdwg.mxu0
  %670 = vmatprep.subr.bf16.mxu0 0
  %671 = vmatpush1.bf16.msra.mxu0 %v492
  %672 = vmatprep.subr.bf16.mxu0 0
  %673 = vmatpush1.bf16.msra.mxu0 %v493
  %674 = vmatprep.subr.bf16.mxu0 0
  %675 = vmatpush1.bf16.msra.mxu0 %v494
  %676 = vmatprep.subr.bf16.mxu0 0
  %677 = vmatpush1.bf16.msra.mxu0 %v495
  %678 = vmatprep.subr.bf16.mxu0 0
  %679 = vmatpush1.bf16.msra.mxu0 %v496
  %680 = vmatprep.subr.bf16.mxu0 0
  %681 = vmatpush1.bf16.msra.mxu0 %v497
  %682 = vmatprep.subr.bf16.mxu0 0
  %683 = vmatpush1.bf16.msra.mxu0 %v498
  %684 = vmatprep.subr.bf16.mxu0 0
  %685 = vmatpush1.bf16.msra.mxu0 %v499
  %686 = vmatprep.subr.bf16.mxu0 0
  %687 = vmatpush1.bf16.msra.mxu0 %v500
  %688 = vmatprep.subr.bf16.mxu0 0
  %689 = vmatpush1.bf16.msra.mxu0 %v501
  %690 = vmatprep.subr.bf16.mxu0 0
  %691 = vmatpush1.bf16.msra.mxu0 %v502
  %692 = vmatprep.subr.bf16.mxu0 0
  %693 = vmatpush1.bf16.msra.mxu0 %v503
  %694 = vmatprep.subr.bf16.mxu0 0
  %695 = vmatpush1.bf16.msra.mxu0 %v504
  %696 = vmatprep.subr.bf16.mxu0 0
  %697 = vmatpush1.bf16.msra.mxu0 %v505
  %698 = vmatprep.subr.bf16.mxu0 0
  %699 = vmatpush1.bf16.msra.mxu0 %v506
  %700 = vmatprep.subr.bf16.mxu0 0
  %701 = vmatpush1.bf16.msra.mxu0 %v507
  %702 = vmatprep.mubr.bf16.mxu0 %v193
  %703 = vmatmul.mubr.bf16.gmra.mrb[0].mxu0 %v192
  %v704 = vpop.f32.mrb[0].mxu0
  %v705 = vadd.f32 %v664, %v704
  %v706 = vpop.f32.mrb[0].mxu0
  %v707 = vpop.f32.mrb[0].mxu0
  %v708 = vadd.f32 %v667, %v707
  %v709 = vpop.f32.mrb[0].mxu0
  %710 = vdwg.mxu0
  %711 = vmatprep.subr.bf16.mxu0 0
  %712 = vmatpush1.bf16.msra.mxu0 %v508
  %713 = vmatprep.subr.bf16.mxu0 0
  %714 = vmatpush1.bf16.msra.mxu0 %v509
  %715 = vmatprep.subr.bf16.mxu0 0
  %716 = vmatpush1.bf16.msra.mxu0 %v510
  %717 = vmatprep.subr.bf16.mxu0 0
  %718 = vmatpush1.bf16.msra.mxu0 %v511
  %719 = vmatprep.subr.bf16.mxu0 0
  %720 = vmatpush1.bf16.msra.mxu0 %v512
  %721 = vmatprep.subr.bf16.mxu0 0
  %722 = vmatpush1.bf16.msra.mxu0 %v513
  %723 = vmatprep.subr.bf16.mxu0 0
  %724 = vmatpush1.bf16.msra.mxu0 %v514
  %725 = vmatprep.subr.bf16.mxu0 0
  %726 = vmatpush1.bf16.msra.mxu0 %v515
  %727 = vmatprep.subr.bf16.mxu0 0
  %728 = vmatpush1.bf16.msra.mxu0 %v516
  %729 = vmatprep.subr.bf16.mxu0 0
  %730 = vmatpush1.bf16.msra.mxu0 %v517
  %731 = vmatprep.subr.bf16.mxu0 0
  %732 = vmatpush1.bf16.msra.mxu0 %v518
  %733 = vmatprep.subr.bf16.mxu0 0
  %734 = vmatpush1.bf16.msra.mxu0 %v519
  %735 = vmatprep.subr.bf16.mxu0 0
  %736 = vmatpush1.bf16.msra.mxu0 %v520
  %737 = vmatprep.subr.bf16.mxu0 0
  %738 = vmatpush1.bf16.msra.mxu0 %v521
  %739 = vmatprep.subr.bf16.mxu0 0
  %740 = vmatpush1.bf16.msra.mxu0 %v522
  %741 = vmatprep.subr.bf16.mxu0 0
  %742 = vmatpush1.bf16.msra.mxu0 %v523
  %743 = vmatprep.mubr.bf16.mxu0 %v195
  %744 = vmatmul.mubr.bf16.gmra.mrb[0].mxu0 %v194
  %v745 = vpop.f32.mrb[0].mxu0
  %v746 = vadd.f32 %v705, %v745
  %v747 = vpop.f32.mrb[0].mxu0
  %v748 = vpop.f32.mrb[0].mxu0
  %v749 = vadd.f32 %v708, %v748
  %v750 = vpop.f32.mrb[0].mxu0
  %751 = vdwg.mxu0
  %v752 = vpack.c.bf16 %v749, %v746
  %v753 = vld [vmem:[%s3] sm:$0xff]
  %v754 = vld [vmem:[%s3 + $0x8] sm:$0xff]
  %v755 = vld [vmem:[%s3 + $0x10] sm:$0xff]
  %v756 = vld [vmem:[%s3 + $0x18] sm:$0xff]
  %v757 = vld [vmem:[%s3 + $0x20] sm:$0xff]
  %v758 = vld [vmem:[%s3 + $0x28] sm:$0xff]
  %v759 = vld [vmem:[%s3 + $0x30] sm:$0xff]
  %v760 = vld [vmem:[%s3 + $0x38] sm:$0xff]
  %v761 = vld [vmem:[%s3 + $0x40] sm:$0xff]
  %v762 = vld [vmem:[%s3 + $0x48] sm:$0xff]
  %v763 = vld [vmem:[%s3 + $0x50] sm:$0xff]
  %v764 = vld [vmem:[%s3 + $0x58] sm:$0xff]
  %v765 = vld [vmem:[%s3 + $0x60] sm:$0xff]
  %v766 = vld [vmem:[%s3 + $0x68] sm:$0xff]
  %v767 = vld [vmem:[%s3 + $0x70] sm:$0xff]
  %v768 = vld [vmem:[%s3 + $0x78] sm:$0xff]
  %v769 = vld [vmem:[%s3 + $0x80] sm:$0xff]
  %v770 = vld [vmem:[%s3 + $0x88] sm:$0xff]
  %v771 = vld [vmem:[%s3 + $0x90] sm:$0xff]
  %v772 = vld [vmem:[%s3 + $0x98] sm:$0xff]
  %v773 = vld [vmem:[%s3 + $0xa0] sm:$0xff]
  %v774 = vld [vmem:[%s3 + $0xa8] sm:$0xff]
  %v775 = vld [vmem:[%s3 + $0xb0] sm:$0xff]
  %v776 = vld [vmem:[%s3 + $0xb8] sm:$0xff]
  %v777 = vld [vmem:[%s3 + $0xc0] sm:$0xff]
  %v778 = vld [vmem:[%s3 + $0xc8] sm:$0xff]
  %v779 = vld [vmem:[%s3 + $0xd0] sm:$0xff]
  %v780 = vld [vmem:[%s3 + $0xd8] sm:$0xff]
  %v781 = vld [vmem:[%s3 + $0xe0] sm:$0xff]
  %v782 = vld [vmem:[%s3 + $0xe8] sm:$0xff]
  %v783 = vld [vmem:[%s3 + $0xf0] sm:$0xff]
  %v784 = vld [vmem:[%s3 + $0xf8] sm:$0xff]
  %v785 = vld [vmem:[%s3 + $0x100] sm:$0xff]
  %v786 = vld [vmem:[%s3 + $0x108] sm:$0xff]
  %v787 = vld [vmem:[%s3 + $0x110] sm:$0xff]
  %v788 = vld [vmem:[%s3 + $0x118] sm:$0xff]
  %v789 = vld [vmem:[%s3 + $0x120] sm:$0xff]
  %v790 = vld [vmem:[%s3 + $0x128] sm:$0xff]
  %v791 = vld [vmem:[%s3 + $0x130] sm:$0xff]
  %v792 = vld [vmem:[%s3 + $0x138] sm:$0xff]
  %v793 = vld [vmem:[%s3 + $0x140] sm:$0xff]
  %v794 = vld [vmem:[%s3 + $0x148] sm:$0xff]
  %v795 = vld [vmem:[%s3 + $0x150] sm:$0xff]
  %v796 = vld [vmem:[%s3 + $0x158] sm:$0xff]
  %v797 = vld [vmem:[%s3 + $0x160] sm:$0xff]
  %v798 = vld [vmem:[%s3 + $0x168] sm:$0xff]
  %v799 = vld [vmem:[%s3 + $0x170] sm:$0xff]
  %v800 = vld [vmem:[%s3 + $0x178] sm:$0xff]
  %v801 = vld [vmem:[%s3 + $0x180] sm:$0xff]
  %v802 = vld [vmem:[%s3 + $0x188] sm:$0xff]
  %v803 = vld [vmem:[%s3 + $0x190] sm:$0xff]
  %v804 = vld [vmem:[%s3 + $0x198] sm:$0xff]
  %v805 = vld [vmem:[%s3 + $0x1a0] sm:$0xff]
  %v806 = vld [vmem:[%s3 + $0x1a8] sm:$0xff]
  %v807 = vld [vmem:[%s3 + $0x1b0] sm:$0xff]
  %v808 = vld [vmem:[%s3 + $0x1b8] sm:$0xff]
  %v809 = vld [vmem:[%s3 + $0x1c0] sm:$0xff]
  %v810 = vld [vmem:[%s3 + $0x1c8] sm:$0xff]
  %v811 = vld [vmem:[%s3 + $0x1d0] sm:$0xff]
  %v812 = vld [vmem:[%s3 + $0x1d8] sm:$0xff]
  %v813 = vld [vmem:[%s3 + $0x1e0] sm:$0xff]
  %v814 = vld [vmem:[%s3 + $0x1e8] sm:$0xff]
  %v815 = vld [vmem:[%s3 + $0x1f0] sm:$0xff]
  %v816 = vld [vmem:[%s3 + $0x1f8] sm:$0xff]
  %v817 = vld [vmem:[%s4] sm:$0xff]
  %v819 = vlaneseq
  %v820 = vshrl.u32 %v819, 7
  %v821 = vsub.s32 0, %v820
  %v822 = vrot.slane %v817, %v821
  %v823 = vlaneseq
  %v824 = vshrl.u32 %v823, 7
  %v825 = vsub.s32 1, %v824
  %v826 = vrot.slane %v817, %v825
  %v827 = vlaneseq
  %v828 = vshrl.u32 %v827, 7
  %v829 = vsub.s32 2, %v828
  %v830 = vrot.slane %v817, %v829
  %v831 = vlaneseq
  %v832 = vshrl.u32 %v831, 7
  %v833 = vsub.s32 3, %v832
  %v834 = vrot.slane %v817, %v833
  %v835 = vlaneseq
  %v836 = vshrl.u32 %v835, 7
  %v837 = vsub.s32 4, %v836
  %v838 = vrot.slane %v817, %v837
  %v839 = vlaneseq
  %v840 = vshrl.u32 %v839, 7
  %v841 = vsub.s32 5, %v840
  %v842 = vrot.slane %v817, %v841
  %v843 = vlaneseq
  %v844 = vshrl.u32 %v843, 7
  %v845 = vsub.s32 6, %v844
  %v846 = vrot.slane %v817, %v845
  %v847 = vlaneseq
  %v848 = vshrl.u32 %v847, 7
  %v849 = vsub.s32 7, %v848
  %v850 = vrot.slane %v817, %v849
  %v923 = vunpack.c.l.b16 %v753
  %v924 = vunpack.c.h.b16 %v753
  %v925 = vunpack.c.l.b16 %v754
  %v926 = vunpack.c.h.b16 %v754
  %v927 = vunpack.c.l.b16 %v755
  %v928 = vunpack.c.h.b16 %v755
  %v929 = vunpack.c.l.b16 %v756
  %v930 = vunpack.c.h.b16 %v756
  %v931 = vunpack.c.l.b16 %v757
  %v932 = vunpack.c.h.b16 %v757
  %v933 = vunpack.c.l.b16 %v758
  %v934 = vunpack.c.h.b16 %v758
  %v935 = vunpack.c.l.b16 %v759
  %v936 = vunpack.c.h.b16 %v759
  %v937 = vunpack.c.l.b16 %v760
  %v938 = vunpack.c.h.b16 %v760
  %v939 = vunpack.c.l.b16 %v761
  %v940 = vunpack.c.h.b16 %v761
  %v941 = vunpack.c.l.b16 %v762
  %v942 = vunpack.c.h.b16 %v762
  %v943 = vunpack.c.l.b16 %v763
  %v944 = vunpack.c.h.b16 %v763
  %v945 = vunpack.c.l.b16 %v764
  %v946 = vunpack.c.h.b16 %v764
  %v947 = vunpack.c.l.b16 %v765
  %v948 = vunpack.c.h.b16 %v765
  %v949 = vunpack.c.l.b16 %v766
  %v950 = vunpack.c.h.b16 %v766
  %v951 = vunpack.c.l.b16 %v767
  %v952 = vunpack.c.h.b16 %v767
  %v953 = vunpack.c.l.b16 %v768
  %v954 = vunpack.c.h.b16 %v768
  %v955 = vunpack.c.l.b16 %v769
  %v956 = vunpack.c.h.b16 %v769
  %v957 = vunpack.c.l.b16 %v770
  %v958 = vunpack.c.h.b16 %v770
  %v959 = vunpack.c.l.b16 %v771
  %v960 = vunpack.c.h.b16 %v771
  %v961 = vunpack.c.l.b16 %v772
  %v962 = vunpack.c.h.b16 %v772
  %v963 = vunpack.c.l.b16 %v773
  %v964 = vunpack.c.h.b16 %v773
  %v965 = vunpack.c.l.b16 %v774
  %v966 = vunpack.c.h.b16 %v774
  %v967 = vunpack.c.l.b16 %v775
  %v968 = vunpack.c.h.b16 %v775
  %v969 = vunpack.c.l.b16 %v776
  %v970 = vunpack.c.h.b16 %v776
  %v971 = vunpack.c.l.b16 %v777
  %v972 = vunpack.c.h.b16 %v777
  %v973 = vunpack.c.l.b16 %v778
  %v974 = vunpack.c.h.b16 %v778
  %v975 = vunpack.c.l.b16 %v779
  %v976 = vunpack.c.h.b16 %v779
  %v977 = vunpack.c.l.b16 %v780
  %v978 = vunpack.c.h.b16 %v780
  %v979 = vunpack.c.l.b16 %v781
  %v980 = vunpack.c.h.b16 %v781
  %v981 = vunpack.c.l.b16 %v782
  %v982 = vunpack.c.h.b16 %v782
  %v983 = vunpack.c.l.b16 %v783
  %v984 = vunpack.c.h.b16 %v783
  %v985 = vunpack.c.l.b16 %v784
  %v986 = vunpack.c.h.b16 %v784
  %v987 = vunpack.c.l.b16 %v785
  %v988 = vunpack.c.h.b16 %v785
  %v989 = vunpack.c.l.b16 %v786
  %v990 = vunpack.c.h.b16 %v786
  %v991 = vunpack.c.l.b16 %v787
  %v992 = vunpack.c.h.b16 %v787
  %v993 = vunpack.c.l.b16 %v788
  %v994 = vunpack.c.h.b16 %v788
  %v995 = vunpack.c.l.b16 %v789
  %v996 = vunpack.c.h.b16 %v789
  %v997 = vunpack.c.l.b16 %v790
  %v998 = vunpack.c.h.b16 %v790
  %v999 = vunpack.c.l.b16 %v791
  %v1000 = vunpack.c.h.b16 %v791
  %v1001 = vunpack.c.l.b16 %v792
  %v1002 = vunpack.c.h.b16 %v792
  %v1003 = vunpack.c.l.b16 %v793
  %v1004 = vunpack.c.h.b16 %v793
  %v1005 = vunpack.c.l.b16 %v794
  %v1006 = vunpack.c.h.b16 %v794
  %v1007 = vunpack.c.l.b16 %v795
  %v1008 = vunpack.c.h.b16 %v795
  %v1009 = vunpack.c.l.b16 %v796
  %v1010 = vunpack.c.h.b16 %v796
  %v1011 = vunpack.c.l.b16 %v797
  %v1012 = vunpack.c.h.b16 %v797
  %v1013 = vunpack.c.l.b16 %v798
  %v1014 = vunpack.c.h.b16 %v798
  %v1015 = vunpack.c.l.b16 %v799
  %v1016 = vunpack.c.h.b16 %v799
  %v1017 = vunpack.c.l.b16 %v800
  %v1018 = vunpack.c.h.b16 %v800
  %v1019 = vunpack.c.l.b16 %v801
  %v1020 = vunpack.c.h.b16 %v801
  %v1021 = vunpack.c.l.b16 %v802
  %v1022 = vunpack.c.h.b16 %v802
  %v1023 = vunpack.c.l.b16 %v803
  %v1024 = vunpack.c.h.b16 %v803
  %v1025 = vunpack.c.l.b16 %v804
  %v1026 = vunpack.c.h.b16 %v804
  %v1027 = vunpack.c.l.b16 %v805
  %v1028 = vunpack.c.h.b16 %v805
  %v1029 = vunpack.c.l.b16 %v806
  %v1030 = vunpack.c.h.b16 %v806
  %v1031 = vunpack.c.l.b16 %v807
  %v1032 = vunpack.c.h.b16 %v807
  %v1033 = vunpack.c.l.b16 %v808
  %v1034 = vunpack.c.h.b16 %v808
  %v1035 = vunpack.c.l.b16 %v809
  %v1036 = vunpack.c.h.b16 %v809
  %v1037 = vunpack.c.l.b16 %v810
  %v1038 = vunpack.c.h.b16 %v810
  %v1039 = vunpack.c.l.b16 %v811
  %v1040 = vunpack.c.h.b16 %v811
  %v1041 = vunpack.c.l.b16 %v812
  %v1042 = vunpack.c.h.b16 %v812
  %v1043 = vunpack.c.l.b16 %v813
  %v1044 = vunpack.c.h.b16 %v813
  %v1045 = vunpack.c.l.b16 %v814
  %v1046 = vunpack.c.h.b16 %v814
  %v1047 = vunpack.c.l.b16 %v815
  %v1048 = vunpack.c.h.b16 %v815
  %v1049 = vunpack.c.l.b16 %v816
  %v1050 = vunpack.c.h.b16 %v816
  %v1051 = vpack.c.b16 %v931, %v923
  %v1052 = vpack.c.b16 %v932, %v924
  %v1053 = vpack.c.b16 %v933, %v925
  %v1054 = vpack.c.b16 %v934, %v926
  %v1055 = vpack.c.b16 %v935, %v927
  %v1056 = vpack.c.b16 %v936, %v928
  %v1057 = vpack.c.b16 %v937, %v929
  %v1058 = vpack.c.b16 %v938, %v930
  %v1059 = vpack.c.b16 %v947, %v939
  %v1060 = vpack.c.b16 %v948, %v940
  %v1061 = vpack.c.b16 %v949, %v941
  %v1062 = vpack.c.b16 %v950, %v942
  %v1063 = vpack.c.b16 %v951, %v943
  %v1064 = vpack.c.b16 %v952, %v944
  %v1065 = vpack.c.b16 %v953, %v945
  %v1066 = vpack.c.b16 %v954, %v946
  %v1067 = vpack.c.b16 %v963, %v955
  %v1068 = vpack.c.b16 %v964, %v956
  %v1069 = vpack.c.b16 %v965, %v957
  %v1070 = vpack.c.b16 %v966, %v958
  %v1071 = vpack.c.b16 %v967, %v959
  %v1072 = vpack.c.b16 %v968, %v960
  %v1073 = vpack.c.b16 %v969, %v961
  %v1074 = vpack.c.b16 %v970, %v962
  %v1075 = vpack.c.b16 %v979, %v971
  %v1076 = vpack.c.b16 %v980, %v972
  %v1077 = vpack.c.b16 %v981, %v973
  %v1078 = vpack.c.b16 %v982, %v974
  %v1079 = vpack.c.b16 %v983, %v975
  %v1080 = vpack.c.b16 %v984, %v976
  %v1081 = vpack.c.b16 %v985, %v977
  %v1082 = vpack.c.b16 %v986, %v978
  %v1083 = vpack.c.b16 %v995, %v987
  %v1084 = vpack.c.b16 %v996, %v988
  %v1085 = vpack.c.b16 %v997, %v989
  %v1086 = vpack.c.b16 %v998, %v990
  %v1087 = vpack.c.b16 %v999, %v991
  %v1088 = vpack.c.b16 %v1000, %v992
  %v1089 = vpack.c.b16 %v1001, %v993
  %v1090 = vpack.c.b16 %v1002, %v994
  %v1091 = vpack.c.b16 %v1011, %v1003
  %v1092 = vpack.c.b16 %v1012, %v1004
  %v1093 = vpack.c.b16 %v1013, %v1005
  %v1094 = vpack.c.b16 %v1014, %v1006
  %v1095 = vpack.c.b16 %v1015, %v1007
  %v1096 = vpack.c.b16 %v1016, %v1008
  %v1097 = vpack.c.b16 %v1017, %v1009
  %v1098 = vpack.c.b16 %v1018, %v1010
  %v1099 = vpack.c.b16 %v1027, %v1019
  %v1100 = vpack.c.b16 %v1028, %v1020
  %v1101 = vpack.c.b16 %v1029, %v1021
  %v1102 = vpack.c.b16 %v1030, %v1022
  %v1103 = vpack.c.b16 %v1031, %v1023
  %v1104 = vpack.c.b16 %v1032, %v1024
  %v1105 = vpack.c.b16 %v1033, %v1025
  %v1106 = vpack.c.b16 %v1034, %v1026
  %v1107 = vpack.c.b16 %v1043, %v1035
  %v1108 = vpack.c.b16 %v1044, %v1036
  %v1109 = vpack.c.b16 %v1045, %v1037
  %v1110 = vpack.c.b16 %v1046, %v1038
  %v1111 = vpack.c.b16 %v1047, %v1039
  %v1112 = vpack.c.b16 %v1048, %v1040
  %v1113 = vpack.c.b16 %v1049, %v1041
  %v1114 = vpack.c.b16 %v1050, %v1042
  %1179 = vmatprep.subr.bf16.mxu0 %v1052
  %1180 = vmatpush1.bf16.msra.mxu0 %v1051
  %1181 = vmatprep.subr.bf16.mxu0 %v1060
  %1182 = vmatpush1.bf16.msra.mxu0 %v1059
  %1183 = vmatprep.subr.bf16.mxu0 %v1068
  %1184 = vmatpush1.bf16.msra.mxu0 %v1067
  %1185 = vmatprep.subr.bf16.mxu0 %v1076
  %1186 = vmatpush1.bf16.msra.mxu0 %v1075
  %1187 = vmatprep.subr.bf16.mxu0 %v1084
  %1188 = vmatpush1.bf16.msra.mxu0 %v1083
  %1189 = vmatprep.subr.bf16.mxu0 %v1092
  %1190 = vmatpush1.bf16.msra.mxu0 %v1091
  %1191 = vmatprep.subr.bf16.mxu0 %v1100
  %1192 = vmatpush1.bf16.msra.mxu0 %v1099
  %1193 = vmatprep.subr.bf16.mxu0 %v1108
  %1194 = vmatpush1.bf16.msra.mxu0 %v1107
  %1195 = vmatprep.subr.bf16.mxu0 0
  %1196 = vmatpush1.bf16.msra.mxu0 0
  %1197 = vmatprep.subr.bf16.mxu0 0
  %1198 = vmatpush1.bf16.msra.mxu0 0
  %1199 = vmatprep.subr.bf16.mxu0 0
  %1200 = vmatpush1.bf16.msra.mxu0 0
  %1201 = vmatprep.subr.bf16.mxu0 0
  %1202 = vmatpush1.bf16.msra.mxu0 0
  %1203 = vmatprep.subr.bf16.mxu0 0
  %1204 = vmatpush1.bf16.msra.mxu0 0
  %1205 = vmatprep.subr.bf16.mxu0 0
  %1206 = vmatpush1.bf16.msra.mxu0 0
  %1207 = vmatprep.subr.bf16.mxu0 0
  %1208 = vmatpush1.bf16.msra.mxu0 0
  %1209 = vmatprep.subr.bf16.mxu0 0
  %1210 = vmatpush1.bf16.msra.mxu0 0
  %1211 = vmatprep.mubr.bf16.mxu0 0
  %1212 = vmatmul.mubr.bf16.gmra.mrb[0].mxu0 %v752
  %v1213 = vpop.f32.mrb[0].mxu0
  %v1214 = vadd.f32 %v822, %v1213
  %v1215 = vpop.f32.mrb[0].mxu0
  %v1216 = vadd.f32 %v826, %v1215
  %v1217 = vpop.f32.mrb[0].mxu0
  %v1218 = vadd.f32 %v822, %v1217
  %v1219 = vpop.f32.mrb[0].mxu0
  %v1220 = vadd.f32 %v826, %v1219
  %1221 = vdwg.mxu0
  %1222 = vmatprep.subr.bf16.mxu0 %v1054
  %1223 = vmatpush1.bf16.msra.mxu0 %v1053
  %1224 = vmatprep.subr.bf16.mxu0 %v1062
  %1225 = vmatpush1.bf16.msra.mxu0 %v1061
  %1226 = vmatprep.subr.bf16.mxu0 %v1070
  %1227 = vmatpush1.bf16.msra.mxu0 %v1069
  %1228 = vmatprep.subr.bf16.mxu0 %v1078
  %1229 = vmatpush1.bf16.msra.mxu0 %v1077
  %1230 = vmatprep.subr.bf16.mxu0 %v1086
  %1231 = vmatpush1.bf16.msra.mxu0 %v1085
  %1232 = vmatprep.subr.bf16.mxu0 %v1094
  %1233 = vmatpush1.bf16.msra.mxu0 %v1093
  %1234 = vmatprep.subr.bf16.mxu0 %v1102
  %1235 = vmatpush1.bf16.msra.mxu0 %v1101
  %1236 = vmatprep.subr.bf16.mxu0 %v1110
  %1237 = vmatpush1.bf16.msra.mxu0 %v1109
  %1238 = vmatprep.subr.bf16.mxu0 0
  %1239 = vmatpush1.bf16.msra.mxu0 0
  %1240 = vmatprep.subr.bf16.mxu0 0
  %1241 = vmatpush1.bf16.msra.mxu0 0
  %1242 = vmatprep.subr.bf16.mxu0 0
  %1243 = vmatpush1.bf16.msra.mxu0 0
  %1244 = vmatprep.subr.bf16.mxu0 0
  %1245 = vmatpush1.bf16.msra.mxu0 0
  %1246 = vmatprep.subr.bf16.mxu0 0
  %1247 = vmatpush1.bf16.msra.mxu0 0
  %1248 = vmatprep.subr.bf16.mxu0 0
  %1249 = vmatpush1.bf16.msra.mxu0 0
  %1250 = vmatprep.subr.bf16.mxu0 0
  %1251 = vmatpush1.bf16.msra.mxu0 0
  %1252 = vmatprep.subr.bf16.mxu0 0
  %1253 = vmatpush1.bf16.msra.mxu0 0
  %1254 = vmatprep.mubr.bf16.mxu0 0
  %1255 = vmatmul.mubr.bf16.gmra.mrb[0].mxu0 %v752
  %v1256 = vpop.f32.mrb[0].mxu0
  %v1257 = vadd.f32 %v830, %v1256
  %v1258 = vpop.f32.mrb[0].mxu0
  %v1259 = vadd.f32 %v834, %v1258
  %v1260 = vpop.f32.mrb[0].mxu0
  %v1261 = vadd.f32 %v830, %v1260
  %v1262 = vpop.f32.mrb[0].mxu0
  %v1263 = vadd.f32 %v834, %v1262
  %1264 = vdwg.mxu0
  %1265 = vmatprep.subr.bf16.mxu0 %v1056
  %1266 = vmatpush1.bf16.msra.mxu0 %v1055
  %1267 = vmatprep.subr.bf16.mxu0 %v1064
  %1268 = vmatpush1.bf16.msra.mxu0 %v1063
  %1269 = vmatprep.subr.bf16.mxu0 %v1072
  %1270 = vmatpush1.bf16.msra.mxu0 %v1071
  %1271 = vmatprep.subr.bf16.mxu0 %v1080
  %1272 = vmatpush1.bf16.msra.mxu0 %v1079
  %1273 = vmatprep.subr.bf16.mxu0 %v1088
  %1274 = vmatpush1.bf16.msra.mxu0 %v1087
  %1275 = vmatprep.subr.bf16.mxu0 %v1096
  %1276 = vmatpush1.bf16.msra.mxu0 %v1095
  %1277 = vmatprep.subr.bf16.mxu0 %v1104
  %1278 = vmatpush1.bf16.msra.mxu0 %v1103
  %1279 = vmatprep.subr.bf16.mxu0 %v1112
  %1280 = vmatpush1.bf16.msra.mxu0 %v1111
  %1281 = vmatprep.subr.bf16.mxu0 0
  %1282 = vmatpush1.bf16.msra.mxu0 0
  %1283 = vmatprep.subr.bf16.mxu0 0
  %1284 = vmatpush1.bf16.msra.mxu0 0
  %1285 = vmatprep.subr.bf16.mxu0 0
  %1286 = vmatpush1.bf16.msra.mxu0 0
  %1287 = vmatprep.subr.bf16.mxu0 0
  %1288 = vmatpush1.bf16.msra.mxu0 0
  %1289 = vmatprep.subr.bf16.mxu0 0
  %1290 = vmatpush1.bf16.msra.mxu0 0
  %1291 = vmatprep.subr.bf16.mxu0 0
  %1292 = vmatpush1.bf16.msra.mxu0 0
  %1293 = vmatprep.subr.bf16.mxu0 0
  %1294 = vmatpush1.bf16.msra.mxu0 0
  %1295 = vmatprep.subr.bf16.mxu0 0
  %1296 = vmatpush1.bf16.msra.mxu0 0
  %1297 = vmatprep.mubr.bf16.mxu0 0
  %1298 = vmatmul.mubr.bf16.gmra.mrb[0].mxu0 %v752
  %v1299 = vpop.f32.mrb[0].mxu0
  %v1300 = vadd.f32 %v838, %v1299
  %v1301 = vpop.f32.mrb[0].mxu0
  %v1302 = vadd.f32 %v842, %v1301
  %v1303 = vpop.f32.mrb[0].mxu0
  %v1304 = vadd.f32 %v838, %v1303
  %v1305 = vpop.f32.mrb[0].mxu0
  %v1306 = vadd.f32 %v842, %v1305
  %1307 = vdwg.mxu0
  %1308 = vmatprep.subr.bf16.mxu0 %v1058
  %1309 = vmatpush1.bf16.msra.mxu0 %v1057
  %1310 = vmatprep.subr.bf16.mxu0 %v1066
  %1311 = vmatpush1.bf16.msra.mxu0 %v1065
  %1312 = vmatprep.subr.bf16.mxu0 %v1074
  %1313 = vmatpush1.bf16.msra.mxu0 %v1073
  %1314 = vmatprep.subr.bf16.mxu0 %v1082
  %1315 = vmatpush1.bf16.msra.mxu0 %v1081
  %1316 = vmatprep.subr.bf16.mxu0 %v1090
  %1317 = vmatpush1.bf16.msra.mxu0 %v1089
  %1318 = vmatprep.subr.bf16.mxu0 %v1098
  %1319 = vmatpush1.bf16.msra.mxu0 %v1097
  %1320 = vmatprep.subr.bf16.mxu0 %v1106
  %1321 = vmatpush1.bf16.msra.mxu0 %v1105
  %1322 = vmatprep.subr.bf16.mxu0 %v1114
  %1323 = vmatpush1.bf16.msra.mxu0 %v1113
  %1324 = vmatprep.subr.bf16.mxu0 0
  %1325 = vmatpush1.bf16.msra.mxu0 0
  %1326 = vmatprep.subr.bf16.mxu0 0
  %1327 = vmatpush1.bf16.msra.mxu0 0
  %1328 = vmatprep.subr.bf16.mxu0 0
  %1329 = vmatpush1.bf16.msra.mxu0 0
  %1330 = vmatprep.subr.bf16.mxu0 0
  %1331 = vmatpush1.bf16.msra.mxu0 0
  %1332 = vmatprep.subr.bf16.mxu0 0
  %1333 = vmatpush1.bf16.msra.mxu0 0
  %1334 = vmatprep.subr.bf16.mxu0 0
  %1335 = vmatpush1.bf16.msra.mxu0 0
  %1336 = vmatprep.subr.bf16.mxu0 0
  %1337 = vmatpush1.bf16.msra.mxu0 0
  %1338 = vmatprep.subr.bf16.mxu0 0
  %1339 = vmatpush1.bf16.msra.mxu0 0
  %1340 = vmatprep.mubr.bf16.mxu0 0
  %1341 = vmatmul.mubr.bf16.gmra.mrb[0].mxu0 %v752
  %v1342 = vpop.f32.mrb[0].mxu0
  %v1343 = vadd.f32 %v846, %v1342
  %v1344 = vpop.f32.mrb[0].mxu0
  %v1345 = vadd.f32 %v850, %v1344
  %v1346 = vpop.f32.mrb[0].mxu0
  %v1347 = vadd.f32 %v846, %v1346
  %v1348 = vpop.f32.mrb[0].mxu0
  %v1349 = vadd.f32 %v850, %v1348
  %1350 = vdwg.mxu0
  %v1351 = vpack.c.bf16 %v1218, %v1214
  %v1352 = vpack.c.bf16 %v1220, %v1216
  %v1353 = vpack.c.bf16 %v1261, %v1257
  %v1354 = vpack.c.bf16 %v1263, %v1259
  %v1355 = vpack.c.bf16 %v1304, %v1300
  %v1356 = vpack.c.bf16 %v1306, %v1302
  %v1357 = vpack.c.bf16 %v1347, %v1343
  %v1358 = vpack.c.bf16 %v1349, %v1345
  %v1367 = vunpack.c.l.b16 %v1351
  %v1368 = vunpack.c.l.b16 %v1352
  %v1369 = vunpack.c.l.b16 %v1353
  %v1370 = vunpack.c.l.b16 %v1354
  %v1371 = vunpack.c.l.b16 %v1355
  %v1372 = vunpack.c.l.b16 %v1356
  %v1373 = vunpack.c.l.b16 %v1357
  %v1374 = vunpack.c.l.b16 %v1358
  %v1375 = vunpack.c.h.b16 %v1351
  %v1376 = vunpack.c.h.b16 %v1352
  %v1377 = vunpack.c.h.b16 %v1353
  %v1378 = vunpack.c.h.b16 %v1354
  %v1379 = vunpack.c.h.b16 %v1355
  %v1380 = vunpack.c.h.b16 %v1356
  %v1381 = vunpack.c.h.b16 %v1357
  %v1382 = vunpack.c.h.b16 %v1358
  %v1383 = vpack.c.b16 %v1368, %v1367
  %v1384 = vpack.c.b16 %v1370, %v1369
  %v1385 = vpack.c.b16 %v1372, %v1371
  %v1386 = vpack.c.b16 %v1374, %v1373
  %v1387 = vpack.c.b16 %v1376, %v1375
  %v1388 = vpack.c.b16 %v1378, %v1377
  %v1389 = vpack.c.b16 %v1380, %v1379
  %v1390 = vpack.c.b16 %v1382, %v1381
  %1399 = vst [vmem:[%s5] sm:$0xff] %v1383
  %1400 = vst [vmem:[%s5 + $0x8] sm:$0xff] %v1384
  %1401 = vst [vmem:[%s5 + $0x10] sm:$0xff] %v1385
  %1402 = vst [vmem:[%s5 + $0x18] sm:$0xff] %v1386
  %1403 = vst [vmem:[%s5 + $0x20] sm:$0xff] %v1387
  %1404 = vst [vmem:[%s5 + $0x28] sm:$0xff] %v1388
  %1405 = vst [vmem:[%s5 + $0x30] sm:$0xff] %v1389
  %1406 = vst [vmem:[%s5 + $0x38] sm:$0xff] %v1390
  // Predicated region
  $region22: #{conv_autoencoder_forward.19} parent=0 // pred_check
    _
  $region23: #{conv_autoencoder_forward.19} parent=0 // pred_check_branch
    %1408 = sbr.rel (0) target = $region25
  $region24: #{conv_autoencoder_forward.19} parent=0 // pred_region
    _
  $region25: #{conv_autoencoder_forward.19} parent=0 // pred_fallthru
    _
  // Predicated region
  $region26: #{conv_autoencoder_forward.19} parent=0 // pred_check
    _
  $region27: #{conv_autoencoder_forward.19} parent=0 // pred_check_branch
    %1410 = sbr.rel (0) target = $region29
  $region28: #{conv_autoencoder_forward.19} parent=0 // pred_region
    _
  $region29: #{conv_autoencoder_forward.19} parent=0 // pred_fallthru
    _

// kernel: tile.23
$region0: #{tile.23}
  #allocation0 [shape = 's32[1]{0}', space=sflag, size = 0x4, scoped, tag = 'scoped memory for tile.23']
  %s0 = inlined_call_operand.vmem [shape: f32[128], index: 0, kind: input, shape index: {}]
  %s1 = inlined_call_operand.vmem [shape: f32[4,128], index: 1, kind: output, shape index: {}]
  // Predicated region
  $region2: #{tile.23} parent=0 // pred_check
    _
  $region3: #{tile.23} parent=0 // pred_check_branch
    %3 = sbr.rel (0) target = $region5
  $region4: #{tile.23} parent=0 // pred_region
    _
  $region5: #{tile.23} parent=0 // pred_fallthru
    _
  %v4 = vld [vmem:[%s0] ss:$0 sm:$0xff]
  %5 = vst [vmem:[%s1] sm:$0xf] %v4

// kernel: conv_autoencoder_forward.22
$region0: #{conv_autoencoder_forward.22}
  #allocation0 [shape = 'u32[]', space=smem, size = 0x4, offset = 0x4, fixed_abs, tag = 'smem constant byte address 0x4 - core index']
  #allocation1 [shape = 'u32[144,128]{1,0:T(1,128)}', space=vmem, size = 0x12000, scoped, tag = 'internal scratch']
  %s0 = inlined_call_operand.vmem [shape: bf16[32,1024], index: 0, kind: input, shape index: {}]
  %s1 = inlined_call_operand.vmem [shape: bf16[1024,512], index: 1, kind: input, shape index: {}]
  %s2 = inlined_call_operand.vmem [shape: f32[1,512], index: 2, kind: input, shape index: {}]
  %s3 = inlined_call_operand.vmem [shape: bf16[32,512], index: 3, kind: output, shape index: {}]
  %s4 = sld [smem:[#allocation0]]
  $region117: #{conv_autoencoder_forward.22} parent=0
    _
  %s6 = ssub.s32 1, %s4
  %s7 = scalar_select 0, %s6, %s4
  $region1: #{conv_autoencoder_forward.22} parent=0
    #allocation2 [shape = 'u8[1048576]{0}', space=vmem, size = 0x100000, scoped, tag = 'input window, operand 1']
    #allocation3 [shape = 'u8[32768]{0}', space=vmem, size = 0x8000, scoped, tag = 'output window, operand 0']
    loop: start=0, step=1, limit=4
    $region2: #{conv_autoencoder_forward.22} parent=1 // loop_pre_header
      _
    $region3: #{conv_autoencoder_forward.22} parent=1 // loop_header
      %s9 = sphi 0, %s13
      %p10 = scmp.ge.s32.totalorder %s9, 4
      %s16 = sphi 0, %s28
      %s17 = sphi 0, %s24
      %s18 = sphi 0, %s16
      %s19 = sphi 0, %s17
      %s20 = sphi 0, %s18
      %s21 = sphi 0, %s19
      %s31 = sphi 0, %s33
      %s34 = sphi 0, %s31
      %s35 = sphi 0, %s34
      %s51 = sphi 0, %s35
      %s57 = sphi 0, %s59
      %s60 = sphi 0, %s57
      %s61 = sphi 0, %s60
      %s77 = sphi 0, %s61
      %s83 = sphi 0, %s85
      %s86 = sphi 0, %s83
      %s87 = sphi 0, %s86
      %s103 = sphi 0, %s87
      %s111 = sphi 0, %s113
      %s114 = sphi 0, %s111
      %s115 = sphi 0, %s114
      %s131 = sphi 0, %s115
    $region4: #{conv_autoencoder_forward.22} parent=1 // loop_header_branch
      %12 = sbr.rel (%p10) target = $region8
    $region5: #{conv_autoencoder_forward.22} parent=1 // loop_body
      %s14 = ssub.s32 %s9, 1
      %s15 = ssub.s32 %s9, 2
      %s22 = sadd.s32 1, %s17
      %p23 = scmp.ge.s32.totalorder %s22, 2
      %s24 = scalar_select %p23, 0, %s22
      %s25 = sadd.s32 1, %s16
      %s26 = scalar_select %p23, %s25, %s16
      %p27 = scmp.ge.s32.totalorder %s26, 1
      %s28 = scalar_select %p27, 0, %s26
      %s29 = ssub.s32 %s16, %s28
      %p30 = scmp.eq.s32.totalorder %s29, 0
      %s32 = sadd.s32 %s31, 1
      %s33 = scalar_select %p30, %s31, %s32
      %p36 = pneg %p30
      %p37 = scmp.eq.s32.totalorder %s9, 1
      %p38 = por %p36, %p37
      %p39 = scmp.ne.s32.totalorder %s31, %s34
      %p40 = scmp.eq.s32.totalorder %s9, 0
      %p41 = por %p39, %p40
      %p42 = scmp.ne.s32.totalorder %s31, %s34
      %p43 = scmp.eq.s32.totalorder %s14, 1
      %p44 = por %p42, %p43
      %p45 = scmp.ne.s32.totalorder %s34, %s35
      %p46 = scmp.eq.s32.totalorder %s14, 0
      %p47 = por %p45, %p46
      %p48 = scmp.ne.s32.totalorder %s34, %s35
      %p49 = scmp.eq.s32.totalorder %s15, 1
      %p50 = por %p48, %p49
      %p52 = scmp.ne.s32.totalorder %s35, %s51
      %p53 = scmp.eq.s32.totalorder %s15, 0
      %p54 = por %p52, %p53
      %s55 = ssub.s32 %s17, %s24
      %p56 = scmp.eq.s32.totalorder %s55, 0
      %s58 = sadd.s32 %s57, 1
      %s59 = scalar_select %p56, %s57, %s58
      %p62 = pneg %p56
      %p63 = scmp.eq.s32.totalorder %s9, 1
      %p64 = por %p62, %p63
      %p65 = scmp.ne.s32.totalorder %s57, %s60
      %p66 = scmp.eq.s32.totalorder %s9, 0
      %p67 = por %p65, %p66
      %p68 = scmp.ne.s32.totalorder %s57, %s60
      %p69 = scmp.eq.s32.totalorder %s14, 1
      %p70 = por %p68, %p69
      %p71 = scmp.ne.s32.totalorder %s60, %s61
      %p72 = scmp.eq.s32.totalorder %s14, 0
      %p73 = por %p71, %p72
      %p74 = scmp.ne.s32.totalorder %s60, %s61
      %p75 = scmp.eq.s32.totalorder %s15, 1
      %p76 = por %p74, %p75
      %p78 = scmp.ne.s32.totalorder %s61, %s77
      %p79 = scmp.eq.s32.totalorder %s15, 0
      %p80 = por %p78, %p79
      %s81 = ssub.s32 %s17, %s24
      %p82 = scmp.eq.s32.totalorder %s81, 0
      %s84 = sadd.s32 %s83, 1
      %s85 = scalar_select %p82, %s83, %s84
      %p88 = pneg %p82
      %p89 = scmp.eq.s32.totalorder %s9, 1
      %p90 = por %p88, %p89
      %p91 = scmp.ne.s32.totalorder %s83, %s86
      %p92 = scmp.eq.s32.totalorder %s9, 0
      %p93 = por %p91, %p92
      %p94 = scmp.ne.s32.totalorder %s83, %s86
      %p95 = scmp.eq.s32.totalorder %s14, 1
      %p96 = por %p94, %p95
      %p97 = scmp.ne.s32.totalorder %s86, %s87
      %p98 = scmp.eq.s32.totalorder %s14, 0
      %p99 = por %p97, %p98
      %p100 = scmp.ne.s32.totalorder %s86, %s87
      %p101 = scmp.eq.s32.totalorder %s15, 1
      %p102 = por %p100, %p101
      %p104 = scmp.ne.s32.totalorder %s87, %s103
      %p105 = scmp.eq.s32.totalorder %s15, 0
      %p106 = por %p104, %p105
      %s107 = ssub.s32 %s16, %s28
      %s108 = ssub.s32 %s17, %s24
      %s109 = sor.u32 %s107, %s108
      %p110 = scmp.eq.s32.totalorder %s109, 0
      %s112 = sadd.s32 %s111, 1
      %s113 = scalar_select %p110, %s111, %s112
      %p116 = pneg %p110
      %p117 = scmp.eq.s32.totalorder %s9, 1
      %p118 = por %p116, %p117
      %p119 = scmp.ne.s32.totalorder %s111, %s114
      %p120 = scmp.eq.s32.totalorder %s9, 0
      %p121 = por %p119, %p120
      %p122 = scmp.ne.s32.totalorder %s111, %s114
      %p123 = scmp.eq.s32.totalorder %s14, 1
      %p124 = por %p122, %p123
      %p125 = scmp.ne.s32.totalorder %s114, %s115
      %p126 = scmp.eq.s32.totalorder %s14, 0
      %p127 = por %p125, %p126
      %p128 = scmp.ne.s32.totalorder %s114, %s115
      %p129 = scmp.eq.s32.totalorder %s15, 1
      %p130 = por %p128, %p129
      %p132 = scmp.ne.s32.totalorder %s115, %s131
      %p133 = scmp.eq.s32.totalorder %s15, 0
      %p134 = por %p132, %p133
      %p135 = scmp.le.s32.totalorder 1, %s9
      %p136 = scmp.lt.s32.totalorder %s9, 3
      %p137 = pnand %p135, %p136
      %p138 = pneg %p137
      // Predicated region
      $region9: #{conv_autoencoder_forward.22} parent=5 // pred_check
        _
      $region10: #{conv_autoencoder_forward.22} parent=5 // pred_check_branch
        %140 = sbr.rel (%p137) target = $region12
      $region11: #{conv_autoencoder_forward.22} parent=5 // pred_region
        %s141 = ssub.s32 %s9, 1
        // Predicated region
        $region13: #{conv_autoencoder_forward.22} parent=11 // pred_check
          %p142 = pneg %p47
        $region14: #{conv_autoencoder_forward.22} parent=11 // pred_check_branch
          %144 = sbr.rel (%p142) target = $region16
        $region15: #{conv_autoencoder_forward.22} parent=11 // pred_region
          %s145 = smul.u32 4, %s18
          %p146 = scmp.lt.s32.totalorder %s145, 3
          %s147 = scalar_select %p146, %s145, 3
          %s148 = smul.addr %s147, 8
          %s149 = smul.addr %s148, 4
          %s150 = scalar_lea.vmem %s0, %s149
          %s151 = smul.u32 4, %s18
        $region16: #{conv_autoencoder_forward.22} parent=11 // pred_fallthru
          _
      $region12: #{conv_autoencoder_forward.22} parent=5 // pred_fallthru
        _
      %p152 = scmp.lt.s32.totalorder %s9, 2
      // Predicated region
      $region17: #{conv_autoencoder_forward.22} parent=5 // pred_check
        %p153 = pneg %p152
      $region18: #{conv_autoencoder_forward.22} parent=5 // pred_check_branch
        %155 = sbr.rel (%p153) target = $region20
      $region19: #{conv_autoencoder_forward.22} parent=5 // pred_region
        // Predicated region
        $region21: #{conv_autoencoder_forward.22} parent=19 // pred_check
          %p156 = pneg %p67
        $region22: #{conv_autoencoder_forward.22} parent=19 // pred_check_branch
          %158 = sbr.rel (%p156) target = $region24
        $region23: #{conv_autoencoder_forward.22} parent=19 // pred_region
          %s159 = sand.u32 %s57, 1
          %s160 = sand.u32 %s57, 1
          %s161 = smul.addr %s160, 1024
          %s162 = scalar_lea.vmem [#allocation2], %s161
          %s163 = smul.u32 2, %s17
          %s164 = smul.addr %s163, 4
          %s165 = scalar_lea.vmem %s1, %s164
          // Predicated region
          $region25: #{conv_autoencoder_forward.22} parent=23 // pred_check
            _
          $region26: #{conv_autoencoder_forward.22} parent=23 // pred_check_branch
            %167 = sbr.rel (0) target = $region28
          $region27: #{conv_autoencoder_forward.22} parent=23 // pred_region
            // Predicated region
            $region29: #{conv_autoencoder_forward.22} parent=27 // pred_check
              _
            $region30: #{conv_autoencoder_forward.22} parent=27 // pred_check_branch
              %169 = sbr.rel (0) target = $region32
            $region31: #{conv_autoencoder_forward.22} parent=27 // pred_region
              // Predicated region
              $region44: #{conv_autoencoder_forward.22} parent=31 // pred_check
                _
              $region45: #{conv_autoencoder_forward.22} parent=31 // pred_check_branch
                %438 = sbr.rel (0) target = $region47
              $region46: #{conv_autoencoder_forward.22} parent=31 // pred_region
                loop: start=0, step=1, limit=1
                $region48: #{conv_autoencoder_forward.22} parent=46 // loop_pre_header
                  _
                $region49: #{conv_autoencoder_forward.22} parent=46 // loop_header
                  %s440 = sphi 0, %s444
                  %p441 = scmp.ge.s32.totalorder %s440, 1
                  %s445 = sphi %s165, %s165
                  %s446 = sphi %s162, %s162
                $region50: #{conv_autoencoder_forward.22} parent=46 // loop_header_branch
                  %443 = sbr.rel (%p441) target = $region54
                $region51: #{conv_autoencoder_forward.22} parent=46 // loop_body
                  %v447 = vld [vmem:[%s445] sm:$0xff]
                  %448 = vst [vmem:[%s446] sm:$0xff] %v447
                  %v449 = vld [vmem:[%s445 + $0x10] sm:$0xff]
                  %450 = vst [vmem:[%s446 + $0x8] sm:$0xff] %v449
                  %v451 = vld [vmem:[%s445 + $0x20] sm:$0xff]
                  %452 = vst [vmem:[%s446 + $0x10] sm:$0xff] %v451
                  %v453 = vld [vmem:[%s445 + $0x30] sm:$0xff]
                  %454 = vst [vmem:[%s446 + $0x18] sm:$0xff] %v453
                  %v455 = vld [vmem:[%s445 + $0x40] sm:$0xff]
                  %456 = vst [vmem:[%s446 + $0x20] sm:$0xff] %v455
                  %v457 = vld [vmem:[%s445 + $0x50] sm:$0xff]
                  %458 = vst [vmem:[%s446 + $0x28] sm:$0xff] %v457
                  %v459 = vld [vmem:[%s445 + $0x60] sm:$0xff]
                  %460 = vst [vmem:[%s446 + $0x30] sm:$0xff] %v459
                  %v461 = vld [vmem:[%s445 + $0x70] sm:$0xff]
                  %462 = vst [vmem:[%s446 + $0x38] sm:$0xff] %v461
                  %v463 = vld [vmem:[%s445 + $0x80] sm:$0xff]
                  %464 = vst [vmem:[%s446 + $0x40] sm:$0xff] %v463
                  %v465 = vld [vmem:[%s445 + $0x90] sm:$0xff]
                  %466 = vst [vmem:[%s446 + $0x48] sm:$0xff] %v465
                  %v467 = vld [vmem:[%s445 + $0xa0] sm:$0xff]
                  %468 = vst [vmem:[%s446 + $0x50] sm:$0xff] %v467
                  %v469 = vld [vmem:[%s445 + $0xb0] sm:$0xff]
                  %470 = vst [vmem:[%s446 + $0x58] sm:$0xff] %v469
                  %v471 = vld [vmem:[%s445 + $0xc0] sm:$0xff]
                  %472 = vst [vmem:[%s446 + $0x60] sm:$0xff] %v471
                  %v473 = vld [vmem:[%s445 + $0xd0] sm:$0xff]
                  %474 = vst [vmem:[%s446 + $0x68] sm:$0xff] %v473
                  %v475 = vld [vmem:[%s445 + $0xe0] sm:$0xff]
                  %476 = vst [vmem:[%s446 + $0x70] sm:$0xff] %v475
                  %v477 = vld [vmem:[%s445 + $0xf0] sm:$0xff]
                  %478 = vst [vmem:[%s446 + $0x78] sm:$0xff] %v477
                  %v479 = vld [vmem:[%s445 + $0x100] sm:$0xff]
                  %480 = vst [vmem:[%s446 + $0x80] sm:$0xff] %v479
                  %v481 = vld [vmem:[%s445 + $0x110] sm:$0xff]
                  %482 = vst [vmem:[%s446 + $0x88] sm:$0xff] %v481
                  %v483 = vld [vmem:[%s445 + $0x120] sm:$0xff]
                  %484 = vst [vmem:[%s446 + $0x90] sm:$0xff] %v483
                  %v485 = vld [vmem:[%s445 + $0x130] sm:$0xff]
                  %486 = vst [vmem:[%s446 + $0x98] sm:$0xff] %v485
                  %v487 = vld [vmem:[%s445 + $0x140] sm:$0xff]
                  %488 = vst [vmem:[%s446 + $0xa0] sm:$0xff] %v487
                  %v489 = vld [vmem:[%s445 + $0x150] sm:$0xff]
                  %490 = vst [vmem:[%s446 + $0xa8] sm:$0xff] %v489
                  %v491 = vld [vmem:[%s445 + $0x160] sm:$0xff]
                  %492 = vst [vmem:[%s446 + $0xb0] sm:$0xff] %v491
                  %v493 = vld [vmem:[%s445 + $0x170] sm:$0xff]
                  %494 = vst [vmem:[%s446 + $0xb8] sm:$0xff] %v493
                  %v495 = vld [vmem:[%s445 + $0x180] sm:$0xff]
                  %496 = vst [vmem:[%s446 + $0xc0] sm:$0xff] %v495
                  %v497 = vld [vmem:[%s445 + $0x190] sm:$0xff]
                  %498 = vst [vmem:[%s446 + $0xc8] sm:$0xff] %v497
                  %v499 = vld [vmem:[%s445 + $0x1a0] sm:$0xff]
                  %500 = vst [vmem:[%s446 + $0xd0] sm:$0xff] %v499
                  %v501 = vld [vmem:[%s445 + $0x1b0] sm:$0xff]
                  %502 = vst [vmem:[%s446 + $0xd8] sm:$0xff] %v501
                  %v503 = vld [vmem:[%s445 + $0x1c0] sm:$0xff]
                  %504 = vst [vmem:[%s446 + $0xe0] sm:$0xff] %v503
                  %v505 = vld [vmem:[%s445 + $0x1d0] sm:$0xff]
                  %506 = vst [vmem:[%s446 + $0xe8] sm:$0xff] %v505
                  %v507 = vld [vmem:[%s445 + $0x1e0] sm:$0xff]
                  %508 = vst [vmem:[%s446 + $0xf0] sm:$0xff] %v507
                  %v509 = vld [vmem:[%s445 + $0x1f0] sm:$0xff]
                  %510 = vst [vmem:[%s446 + $0xf8] sm:$0xff] %v509
                  %v511 = vld [vmem:[%s445 + $0x200] sm:$0xff]
                  %512 = vst [vmem:[%s446 + $0x100] sm:$0xff] %v511
                  %v513 = vld [vmem:[%s445 + $0x210] sm:$0xff]
                  %514 = vst [vmem:[%s446 + $0x108] sm:$0xff] %v513
                  %v515 = vld [vmem:[%s445 + $0x220] sm:$0xff]
                  %516 = vst [vmem:[%s446 + $0x110] sm:$0xff] %v515
                  %v517 = vld [vmem:[%s445 + $0x230] sm:$0xff]
                  %518 = vst [vmem:[%s446 + $0x118] sm:$0xff] %v517
                  %v519 = vld [vmem:[%s445 + $0x240] sm:$0xff]
                  %520 = vst [vmem:[%s446 + $0x120] sm:$0xff] %v519
                  %v521 = vld [vmem:[%s445 + $0x250] sm:$0xff]
                  %522 = vst [vmem:[%s446 + $0x128] sm:$0xff] %v521
                  %v523 = vld [vmem:[%s445 + $0x260] sm:$0xff]
                  %524 = vst [vmem:[%s446 + $0x130] sm:$0xff] %v523
                  %v525 = vld [vmem:[%s445 + $0x270] sm:$0xff]
                  %526 = vst [vmem:[%s446 + $0x138] sm:$0xff] %v525
                  %v527 = vld [vmem:[%s445 + $0x280] sm:$0xff]
                  %528 = vst [vmem:[%s446 + $0x140] sm:$0xff] %v527
                  %v529 = vld [vmem:[%s445 + $0x290] sm:$0xff]
                  %530 = vst [vmem:[%s446 + $0x148] sm:$0xff] %v529
                  %v531 = vld [vmem:[%s445 + $0x2a0] sm:$0xff]
                  %532 = vst [vmem:[%s446 + $0x150] sm:$0xff] %v531
                  %v533 = vld [vmem:[%s445 + $0x2b0] sm:$0xff]
                  %534 = vst [vmem:[%s446 + $0x158] sm:$0xff] %v533
                  %v535 = vld [vmem:[%s445 + $0x2c0] sm:$0xff]
                  %536 = vst [vmem:[%s446 + $0x160] sm:$0xff] %v535
                  %v537 = vld [vmem:[%s445 + $0x2d0] sm:$0xff]
                  %538 = vst [vmem:[%s446 + $0x168] sm:$0xff] %v537
                  %v539 = vld [vmem:[%s445 + $0x2e0] sm:$0xff]
                  %540 = vst [vmem:[%s446 + $0x170] sm:$0xff] %v539
                  %v541 = vld [vmem:[%s445 + $0x2f0] sm:$0xff]
                  %542 = vst [vmem:[%s446 + $0x178] sm:$0xff] %v541
                  %v543 = vld [vmem:[%s445 + $0x300] sm:$0xff]
                  %544 = vst [vmem:[%s446 + $0x180] sm:$0xff] %v543
                  %v545 = vld [vmem:[%s445 + $0x310] sm:$0xff]
                  %546 = vst [vmem:[%s446 + $0x188] sm:$0xff] %v545
                  %v547 = vld [vmem:[%s445 + $0x320] sm:$0xff]
                  %548 = vst [vmem:[%s446 + $0x190] sm:$0xff] %v547
                  %v549 = vld [vmem:[%s445 + $0x330] sm:$0xff]
                  %550 = vst [vmem:[%s446 + $0x198] sm:$0xff] %v549
                  %v551 = vld [vmem:[%s445 + $0x340] sm:$0xff]
                  %552 = vst [vmem:[%s446 + $0x1a0] sm:$0xff] %v551
                  %v553 = vld [vmem:[%s445 + $0x350] sm:$0xff]
                  %554 = vst [vmem:[%s446 + $0x1a8] sm:$0xff] %v553
                  %v555 = vld [vmem:[%s445 + $0x360] sm:$0xff]
                  %556 = vst [vmem:[%s446 + $0x1b0] sm:$0xff] %v555
                  %v557 = vld [vmem:[%s445 + $0x370] sm:$0xff]
                  %558 = vst [vmem:[%s446 + $0x1b8] sm:$0xff] %v557
                  %v559 = vld [vmem:[%s445 + $0x380] sm:$0xff]
                  %560 = vst [vmem:[%s446 + $0x1c0] sm:$0xff] %v559
                  %v561 = vld [vmem:[%s445 + $0x390] sm:$0xff]
                  %562 = vst [vmem:[%s446 + $0x1c8] sm:$0xff] %v561
                  %v563 = vld [vmem:[%s445 + $0x3a0] sm:$0xff]
                  %564 = vst [vmem:[%s446 + $0x1d0] sm:$0xff] %v563
                  %v565 = vld [vmem:[%s445 + $0x3b0] sm:$0xff]
                  %566 = vst [vmem:[%s446 + $0x1d8] sm:$0xff] %v565
                  %v567 = vld [vmem:[%s445 + $0x3c0] sm:$0xff]
                  %568 = vst [vmem:[%s446 + $0x1e0] sm:$0xff] %v567
                  %v569 = vld [vmem:[%s445 + $0x3d0] sm:$0xff]
                  %570 = vst [vmem:[%s446 + $0x1e8] sm:$0xff] %v569
                  %v571 = vld [vmem:[%s445 + $0x3e0] sm:$0xff]
                  %572 = vst [vmem:[%s446 + $0x1f0] sm:$0xff] %v571
                  %v573 = vld [vmem:[%s445 + $0x3f0] sm:$0xff]
                  %574 = vst [vmem:[%s446 + $0x1f8] sm:$0xff] %v573
                  %v575 = vld [vmem:[%s445 + $0x400] sm:$0xff]
                  %576 = vst [vmem:[%s446 + $0x200] sm:$0xff] %v575
                  %v577 = vld [vmem:[%s445 + $0x410] sm:$0xff]
                  %578 = vst [vmem:[%s446 + $0x208] sm:$0xff] %v577
                  %v579 = vld [vmem:[%s445 + $0x420] sm:$0xff]
                  %580 = vst [vmem:[%s446 + $0x210] sm:$0xff] %v579
                  %v581 = vld [vmem:[%s445 + $0x430] sm:$0xff]
                  %582 = vst [vmem:[%s446 + $0x218] sm:$0xff] %v581
                  %v583 = vld [vmem:[%s445 + $0x440] sm:$0xff]
                  %584 = vst [vmem:[%s446 + $0x220] sm:$0xff] %v583
                  %v585 = vld [vmem:[%s445 + $0x450] sm:$0xff]
                  %586 = vst [vmem:[%s446 + $0x228] sm:$0xff] %v585
                  %v587 = vld [vmem:[%s445 + $0x460] sm:$0xff]
                  %588 = vst [vmem:[%s446 + $0x230] sm:$0xff] %v587
                  %v589 = vld [vmem:[%s445 + $0x470] sm:$0xff]
                  %590 = vst [vmem:[%s446 + $0x238] sm:$0xff] %v589
                  %v591 = vld [vmem:[%s445 + $0x480] sm:$0xff]
                  %592 = vst [vmem:[%s446 + $0x240] sm:$0xff] %v591
                  %v593 = vld [vmem:[%s445 + $0x490] sm:$0xff]
                  %594 = vst [vmem:[%s446 + $0x248] sm:$0xff] %v593
                  %v595 = vld [vmem:[%s445 + $0x4a0] sm:$0xff]
                  %596 = vst [vmem:[%s446 + $0x250] sm:$0xff] %v595
                  %v597 = vld [vmem:[%s445 + $0x4b0] sm:$0xff]
                  %598 = vst [vmem:[%s446 + $0x258] sm:$0xff] %v597
                  %v599 = vld [vmem:[%s445 + $0x4c0] sm:$0xff]
                  %600 = vst [vmem:[%s446 + $0x260] sm:$0xff] %v599
                  %v601 = vld [vmem:[%s445 + $0x4d0] sm:$0xff]
                  %602 = vst [vmem:[%s446 + $0x268] sm:$0xff] %v601
                  %v603 = vld [vmem:[%s445 + $0x4e0] sm:$0xff]
                  %604 = vst [vmem:[%s446 + $0x270] sm:$0xff] %v603
                  %v605 = vld [vmem:[%s445 + $0x4f0] sm:$0xff]
                  %606 = vst [vmem:[%s446 + $0x278] sm:$0xff] %v605
                  %v607 = vld [vmem:[%s445 + $0x500] sm:$0xff]
                  %608 = vst [vmem:[%s446 + $0x280] sm:$0xff] %v607
                  %v609 = vld [vmem:[%s445 + $0x510] sm:$0xff]
                  %610 = vst [vmem:[%s446 + $0x288] sm:$0xff] %v609
                  %v611 = vld [vmem:[%s445 + $0x520] sm:$0xff]
                  %612 = vst [vmem:[%s446 + $0x290] sm:$0xff] %v611
                  %v613 = vld [vmem:[%s445 + $0x530] sm:$0xff]
                  %614 = vst [vmem:[%s446 + $0x298] sm:$0xff] %v613
                  %v615 = vld [vmem:[%s445 + $0x540] sm:$0xff]
                  %616 = vst [vmem:[%s446 + $0x2a0] sm:$0xff] %v615
                  %v617 = vld [vmem:[%s445 + $0x550] sm:$0xff]
                  %618 = vst [vmem:[%s446 + $0x2a8] sm:$0xff] %v617
                  %v619 = vld [vmem:[%s445 + $0x560] sm:$0xff]
                  %620 = vst [vmem:[%s446 + $0x2b0] sm:$0xff] %v619
                  %v621 = vld [vmem:[%s445 + $0x570] sm:$0xff]
                  %622 = vst [vmem:[%s446 + $0x2b8] sm:$0xff] %v621
                  %v623 = vld [vmem:[%s445 + $0x580] sm:$0xff]
                  %624 = vst [vmem:[%s446 + $0x2c0] sm:$0xff] %v623
                  %v625 = vld [vmem:[%s445 + $0x590] sm:$0xff]
                  %626 = vst [vmem:[%s446 + $0x2c8] sm:$0xff] %v625
                  %v627 = vld [vmem:[%s445 + $0x5a0] sm:$0xff]
                  %628 = vst [vmem:[%s446 + $0x2d0] sm:$0xff] %v627
                  %v629 = vld [vmem:[%s445 + $0x5b0] sm:$0xff]
                  %630 = vst [vmem:[%s446 + $0x2d8] sm:$0xff] %v629
                  %v631 = vld [vmem:[%s445 + $0x5c0] sm:$0xff]
                  %632 = vst [vmem:[%s446 + $0x2e0] sm:$0xff] %v631
                  %v633 = vld [vmem:[%s445 + $0x5d0] sm:$0xff]
                  %634 = vst [vmem:[%s446 + $0x2e8] sm:$0xff] %v633
                  %v635 = vld [vmem:[%s445 + $0x5e0] sm:$0xff]
                  %636 = vst [vmem:[%s446 + $0x2f0] sm:$0xff] %v635
                  %v637 = vld [vmem:[%s445 + $0x5f0] sm:$0xff]
                  %638 = vst [vmem:[%s446 + $0x2f8] sm:$0xff] %v637
                  %v639 = vld [vmem:[%s445 + $0x600] sm:$0xff]
                  %640 = vst [vmem:[%s446 + $0x300] sm:$0xff] %v639
                  %v641 = vld [vmem:[%s445 + $0x610] sm:$0xff]
                  %642 = vst [vmem:[%s446 + $0x308] sm:$0xff] %v641
                  %v643 = vld [vmem:[%s445 + $0x620] sm:$0xff]
                  %644 = vst [vmem:[%s446 + $0x310] sm:$0xff] %v643
                  %v645 = vld [vmem:[%s445 + $0x630] sm:$0xff]
                  %646 = vst [vmem:[%s446 + $0x318] sm:$0xff] %v645
                  %v647 = vld [vmem:[%s445 + $0x640] sm:$0xff]
                  %648 = vst [vmem:[%s446 + $0x320] sm:$0xff] %v647
                  %v649 = vld [vmem:[%s445 + $0x650] sm:$0xff]
                  %650 = vst [vmem:[%s446 + $0x328] sm:$0xff] %v649
                  %v651 = vld [vmem:[%s445 + $0x660] sm:$0xff]
                  %652 = vst [vmem:[%s446 + $0x330] sm:$0xff] %v651
                  %v653 = vld [vmem:[%s445 + $0x670] sm:$0xff]
                  %654 = vst [vmem:[%s446 + $0x338] sm:$0xff] %v653
                  %v655 = vld [vmem:[%s445 + $0x680] sm:$0xff]
                  %656 = vst [vmem:[%s446 + $0x340] sm:$0xff] %v655
                  %v657 = vld [vmem:[%s445 + $0x690] sm:$0xff]
                  %658 = vst [vmem:[%s446 + $0x348] sm:$0xff] %v657
                  %v659 = vld [vmem:[%s445 + $0x6a0] sm:$0xff]
                  %660 = vst [vmem:[%s446 + $0x350] sm:$0xff] %v659
                  %v661 = vld [vmem:[%s445 + $0x6b0] sm:$0xff]
                  %662 = vst [vmem:[%s446 + $0x358] sm:$0xff] %v661
                  %v663 = vld [vmem:[%s445 + $0x6c0] sm:$0xff]
                  %664 = vst [vmem:[%s446 + $0x360] sm:$0xff] %v663
                  %v665 = vld [vmem:[%s445 + $0x6d0] sm:$0xff]
                  %666 = vst [vmem:[%s446 + $0x368] sm:$0xff] %v665
                  %v667 = vld [vmem:[%s445 + $0x6e0] sm:$0xff]
                  %668 = vst [vmem:[%s446 + $0x370] sm:$0xff] %v667
                  %v669 = vld [vmem:[%s445 + $0x6f0] sm:$0xff]
                  %670 = vst [vmem:[%s446 + $0x378] sm:$0xff] %v669
                  %v671 = vld [vmem:[%s445 + $0x700] sm:$0xff]
                  %672 = vst [vmem:[%s446 + $0x380] sm:$0xff] %v671
                  %v673 = vld [vmem:[%s445 + $0x710] sm:$0xff]
                  %674 = vst [vmem:[%s446 + $0x388] sm:$0xff] %v673
                  %v675 = vld [vmem:[%s445 + $0x720] sm:$0xff]
                  %676 = vst [vmem:[%s446 + $0x390] sm:$0xff] %v675
                  %v677 = vld [vmem:[%s445 + $0x730] sm:$0xff]
                  %678 = vst [vmem:[%s446 + $0x398] sm:$0xff] %v677
                  %v679 = vld [vmem:[%s445 + $0x740] sm:$0xff]
                  %680 = vst [vmem:[%s446 + $0x3a0] sm:$0xff] %v679
                  %v681 = vld [vmem:[%s445 + $0x750] sm:$0xff]
                  %682 = vst [vmem:[%s446 + $0x3a8] sm:$0xff] %v681
                  %v683 = vld [vmem:[%s445 + $0x760] sm:$0xff]
                  %684 = vst [vmem:[%s446 + $0x3b0] sm:$0xff] %v683
                  %v685 = vld [vmem:[%s445 + $0x770] sm:$0xff]
                  %686 = vst [vmem:[%s446 + $0x3b8] sm:$0xff] %v685
                  %v687 = vld [vmem:[%s445 + $0x780] sm:$0xff]
                  %688 = vst [vmem:[%s446 + $0x3c0] sm:$0xff] %v687
                  %v689 = vld [vmem:[%s445 + $0x790] sm:$0xff]
                  %690 = vst [vmem:[%s446 + $0x3c8] sm:$0xff] %v689
                  %v691 = vld [vmem:[%s445 + $0x7a0] sm:$0xff]
                  %692 = vst [vmem:[%s446 + $0x3d0] sm:$0xff] %v691
                  %v693 = vld [vmem:[%s445 + $0x7b0] sm:$0xff]
                  %694 = vst [vmem:[%s446 + $0x3d8] sm:$0xff] %v693
                  %v695 = vld [vmem:[%s445 + $0x7c0] sm:$0xff]
                  %696 = vst [vmem:[%s446 + $0x3e0] sm:$0xff] %v695
                  %v697 = vld [vmem:[%s445 + $0x7d0] sm:$0xff]
                  %698 = vst [vmem:[%s446 + $0x3e8] sm:$0xff] %v697
                  %v699 = vld [vmem:[%s445 + $0x7e0] sm:$0xff]
                  %700 = vst [vmem:[%s446 + $0x3f0] sm:$0xff] %v699
                  %v701 = vld [vmem:[%s445 + $0x7f0] sm:$0xff]
                  %702 = vst [vmem:[%s446 + $0x3f8] sm:$0xff] %v701
                $region52: #{conv_autoencoder_forward.22} parent=46 // loop_footer
                  %s444 = sadd.s32 1, %s440
                $region53: #{conv_autoencoder_forward.22} parent=46 // loop_footer_branch
                  %439 = sbr.rel target = $region49
                $region54: #{conv_autoencoder_forward.22} parent=46 // loop_exit
                  _
              $region47: #{conv_autoencoder_forward.22} parent=31 // pred_fallthru
                _
              // Predicated region
              $region55: #{conv_autoencoder_forward.22} parent=31 // pred_check
                _
              $region56: #{conv_autoencoder_forward.22} parent=31 // pred_check_branch
                %704 = sbr.rel target = $region58
              $region57: #{conv_autoencoder_forward.22} parent=31 // pred_region
                _
              $region58: #{conv_autoencoder_forward.22} parent=31 // pred_fallthru
                _
            $region32: #{conv_autoencoder_forward.22} parent=27 // pred_fallthru
              _
            // Predicated region
            $region33: #{conv_autoencoder_forward.22} parent=27 // pred_check
              _
            $region34: #{conv_autoencoder_forward.22} parent=27 // pred_check_branch
              %171 = sbr.rel target = $region36
            $region35: #{conv_autoencoder_forward.22} parent=27 // pred_region
              loop: start=0, step=1, limit=1
              $region37: #{conv_autoencoder_forward.22} parent=35 // loop_pre_header
                _
              $region38: #{conv_autoencoder_forward.22} parent=35 // loop_header
                %s174 = sphi 0, %s178
                %p175 = scmp.ge.s32.totalorder %s174, 1
                %s179 = sphi %s165, %s165
                %s180 = sphi %s162, %s162
              $region39: #{conv_autoencoder_forward.22} parent=35 // loop_header_branch
                %177 = sbr.rel (%p175) target = $region43
              $region40: #{conv_autoencoder_forward.22} parent=35 // loop_body
                %v181 = vld [vmem:[%s179] sm:$0xff]
                %182 = vst [vmem:[%s180] sm:$0xff] %v181
                %v183 = vld [vmem:[%s179 + $0x10] sm:$0xff]
                %184 = vst [vmem:[%s180 + $0x8] sm:$0xff] %v183
                %v185 = vld [vmem:[%s179 + $0x20] sm:$0xff]
                %186 = vst [vmem:[%s180 + $0x10] sm:$0xff] %v185
                %v187 = vld [vmem:[%s179 + $0x30] sm:$0xff]
                %188 = vst [vmem:[%s180 + $0x18] sm:$0xff] %v187
                %v189 = vld [vmem:[%s179 + $0x40] sm:$0xff]
                %190 = vst [vmem:[%s180 + $0x20] sm:$0xff] %v189
                %v191 = vld [vmem:[%s179 + $0x50] sm:$0xff]
                %192 = vst [vmem:[%s180 + $0x28] sm:$0xff] %v191
                %v193 = vld [vmem:[%s179 + $0x60] sm:$0xff]
                %194 = vst [vmem:[%s180 + $0x30] sm:$0xff] %v193
                %v195 = vld [vmem:[%s179 + $0x70] sm:$0xff]
                %196 = vst [vmem:[%s180 + $0x38] sm:$0xff] %v195
                %v197 = vld [vmem:[%s179 + $0x80] sm:$0xff]
                %198 = vst [vmem:[%s180 + $0x40] sm:$0xff] %v197
                %v199 = vld [vmem:[%s179 + $0x90] sm:$0xff]
                %200 = vst [vmem:[%s180 + $0x48] sm:$0xff] %v199
                %v201 = vld [vmem:[%s179 + $0xa0] sm:$0xff]
                %202 = vst [vmem:[%s180 + $0x50] sm:$0xff] %v201
                %v203 = vld [vmem:[%s179 + $0xb0] sm:$0xff]
                %204 = vst [vmem:[%s180 + $0x58] sm:$0xff] %v203
                %v205 = vld [vmem:[%s179 + $0xc0] sm:$0xff]
                %206 = vst [vmem:[%s180 + $0x60] sm:$0xff] %v205
                %v207 = vld [vmem:[%s179 + $0xd0] sm:$0xff]
                %208 = vst [vmem:[%s180 + $0x68] sm:$0xff] %v207
                %v209 = vld [vmem:[%s179 + $0xe0] sm:$0xff]
                %210 = vst [vmem:[%s180 + $0x70] sm:$0xff] %v209
                %v211 = vld [vmem:[%s179 + $0xf0] sm:$0xff]
                %212 = vst [vmem:[%s180 + $0x78] sm:$0xff] %v211
                %v213 = vld [vmem:[%s179 + $0x100] sm:$0xff]
                %214 = vst [vmem:[%s180 + $0x80] sm:$0xff] %v213
                %v215 = vld [vmem:[%s179 + $0x110] sm:$0xff]
                %216 = vst [vmem:[%s180 + $0x88] sm:$0xff] %v215
                %v217 = vld [vmem:[%s179 + $0x120] sm:$0xff]
                %218 = vst [vmem:[%s180 + $0x90] sm:$0xff] %v217
                %v219 = vld [vmem:[%s179 + $0x130] sm:$0xff]
                %220 = vst [vmem:[%s180 + $0x98] sm:$0xff] %v219
                %v221 = vld [vmem:[%s179 + $0x140] sm:$0xff]
                %222 = vst [vmem:[%s180 + $0xa0] sm:$0xff] %v221
                %v223 = vld [vmem:[%s179 + $0x150] sm:$0xff]
                %224 = vst [vmem:[%s180 + $0xa8] sm:$0xff] %v223
                %v225 = vld [vmem:[%s179 + $0x160] sm:$0xff]
                %226 = vst [vmem:[%s180 + $0xb0] sm:$0xff] %v225
                %v227 = vld [vmem:[%s179 + $0x170] sm:$0xff]
                %228 = vst [vmem:[%s180 + $0xb8] sm:$0xff] %v227
                %v229 = vld [vmem:[%s179 + $0x180] sm:$0xff]
                %230 = vst [vmem:[%s180 + $0xc0] sm:$0xff] %v229
                %v231 = vld [vmem:[%s179 + $0x190] sm:$0xff]
                %232 = vst [vmem:[%s180 + $0xc8] sm:$0xff] %v231
                %v233 = vld [vmem:[%s179 + $0x1a0] sm:$0xff]
                %234 = vst [vmem:[%s180 + $0xd0] sm:$0xff] %v233
                %v235 = vld [vmem:[%s179 + $0x1b0] sm:$0xff]
                %236 = vst [vmem:[%s180 + $0xd8] sm:$0xff] %v235
                %v237 = vld [vmem:[%s179 + $0x1c0] sm:$0xff]
                %238 = vst [vmem:[%s180 + $0xe0] sm:$0xff] %v237
                %v239 = vld [vmem:[%s179 + $0x1d0] sm:$0xff]
                %240 = vst [vmem:[%s180 + $0xe8] sm:$0xff] %v239
                %v241 = vld [vmem:[%s179 + $0x1e0] sm:$0xff]
                %242 = vst [vmem:[%s180 + $0xf0] sm:$0xff] %v241
                %v243 = vld [vmem:[%s179 + $0x1f0] sm:$0xff]
                %244 = vst [vmem:[%s180 + $0xf8] sm:$0xff] %v243
                %v245 = vld [vmem:[%s179 + $0x200] sm:$0xff]
                %246 = vst [vmem:[%s180 + $0x100] sm:$0xff] %v245
                %v247 = vld [vmem:[%s179 + $0x210] sm:$0xff]
                %248 = vst [vmem:[%s180 + $0x108] sm:$0xff] %v247
                %v249 = vld [vmem:[%s179 + $0x220] sm:$0xff]
                %250 = vst [vmem:[%s180 + $0x110] sm:$0xff] %v249
                %v251 = vld [vmem:[%s179 + $0x230] sm:$0xff]
                %252 = vst [vmem:[%s180 + $0x118] sm:$0xff] %v251
                %v253 = vld [vmem:[%s179 + $0x240] sm:$0xff]
                %254 = vst [vmem:[%s180 + $0x120] sm:$0xff] %v253
                %v255 = vld [vmem:[%s179 + $0x250] sm:$0xff]
                %256 = vst [vmem:[%s180 + $0x128] sm:$0xff] %v255
                %v257 = vld [vmem:[%s179 + $0x260] sm:$0xff]
                %258 = vst [vmem:[%s180 + $0x130] sm:$0xff] %v257
                %v259 = vld [vmem:[%s179 + $0x270] sm:$0xff]
                %260 = vst [vmem:[%s180 + $0x138] sm:$0xff] %v259
                %v261 = vld [vmem:[%s179 + $0x280] sm:$0xff]
                %262 = vst [vmem:[%s180 + $0x140] sm:$0xff] %v261
                %v263 = vld [vmem:[%s179 + $0x290] sm:$0xff]
                %264 = vst [vmem:[%s180 + $0x148] sm:$0xff] %v263
                %v265 = vld [vmem:[%s179 + $0x2a0] sm:$0xff]
                %266 = vst [vmem:[%s180 + $0x150] sm:$0xff] %v265
                %v267 = vld [vmem:[%s179 + $0x2b0] sm:$0xff]
                %268 = vst [vmem:[%s180 + $0x158] sm:$0xff] %v267
                %v269 = vld [vmem:[%s179 + $0x2c0] sm:$0xff]
                %270 = vst [vmem:[%s180 + $0x160] sm:$0xff] %v269
                %v271 = vld [vmem:[%s179 + $0x2d0] sm:$0xff]
                %272 = vst [vmem:[%s180 + $0x168] sm:$0xff] %v271
                %v273 = vld [vmem:[%s179 + $0x2e0] sm:$0xff]
                %274 = vst [vmem:[%s180 + $0x170] sm:$0xff] %v273
                %v275 = vld [vmem:[%s179 + $0x2f0] sm:$0xff]
                %276 = vst [vmem:[%s180 + $0x178] sm:$0xff] %v275
                %v277 = vld [vmem:[%s179 + $0x300] sm:$0xff]
                %278 = vst [vmem:[%s180 + $0x180] sm:$0xff] %v277
                %v279 = vld [vmem:[%s179 + $0x310] sm:$0xff]
                %280 = vst [vmem:[%s180 + $0x188] sm:$0xff] %v279
                %v281 = vld [vmem:[%s179 + $0x320] sm:$0xff]
                %282 = vst [vmem:[%s180 + $0x190] sm:$0xff] %v281
                %v283 = vld [vmem:[%s179 + $0x330] sm:$0xff]
                %284 = vst [vmem:[%s180 + $0x198] sm:$0xff] %v283
                %v285 = vld [vmem:[%s179 + $0x340] sm:$0xff]
                %286 = vst [vmem:[%s180 + $0x1a0] sm:$0xff] %v285
                %v287 = vld [vmem:[%s179 + $0x350] sm:$0xff]
                %288 = vst [vmem:[%s180 + $0x1a8] sm:$0xff] %v287
                %v289 = vld [vmem:[%s179 + $0x360] sm:$0xff]
                %290 = vst [vmem:[%s180 + $0x1b0] sm:$0xff] %v289
                %v291 = vld [vmem:[%s179 + $0x370] sm:$0xff]
                %292 = vst [vmem:[%s180 + $0x1b8] sm:$0xff] %v291
                %v293 = vld [vmem:[%s179 + $0x380] sm:$0xff]
                %294 = vst [vmem:[%s180 + $0x1c0] sm:$0xff] %v293
                %v295 = vld [vmem:[%s179 + $0x390] sm:$0xff]
                %296 = vst [vmem:[%s180 + $0x1c8] sm:$0xff] %v295
                %v297 = vld [vmem:[%s179 + $0x3a0] sm:$0xff]
                %298 = vst [vmem:[%s180 + $0x1d0] sm:$0xff] %v297
                %v299 = vld [vmem:[%s179 + $0x3b0] sm:$0xff]
                %300 = vst [vmem:[%s180 + $0x1d8] sm:$0xff] %v299
                %v301 = vld [vmem:[%s179 + $0x3c0] sm:$0xff]
                %302 = vst [vmem:[%s180 + $0x1e0] sm:$0xff] %v301
                %v303 = vld [vmem:[%s179 + $0x3d0] sm:$0xff]
                %304 = vst [vmem:[%s180 + $0x1e8] sm:$0xff] %v303
                %v305 = vld [vmem:[%s179 + $0x3e0] sm:$0xff]
                %306 = vst [vmem:[%s180 + $0x1f0] sm:$0xff] %v305
                %v307 = vld [vmem:[%s179 + $0x3f0] sm:$0xff]
                %308 = vst [vmem:[%s180 + $0x1f8] sm:$0xff] %v307
                %v309 = vld [vmem:[%s179 + $0x400] sm:$0xff]
                %310 = vst [vmem:[%s180 + $0x200] sm:$0xff] %v309
                %v311 = vld [vmem:[%s179 + $0x410] sm:$0xff]
                %312 = vst [vmem:[%s180 + $0x208] sm:$0xff] %v311
                %v313 = vld [vmem:[%s179 + $0x420] sm:$0xff]
                %314 = vst [vmem:[%s180 + $0x210] sm:$0xff] %v313
                %v315 = vld [vmem:[%s179 + $0x430] sm:$0xff]
                %316 = vst [vmem:[%s180 + $0x218] sm:$0xff] %v315
                %v317 = vld [vmem:[%s179 + $0x440] sm:$0xff]
                %318 = vst [vmem:[%s180 + $0x220] sm:$0xff] %v317
                %v319 = vld [vmem:[%s179 + $0x450] sm:$0xff]
                %320 = vst [vmem:[%s180 + $0x228] sm:$0xff] %v319
                %v321 = vld [vmem:[%s179 + $0x460] sm:$0xff]
                %322 = vst [vmem:[%s180 + $0x230] sm:$0xff] %v321
                %v323 = vld [vmem:[%s179 + $0x470] sm:$0xff]
                %324 = vst [vmem:[%s180 + $0x238] sm:$0xff] %v323
                %v325 = vld [vmem:[%s179 + $0x480] sm:$0xff]
                %326 = vst [vmem:[%s180 + $0x240] sm:$0xff] %v325
                %v327 = vld [vmem:[%s179 + $0x490] sm:$0xff]
                %328 = vst [vmem:[%s180 + $0x248] sm:$0xff] %v327
                %v329 = vld [vmem:[%s179 + $0x4a0] sm:$0xff]
                %330 = vst [vmem:[%s180 + $0x250] sm:$0xff] %v329
                %v331 = vld [vmem:[%s179 + $0x4b0] sm:$0xff]
                %332 = vst [vmem:[%s180 + $0x258] sm:$0xff] %v331
                %v333 = vld [vmem:[%s179 + $0x4c0] sm:$0xff]
                %334 = vst [vmem:[%s180 + $0x260] sm:$0xff] %v333
                %v335 = vld [vmem:[%s179 + $0x4d0] sm:$0xff]
                %336 = vst [vmem:[%s180 + $0x268] sm:$0xff] %v335
                %v337 = vld [vmem:[%s179 + $0x4e0] sm:$0xff]
                %338 = vst [vmem:[%s180 + $0x270] sm:$0xff] %v337
                %v339 = vld [vmem:[%s179 + $0x4f0] sm:$0xff]
                %340 = vst [vmem:[%s180 + $0x278] sm:$0xff] %v339
                %v341 = vld [vmem:[%s179 + $0x500] sm:$0xff]
                %342 = vst [vmem:[%s180 + $0x280] sm:$0xff] %v341
                %v343 = vld [vmem:[%s179 + $0x510] sm:$0xff]
                %344 = vst [vmem:[%s180 + $0x288] sm:$0xff] %v343
                %v345 = vld [vmem:[%s179 + $0x520] sm:$0xff]
                %346 = vst [vmem:[%s180 + $0x290] sm:$0xff] %v345
                %v347 = vld [vmem:[%s179 + $0x530] sm:$0xff]
                %348 = vst [vmem:[%s180 + $0x298] sm:$0xff] %v347
                %v349 = vld [vmem:[%s179 + $0x540] sm:$0xff]
                %350 = vst [vmem:[%s180 + $0x2a0] sm:$0xff] %v349
                %v351 = vld [vmem:[%s179 + $0x550] sm:$0xff]
                %352 = vst [vmem:[%s180 + $0x2a8] sm:$0xff] %v351
                %v353 = vld [vmem:[%s179 + $0x560] sm:$0xff]
                %354 = vst [vmem:[%s180 + $0x2b0] sm:$0xff] %v353
                %v355 = vld [vmem:[%s179 + $0x570] sm:$0xff]
                %356 = vst [vmem:[%s180 + $0x2b8] sm:$0xff] %v355
                %v357 = vld [vmem:[%s179 + $0x580] sm:$0xff]
                %358 = vst [vmem:[%s180 + $0x2c0] sm:$0xff] %v357
                %v359 = vld [vmem:[%s179 + $0x590] sm:$0xff]
                %360 = vst [vmem:[%s180 + $0x2c8] sm:$0xff] %v359
                %v361 = vld [vmem:[%s179 + $0x5a0] sm:$0xff]
                %362 = vst [vmem:[%s180 + $0x2d0] sm:$0xff] %v361
                %v363 = vld [vmem:[%s179 + $0x5b0] sm:$0xff]
                %364 = vst [vmem:[%s180 + $0x2d8] sm:$0xff] %v363
                %v365 = vld [vmem:[%s179 + $0x5c0] sm:$0xff]
                %366 = vst [vmem:[%s180 + $0x2e0] sm:$0xff] %v365
                %v367 = vld [vmem:[%s179 + $0x5d0] sm:$0xff]
                %368 = vst [vmem:[%s180 + $0x2e8] sm:$0xff] %v367
                %v369 = vld [vmem:[%s179 + $0x5e0] sm:$0xff]
                %370 = vst [vmem:[%s180 + $0x2f0] sm:$0xff] %v369
                %v371 = vld [vmem:[%s179 + $0x5f0] sm:$0xff]
                %372 = vst [vmem:[%s180 + $0x2f8] sm:$0xff] %v371
                %v373 = vld [vmem:[%s179 + $0x600] sm:$0xff]
                %374 = vst [vmem:[%s180 + $0x300] sm:$0xff] %v373
                %v375 = vld [vmem:[%s179 + $0x610] sm:$0xff]
                %376 = vst [vmem:[%s180 + $0x308] sm:$0xff] %v375
                %v377 = vld [vmem:[%s179 + $0x620] sm:$0xff]
                %378 = vst [vmem:[%s180 + $0x310] sm:$0xff] %v377
                %v379 = vld [vmem:[%s179 + $0x630] sm:$0xff]
                %380 = vst [vmem:[%s180 + $0x318] sm:$0xff] %v379
                %v381 = vld [vmem:[%s179 + $0x640] sm:$0xff]
                %382 = vst [vmem:[%s180 + $0x320] sm:$0xff] %v381
                %v383 = vld [vmem:[%s179 + $0x650] sm:$0xff]
                %384 = vst [vmem:[%s180 + $0x328] sm:$0xff] %v383
                %v385 = vld [vmem:[%s179 + $0x660] sm:$0xff]
                %386 = vst [vmem:[%s180 + $0x330] sm:$0xff] %v385
                %v387 = vld [vmem:[%s179 + $0x670] sm:$0xff]
                %388 = vst [vmem:[%s180 + $0x338] sm:$0xff] %v387
                %v389 = vld [vmem:[%s179 + $0x680] sm:$0xff]
                %390 = vst [vmem:[%s180 + $0x340] sm:$0xff] %v389
                %v391 = vld [vmem:[%s179 + $0x690] sm:$0xff]
                %392 = vst [vmem:[%s180 + $0x348] sm:$0xff] %v391
                %v393 = vld [vmem:[%s179 + $0x6a0] sm:$0xff]
                %394 = vst [vmem:[%s180 + $0x350] sm:$0xff] %v393
                %v395 = vld [vmem:[%s179 + $0x6b0] sm:$0xff]
                %396 = vst [vmem:[%s180 + $0x358] sm:$0xff] %v395
                %v397 = vld [vmem:[%s179 + $0x6c0] sm:$0xff]
                %398 = vst [vmem:[%s180 + $0x360] sm:$0xff] %v397
                %v399 = vld [vmem:[%s179 + $0x6d0] sm:$0xff]
                %400 = vst [vmem:[%s180 + $0x368] sm:$0xff] %v399
                %v401 = vld [vmem:[%s179 + $0x6e0] sm:$0xff]
                %402 = vst [vmem:[%s180 + $0x370] sm:$0xff] %v401
                %v403 = vld [vmem:[%s179 + $0x6f0] sm:$0xff]
                %404 = vst [vmem:[%s180 + $0x378] sm:$0xff] %v403
                %v405 = vld [vmem:[%s179 + $0x700] sm:$0xff]
                %406 = vst [vmem:[%s180 + $0x380] sm:$0xff] %v405
                %v407 = vld [vmem:[%s179 + $0x710] sm:$0xff]
                %408 = vst [vmem:[%s180 + $0x388] sm:$0xff] %v407
                %v409 = vld [vmem:[%s179 + $0x720] sm:$0xff]
                %410 = vst [vmem:[%s180 + $0x390] sm:$0xff] %v409
                %v411 = vld [vmem:[%s179 + $0x730] sm:$0xff]
                %412 = vst [vmem:[%s180 + $0x398] sm:$0xff] %v411
                %v413 = vld [vmem:[%s179 + $0x740] sm:$0xff]
                %414 = vst [vmem:[%s180 + $0x3a0] sm:$0xff] %v413
                %v415 = vld [vmem:[%s179 + $0x750] sm:$0xff]
                %416 = vst [vmem:[%s180 + $0x3a8] sm:$0xff] %v415
                %v417 = vld [vmem:[%s179 + $0x760] sm:$0xff]
                %418 = vst [vmem:[%s180 + $0x3b0] sm:$0xff] %v417
                %v419 = vld [vmem:[%s179 + $0x770] sm:$0xff]
                %420 = vst [vmem:[%s180 + $0x3b8] sm:$0xff] %v419
                %v421 = vld [vmem:[%s179 + $0x780] sm:$0xff]
                %422 = vst [vmem:[%s180 + $0x3c0] sm:$0xff] %v421
                %v423 = vld [vmem:[%s179 + $0x790] sm:$0xff]
                %424 = vst [vmem:[%s180 + $0x3c8] sm:$0xff] %v423
                %v425 = vld [vmem:[%s179 + $0x7a0] sm:$0xff]
                %426 = vst [vmem:[%s180 + $0x3d0] sm:$0xff] %v425
                %v427 = vld [vmem:[%s179 + $0x7b0] sm:$0xff]
                %428 = vst [vmem:[%s180 + $0x3d8] sm:$0xff] %v427
                %v429 = vld [vmem:[%s179 + $0x7c0] sm:$0xff]
                %430 = vst [vmem:[%s180 + $0x3e0] sm:$0xff] %v429
                %v431 = vld [vmem:[%s179 + $0x7d0] sm:$0xff]
                %432 = vst [vmem:[%s180 + $0x3e8] sm:$0xff] %v431
                %v433 = vld [vmem:[%s179 + $0x7e0] sm:$0xff]
                %434 = vst [vmem:[%s180 + $0x3f0] sm:$0xff] %v433
                %v435 = vld [vmem:[%s179 + $0x7f0] sm:$0xff]
                %436 = vst [vmem:[%s180 + $0x3f8] sm:$0xff] %v435
              $region41: #{conv_autoencoder_forward.22} parent=35 // loop_footer
                %s178 = sadd.s32 1, %s174
              $region42: #{conv_autoencoder_forward.22} parent=35 // loop_footer_branch
                %173 = sbr.rel target = $region38
              $region43: #{conv_autoencoder_forward.22} parent=35 // loop_exit
                _
            $region36: #{conv_autoencoder_forward.22} parent=27 // pred_fallthru
              _
          $region28: #{conv_autoencoder_forward.22} parent=23 // pred_fallthru
            _
          %705 = vnop
        $region24: #{conv_autoencoder_forward.22} parent=19 // pred_fallthru
          _
        // Predicated region
        $region59: #{conv_autoencoder_forward.22} parent=19 // pred_check
          %p706 = pneg %p93
        $region60: #{conv_autoencoder_forward.22} parent=19 // pred_check_branch
          %708 = sbr.rel (%p706) target = $region62
        $region61: #{conv_autoencoder_forward.22} parent=19 // pred_region
          %s709 = smul.u32 2, %s17
          %p710 = scmp.lt.s32.totalorder %s709, 3
          %s711 = scalar_select %p710, %s709, 3
          %s712 = scalar_lea.vmem %s2, %s711
          %s713 = smul.u32 2, %s17
        $region62: #{conv_autoencoder_forward.22} parent=19 // pred_fallthru
          _
      $region20: #{conv_autoencoder_forward.22} parent=5 // pred_fallthru
        _
      %p714 = scmp.le.s32.totalorder 1, %s9
      %p715 = scmp.lt.s32.totalorder %s9, 3
      %p716 = pnand %p714, %p715
      %p717 = pneg %p716
      // Predicated region
      $region63: #{conv_autoencoder_forward.22} parent=5 // pred_check
        _
      $region64: #{conv_autoencoder_forward.22} parent=5 // pred_check_branch
        %719 = sbr.rel (%p716) target = $region66
      $region65: #{conv_autoencoder_forward.22} parent=5 // pred_region
        %s720 = ssub.s32 %s9, 1
        %s721 = sand.u32 %s60, 1
        %s722 = sand.u32 %s60, 1
        %s723 = smul.addr %s722, 1024
        %s724 = scalar_lea.vmem [#allocation2], %s723
        // Predicated region
        $region67: #{conv_autoencoder_forward.22} parent=65 // pred_check
          %p725 = pneg %p73
        $region68: #{conv_autoencoder_forward.22} parent=65 // pred_check_branch
          %727 = sbr.rel (%p725) target = $region70
        $region69: #{conv_autoencoder_forward.22} parent=65 // pred_region
          _
        $region70: #{conv_autoencoder_forward.22} parent=65 // pred_fallthru
          _
        %s728 = smul.u32 4, %s18
        %p729 = scmp.lt.s32.totalorder %s728, 3
        %s730 = scalar_select %p729, %s728, 3
        %s731 = smul.addr %s730, 8
        %s732 = smul.addr %s731, 4
        %s733 = scalar_lea.vmem %s0, %s732
        %p734 = pneg %p47
        %p735 = pneg %p44
        %s736 = sand.u32 %s60, 1
        %s737 = sand.u32 %s60, 1
        %s738 = smul.addr %s737, 1024
        %s739 = scalar_lea.vmem [#allocation2], %s738
        %p740 = pneg %p73
        %p741 = pneg %p70
        %s742 = smul.u32 2, %s19
        %p743 = scmp.lt.s32.totalorder %s742, 3
        %s744 = scalar_select %p743, %s742, 3
        %s745 = scalar_lea.vmem %s2, %s744
        %p746 = pneg %p99
        %p747 = pneg %p96
        %p748 = pneg %p127
        %p749 = pneg %p124
        %s750 = sand.u32 %s114, 1
        %s751 = sand.u32 %s114, 1
        %s752 = smul.addr %s751, 32
        %s753 = scalar_lea.vmem [#allocation3], %s752
        %s754 = smul.u32 4, %s18
        %p755 = scmp.lt.s32.totalorder %s754, 3
        %s756 = scalar_select %p755, %s754, 3
        %s757 = smul.addr %s756, 8
        %s758 = smul.addr %s757, 4
        %s759 = scalar_lea.vmem %s0, %s758
        %s760 = smul.u32 4, %s18
        %s761 = smul.u32 2, %s19
        %s762 = smul.u32 2, %s19
        %p763 = scmp.lt.s32.totalorder %s762, 3
        %s764 = scalar_select %p763, %s762, 3
        %s765 = scalar_lea.vmem %s2, %s764
        %s766 = smul.u32 2, %s19
        %s767 = smul.u32 4, %s18
        %s768 = smul.u32 2, %s19
        %v769 = vld [vmem:[%s759] sm:$0xff]
        %v770 = vld [vmem:[%s759 + $0x8] sm:$0xff]
        %v771 = vld [vmem:[%s759 + $0x10] sm:$0xff]
        %v772 = vld [vmem:[%s759 + $0x18] sm:$0xff]
        %v773 = vld [vmem:[%s759 + $0x20] sm:$0xff]
        %v774 = vld [vmem:[%s759 + $0x28] sm:$0xff]
        %v775 = vld [vmem:[%s759 + $0x30] sm:$0xff]
        %v776 = vld [vmem:[%s759 + $0x38] sm:$0xff]
        %v777 = vld [vmem:[%s759 + $0x40] sm:$0xff]
        %v778 = vld [vmem:[%s759 + $0x48] sm:$0xff]
        %v779 = vld [vmem:[%s759 + $0x50] sm:$0xff]
        %v780 = vld [vmem:[%s759 + $0x58] sm:$0xff]
        %v781 = vld [vmem:[%s759 + $0x60] sm:$0xff]
        %v782 = vld [vmem:[%s759 + $0x68] sm:$0xff]
        %v783 = vld [vmem:[%s759 + $0x70] sm:$0xff]
        %v784 = vld [vmem:[%s759 + $0x78] sm:$0xff]
        %v785 = vld [vmem:[%s724] sm:$0xff]
        %v786 = vld [vmem:[%s724 + $0x8] sm:$0xff]
        %v787 = vld [vmem:[%s724 + $0x10] sm:$0xff]
        %v788 = vld [vmem:[%s724 + $0x18] sm:$0xff]
        %v789 = vld [vmem:[%s724 + $0x20] sm:$0xff]
        %v790 = vld [vmem:[%s724 + $0x28] sm:$0xff]
        %v791 = vld [vmem:[%s724 + $0x30] sm:$0xff]
        %v792 = vld [vmem:[%s724 + $0x38] sm:$0xff]
        %v793 = vld [vmem:[%s724 + $0x40] sm:$0xff]
        %v794 = vld [vmem:[%s724 + $0x48] sm:$0xff]
        %v795 = vld [vmem:[%s724 + $0x50] sm:$0xff]
        %v796 = vld [vmem:[%s724 + $0x58] sm:$0xff]
        %v797 = vld [vmem:[%s724 + $0x60] sm:$0xff]
        %v798 = vld [vmem:[%s724 + $0x68] sm:$0xff]
        %v799 = vld [vmem:[%s724 + $0x70] sm:$0xff]
        %v800 = vld [vmem:[%s724 + $0x78] sm:$0xff]
        %v801 = vld [vmem:[%s724 + $0x80] sm:$0xff]
        %v802 = vld [vmem:[%s724 + $0x88] sm:$0xff]
        %v803 = vld [vmem:[%s724 + $0x90] sm:$0xff]
        %v804 = vld [vmem:[%s724 + $0x98] sm:$0xff]
        %v805 = vld [vmem:[%s724 + $0xa0] sm:$0xff]
        %v806 = vld [vmem:[%s724 + $0xa8] sm:$0xff]
        %v807 = vld [vmem:[%s724 + $0xb0] sm:$0xff]
        %v808 = vld [vmem:[%s724 + $0xb8] sm:$0xff]
        %v809 = vld [vmem:[%s724 + $0xc0] sm:$0xff]
        %v810 = vld [vmem:[%s724 + $0xc8] sm:$0xff]
        %v811 = vld [vmem:[%s724 + $0xd0] sm:$0xff]
        %v812 = vld [vmem:[%s724 + $0xd8] sm:$0xff]
        %v813 = vld [vmem:[%s724 + $0xe0] sm:$0xff]
        %v814 = vld [vmem:[%s724 + $0xe8] sm:$0xff]
        %v815 = vld [vmem:[%s724 + $0xf0] sm:$0xff]
        %v816 = vld [vmem:[%s724 + $0xf8] sm:$0xff]
        %v817 = vld [vmem:[%s724 + $0x100] sm:$0xff]
        %v818 = vld [vmem:[%s724 + $0x108] sm:$0xff]
        %v819 = vld [vmem:[%s724 + $0x110] sm:$0xff]
        %v820 = vld [vmem:[%s724 + $0x118] sm:$0xff]
        %v821 = vld [vmem:[%s724 + $0x120] sm:$0xff]
        %v822 = vld [vmem:[%s724 + $0x128] sm:$0xff]
        %v823 = vld [vmem:[%s724 + $0x130] sm:$0xff]
        %v824 = vld [vmem:[%s724 + $0x138] sm:$0xff]
        %v825 = vld [vmem:[%s724 + $0x140] sm:$0xff]
        %v826 = vld [vmem:[%s724 + $0x148] sm:$0xff]
        %v827 = vld [vmem:[%s724 + $0x150] sm:$0xff]
        %v828 = vld [vmem:[%s724 + $0x158] sm:$0xff]
        %v829 = vld [vmem:[%s724 + $0x160] sm:$0xff]
        %v830 = vld [vmem:[%s724 + $0x168] sm:$0xff]
        %v831 = vld [vmem:[%s724 + $0x170] sm:$0xff]
        %v832 = vld [vmem:[%s724 + $0x178] sm:$0xff]
        %v833 = vld [vmem:[%s724 + $0x180] sm:$0xff]
        %v834 = vld [vmem:[%s724 + $0x188] sm:$0xff]
        %v835 = vld [vmem:[%s724 + $0x190] sm:$0xff]
        %v836 = vld [vmem:[%s724 + $0x198] sm:$0xff]
        %v837 = vld [vmem:[%s724 + $0x1a0] sm:$0xff]
        %v838 = vld [vmem:[%s724 + $0x1a8] sm:$0xff]
        %v839 = vld [vmem:[%s724 + $0x1b0] sm:$0xff]
        %v840 = vld [vmem:[%s724 + $0x1b8] sm:$0xff]
        %v841 = vld [vmem:[%s724 + $0x1c0] sm:$0xff]
        %v842 = vld [vmem:[%s724 + $0x1c8] sm:$0xff]
        %v843 = vld [vmem:[%s724 + $0x1d0] sm:$0xff]
        %v844 = vld [vmem:[%s724 + $0x1d8] sm:$0xff]
        %v845 = vld [vmem:[%s724 + $0x1e0] sm:$0xff]
        %v846 = vld [vmem:[%s724 + $0x1e8] sm:$0xff]
        %v847 = vld [vmem:[%s724 + $0x1f0] sm:$0xff]
        %v848 = vld [vmem:[%s724 + $0x1f8] sm:$0xff]
        %v849 = vld [vmem:[%s724 + $0x200] sm:$0xff]
        %v850 = vld [vmem:[%s724 + $0x208] sm:$0xff]
        %v851 = vld [vmem:[%s724 + $0x210] sm:$0xff]
        %v852 = vld [vmem:[%s724 + $0x218] sm:$0xff]
        %v853 = vld [vmem:[%s724 + $0x220] sm:$0xff]
        %v854 = vld [vmem:[%s724 + $0x228] sm:$0xff]
        %v855 = vld [vmem:[%s724 + $0x230] sm:$0xff]
        %v856 = vld [vmem:[%s724 + $0x238] sm:$0xff]
        %v857 = vld [vmem:[%s724 + $0x240] sm:$0xff]
        %v858 = vld [vmem:[%s724 + $0x248] sm:$0xff]
        %v859 = vld [vmem:[%s724 + $0x250] sm:$0xff]
        %v860 = vld [vmem:[%s724 + $0x258] sm:$0xff]
        %v861 = vld [vmem:[%s724 + $0x260] sm:$0xff]
        %v862 = vld [vmem:[%s724 + $0x268] sm:$0xff]
        %v863 = vld [vmem:[%s724 + $0x270] sm:$0xff]
        %v864 = vld [vmem:[%s724 + $0x278] sm:$0xff]
        %v865 = vld [vmem:[%s724 + $0x280] sm:$0xff]
        %v866 = vld [vmem:[%s724 + $0x288] sm:$0xff]
        %v867 = vld [vmem:[%s724 + $0x290] sm:$0xff]
        %v868 = vld [vmem:[%s724 + $0x298] sm:$0xff]
        %v869 = vld [vmem:[%s724 + $0x2a0] sm:$0xff]
        %v870 = vld [vmem:[%s724 + $0x2a8] sm:$0xff]
        %v871 = vld [vmem:[%s724 + $0x2b0] sm:$0xff]
        %v872 = vld [vmem:[%s724 + $0x2b8] sm:$0xff]
        %v873 = vld [vmem:[%s724 + $0x2c0] sm:$0xff]
        %v874 = vld [vmem:[%s724 + $0x2c8] sm:$0xff]
        %v875 = vld [vmem:[%s724 + $0x2d0] sm:$0xff]
        %v876 = vld [vmem:[%s724 + $0x2d8] sm:$0xff]
        %v877 = vld [vmem:[%s724 + $0x2e0] sm:$0xff]
        %v878 = vld [vmem:[%s724 + $0x2e8] sm:$0xff]
        %v879 = vld [vmem:[%s724 + $0x2f0] sm:$0xff]
        %v880 = vld [vmem:[%s724 + $0x2f8] sm:$0xff]
        %v881 = vld [vmem:[%s724 + $0x300] sm:$0xff]
        %v882 = vld [vmem:[%s724 + $0x308] sm:$0xff]
        %v883 = vld [vmem:[%s724 + $0x310] sm:$0xff]
        %v884 = vld [vmem:[%s724 + $0x318] sm:$0xff]
        %v885 = vld [vmem:[%s724 + $0x320] sm:$0xff]
        %v886 = vld [vmem:[%s724 + $0x328] sm:$0xff]
        %v887 = vld [vmem:[%s724 + $0x330] sm:$0xff]
        %v888 = vld [vmem:[%s724 + $0x338] sm:$0xff]
        %v889 = vld [vmem:[%s724 + $0x340] sm:$0xff]
        %v890 = vld [vmem:[%s724 + $0x348] sm:$0xff]
        %v891 = vld [vmem:[%s724 + $0x350] sm:$0xff]
        %v892 = vld [vmem:[%s724 + $0x358] sm:$0xff]
        %v893 = vld [vmem:[%s724 + $0x360] sm:$0xff]
        %v894 = vld [vmem:[%s724 + $0x368] sm:$0xff]
        %v895 = vld [vmem:[%s724 + $0x370] sm:$0xff]
        %v896 = vld [vmem:[%s724 + $0x378] sm:$0xff]
        %v897 = vld [vmem:[%s724 + $0x380] sm:$0xff]
        %v898 = vld [vmem:[%s724 + $0x388] sm:$0xff]
        %v899 = vld [vmem:[%s724 + $0x390] sm:$0xff]
        %v900 = vld [vmem:[%s724 + $0x398] sm:$0xff]
        %v901 = vld [vmem:[%s724 + $0x3a0] sm:$0xff]
        %v902 = vld [vmem:[%s724 + $0x3a8] sm:$0xff]
        %v903 = vld [vmem:[%s724 + $0x3b0] sm:$0xff]
        %v904 = vld [vmem:[%s724 + $0x3b8] sm:$0xff]
        %v905 = vld [vmem:[%s724 + $0x3c0] sm:$0xff]
        %v906 = vld [vmem:[%s724 + $0x3c8] sm:$0xff]
        %v907 = vld [vmem:[%s724 + $0x3d0] sm:$0xff]
        %v908 = vld [vmem:[%s724 + $0x3d8] sm:$0xff]
        %v909 = vld [vmem:[%s724 + $0x3e0] sm:$0xff]
        %v910 = vld [vmem:[%s724 + $0x3e8] sm:$0xff]
        %v911 = vld [vmem:[%s724 + $0x3f0] sm:$0xff]
        %v912 = vld [vmem:[%s724 + $0x3f8] sm:$0xff]
        %v913 = vld [vmem:[%s765] sm:$0x3]
        %v915 = vlaneseq
        %v916 = vshrl.u32 %v915, 7
        %v917 = vsub.s32 0, %v916
        %v918 = vrot.slane %v913, %v917
        %v919 = vlaneseq
        %v920 = vshrl.u32 %v919, 7
        %v921 = vsub.s32 1, %v920
        %v922 = vrot.slane %v913, %v921
        %v941 = vunpack.c.l.b16 %v769
        %v942 = vunpack.c.h.b16 %v769
        %v943 = vunpack.c.l.b16 %v770
        %v944 = vunpack.c.h.b16 %v770
        %v945 = vunpack.c.l.b16 %v771
        %v946 = vunpack.c.h.b16 %v771
        %v947 = vunpack.c.l.b16 %v772
        %v948 = vunpack.c.h.b16 %v772
        %v949 = vunpack.c.l.b16 %v773
        %v950 = vunpack.c.h.b16 %v773
        %v951 = vunpack.c.l.b16 %v774
        %v952 = vunpack.c.h.b16 %v774
        %v953 = vunpack.c.l.b16 %v775
        %v954 = vunpack.c.h.b16 %v775
        %v955 = vunpack.c.l.b16 %v776
        %v956 = vunpack.c.h.b16 %v776
        %v957 = vunpack.c.l.b16 %v777
        %v958 = vunpack.c.h.b16 %v777
        %v959 = vunpack.c.l.b16 %v778
        %v960 = vunpack.c.h.b16 %v778
        %v961 = vunpack.c.l.b16 %v779
        %v962 = vunpack.c.h.b16 %v779
        %v963 = vunpack.c.l.b16 %v780
        %v964 = vunpack.c.h.b16 %v780
        %v965 = vunpack.c.l.b16 %v781
        %v966 = vunpack.c.h.b16 %v781
        %v967 = vunpack.c.l.b16 %v782
        %v968 = vunpack.c.h.b16 %v782
        %v969 = vunpack.c.l.b16 %v783
        %v970 = vunpack.c.h.b16 %v783
        %v971 = vunpack.c.l.b16 %v784
        %v972 = vunpack.c.h.b16 %v784
        %v973 = vpack.c.b16 %v949, %v941
        %v974 = vpack.c.b16 %v950, %v942
        %v975 = vpack.c.b16 %v951, %v943
        %v976 = vpack.c.b16 %v952, %v944
        %v977 = vpack.c.b16 %v953, %v945
        %v978 = vpack.c.b16 %v954, %v946
        %v979 = vpack.c.b16 %v955, %v947
        %v980 = vpack.c.b16 %v956, %v948
        %v981 = vpack.c.b16 %v965, %v957
        %v982 = vpack.c.b16 %v966, %v958
        %v983 = vpack.c.b16 %v967, %v959
        %v984 = vpack.c.b16 %v968, %v960
        %v985 = vpack.c.b16 %v969, %v961
        %v986 = vpack.c.b16 %v970, %v962
        %v987 = vpack.c.b16 %v971, %v963
        %v988 = vpack.c.b16 %v972, %v964
        %v1133 = vunpack.c.l.b16 %v785
        %v1134 = vunpack.c.h.b16 %v785
        %v1135 = vunpack.c.l.b16 %v786
        %v1136 = vunpack.c.h.b16 %v786
        %v1137 = vunpack.c.l.b16 %v787
        %v1138 = vunpack.c.h.b16 %v787
        %v1139 = vunpack.c.l.b16 %v788
        %v1140 = vunpack.c.h.b16 %v788
        %v1141 = vunpack.c.l.b16 %v789
        %v1142 = vunpack.c.h.b16 %v789
        %v1143 = vunpack.c.l.b16 %v790
        %v1144 = vunpack.c.h.b16 %v790
        %v1145 = vunpack.c.l.b16 %v791
        %v1146 = vunpack.c.h.b16 %v791
        %v1147 = vunpack.c.l.b16 %v792
        %v1148 = vunpack.c.h.b16 %v792
        %v1149 = vunpack.c.l.b16 %v793
        %v1150 = vunpack.c.h.b16 %v793
        %v1151 = vunpack.c.l.b16 %v794
        %v1152 = vunpack.c.h.b16 %v794
        %v1153 = vunpack.c.l.b16 %v795
        %v1154 = vunpack.c.h.b16 %v795
        %v1155 = vunpack.c.l.b16 %v796
        %v1156 = vunpack.c.h.b16 %v796
        %v1157 = vunpack.c.l.b16 %v797
        %v1158 = vunpack.c.h.b16 %v797
        %v1159 = vunpack.c.l.b16 %v798
        %v1160 = vunpack.c.h.b16 %v798
        %v1161 = vunpack.c.l.b16 %v799
        %v1162 = vunpack.c.h.b16 %v799
        %v1163 = vunpack.c.l.b16 %v800
        %v1164 = vunpack.c.h.b16 %v800
        %v1165 = vunpack.c.l.b16 %v801
        %v1166 = vunpack.c.h.b16 %v801
        %v1167 = vunpack.c.l.b16 %v802
        %v1168 = vunpack.c.h.b16 %v802
        %v1169 = vunpack.c.l.b16 %v803
        %v1170 = vunpack.c.h.b16 %v803
        %v1171 = vunpack.c.l.b16 %v804
        %v1172 = vunpack.c.h.b16 %v804
        %v1173 = vunpack.c.l.b16 %v805
        %v1174 = vunpack.c.h.b16 %v805
        %v1175 = vunpack.c.l.b16 %v806
        %v1176 = vunpack.c.h.b16 %v806
        %v1177 = vunpack.c.l.b16 %v807
        %v1178 = vunpack.c.h.b16 %v807
        %v1179 = vunpack.c.l.b16 %v808
        %v1180 = vunpack.c.h.b16 %v808
        %v1181 = vunpack.c.l.b16 %v809
        %v1182 = vunpack.c.h.b16 %v809
        %v1183 = vunpack.c.l.b16 %v810
        %v1184 = vunpack.c.h.b16 %v810
        %v1185 = vunpack.c.l.b16 %v811
        %v1186 = vunpack.c.h.b16 %v811
        %v1187 = vunpack.c.l.b16 %v812
        %v1188 = vunpack.c.h.b16 %v812
        %v1189 = vunpack.c.l.b16 %v813
        %v1190 = vunpack.c.h.b16 %v813
        %v1191 = vunpack.c.l.b16 %v814
        %v1192 = vunpack.c.h.b16 %v814
        %v1193 = vunpack.c.l.b16 %v815
        %v1194 = vunpack.c.h.b16 %v815
        %v1195 = vunpack.c.l.b16 %v816
        %v1196 = vunpack.c.h.b16 %v816
        %v1197 = vunpack.c.l.b16 %v817
        %v1198 = vunpack.c.h.b16 %v817
        %v1199 = vunpack.c.l.b16 %v818
        %v1200 = vunpack.c.h.b16 %v818
        %v1201 = vunpack.c.l.b16 %v819
        %v1202 = vunpack.c.h.b16 %v819
        %v1203 = vunpack.c.l.b16 %v820
        %v1204 = vunpack.c.h.b16 %v820
        %v1205 = vunpack.c.l.b16 %v821
        %v1206 = vunpack.c.h.b16 %v821
        %v1207 = vunpack.c.l.b16 %v822
        %v1208 = vunpack.c.h.b16 %v822
        %v1209 = vunpack.c.l.b16 %v823
        %v1210 = vunpack.c.h.b16 %v823
        %v1211 = vunpack.c.l.b16 %v824
        %v1212 = vunpack.c.h.b16 %v824
        %v1213 = vunpack.c.l.b16 %v825
        %v1214 = vunpack.c.h.b16 %v825
        %v1215 = vunpack.c.l.b16 %v826
        %v1216 = vunpack.c.h.b16 %v826
        %v1217 = vunpack.c.l.b16 %v827
        %v1218 = vunpack.c.h.b16 %v827
        %v1219 = vunpack.c.l.b16 %v828
        %v1220 = vunpack.c.h.b16 %v828
        %v1221 = vunpack.c.l.b16 %v829
        %v1222 = vunpack.c.h.b16 %v829
        %v1223 = vunpack.c.l.b16 %v830
        %v1224 = vunpack.c.h.b16 %v830
        %v1225 = vunpack.c.l.b16 %v831
        %v1226 = vunpack.c.h.b16 %v831
        %v1227 = vunpack.c.l.b16 %v832
        %v1228 = vunpack.c.h.b16 %v832
        %v1229 = vunpack.c.l.b16 %v833
        %v1230 = vunpack.c.h.b16 %v833
        %v1231 = vunpack.c.l.b16 %v834
        %v1232 = vunpack.c.h.b16 %v834
        %v1233 = vunpack.c.l.b16 %v835
        %v1234 = vunpack.c.h.b16 %v835
        %v1235 = vunpack.c.l.b16 %v836
        %v1236 = vunpack.c.h.b16 %v836
        %v1237 = vunpack.c.l.b16 %v837
        %v1238 = vunpack.c.h.b16 %v837
        %v1239 = vunpack.c.l.b16 %v838
        %v1240 = vunpack.c.h.b16 %v838
        %v1241 = vunpack.c.l.b16 %v839
        %v1242 = vunpack.c.h.b16 %v839
        %v1243 = vunpack.c.l.b16 %v840
        %v1244 = vunpack.c.h.b16 %v840
        %v1245 = vunpack.c.l.b16 %v841
        %v1246 = vunpack.c.h.b16 %v841
        %v1247 = vunpack.c.l.b16 %v842
        %v1248 = vunpack.c.h.b16 %v842
        %v1249 = vunpack.c.l.b16 %v843
        %v1250 = vunpack.c.h.b16 %v843
        %v1251 = vunpack.c.l.b16 %v844
        %v1252 = vunpack.c.h.b16 %v844
        %v1253 = vunpack.c.l.b16 %v845
        %v1254 = vunpack.c.h.b16 %v845
        %v1255 = vunpack.c.l.b16 %v846
        %v1256 = vunpack.c.h.b16 %v846
        %v1257 = vunpack.c.l.b16 %v847
        %v1258 = vunpack.c.h.b16 %v847
        %v1259 = vunpack.c.l.b16 %v848
        %v1260 = vunpack.c.h.b16 %v848
        %v1261 = vunpack.c.l.b16 %v849
        %v1262 = vunpack.c.h.b16 %v849
        %v1263 = vunpack.c.l.b16 %v850
        %v1264 = vunpack.c.h.b16 %v850
        %v1265 = vunpack.c.l.b16 %v851
        %v1266 = vunpack.c.h.b16 %v851
        %v1267 = vunpack.c.l.b16 %v852
        %v1268 = vunpack.c.h.b16 %v852
        %v1269 = vunpack.c.l.b16 %v853
        %v1270 = vunpack.c.h.b16 %v853
        %v1271 = vunpack.c.l.b16 %v854
        %v1272 = vunpack.c.h.b16 %v854
        %v1273 = vunpack.c.l.b16 %v855
        %v1274 = vunpack.c.h.b16 %v855
        %v1275 = vunpack.c.l.b16 %v856
        %v1276 = vunpack.c.h.b16 %v856
        %v1277 = vunpack.c.l.b16 %v857
        %v1278 = vunpack.c.h.b16 %v857
        %v1279 = vunpack.c.l.b16 %v858
        %v1280 = vunpack.c.h.b16 %v858
        %v1281 = vunpack.c.l.b16 %v859
        %v1282 = vunpack.c.h.b16 %v859
        %v1283 = vunpack.c.l.b16 %v860
        %v1284 = vunpack.c.h.b16 %v860
        %v1285 = vunpack.c.l.b16 %v861
        %v1286 = vunpack.c.h.b16 %v861
        %v1287 = vunpack.c.l.b16 %v862
        %v1288 = vunpack.c.h.b16 %v862
        %v1289 = vunpack.c.l.b16 %v863
        %v1290 = vunpack.c.h.b16 %v863
        %v1291 = vunpack.c.l.b16 %v864
        %v1292 = vunpack.c.h.b16 %v864
        %v1293 = vunpack.c.l.b16 %v865
        %v1294 = vunpack.c.h.b16 %v865
        %v1295 = vunpack.c.l.b16 %v866
        %v1296 = vunpack.c.h.b16 %v866
        %v1297 = vunpack.c.l.b16 %v867
        %v1298 = vunpack.c.h.b16 %v867
        %v1299 = vunpack.c.l.b16 %v868
        %v1300 = vunpack.c.h.b16 %v868
        %v1301 = vunpack.c.l.b16 %v869
        %v1302 = vunpack.c.h.b16 %v869
        %v1303 = vunpack.c.l.b16 %v870
        %v1304 = vunpack.c.h.b16 %v870
        %v1305 = vunpack.c.l.b16 %v871
        %v1306 = vunpack.c.h.b16 %v871
        %v1307 = vunpack.c.l.b16 %v872
        %v1308 = vunpack.c.h.b16 %v872
        %v1309 = vunpack.c.l.b16 %v873
        %v1310 = vunpack.c.h.b16 %v873
        %v1311 = vunpack.c.l.b16 %v874
        %v1312 = vunpack.c.h.b16 %v874
        %v1313 = vunpack.c.l.b16 %v875
        %v1314 = vunpack.c.h.b16 %v875
        %v1315 = vunpack.c.l.b16 %v876
        %v1316 = vunpack.c.h.b16 %v876
        %v1317 = vunpack.c.l.b16 %v877
        %v1318 = vunpack.c.h.b16 %v877
        %v1319 = vunpack.c.l.b16 %v878
        %v1320 = vunpack.c.h.b16 %v878
        %v1321 = vunpack.c.l.b16 %v879
        %v1322 = vunpack.c.h.b16 %v879
        %v1323 = vunpack.c.l.b16 %v880
        %v1324 = vunpack.c.h.b16 %v880
        %v1325 = vunpack.c.l.b16 %v881
        %v1326 = vunpack.c.h.b16 %v881
        %v1327 = vunpack.c.l.b16 %v882
        %v1328 = vunpack.c.h.b16 %v882
        %v1329 = vunpack.c.l.b16 %v883
        %v1330 = vunpack.c.h.b16 %v883
        %v1331 = vunpack.c.l.b16 %v884
        %v1332 = vunpack.c.h.b16 %v884
        %v1333 = vunpack.c.l.b16 %v885
        %v1334 = vunpack.c.h.b16 %v885
        %v1335 = vunpack.c.l.b16 %v886
        %v1336 = vunpack.c.h.b16 %v886
        %v1337 = vunpack.c.l.b16 %v887
        %v1338 = vunpack.c.h.b16 %v887
        %v1339 = vunpack.c.l.b16 %v888
        %v1340 = vunpack.c.h.b16 %v888
        %v1341 = vunpack.c.l.b16 %v889
        %v1342 = vunpack.c.h.b16 %v889
        %v1343 = vunpack.c.l.b16 %v890
        %v1344 = vunpack.c.h.b16 %v890
        %v1345 = vunpack.c.l.b16 %v891
        %v1346 = vunpack.c.h.b16 %v891
        %v1347 = vunpack.c.l.b16 %v892
        %v1348 = vunpack.c.h.b16 %v892
        %v1349 = vunpack.c.l.b16 %v893
        %v1350 = vunpack.c.h.b16 %v893
        %v1351 = vunpack.c.l.b16 %v894
        %v1352 = vunpack.c.h.b16 %v894
        %v1353 = vunpack.c.l.b16 %v895
        %v1354 = vunpack.c.h.b16 %v895
        %v1355 = vunpack.c.l.b16 %v896
        %v1356 = vunpack.c.h.b16 %v896
        %v1357 = vunpack.c.l.b16 %v897
        %v1358 = vunpack.c.h.b16 %v897
        %v1359 = vunpack.c.l.b16 %v898
        %v1360 = vunpack.c.h.b16 %v898
        %v1361 = vunpack.c.l.b16 %v899
        %v1362 = vunpack.c.h.b16 %v899
        %v1363 = vunpack.c.l.b16 %v900
        %v1364 = vunpack.c.h.b16 %v900
        %v1365 = vunpack.c.l.b16 %v901
        %v1366 = vunpack.c.h.b16 %v901
        %v1367 = vunpack.c.l.b16 %v902
        %v1368 = vunpack.c.h.b16 %v902
        %v1369 = vunpack.c.l.b16 %v903
        %v1370 = vunpack.c.h.b16 %v903
        %v1371 = vunpack.c.l.b16 %v904
        %v1372 = vunpack.c.h.b16 %v904
        %v1373 = vunpack.c.l.b16 %v905
        %v1374 = vunpack.c.h.b16 %v905
        %v1375 = vunpack.c.l.b16 %v906
        %v1376 = vunpack.c.h.b16 %v906
        %v1377 = vunpack.c.l.b16 %v907
        %v1378 = vunpack.c.h.b16 %v907
        %v1379 = vunpack.c.l.b16 %v908
        %v1380 = vunpack.c.h.b16 %v908
        %v1381 = vunpack.c.l.b16 %v909
        %v1382 = vunpack.c.h.b16 %v909
        %v1383 = vunpack.c.l.b16 %v910
        %v1384 = vunpack.c.h.b16 %v910
        %v1385 = vunpack.c.l.b16 %v911
        %v1386 = vunpack.c.h.b16 %v911
        %v1387 = vunpack.c.l.b16 %v912
        %v1388 = vunpack.c.h.b16 %v912
        %v1389 = vpack.c.b16 %v1135, %v1133
        %v1390 = vpack.c.b16 %v1136, %v1134
        %v1391 = vpack.c.b16 %v1139, %v1137
        %v1392 = vpack.c.b16 %v1140, %v1138
        %v1393 = vpack.c.b16 %v1143, %v1141
        %v1394 = vpack.c.b16 %v1144, %v1142
        %v1395 = vpack.c.b16 %v1147, %v1145
        %v1396 = vpack.c.b16 %v1148, %v1146
        %v1397 = vpack.c.b16 %v1151, %v1149
        %v1398 = vpack.c.b16 %v1152, %v1150
        %v1399 = vpack.c.b16 %v1155, %v1153
        %v1400 = vpack.c.b16 %v1156, %v1154
        %v1401 = vpack.c.b16 %v1159, %v1157
        %v1402 = vpack.c.b16 %v1160, %v1158
        %v1403 = vpack.c.b16 %v1163, %v1161
        %v1404 = vpack.c.b16 %v1164, %v1162
        %v1405 = vpack.c.b16 %v1167, %v1165
        %v1406 = vpack.c.b16 %v1168, %v1166
        %v1407 = vpack.c.b16 %v1171, %v1169
        %v1408 = vpack.c.b16 %v1172, %v1170
        %v1409 = vpack.c.b16 %v1175, %v1173
        %v1410 = vpack.c.b16 %v1176, %v1174
        %v1411 = vpack.c.b16 %v1179, %v1177
        %v1412 = vpack.c.b16 %v1180, %v1178
        %v1413 = vpack.c.b16 %v1183, %v1181
        %v1414 = vpack.c.b16 %v1184, %v1182
        %v1415 = vpack.c.b16 %v1187, %v1185
        %v1416 = vpack.c.b16 %v1188, %v1186
        %v1417 = vpack.c.b16 %v1191, %v1189
        %v1418 = vpack.c.b16 %v1192, %v1190
        %v1419 = vpack.c.b16 %v1195, %v1193
        %v1420 = vpack.c.b16 %v1196, %v1194
        %v1421 = vpack.c.b16 %v1199, %v1197
        %v1422 = vpack.c.b16 %v1200, %v1198
        %v1423 = vpack.c.b16 %v1203, %v1201
        %v1424 = vpack.c.b16 %v1204, %v1202
        %v1425 = vpack.c.b16 %v1207, %v1205
        %v1426 = vpack.c.b16 %v1208, %v1206
        %v1427 = vpack.c.b16 %v1211, %v1209
        %v1428 = vpack.c.b16 %v1212, %v1210
        %v1429 = vpack.c.b16 %v1215, %v1213
        %v1430 = vpack.c.b16 %v1216, %v1214
        %v1431 = vpack.c.b16 %v1219, %v1217
        %v1432 = vpack.c.b16 %v1220, %v1218
        %v1433 = vpack.c.b16 %v1223, %v1221
        %v1434 = vpack.c.b16 %v1224, %v1222
        %v1435 = vpack.c.b16 %v1227, %v1225
        %v1436 = vpack.c.b16 %v1228, %v1226
        %v1437 = vpack.c.b16 %v1231, %v1229
        %v1438 = vpack.c.b16 %v1232, %v1230
        %v1439 = vpack.c.b16 %v1235, %v1233
        %v1440 = vpack.c.b16 %v1236, %v1234
        %v1441 = vpack.c.b16 %v1239, %v1237
        %v1442 = vpack.c.b16 %v1240, %v1238
        %v1443 = vpack.c.b16 %v1243, %v1241
        %v1444 = vpack.c.b16 %v1244, %v1242
        %v1445 = vpack.c.b16 %v1247, %v1245
        %v1446 = vpack.c.b16 %v1248, %v1246
        %v1447 = vpack.c.b16 %v1251, %v1249
        %v1448 = vpack.c.b16 %v1252, %v1250
        %v1449 = vpack.c.b16 %v1255, %v1253
        %v1450 = vpack.c.b16 %v1256, %v1254
        %v1451 = vpack.c.b16 %v1259, %v1257
        %v1452 = vpack.c.b16 %v1260, %v1258
        %v1453 = vpack.c.b16 %v1263, %v1261
        %v1454 = vpack.c.b16 %v1264, %v1262
        %v1455 = vpack.c.b16 %v1267, %v1265
        %v1456 = vpack.c.b16 %v1268, %v1266
        %v1457 = vpack.c.b16 %v1271, %v1269
        %v1458 = vpack.c.b16 %v1272, %v1270
        %v1459 = vpack.c.b16 %v1275, %v1273
        %v1460 = vpack.c.b16 %v1276, %v1274
        %v1461 = vpack.c.b16 %v1279, %v1277
        %v1462 = vpack.c.b16 %v1280, %v1278
        %v1463 = vpack.c.b16 %v1283, %v1281
        %v1464 = vpack.c.b16 %v1284, %v1282
        %v1465 = vpack.c.b16 %v1287, %v1285
        %v1466 = vpack.c.b16 %v1288, %v1286
        %v1467 = vpack.c.b16 %v1291, %v1289
        %v1468 = vpack.c.b16 %v1292, %v1290
        %v1469 = vpack.c.b16 %v1295, %v1293
        %v1470 = vpack.c.b16 %v1296, %v1294
        %v1471 = vpack.c.b16 %v1299, %v1297
        %v1472 = vpack.c.b16 %v1300, %v1298
        %v1473 = vpack.c.b16 %v1303, %v1301
        %v1474 = vpack.c.b16 %v1304, %v1302
        %v1475 = vpack.c.b16 %v1307, %v1305
        %v1476 = vpack.c.b16 %v1308, %v1306
        %v1477 = vpack.c.b16 %v1311, %v1309
        %v1478 = vpack.c.b16 %v1312, %v1310
        %v1479 = vpack.c.b16 %v1315, %v1313
        %v1480 = vpack.c.b16 %v1316, %v1314
        %v1481 = vpack.c.b16 %v1319, %v1317
        %v1482 = vpack.c.b16 %v1320, %v1318
        %v1483 = vpack.c.b16 %v1323, %v1321
        %v1484 = vpack.c.b16 %v1324, %v1322
        %v1485 = vpack.c.b16 %v1327, %v1325
        %v1486 = vpack.c.b16 %v1328, %v1326
        %v1487 = vpack.c.b16 %v1331, %v1329
        %v1488 = vpack.c.b16 %v1332, %v1330
        %v1489 = vpack.c.b16 %v1335, %v1333
        %v1490 = vpack.c.b16 %v1336, %v1334
        %v1491 = vpack.c.b16 %v1339, %v1337
        %v1492 = vpack.c.b16 %v1340, %v1338
        %v1493 = vpack.c.b16 %v1343, %v1341
        %v1494 = vpack.c.b16 %v1344, %v1342
        %v1495 = vpack.c.b16 %v1347, %v1345
        %v1496 = vpack.c.b16 %v1348, %v1346
        %v1497 = vpack.c.b16 %v1351, %v1349
        %v1498 = vpack.c.b16 %v1352, %v1350
        %v1499 = vpack.c.b16 %v1355, %v1353
        %v1500 = vpack.c.b16 %v1356, %v1354
        %v1501 = vpack.c.b16 %v1359, %v1357
        %v1502 = vpack.c.b16 %v1360, %v1358
        %v1503 = vpack.c.b16 %v1363, %v1361
        %v1504 = vpack.c.b16 %v1364, %v1362
        %v1505 = vpack.c.b16 %v1367, %v1365
        %v1506 = vpack.c.b16 %v1368, %v1366
        %v1507 = vpack.c.b16 %v1371, %v1369
        %v1508 = vpack.c.b16 %v1372, %v1370
        %v1509 = vpack.c.b16 %v1375, %v1373
        %v1510 = vpack.c.b16 %v1376, %v1374
        %v1511 = vpack.c.b16 %v1379, %v1377
        %v1512 = vpack.c.b16 %v1380, %v1378
        %v1513 = vpack.c.b16 %v1383, %v1381
        %v1514 = vpack.c.b16 %v1384, %v1382
        %v1515 = vpack.c.b16 %v1387, %v1385
        %v1516 = vpack.c.b16 %v1388, %v1386
        %1645 = vmatprep.subr.bf16.mxu0 %v1390
        %1646 = vmatpush1.bf16.msra.mxu0 %v1389
        %1647 = vmatprep.subr.bf16.mxu0 %v1392
        %1648 = vmatpush1.bf16.msra.mxu0 %v1391
        %1649 = vmatprep.subr.bf16.mxu0 %v1394
        %1650 = vmatpush1.bf16.msra.mxu0 %v1393
        %1651 = vmatprep.subr.bf16.mxu0 %v1396
        %1652 = vmatpush1.bf16.msra.mxu0 %v1395
        %1653 = vmatprep.subr.bf16.mxu0 %v1398
        %1654 = vmatpush1.bf16.msra.mxu0 %v1397
        %1655 = vmatprep.subr.bf16.mxu0 %v1400
        %1656 = vmatpush1.bf16.msra.mxu0 %v1399
        %1657 = vmatprep.subr.bf16.mxu0 %v1402
        %1658 = vmatpush1.bf16.msra.mxu0 %v1401
        %1659 = vmatprep.subr.bf16.mxu0 %v1404
        %1660 = vmatpush1.bf16.msra.mxu0 %v1403
        %1661 = vmatprep.subr.bf16.mxu0 %v1406
        %1662 = vmatpush1.bf16.msra.mxu0 %v1405
        %1663 = vmatprep.subr.bf16.mxu0 %v1408
        %1664 = vmatpush1.bf16.msra.mxu0 %v1407
        %1665 = vmatprep.subr.bf16.mxu0 %v1410
        %1666 = vmatpush1.bf16.msra.mxu0 %v1409
        %1667 = vmatprep.subr.bf16.mxu0 %v1412
        %1668 = vmatpush1.bf16.msra.mxu0 %v1411
        %1669 = vmatprep.subr.bf16.mxu0 %v1414
        %1670 = vmatpush1.bf16.msra.mxu0 %v1413
        %1671 = vmatprep.subr.bf16.mxu0 %v1416
        %1672 = vmatpush1.bf16.msra.mxu0 %v1415
        %1673 = vmatprep.subr.bf16.mxu0 %v1418
        %1674 = vmatpush1.bf16.msra.mxu0 %v1417
        %1675 = vmatprep.subr.bf16.mxu0 %v1420
        %1676 = vmatpush1.bf16.msra.mxu0 %v1419
        %1677 = vmatprep.mubr.bf16.mxu0 %v974
        %1678 = vmatmul.mubr.bf16.gmra.mrb[0].mxu0 %v973
        %v1679 = vpop.f32.mrb[0].mxu0
        %v1680 = vadd.f32 %v918, %v1679
        %v1681 = vpop.f32.mrb[0].mxu0
        %v1682 = vadd.f32 %v922, %v1681
        %v1683 = vpop.f32.mrb[0].mxu0
        %v1684 = vadd.f32 %v918, %v1683
        %v1685 = vpop.f32.mrb[0].mxu0
        %v1686 = vadd.f32 %v922, %v1685
        %1687 = vmatprep.mubr.bf16.mxu0 %v982
        %1688 = vmatmul.mubr.bf16.gmra.mrb[0].mxu0 %v981
        %v1689 = vpop.f32.mrb[0].mxu0
        %v1690 = vadd.f32 %v918, %v1689
        %v1691 = vpop.f32.mrb[0].mxu0
        %v1692 = vadd.f32 %v922, %v1691
        %v1693 = vpop.f32.mrb[0].mxu0
        %v1694 = vadd.f32 %v918, %v1693
        %v1695 = vpop.f32.mrb[0].mxu0
        %v1696 = vadd.f32 %v922, %v1695
        %1697 = vdwg.mxu0
        %1698 = vmatprep.subr.bf16.mxu0 %v1422
        %1699 = vmatpush1.bf16.msra.mxu0 %v1421
        %1700 = vmatprep.subr.bf16.mxu0 %v1424
        %1701 = vmatpush1.bf16.msra.mxu0 %v1423
        %1702 = vmatprep.subr.bf16.mxu0 %v1426
        %1703 = vmatpush1.bf16.msra.mxu0 %v1425
        %1704 = vmatprep.subr.bf16.mxu0 %v1428
        %1705 = vmatpush1.bf16.msra.mxu0 %v1427
        %1706 = vmatprep.subr.bf16.mxu0 %v1430
        %1707 = vmatpush1.bf16.msra.mxu0 %v1429
        %1708 = vmatprep.subr.bf16.mxu0 %v1432
        %1709 = vmatpush1.bf16.msra.mxu0 %v1431
        %1710 = vmatprep.subr.bf16.mxu0 %v1434
        %1711 = vmatpush1.bf16.msra.mxu0 %v1433
        %1712 = vmatprep.subr.bf16.mxu0 %v1436
        %1713 = vmatpush1.bf16.msra.mxu0 %v1435
        %1714 = vmatprep.subr.bf16.mxu0 %v1438
        %1715 = vmatpush1.bf16.msra.mxu0 %v1437
        %1716 = vmatprep.subr.bf16.mxu0 %v1440
        %1717 = vmatpush1.bf16.msra.mxu0 %v1439
        %1718 = vmatprep.subr.bf16.mxu0 %v1442
        %1719 = vmatpush1.bf16.msra.mxu0 %v1441
        %1720 = vmatprep.subr.bf16.mxu0 %v1444
        %1721 = vmatpush1.bf16.msra.mxu0 %v1443
        %1722 = vmatprep.subr.bf16.mxu0 %v1446
        %1723 = vmatpush1.bf16.msra.mxu0 %v1445
        %1724 = vmatprep.subr.bf16.mxu0 %v1448
        %1725 = vmatpush1.bf16.msra.mxu0 %v1447
        %1726 = vmatprep.subr.bf16.mxu0 %v1450
        %1727 = vmatpush1.bf16.msra.mxu0 %v1449
        %1728 = vmatprep.subr.bf16.mxu0 %v1452
        %1729 = vmatpush1.bf16.msra.mxu0 %v1451
        %1730 = vmatprep.mubr.bf16.mxu0 %v976
        %1731 = vmatmul.mubr.bf16.gmra.mrb[0].mxu0 %v975
        %v1732 = vpop.f32.mrb[0].mxu0
        %v1733 = vadd.f32 %v1680, %v1732
        %v1734 = vpop.f32.mrb[0].mxu0
        %v1735 = vadd.f32 %v1682, %v1734
        %v1736 = vpop.f32.mrb[0].mxu0
        %v1737 = vadd.f32 %v1684, %v1736
        %v1738 = vpop.f32.mrb[0].mxu0
        %v1739 = vadd.f32 %v1686, %v1738
        %1740 = vmatprep.mubr.bf16.mxu0 %v984
        %1741 = vmatmul.mubr.bf16.gmra.mrb[0].mxu0 %v983
        %v1742 = vpop.f32.mrb[0].mxu0
        %v1743 = vadd.f32 %v1690, %v1742
        %v1744 = vpop.f32.mrb[0].mxu0
        %v1745 = vadd.f32 %v1692, %v1744
        %v1746 = vpop.f32.mrb[0].mxu0
        %v1747 = vadd.f32 %v1694, %v1746
        %v1748 = vpop.f32.mrb[0].mxu0
        %v1749 = vadd.f32 %v1696, %v1748
        %1750 = vdwg.mxu0
        %1751 = vmatprep.subr.bf16.mxu0 %v1454
        %1752 = vmatpush1.bf16.msra.mxu0 %v1453
        %1753 = vmatprep.subr.bf16.mxu0 %v1456
        %1754 = vmatpush1.bf16.msra.mxu0 %v1455
        %1755 = vmatprep.subr.bf16.mxu0 %v1458
        %1756 = vmatpush1.bf16.msra.mxu0 %v1457
        %1757 = vmatprep.subr.bf16.mxu0 %v1460
        %1758 = vmatpush1.bf16.msra.mxu0 %v1459
        %1759 = vmatprep.subr.bf16.mxu0 %v1462
        %1760 = vmatpush1.bf16.msra.mxu0 %v1461
        %1761 = vmatprep.subr.bf16.mxu0 %v1464
        %1762 = vmatpush1.bf16.msra.mxu0 %v1463
        %1763 = vmatprep.subr.bf16.mxu0 %v1466
        %1764 = vmatpush1.bf16.msra.mxu0 %v1465
        %1765 = vmatprep.subr.bf16.mxu0 %v1468
        %1766 = vmatpush1.bf16.msra.mxu0 %v1467
        %1767 = vmatprep.subr.bf16.mxu0 %v1470
        %1768 = vmatpush1.bf16.msra.mxu0 %v1469
        %1769 = vmatprep.subr.bf16.mxu0 %v1472
        %1770 = vmatpush1.bf16.msra.mxu0 %v1471
        %1771 = vmatprep.subr.bf16.mxu0 %v1474
        %1772 = vmatpush1.bf16.msra.mxu0 %v1473
        %1773 = vmatprep.subr.bf16.mxu0 %v1476
        %1774 = vmatpush1.bf16.msra.mxu0 %v1475
        %1775 = vmatprep.subr.bf16.mxu0 %v1478
        %1776 = vmatpush1.bf16.msra.mxu0 %v1477
        %1777 = vmatprep.subr.bf16.mxu0 %v1480
        %1778 = vmatpush1.bf16.msra.mxu0 %v1479
        %1779 = vmatprep.subr.bf16.mxu0 %v1482
        %1780 = vmatpush1.bf16.msra.mxu0 %v1481
        %1781 = vmatprep.subr.bf16.mxu0 %v1484
        %1782 = vmatpush1.bf16.msra.mxu0 %v1483
        %1783 = vmatprep.mubr.bf16.mxu0 %v978
        %1784 = vmatmul.mubr.bf16.gmra.mrb[0].mxu0 %v977
        %v1785 = vpop.f32.mrb[0].mxu0
        %v1786 = vadd.f32 %v1733, %v1785
        %v1787 = vpop.f32.mrb[0].mxu0
        %v1788 = vadd.f32 %v1735, %v1787
        %v1789 = vpop.f32.mrb[0].mxu0
        %v1790 = vadd.f32 %v1737, %v1789
        %v1791 = vpop.f32.mrb[0].mxu0
        %v1792 = vadd.f32 %v1739, %v1791
        %1793 = vmatprep.mubr.bf16.mxu0 %v986
        %1794 = vmatmul.mubr.bf16.gmra.mrb[0].mxu0 %v985
        %v1795 = vpop.f32.mrb[0].mxu0
        %v1796 = vadd.f32 %v1743, %v1795
        %v1797 = vpop.f32.mrb[0].mxu0
        %v1798 = vadd.f32 %v1745, %v1797
        %v1799 = vpop.f32.mrb[0].mxu0
        %v1800 = vadd.f32 %v1747, %v1799
        %v1801 = vpop.f32.mrb[0].mxu0
        %v1802 = vadd.f32 %v1749, %v1801
        %1803 = vdwg.mxu0
        %1804 = vmatprep.subr.bf16.mxu0 %v1486
        %1805 = vmatpush1.bf16.msra.mxu0 %v1485
        %1806 = vmatprep.subr.bf16.mxu0 %v1488
        %1807 = vmatpush1.bf16.msra.mxu0 %v1487
        %1808 = vmatprep.subr.bf16.mxu0 %v1490
        %1809 = vmatpush1.bf16.msra.mxu0 %v1489
        %1810 = vmatprep.subr.bf16.mxu0 %v1492
        %1811 = vmatpush1.bf16.msra.mxu0 %v1491
        %1812 = vmatprep.subr.bf16.mxu0 %v1494
        %1813 = vmatpush1.bf16.msra.mxu0 %v1493
        %1814 = vmatprep.subr.bf16.mxu0 %v1496
        %1815 = vmatpush1.bf16.msra.mxu0 %v1495
        %1816 = vmatprep.subr.bf16.mxu0 %v1498
        %1817 = vmatpush1.bf16.msra.mxu0 %v1497
        %1818 = vmatprep.subr.bf16.mxu0 %v1500
        %1819 = vmatpush1.bf16.msra.mxu0 %v1499
        %1820 = vmatprep.subr.bf16.mxu0 %v1502
        %1821 = vmatpush1.bf16.msra.mxu0 %v1501
        %1822 = vmatprep.subr.bf16.mxu0 %v1504
        %1823 = vmatpush1.bf16.msra.mxu0 %v1503
        %1824 = vmatprep.subr.bf16.mxu0 %v1506
        %1825 = vmatpush1.bf16.msra.mxu0 %v1505
        %1826 = vmatprep.subr.bf16.mxu0 %v1508
        %1827 = vmatpush1.bf16.msra.mxu0 %v1507
        %1828 = vmatprep.subr.bf16.mxu0 %v1510
        %1829 = vmatpush1.bf16.msra.mxu0 %v1509
        %1830 = vmatprep.subr.bf16.mxu0 %v1512
        %1831 = vmatpush1.bf16.msra.mxu0 %v1511
        %1832 = vmatprep.subr.bf16.mxu0 %v1514
        %1833 = vmatpush1.bf16.msra.mxu0 %v1513
        %1834 = vmatprep.subr.bf16.mxu0 %v1516
        %1835 = vmatpush1.bf16.msra.mxu0 %v1515
        %1836 = vmatprep.mubr.bf16.mxu0 %v980
        %1837 = vmatmul.mubr.bf16.gmra.mrb[0].mxu0 %v979
        %v1838 = vpop.f32.mrb[0].mxu0
        %v1839 = vadd.f32 %v1786, %v1838
        %v1840 = vpop.f32.mrb[0].mxu0
        %v1841 = vadd.f32 %v1788, %v1840
        %v1842 = vpop.f32.mrb[0].mxu0
        %v1843 = vadd.f32 %v1790, %v1842
        %v1844 = vpop.f32.mrb[0].mxu0
        %v1845 = vadd.f32 %v1792, %v1844
        %1846 = vmatprep.mubr.bf16.mxu0 %v988
        %1847 = vmatmul.mubr.bf16.gmra.mrb[0].mxu0 %v987
        %v1848 = vpop.f32.mrb[0].mxu0
        %v1849 = vadd.f32 %v1796, %v1848
        %v1850 = vpop.f32.mrb[0].mxu0
        %v1851 = vadd.f32 %v1798, %v1850
        %v1852 = vpop.f32.mrb[0].mxu0
        %v1853 = vadd.f32 %v1800, %v1852
        %v1854 = vpop.f32.mrb[0].mxu0
        %v1855 = vadd.f32 %v1802, %v1854
        %1856 = vdwg.mxu0
        %v1857 = vmax.f32 %v1839, 0.0
        %v1858 = vmax.f32 %v1841, 0.0
        %v1859 = vmax.f32 %v1843, 0.0
        %v1860 = vmax.f32 %v1845, 0.0
        %v1861 = vmax.f32 %v1849, 0.0
        %v1862 = vmax.f32 %v1851, 0.0
        %v1863 = vmax.f32 %v1853, 0.0
        %v1864 = vmax.f32 %v1855, 0.0
        %v1865 = vpack.c.bf16 %v1859, %v1857
        %v1866 = vpack.c.bf16 %v1860, %v1858
        %v1867 = vpack.c.bf16 %v1863, %v1861
        %v1868 = vpack.c.bf16 %v1864, %v1862
        %v1873 = vunpack.c.l.b16 %v1865
        %v1874 = vunpack.c.l.b16 %v1866
        %v1875 = vunpack.c.h.b16 %v1865
        %v1876 = vunpack.c.h.b16 %v1866
        %v1877 = vunpack.c.l.b16 %v1867
        %v1878 = vunpack.c.l.b16 %v1868
        %v1879 = vunpack.c.h.b16 %v1867
        %v1880 = vunpack.c.h.b16 %v1868
        %v1881 = vpack.c.b16 %v1874, %v1873
        %v1882 = vpack.c.b16 %v1876, %v1875
        %v1883 = vpack.c.b16 %v1878, %v1877
        %v1884 = vpack.c.b16 %v1880, %v1879
        %1889 = vst [vmem:[%s753] sm:$0xff] %v1881
        %1890 = vst [vmem:[%s753 + $0x8] sm:$0xff] %v1882
        %1891 = vst [vmem:[%s753 + $0x10] sm:$0xff] %v1883
        %1892 = vst [vmem:[%s753 + $0x18] sm:$0xff] %v1884
        %s1893 = sand.u32 %s114, 1
        %s1894 = sand.u32 %s114, 1
        %s1895 = smul.addr %s1894, 32
        %s1896 = scalar_lea.vmem [#allocation3], %s1895
        // Predicated region
        $region71: #{conv_autoencoder_forward.22} parent=65 // pred_check
          %p1897 = pneg %p124
        $region72: #{conv_autoencoder_forward.22} parent=65 // pred_check_branch
          %1899 = sbr.rel (%p1897) target = $region74
        $region73: #{conv_autoencoder_forward.22} parent=65 // pred_region
          %s1900 = smul.u32 4, %s18
          %s1901 = smul.u32 2, %s19
          %s1902 = smul.addr %s1900, 4
          %s1903 = sadd.s32 %s1901, %s1902
          %s1904 = smul.addr %s1903, 4
          %s1905 = scalar_lea.vmem %s3, %s1904
          // Predicated region
          $region75: #{conv_autoencoder_forward.22} parent=73 // pred_check
            _
          $region76: #{conv_autoencoder_forward.22} parent=73 // pred_check_branch
            %1907 = sbr.rel (0) target = $region78
          $region77: #{conv_autoencoder_forward.22} parent=73 // pred_region
            // Predicated region
            $region79: #{conv_autoencoder_forward.22} parent=77 // pred_check
              _
            $region80: #{conv_autoencoder_forward.22} parent=77 // pred_check_branch
              %1909 = sbr.rel (0) target = $region82
            $region81: #{conv_autoencoder_forward.22} parent=77 // pred_region
              // Predicated region
              $region94: #{conv_autoencoder_forward.22} parent=81 // pred_check
                _
              $region95: #{conv_autoencoder_forward.22} parent=81 // pred_check_branch
                %1930 = sbr.rel (0) target = $region97
              $region96: #{conv_autoencoder_forward.22} parent=81 // pred_region
                loop: start=0, step=1, limit=1
                $region98: #{conv_autoencoder_forward.22} parent=96 // loop_pre_header
                  _
                $region99: #{conv_autoencoder_forward.22} parent=96 // loop_header
                  %s1932 = sphi 0, %s1936
                  %p1933 = scmp.ge.s32.totalorder %s1932, 1
                  %s1937 = sphi %s1896, %s1896
                  %s1938 = sphi %s1905, %s1905
                $region100: #{conv_autoencoder_forward.22} parent=96 // loop_header_branch
                  %1935 = sbr.rel (%p1933) target = $region104
                $region101: #{conv_autoencoder_forward.22} parent=96 // loop_body
                  %v1939 = vld [vmem:[%s1937] sm:$0xff]
                  %1940 = vst [vmem:[%s1938] sm:$0xff] %v1939
                  %v1941 = vld [vmem:[%s1937 + $0x8] sm:$0xff]
                  %1942 = vst [vmem:[%s1938 + $0x10] sm:$0xff] %v1941
                  %v1943 = vld [vmem:[%s1937 + $0x10] sm:$0xff]
                  %1944 = vst [vmem:[%s1938 + $0x20] sm:$0xff] %v1943
                  %v1945 = vld [vmem:[%s1937 + $0x18] sm:$0xff]
                  %1946 = vst [vmem:[%s1938 + $0x30] sm:$0xff] %v1945
                $region102: #{conv_autoencoder_forward.22} parent=96 // loop_footer
                  %s1936 = sadd.s32 1, %s1932
                $region103: #{conv_autoencoder_forward.22} parent=96 // loop_footer_branch
                  %1931 = sbr.rel target = $region99
                $region104: #{conv_autoencoder_forward.22} parent=96 // loop_exit
                  _
              $region97: #{conv_autoencoder_forward.22} parent=81 // pred_fallthru
                _
              // Predicated region
              $region105: #{conv_autoencoder_forward.22} parent=81 // pred_check
                _
              $region106: #{conv_autoencoder_forward.22} parent=81 // pred_check_branch
                %1948 = sbr.rel target = $region108
              $region107: #{conv_autoencoder_forward.22} parent=81 // pred_region
                _
              $region108: #{conv_autoencoder_forward.22} parent=81 // pred_fallthru
                _
            $region82: #{conv_autoencoder_forward.22} parent=77 // pred_fallthru
              _
            // Predicated region
            $region83: #{conv_autoencoder_forward.22} parent=77 // pred_check
              _
            $region84: #{conv_autoencoder_forward.22} parent=77 // pred_check_branch
              %1911 = sbr.rel target = $region86
            $region85: #{conv_autoencoder_forward.22} parent=77 // pred_region
              loop: start=0, step=1, limit=1
              $region87: #{conv_autoencoder_forward.22} parent=85 // loop_pre_header
                _
              $region88: #{conv_autoencoder_forward.22} parent=85 // loop_header
                %s1914 = sphi 0, %s1918
                %p1915 = scmp.ge.s32.totalorder %s1914, 1
                %s1919 = sphi %s1896, %s1896
                %s1920 = sphi %s1905, %s1905
              $region89: #{conv_autoencoder_forward.22} parent=85 // loop_header_branch
                %1917 = sbr.rel (%p1915) target = $region93
              $region90: #{conv_autoencoder_forward.22} parent=85 // loop_body
                %v1921 = vld [vmem:[%s1919] sm:$0xff]
                %1922 = vst [vmem:[%s1920] sm:$0xff] %v1921
                %v1923 = vld [vmem:[%s1919 + $0x8] sm:$0xff]
                %1924 = vst [vmem:[%s1920 + $0x10] sm:$0xff] %v1923
                %v1925 = vld [vmem:[%s1919 + $0x10] sm:$0xff]
                %1926 = vst [vmem:[%s1920 + $0x20] sm:$0xff] %v1925
                %v1927 = vld [vmem:[%s1919 + $0x18] sm:$0xff]
                %1928 = vst [vmem:[%s1920 + $0x30] sm:$0xff] %v1927
              $region91: #{conv_autoencoder_forward.22} parent=85 // loop_footer
                %s1918 = sadd.s32 1, %s1914
              $region92: #{conv_autoencoder_forward.22} parent=85 // loop_footer_branch
                %1913 = sbr.rel target = $region88
              $region93: #{conv_autoencoder_forward.22} parent=85 // loop_exit
                _
            $region86: #{conv_autoencoder_forward.22} parent=77 // pred_fallthru
              _
          $region78: #{conv_autoencoder_forward.22} parent=73 // pred_fallthru
            _
          %1949 = vnop
        $region74: #{conv_autoencoder_forward.22} parent=65 // pred_fallthru
          _
      $region66: #{conv_autoencoder_forward.22} parent=5 // pred_fallthru
        _
      %p1950 = scmp.le.s32.totalorder 2, %s9
      // Predicated region
      $region109: #{conv_autoencoder_forward.22} parent=5 // pred_check
        %p1951 = pneg %p1950
      $region110: #{conv_autoencoder_forward.22} parent=5 // pred_check_branch
        %1953 = sbr.rel (%p1951) target = $region112
      $region111: #{conv_autoencoder_forward.22} parent=5 // pred_region
        %s1954 = ssub.s32 %s9, 2
        // Predicated region
        $region113: #{conv_autoencoder_forward.22} parent=111 // pred_check
          %p1955 = pneg %p130
        $region114: #{conv_autoencoder_forward.22} parent=111 // pred_check_branch
          %1957 = sbr.rel (%p1955) target = $region116
        $region115: #{conv_autoencoder_forward.22} parent=111 // pred_region
          %s1958 = sand.u32 %s115, 1
          %s1959 = sand.u32 %s115, 1
          %s1960 = smul.addr %s1959, 32
          %s1961 = scalar_lea.vmem [#allocation3], %s1960
        $region116: #{conv_autoencoder_forward.22} parent=111 // pred_fallthru
          _
      $region112: #{conv_autoencoder_forward.22} parent=5 // pred_fallthru
        _
    $region6: #{conv_autoencoder_forward.22} parent=1 // loop_footer
      %s13 = sadd.s32 1, %s9
    $region7: #{conv_autoencoder_forward.22} parent=1 // loop_footer_branch
      %8 = sbr.rel target = $region3
    $region8: #{conv_autoencoder_forward.22} parent=1 // loop_exit
      _

// kernel: tile.28
$region0: #{tile.28}
  #allocation0 [shape = 's32[1]{0}', space=sflag, size = 0x4, scoped, tag = 'scoped memory for tile.28']
  %s0 = inlined_call_operand.vmem [shape: f32[64], index: 0, kind: input, shape index: {}]
  %s1 = inlined_call_operand.vmem [shape: f32[4,64], index: 1, kind: output, shape index: {}]
  // Predicated region
  $region2: #{tile.28} parent=0 // pred_check
    _
  $region3: #{tile.28} parent=0 // pred_check_branch
    %3 = sbr.rel (0) target = $region5
  $region4: #{tile.28} parent=0 // pred_region
    _
  $region5: #{tile.28} parent=0 // pred_fallthru
    _
  %v4 = vld [vmem:[%s0] ss:$0 sm:$0xff]
  %5 = vst [vmem:[%s1] sm:$0xf] %v4

// kernel: tile.29
$region0: #{tile.29}
  %s0 = inlined_call_operand.vmem [shape: f32[4,64], index: 0, kind: input, shape index: {}]
  %s1 = inlined_call_operand.vmem [shape: f32[1,256], index: 1, kind: output, shape index: {}]
  $region1: #{tile.29} parent=0
    #allocation0 [shape = 'u8[8192]{0}', space=vmem, size = 0x2000, scoped, tag = 'scoped mem for output reshape']
    #allocation1 [shape = 'u8[4096]{0}', space=vmem, size = 0x1000, scoped, tag = 'scoped mem for input reshape']
    %s3 = sshllo.u32 0, 4
    %v4 = vld [vmem:[%s0] sm:%s3]
    %5 = vst [vmem:[#allocation1] sm:%s3] %v4
    %s6 = smov 3
    %v7 = vld [vmem:[#allocation1] ss:$2 sm:%s6]
    %vm8 = vcmask 523264
    %9 = vst.msk [vmem:[#allocation0] ss:$8 sm:$0x3] %vm8, %v7
    %s10 = scalar_lea.vmem [#allocation1], 1
    %s11 = smov 3
    %v12 = vld [vmem:[%s10] ss:$2 sm:%s11]
    %13 = vrot.lane.b32.xlu0 %v12, 64
    %v14 = vpop.permute.xlu0 %13
    %vm15 = vcmask 1048064
    %16 = vst.msk [vmem:[#allocation0] ss:$8 sm:$0x3] %vm15, %v14
    %s18 = sshllo.u32 0, 1
    %v20 = vld [vmem:[#allocation0] sm:%s18]
    %s21 = sshllo.u32 0, 1
    %22 = vst [vmem:[%s1] sm:%s21] %v20
    %s23 = scalar_lea.vmem [#allocation0], 8
    %v24 = vld [vmem:[%s23] sm:%s18]
    %s25 = sshllo.u32 0, 1
    %s26 = scalar_lea.vmem %s1, 1
    %27 = vst [vmem:[%s26] sm:%s25] %v24

// kernel: conv_autoencoder_forward.23
$region0: #{conv_autoencoder_forward.23}
  #allocation0 [shape = 'u32[]', space=smem, size = 0x4, offset = 0x4, fixed_abs, tag = 'smem constant byte address 0x4 - core index']
  #allocation1 [shape = 'u32[144,128]{1,0:T(1,128)}', space=vmem, size = 0x12000, scoped, tag = 'internal scratch']
  %s0 = inlined_call_operand.vmem [shape: bf16[64,512], index: 0, kind: input, shape index: {}]
  %s1 = inlined_call_operand.vmem [shape: bf16[512,256], index: 1, kind: input, shape index: {}]
  %s2 = inlined_call_operand.vmem [shape: f32[1,256], index: 2, kind: input, shape index: {}]
  %s3 = inlined_call_operand.vmem [shape: bf16[64,256], index: 3, kind: output, shape index: {}]
  %s4 = sld [smem:[#allocation0]]
  $region45: #{conv_autoencoder_forward.23} parent=0
    _
  %s6 = ssub.s32 1, %s4
  %s7 = scalar_select 0, %s6, %s4
  loop: start=0, step=1, limit=4
  $region2: #{conv_autoencoder_forward.23} parent=0 // loop_pre_header
    _
  $region3: #{conv_autoencoder_forward.23} parent=0 // loop_header
    %s9 = sphi 0, %s13
    %p10 = scmp.ge.s32.totalorder %s9, 4
    %s16 = sphi 0, %s28
    %s17 = sphi 0, %s24
    %s18 = sphi 0, %s16
    %s19 = sphi 0, %s17
    %s20 = sphi 0, %s18
    %s21 = sphi 0, %s19
    %s31 = sphi 0, %s33
    %s34 = sphi 0, %s31
    %s35 = sphi 0, %s34
    %s51 = sphi 0, %s35
    %s57 = sphi 0, %s59
    %s60 = sphi 0, %s57
    %s61 = sphi 0, %s60
    %s77 = sphi 0, %s61
    %s83 = sphi 0, %s85
    %s86 = sphi 0, %s83
    %s87 = sphi 0, %s86
    %s103 = sphi 0, %s87
    %s111 = sphi 0, %s113
    %s114 = sphi 0, %s111
    %s115 = sphi 0, %s114
    %s131 = sphi 0, %s115
  $region4: #{conv_autoencoder_forward.23} parent=0 // loop_header_branch
    %12 = sbr.rel (%p10) target = $region8
  $region5: #{conv_autoencoder_forward.23} parent=0 // loop_body
    %s14 = ssub.s32 %s9, 1
    %s15 = ssub.s32 %s9, 2
    %s22 = sadd.s32 1, %s17
    %p23 = scmp.ge.s32.totalorder %s22, 1
    %s24 = scalar_select %p23, 0, %s22
    %s25 = sadd.s32 1, %s16
    %s26 = scalar_select %p23, %s25, %s16
    %p27 = scmp.ge.s32.totalorder %s26, 2
    %s28 = scalar_select %p27, 0, %s26
    %s29 = ssub.s32 %s16, %s28
    %p30 = scmp.eq.s32.totalorder %s29, 0
    %s32 = sadd.s32 %s31, 1
    %s33 = scalar_select %p30, %s31, %s32
    %p36 = pneg %p30
    %p37 = scmp.eq.s32.totalorder %s9, 1
    %p38 = por %p36, %p37
    %p39 = scmp.ne.s32.totalorder %s31, %s34
    %p40 = scmp.eq.s32.totalorder %s9, 0
    %p41 = por %p39, %p40
    %p42 = scmp.ne.s32.totalorder %s31, %s34
    %p43 = scmp.eq.s32.totalorder %s14, 1
    %p44 = por %p42, %p43
    %p45 = scmp.ne.s32.totalorder %s34, %s35
    %p46 = scmp.eq.s32.totalorder %s14, 0
    %p47 = por %p45, %p46
    %p48 = scmp.ne.s32.totalorder %s34, %s35
    %p49 = scmp.eq.s32.totalorder %s15, 1
    %p50 = por %p48, %p49
    %p52 = scmp.ne.s32.totalorder %s35, %s51
    %p53 = scmp.eq.s32.totalorder %s15, 0
    %p54 = por %p52, %p53
    %s55 = ssub.s32 %s17, %s24
    %p56 = scmp.eq.s32.totalorder %s55, 0
    %s58 = sadd.s32 %s57, 1
    %s59 = scalar_select %p56, %s57, %s58
    %p62 = pneg %p56
    %p63 = scmp.eq.s32.totalorder %s9, 1
    %p64 = por %p62, %p63
    %p65 = scmp.ne.s32.totalorder %s57, %s60
    %p66 = scmp.eq.s32.totalorder %s9, 0
    %p67 = por %p65, %p66
    %p68 = scmp.ne.s32.totalorder %s57, %s60
    %p69 = scmp.eq.s32.totalorder %s14, 1
    %p70 = por %p68, %p69
    %p71 = scmp.ne.s32.totalorder %s60, %s61
    %p72 = scmp.eq.s32.totalorder %s14, 0
    %p73 = por %p71, %p72
    %p74 = scmp.ne.s32.totalorder %s60, %s61
    %p75 = scmp.eq.s32.totalorder %s15, 1
    %p76 = por %p74, %p75
    %p78 = scmp.ne.s32.totalorder %s61, %s77
    %p79 = scmp.eq.s32.totalorder %s15, 0
    %p80 = por %p78, %p79
    %s81 = ssub.s32 %s17, %s24
    %p82 = scmp.eq.s32.totalorder %s81, 0
    %s84 = sadd.s32 %s83, 1
    %s85 = scalar_select %p82, %s83, %s84
    %p88 = pneg %p82
    %p89 = scmp.eq.s32.totalorder %s9, 1
    %p90 = por %p88, %p89
    %p91 = scmp.ne.s32.totalorder %s83, %s86
    %p92 = scmp.eq.s32.totalorder %s9, 0
    %p93 = por %p91, %p92
    %p94 = scmp.ne.s32.totalorder %s83, %s86
    %p95 = scmp.eq.s32.totalorder %s14, 1
    %p96 = por %p94, %p95
    %p97 = scmp.ne.s32.totalorder %s86, %s87
    %p98 = scmp.eq.s32.totalorder %s14, 0
    %p99 = por %p97, %p98
    %p100 = scmp.ne.s32.totalorder %s86, %s87
    %p101 = scmp.eq.s32.totalorder %s15, 1
    %p102 = por %p100, %p101
    %p104 = scmp.ne.s32.totalorder %s87, %s103
    %p105 = scmp.eq.s32.totalorder %s15, 0
    %p106 = por %p104, %p105
    %s107 = ssub.s32 %s16, %s28
    %s108 = ssub.s32 %s17, %s24
    %s109 = sor.u32 %s107, %s108
    %p110 = scmp.eq.s32.totalorder %s109, 0
    %s112 = sadd.s32 %s111, 1
    %s113 = scalar_select %p110, %s111, %s112
    %p116 = pneg %p110
    %p117 = scmp.eq.s32.totalorder %s9, 1
    %p118 = por %p116, %p117
    %p119 = scmp.ne.s32.totalorder %s111, %s114
    %p120 = scmp.eq.s32.totalorder %s9, 0
    %p121 = por %p119, %p120
    %p122 = scmp.ne.s32.totalorder %s111, %s114
    %p123 = scmp.eq.s32.totalorder %s14, 1
    %p124 = por %p122, %p123
    %p125 = scmp.ne.s32.totalorder %s114, %s115
    %p126 = scmp.eq.s32.totalorder %s14, 0
    %p127 = por %p125, %p126
    %p128 = scmp.ne.s32.totalorder %s114, %s115
    %p129 = scmp.eq.s32.totalorder %s15, 1
    %p130 = por %p128, %p129
    %p132 = scmp.ne.s32.totalorder %s115, %s131
    %p133 = scmp.eq.s32.totalorder %s15, 0
    %p134 = por %p132, %p133
    %p135 = scmp.le.s32.totalorder 1, %s9
    %p136 = scmp.lt.s32.totalorder %s9, 3
    %p137 = pnand %p135, %p136
    %p138 = pneg %p137
    // Predicated region
    $region9: #{conv_autoencoder_forward.23} parent=5 // pred_check
      _
    $region10: #{conv_autoencoder_forward.23} parent=5 // pred_check_branch
      %140 = sbr.rel (%p137) target = $region12
    $region11: #{conv_autoencoder_forward.23} parent=5 // pred_region
      %s141 = ssub.s32 %s9, 1
      // Predicated region
      $region13: #{conv_autoencoder_forward.23} parent=11 // pred_check
        %p142 = pneg %p73
      $region14: #{conv_autoencoder_forward.23} parent=11 // pred_check_branch
        %144 = sbr.rel (%p142) target = $region16
      $region15: #{conv_autoencoder_forward.23} parent=11 // pred_region
        %s145 = smul.u32 2, %s19
        %p146 = scmp.lt.s32.totalorder %s145, 1
        %s147 = scalar_select %p146, %s145, 1
        %s148 = smul.addr %s147, 4
        %s149 = scalar_lea.vmem %s1, %s148
        %s150 = smul.u32 2, %s19
      $region16: #{conv_autoencoder_forward.23} parent=11 // pred_fallthru
        _
      // Predicated region
      $region17: #{conv_autoencoder_forward.23} parent=11 // pred_check
        %p151 = pneg %p99
      $region18: #{conv_autoencoder_forward.23} parent=11 // pred_check_branch
        %153 = sbr.rel (%p151) target = $region20
      $region19: #{conv_autoencoder_forward.23} parent=11 // pred_region
        %s154 = smul.u32 2, %s19
        %p155 = scmp.lt.s32.totalorder %s154, 1
        %s156 = scalar_select %p155, %s154, 1
        %s157 = scalar_lea.vmem %s2, %s156
        %s158 = smul.u32 2, %s19
      $region20: #{conv_autoencoder_forward.23} parent=11 // pred_fallthru
        _
    $region12: #{conv_autoencoder_forward.23} parent=5 // pred_fallthru
      _
    %p159 = scmp.lt.s32.totalorder %s9, 2
    // Predicated region
    $region21: #{conv_autoencoder_forward.23} parent=5 // pred_check
      %p160 = pneg %p159
    $region22: #{conv_autoencoder_forward.23} parent=5 // pred_check_branch
      %162 = sbr.rel (%p160) target = $region24
    $region23: #{conv_autoencoder_forward.23} parent=5 // pred_region
      // Predicated region
      $region25: #{conv_autoencoder_forward.23} parent=23 // pred_check
        %p163 = pneg %p41
      $region26: #{conv_autoencoder_forward.23} parent=23 // pred_check_branch
        %165 = sbr.rel (%p163) target = $region28
      $region27: #{conv_autoencoder_forward.23} parent=23 // pred_region
        %s166 = smul.u32 4, %s16
        %p167 = scmp.lt.s32.totalorder %s166, 7
        %s168 = scalar_select %p167, %s166, 7
        %s169 = smul.addr %s168, 4
        %s170 = smul.addr %s169, 4
        %s171 = scalar_lea.vmem %s0, %s170
        %s172 = smul.u32 4, %s16
      $region28: #{conv_autoencoder_forward.23} parent=23 // pred_fallthru
        _
    $region24: #{conv_autoencoder_forward.23} parent=5 // pred_fallthru
      _
    %p173 = scmp.le.s32.totalorder 1, %s9
    %p174 = scmp.lt.s32.totalorder %s9, 3
    %p175 = pnand %p173, %p174
    %p176 = pneg %p175
    // Predicated region
    $region29: #{conv_autoencoder_forward.23} parent=5 // pred_check
      _
    $region30: #{conv_autoencoder_forward.23} parent=5 // pred_check_branch
      %178 = sbr.rel (%p175) target = $region32
    $region31: #{conv_autoencoder_forward.23} parent=5 // pred_region
      %s179 = ssub.s32 %s9, 1
      %s180 = smul.u32 4, %s18
      %p181 = scmp.lt.s32.totalorder %s180, 7
      %s182 = scalar_select %p181, %s180, 7
      %s183 = smul.addr %s182, 4
      %s184 = smul.addr %s183, 4
      %s185 = scalar_lea.vmem %s0, %s184
      %p186 = pneg %p47
      %p187 = pneg %p44
      %s188 = smul.u32 2, %s19
      %p189 = scmp.lt.s32.totalorder %s188, 1
      %s190 = scalar_select %p189, %s188, 1
      %s191 = smul.addr %s190, 4
      %s192 = scalar_lea.vmem %s1, %s191
      %p193 = pneg %p73
      %p194 = pneg %p70
      %s195 = smul.u32 2, %s19
      %p196 = scmp.lt.s32.totalorder %s195, 1
      %s197 = scalar_select %p196, %s195, 1
      %s198 = scalar_lea.vmem %s2, %s197
      %p199 = pneg %p99
      %p200 = pneg %p96
      %p201 = pneg %p127
      %p202 = pneg %p124
      %s203 = smul.u32 4, %s18
      %s204 = smul.u32 2, %s19
      %p205 = scmp.lt.s32.totalorder %s203, 7
      %s206 = scalar_select %p205, %s203, 7
      %p207 = scmp.lt.s32.totalorder %s204, 1
      %s208 = scalar_select %p207, %s204, 1
      %s209 = smul.addr %s206, 2
      %s210 = sadd.s32 %s208, %s209
      %s211 = smul.addr %s210, 4
      %s212 = scalar_lea.vmem %s3, %s211
      %s213 = smul.u32 4, %s18
      %p214 = scmp.lt.s32.totalorder %s213, 7
      %s215 = scalar_select %p214, %s213, 7
      %s216 = smul.addr %s215, 4
      %s217 = smul.addr %s216, 4
      %s218 = scalar_lea.vmem %s0, %s217
      %s219 = smul.u32 4, %s18
      %s220 = smul.u32 2, %s19
      %p221 = scmp.lt.s32.totalorder %s220, 1
      %s222 = scalar_select %p221, %s220, 1
      %s223 = smul.addr %s222, 4
      %s224 = scalar_lea.vmem %s1, %s223
      %s225 = smul.u32 2, %s19
      %s226 = smul.u32 2, %s19
      %p227 = scmp.lt.s32.totalorder %s226, 1
      %s228 = scalar_select %p227, %s226, 1
      %s229 = scalar_lea.vmem %s2, %s228
      %s230 = smul.u32 2, %s19
      %s231 = smul.u32 4, %s18
      %s232 = smul.u32 2, %s19
      %p233 = scmp.lt.s32.totalorder %s231, 7
      %s234 = scalar_select %p233, %s231, 7
      %p235 = scmp.lt.s32.totalorder %s232, 1
      %s236 = scalar_select %p235, %s232, 1
      %s237 = smul.addr %s234, 2
      %s238 = sadd.s32 %s236, %s237
      %s239 = smul.addr %s238, 4
      %s240 = scalar_lea.vmem %s3, %s239
      %s241 = smul.u32 4, %s18
      %s242 = smul.u32 2, %s19
      %v243 = vld [vmem:[%s218] sm:$0xff]
      %v244 = vld [vmem:[%s218 + $0x8] sm:$0xff]
      %v245 = vld [vmem:[%s218 + $0x10] sm:$0xff]
      %v246 = vld [vmem:[%s218 + $0x18] sm:$0xff]
      %v247 = vld [vmem:[%s218 + $0x20] sm:$0xff]
      %v248 = vld [vmem:[%s218 + $0x28] sm:$0xff]
      %v249 = vld [vmem:[%s218 + $0x30] sm:$0xff]
      %v250 = vld [vmem:[%s218 + $0x38] sm:$0xff]
      %v251 = vld [vmem:[%s224] sm:$0xff]
      %v252 = vld [vmem:[%s224 + $0x8] sm:$0xff]
      %v253 = vld [vmem:[%s224 + $0x10] sm:$0xff]
      %v254 = vld [vmem:[%s224 + $0x18] sm:$0xff]
      %v255 = vld [vmem:[%s224 + $0x20] sm:$0xff]
      %v256 = vld [vmem:[%s224 + $0x28] sm:$0xff]
      %v257 = vld [vmem:[%s224 + $0x30] sm:$0xff]
      %v258 = vld [vmem:[%s224 + $0x38] sm:$0xff]
      %v259 = vld [vmem:[%s224 + $0x40] sm:$0xff]
      %v260 = vld [vmem:[%s224 + $0x48] sm:$0xff]
      %v261 = vld [vmem:[%s224 + $0x50] sm:$0xff]
      %v262 = vld [vmem:[%s224 + $0x58] sm:$0xff]
      %v263 = vld [vmem:[%s224 + $0x60] sm:$0xff]
      %v264 = vld [vmem:[%s224 + $0x68] sm:$0xff]
      %v265 = vld [vmem:[%s224 + $0x70] sm:$0xff]
      %v266 = vld [vmem:[%s224 + $0x78] sm:$0xff]
      %v267 = vld [vmem:[%s224 + $0x80] sm:$0xff]
      %v268 = vld [vmem:[%s224 + $0x88] sm:$0xff]
      %v269 = vld [vmem:[%s224 + $0x90] sm:$0xff]
      %v270 = vld [vmem:[%s224 + $0x98] sm:$0xff]
      %v271 = vld [vmem:[%s224 + $0xa0] sm:$0xff]
      %v272 = vld [vmem:[%s224 + $0xa8] sm:$0xff]
      %v273 = vld [vmem:[%s224 + $0xb0] sm:$0xff]
      %v274 = vld [vmem:[%s224 + $0xb8] sm:$0xff]
      %v275 = vld [vmem:[%s224 + $0xc0] sm:$0xff]
      %v276 = vld [vmem:[%s224 + $0xc8] sm:$0xff]
      %v277 = vld [vmem:[%s224 + $0xd0] sm:$0xff]
      %v278 = vld [vmem:[%s224 + $0xd8] sm:$0xff]
      %v279 = vld [vmem:[%s224 + $0xe0] sm:$0xff]
      %v280 = vld [vmem:[%s224 + $0xe8] sm:$0xff]
      %v281 = vld [vmem:[%s224 + $0xf0] sm:$0xff]
      %v282 = vld [vmem:[%s224 + $0xf8] sm:$0xff]
      %v283 = vld [vmem:[%s224 + $0x100] sm:$0xff]
      %v284 = vld [vmem:[%s224 + $0x108] sm:$0xff]
      %v285 = vld [vmem:[%s224 + $0x110] sm:$0xff]
      %v286 = vld [vmem:[%s224 + $0x118] sm:$0xff]
      %v287 = vld [vmem:[%s224 + $0x120] sm:$0xff]
      %v288 = vld [vmem:[%s224 + $0x128] sm:$0xff]
      %v289 = vld [vmem:[%s224 + $0x130] sm:$0xff]
      %v290 = vld [vmem:[%s224 + $0x138] sm:$0xff]
      %v291 = vld [vmem:[%s224 + $0x140] sm:$0xff]
      %v292 = vld [vmem:[%s224 + $0x148] sm:$0xff]
      %v293 = vld [vmem:[%s224 + $0x150] sm:$0xff]
      %v294 = vld [vmem:[%s224 + $0x158] sm:$0xff]
      %v295 = vld [vmem:[%s224 + $0x160] sm:$0xff]
      %v296 = vld [vmem:[%s224 + $0x168] sm:$0xff]
      %v297 = vld [vmem:[%s224 + $0x170] sm:$0xff]
      %v298 = vld [vmem:[%s224 + $0x178] sm:$0xff]
      %v299 = vld [vmem:[%s224 + $0x180] sm:$0xff]
      %v300 = vld [vmem:[%s224 + $0x188] sm:$0xff]
      %v301 = vld [vmem:[%s224 + $0x190] sm:$0xff]
      %v302 = vld [vmem:[%s224 + $0x198] sm:$0xff]
      %v303 = vld [vmem:[%s224 + $0x1a0] sm:$0xff]
      %v304 = vld [vmem:[%s224 + $0x1a8] sm:$0xff]
      %v305 = vld [vmem:[%s224 + $0x1b0] sm:$0xff]
      %v306 = vld [vmem:[%s224 + $0x1b8] sm:$0xff]
      %v307 = vld [vmem:[%s224 + $0x1c0] sm:$0xff]
      %v308 = vld [vmem:[%s224 + $0x1c8] sm:$0xff]
      %v309 = vld [vmem:[%s224 + $0x1d0] sm:$0xff]
      %v310 = vld [vmem:[%s224 + $0x1d8] sm:$0xff]
      %v311 = vld [vmem:[%s224 + $0x1e0] sm:$0xff]
      %v312 = vld [vmem:[%s224 + $0x1e8] sm:$0xff]
      %v313 = vld [vmem:[%s224 + $0x1f0] sm:$0xff]
      %v314 = vld [vmem:[%s224 + $0x1f8] sm:$0xff]
      %v315 = vld [vmem:[%s229] sm:$0x3]
      %v317 = vlaneseq
      %v318 = vshrl.u32 %v317, 7
      %v319 = vsub.s32 0, %v318
      %v320 = vrot.slane %v315, %v319
      %v321 = vlaneseq
      %v322 = vshrl.u32 %v321, 7
      %v323 = vsub.s32 1, %v322
      %v324 = vrot.slane %v315, %v323
      %v335 = vunpack.c.l.b16 %v243
      %v336 = vunpack.c.h.b16 %v243
      %v337 = vunpack.c.l.b16 %v244
      %v338 = vunpack.c.h.b16 %v244
      %v339 = vunpack.c.l.b16 %v245
      %v340 = vunpack.c.h.b16 %v245
      %v341 = vunpack.c.l.b16 %v246
      %v342 = vunpack.c.h.b16 %v246
      %v343 = vunpack.c.l.b16 %v247
      %v344 = vunpack.c.h.b16 %v247
      %v345 = vunpack.c.l.b16 %v248
      %v346 = vunpack.c.h.b16 %v248
      %v347 = vunpack.c.l.b16 %v249
      %v348 = vunpack.c.h.b16 %v249
      %v349 = vunpack.c.l.b16 %v250
      %v350 = vunpack.c.h.b16 %v250
      %v351 = vpack.c.b16 %v339, %v335
      %v352 = vpack.c.b16 %v340, %v336
      %v353 = vpack.c.b16 %v341, %v337
      %v354 = vpack.c.b16 %v342, %v338
      %v355 = vpack.c.b16 %v347, %v343
      %v356 = vpack.c.b16 %v348, %v344
      %v357 = vpack.c.b16 %v349, %v345
      %v358 = vpack.c.b16 %v350, %v346
      %v431 = vunpack.c.l.b16 %v251
      %v432 = vunpack.c.h.b16 %v251
      %v433 = vunpack.c.l.b16 %v252
      %v434 = vunpack.c.h.b16 %v252
      %v435 = vunpack.c.l.b16 %v253
      %v436 = vunpack.c.h.b16 %v253
      %v437 = vunpack.c.l.b16 %v254
      %v438 = vunpack.c.h.b16 %v254
      %v439 = vunpack.c.l.b16 %v255
      %v440 = vunpack.c.h.b16 %v255
      %v441 = vunpack.c.l.b16 %v256
      %v442 = vunpack.c.h.b16 %v256
      %v443 = vunpack.c.l.b16 %v257
      %v444 = vunpack.c.h.b16 %v257
      %v445 = vunpack.c.l.b16 %v258
      %v446 = vunpack.c.h.b16 %v258
      %v447 = vunpack.c.l.b16 %v259
      %v448 = vunpack.c.h.b16 %v259
      %v449 = vunpack.c.l.b16 %v260
      %v450 = vunpack.c.h.b16 %v260
      %v451 = vunpack.c.l.b16 %v261
      %v452 = vunpack.c.h.b16 %v261
      %v453 = vunpack.c.l.b16 %v262
      %v454 = vunpack.c.h.b16 %v262
      %v455 = vunpack.c.l.b16 %v263
      %v456 = vunpack.c.h.b16 %v263
      %v457 = vunpack.c.l.b16 %v264
      %v458 = vunpack.c.h.b16 %v264
      %v459 = vunpack.c.l.b16 %v265
      %v460 = vunpack.c.h.b16 %v265
      %v461 = vunpack.c.l.b16 %v266
      %v462 = vunpack.c.h.b16 %v266
      %v463 = vunpack.c.l.b16 %v267
      %v464 = vunpack.c.h.b16 %v267
      %v465 = vunpack.c.l.b16 %v268
      %v466 = vunpack.c.h.b16 %v268
      %v467 = vunpack.c.l.b16 %v269
      %v468 = vunpack.c.h.b16 %v269
      %v469 = vunpack.c.l.b16 %v270
      %v470 = vunpack.c.h.b16 %v270
      %v471 = vunpack.c.l.b16 %v271
      %v472 = vunpack.c.h.b16 %v271
      %v473 = vunpack.c.l.b16 %v272
      %v474 = vunpack.c.h.b16 %v272
      %v475 = vunpack.c.l.b16 %v273
      %v476 = vunpack.c.h.b16 %v273
      %v477 = vunpack.c.l.b16 %v274
      %v478 = vunpack.c.h.b16 %v274
      %v479 = vunpack.c.l.b16 %v275
      %v480 = vunpack.c.h.b16 %v275
      %v481 = vunpack.c.l.b16 %v276
      %v482 = vunpack.c.h.b16 %v276
      %v483 = vunpack.c.l.b16 %v277
      %v484 = vunpack.c.h.b16 %v277
      %v485 = vunpack.c.l.b16 %v278
      %v486 = vunpack.c.h.b16 %v278
      %v487 = vunpack.c.l.b16 %v279
      %v488 = vunpack.c.h.b16 %v279
      %v489 = vunpack.c.l.b16 %v280
      %v490 = vunpack.c.h.b16 %v280
      %v491 = vunpack.c.l.b16 %v281
      %v492 = vunpack.c.h.b16 %v281
      %v493 = vunpack.c.l.b16 %v282
      %v494 = vunpack.c.h.b16 %v282
      %v495 = vunpack.c.l.b16 %v283
      %v496 = vunpack.c.h.b16 %v283
      %v497 = vunpack.c.l.b16 %v284
      %v498 = vunpack.c.h.b16 %v284
      %v499 = vunpack.c.l.b16 %v285
      %v500 = vunpack.c.h.b16 %v285
      %v501 = vunpack.c.l.b16 %v286
      %v502 = vunpack.c.h.b16 %v286
      %v503 = vunpack.c.l.b16 %v287
      %v504 = vunpack.c.h.b16 %v287
      %v505 = vunpack.c.l.b16 %v288
      %v506 = vunpack.c.h.b16 %v288
      %v507 = vunpack.c.l.b16 %v289
      %v508 = vunpack.c.h.b16 %v289
      %v509 = vunpack.c.l.b16 %v290
      %v510 = vunpack.c.h.b16 %v290
      %v511 = vunpack.c.l.b16 %v291
      %v512 = vunpack.c.h.b16 %v291
      %v513 = vunpack.c.l.b16 %v292
      %v514 = vunpack.c.h.b16 %v292
      %v515 = vunpack.c.l.b16 %v293
      %v516 = vunpack.c.h.b16 %v293
      %v517 = vunpack.c.l.b16 %v294
      %v518 = vunpack.c.h.b16 %v294
      %v519 = vunpack.c.l.b16 %v295
      %v520 = vunpack.c.h.b16 %v295
      %v521 = vunpack.c.l.b16 %v296
      %v522 = vunpack.c.h.b16 %v296
      %v523 = vunpack.c.l.b16 %v297
      %v524 = vunpack.c.h.b16 %v297
      %v525 = vunpack.c.l.b16 %v298
      %v526 = vunpack.c.h.b16 %v298
      %v527 = vunpack.c.l.b16 %v299
      %v528 = vunpack.c.h.b16 %v299
      %v529 = vunpack.c.l.b16 %v300
      %v530 = vunpack.c.h.b16 %v300
      %v531 = vunpack.c.l.b16 %v301
      %v532 = vunpack.c.h.b16 %v301
      %v533 = vunpack.c.l.b16 %v302
      %v534 = vunpack.c.h.b16 %v302
      %v535 = vunpack.c.l.b16 %v303
      %v536 = vunpack.c.h.b16 %v303
      %v537 = vunpack.c.l.b16 %v304
      %v538 = vunpack.c.h.b16 %v304
      %v539 = vunpack.c.l.b16 %v305
      %v540 = vunpack.c.h.b16 %v305
      %v541 = vunpack.c.l.b16 %v306
      %v542 = vunpack.c.h.b16 %v306
      %v543 = vunpack.c.l.b16 %v307
      %v544 = vunpack.c.h.b16 %v307
      %v545 = vunpack.c.l.b16 %v308
      %v546 = vunpack.c.h.b16 %v308
      %v547 = vunpack.c.l.b16 %v309
      %v548 = vunpack.c.h.b16 %v309
      %v549 = vunpack.c.l.b16 %v310
      %v550 = vunpack.c.h.b16 %v310
      %v551 = vunpack.c.l.b16 %v311
      %v552 = vunpack.c.h.b16 %v311
      %v553 = vunpack.c.l.b16 %v312
      %v554 = vunpack.c.h.b16 %v312
      %v555 = vunpack.c.l.b16 %v313
      %v556 = vunpack.c.h.b16 %v313
      %v557 = vunpack.c.l.b16 %v314
      %v558 = vunpack.c.h.b16 %v314
      %v559 = vpack.c.b16 %v433, %v431
      %v560 = vpack.c.b16 %v434, %v432
      %v561 = vpack.c.b16 %v437, %v435
      %v562 = vpack.c.b16 %v438, %v436
      %v563 = vpack.c.b16 %v441, %v439
      %v564 = vpack.c.b16 %v442, %v440
      %v565 = vpack.c.b16 %v445, %v443
      %v566 = vpack.c.b16 %v446, %v444
      %v567 = vpack.c.b16 %v449, %v447
      %v568 = vpack.c.b16 %v450, %v448
      %v569 = vpack.c.b16 %v453, %v451
      %v570 = vpack.c.b16 %v454, %v452
      %v571 = vpack.c.b16 %v457, %v455
      %v572 = vpack.c.b16 %v458, %v456
      %v573 = vpack.c.b16 %v461, %v459
      %v574 = vpack.c.b16 %v462, %v460
      %v575 = vpack.c.b16 %v465, %v463
      %v576 = vpack.c.b16 %v466, %v464
      %v577 = vpack.c.b16 %v469, %v467
      %v578 = vpack.c.b16 %v470, %v468
      %v579 = vpack.c.b16 %v473, %v471
      %v580 = vpack.c.b16 %v474, %v472
      %v581 = vpack.c.b16 %v477, %v475
      %v582 = vpack.c.b16 %v478, %v476
      %v583 = vpack.c.b16 %v481, %v479
      %v584 = vpack.c.b16 %v482, %v480
      %v585 = vpack.c.b16 %v485, %v483
      %v586 = vpack.c.b16 %v486, %v484
      %v587 = vpack.c.b16 %v489, %v487
      %v588 = vpack.c.b16 %v490, %v488
      %v589 = vpack.c.b16 %v493, %v491
      %v590 = vpack.c.b16 %v494, %v492
      %v591 = vpack.c.b16 %v497, %v495
      %v592 = vpack.c.b16 %v498, %v496
      %v593 = vpack.c.b16 %v501, %v499
      %v594 = vpack.c.b16 %v502, %v500
      %v595 = vpack.c.b16 %v505, %v503
      %v596 = vpack.c.b16 %v506, %v504
      %v597 = vpack.c.b16 %v509, %v507
      %v598 = vpack.c.b16 %v510, %v508
      %v599 = vpack.c.b16 %v513, %v511
      %v600 = vpack.c.b16 %v514, %v512
      %v601 = vpack.c.b16 %v517, %v515
      %v602 = vpack.c.b16 %v518, %v516
      %v603 = vpack.c.b16 %v521, %v519
      %v604 = vpack.c.b16 %v522, %v520
      %v605 = vpack.c.b16 %v525, %v523
      %v606 = vpack.c.b16 %v526, %v524
      %v607 = vpack.c.b16 %v529, %v527
      %v608 = vpack.c.b16 %v530, %v528
      %v609 = vpack.c.b16 %v533, %v531
      %v610 = vpack.c.b16 %v534, %v532
      %v611 = vpack.c.b16 %v537, %v535
      %v612 = vpack.c.b16 %v538, %v536
      %v613 = vpack.c.b16 %v541, %v539
      %v614 = vpack.c.b16 %v542, %v540
      %v615 = vpack.c.b16 %v545, %v543
      %v616 = vpack.c.b16 %v546, %v544
      %v617 = vpack.c.b16 %v549, %v547
      %v618 = vpack.c.b16 %v550, %v548
      %v619 = vpack.c.b16 %v553, %v551
      %v620 = vpack.c.b16 %v554, %v552
      %v621 = vpack.c.b16 %v557, %v555
      %v622 = vpack.c.b16 %v558, %v556
      %687 = vmatprep.subr.bf16.mxu0 %v560
      %688 = vmatpush1.bf16.msra.mxu0 %v559
      %689 = vmatprep.subr.bf16.mxu0 %v562
      %690 = vmatpush1.bf16.msra.mxu0 %v561
      %691 = vmatprep.subr.bf16.mxu0 %v564
      %692 = vmatpush1.bf16.msra.mxu0 %v563
      %693 = vmatprep.subr.bf16.mxu0 %v566
      %694 = vmatpush1.bf16.msra.mxu0 %v565
      %695 = vmatprep.subr.bf16.mxu0 %v568
      %696 = vmatpush1.bf16.msra.mxu0 %v567
      %697 = vmatprep.subr.bf16.mxu0 %v570
      %698 = vmatpush1.bf16.msra.mxu0 %v569
      %699 = vmatprep.subr.bf16.mxu0 %v572
      %700 = vmatpush1.bf16.msra.mxu0 %v571
      %701 = vmatprep.subr.bf16.mxu0 %v574
      %702 = vmatpush1.bf16.msra.mxu0 %v573
      %703 = vmatprep.subr.bf16.mxu0 %v576
      %704 = vmatpush1.bf16.msra.mxu0 %v575
      %705 = vmatprep.subr.bf16.mxu0 %v578
      %706 = vmatpush1.bf16.msra.mxu0 %v577
      %707 = vmatprep.subr.bf16.mxu0 %v580
      %708 = vmatpush1.bf16.msra.mxu0 %v579
      %709 = vmatprep.subr.bf16.mxu0 %v582
      %710 = vmatpush1.bf16.msra.mxu0 %v581
      %711 = vmatprep.subr.bf16.mxu0 %v584
      %712 = vmatpush1.bf16.msra.mxu0 %v583
      %713 = vmatprep.subr.bf16.mxu0 %v586
      %714 = vmatpush1.bf16.msra.mxu0 %v585
      %715 = vmatprep.subr.bf16.mxu0 %v588
      %716 = vmatpush1.bf16.msra.mxu0 %v587
      %717 = vmatprep.subr.bf16.mxu0 %v590
      %718 = vmatpush1.bf16.msra.mxu0 %v589
      %719 = vmatprep.mubr.bf16.mxu0 %v352
      %720 = vmatmul.mubr.bf16.gmra.mrb[0].mxu0 %v351
      %v721 = vpop.f32.mrb[0].mxu0
      %v722 = vadd.f32 %v320, %v721
      %v723 = vpop.f32.mrb[0].mxu0
      %v724 = vadd.f32 %v324, %v723
      %v725 = vpop.f32.mrb[0].mxu0
      %v726 = vadd.f32 %v320, %v725
      %v727 = vpop.f32.mrb[0].mxu0
      %v728 = vadd.f32 %v324, %v727
      %729 = vmatprep.mubr.bf16.mxu0 %v356
      %730 = vmatmul.mubr.bf16.gmra.mrb[0].mxu0 %v355
      %v731 = vpop.f32.mrb[0].mxu0
      %v732 = vadd.f32 %v320, %v731
      %v733 = vpop.f32.mrb[0].mxu0
      %v734 = vadd.f32 %v324, %v733
      %v735 = vpop.f32.mrb[0].mxu0
      %v736 = vadd.f32 %v320, %v735
      %v737 = vpop.f32.mrb[0].mxu0
      %v738 = vadd.f32 %v324, %v737
      %739 = vdwg.mxu0
      %740 = vmatprep.subr.bf16.mxu0 %v592
      %741 = vmatpush1.bf16.msra.mxu0 %v591
      %742 = vmatprep.subr.bf16.mxu0 %v594
      %743 = vmatpush1.bf16.msra.mxu0 %v593
      %744 = vmatprep.subr.bf16.mxu0 %v596
      %745 = vmatpush1.bf16.msra.mxu0 %v595
      %746 = vmatprep.subr.bf16.mxu0 %v598
      %747 = vmatpush1.bf16.msra.mxu0 %v597
      %748 = vmatprep.subr.bf16.mxu0 %v600
      %749 = vmatpush1.bf16.msra.mxu0 %v599
      %750 = vmatprep.subr.bf16.mxu0 %v602
      %751 = vmatpush1.bf16.msra.mxu0 %v601
      %752 = vmatprep.subr.bf16.mxu0 %v604
      %753 = vmatpush1.bf16.msra.mxu0 %v603
      %754 = vmatprep.subr.bf16.mxu0 %v606
      %755 = vmatpush1.bf16.msra.mxu0 %v605
      %756 = vmatprep.subr.bf16.mxu0 %v608
      %757 = vmatpush1.bf16.msra.mxu0 %v607
      %758 = vmatprep.subr.bf16.mxu0 %v610
      %759 = vmatpush1.bf16.msra.mxu0 %v609
      %760 = vmatprep.subr.bf16.mxu0 %v612
      %761 = vmatpush1.bf16.msra.mxu0 %v611
      %762 = vmatprep.subr.bf16.mxu0 %v614
      %763 = vmatpush1.bf16.msra.mxu0 %v613
      %764 = vmatprep.subr.bf16.mxu0 %v616
      %765 = vmatpush1.bf16.msra.mxu0 %v615
      %766 = vmatprep.subr.bf16.mxu0 %v618
      %767 = vmatpush1.bf16.msra.mxu0 %v617
      %768 = vmatprep.subr.bf16.mxu0 %v620
      %769 = vmatpush1.bf16.msra.mxu0 %v619
      %770 = vmatprep.subr.bf16.mxu0 %v622
      %771 = vmatpush1.bf16.msra.mxu0 %v621
      %772 = vmatprep.mubr.bf16.mxu0 %v354
      %773 = vmatmul.mubr.bf16.gmra.mrb[0].mxu0 %v353
      %v774 = vpop.f32.mrb[0].mxu0
      %v775 = vadd.f32 %v722, %v774
      %v776 = vpop.f32.mrb[0].mxu0
      %v777 = vadd.f32 %v724, %v776
      %v778 = vpop.f32.mrb[0].mxu0
      %v779 = vadd.f32 %v726, %v778
      %v780 = vpop.f32.mrb[0].mxu0
      %v781 = vadd.f32 %v728, %v780
      %782 = vmatprep.mubr.bf16.mxu0 %v358
      %783 = vmatmul.mubr.bf16.gmra.mrb[0].mxu0 %v357
      %v784 = vpop.f32.mrb[0].mxu0
      %v785 = vadd.f32 %v732, %v784
      %v786 = vpop.f32.mrb[0].mxu0
      %v787 = vadd.f32 %v734, %v786
      %v788 = vpop.f32.mrb[0].mxu0
      %v789 = vadd.f32 %v736, %v788
      %v790 = vpop.f32.mrb[0].mxu0
      %v791 = vadd.f32 %v738, %v790
      %792 = vdwg.mxu0
      %v793 = vmax.f32 %v775, 0.0
      %v794 = vmax.f32 %v777, 0.0
      %v795 = vmax.f32 %v779, 0.0
      %v796 = vmax.f32 %v781, 0.0
      %v797 = vmax.f32 %v785, 0.0
      %v798 = vmax.f32 %v787, 0.0
      %v799 = vmax.f32 %v789, 0.0
      %v800 = vmax.f32 %v791, 0.0
      %v801 = vpack.c.bf16 %v795, %v793
      %v802 = vpack.c.bf16 %v796, %v794
      %v803 = vpack.c.bf16 %v799, %v797
      %v804 = vpack.c.bf16 %v800, %v798
      %v809 = vunpack.c.l.b16 %v801
      %v810 = vunpack.c.l.b16 %v802
      %v811 = vunpack.c.h.b16 %v801
      %v812 = vunpack.c.h.b16 %v802
      %v813 = vunpack.c.l.b16 %v803
      %v814 = vunpack.c.l.b16 %v804
      %v815 = vunpack.c.h.b16 %v803
      %v816 = vunpack.c.h.b16 %v804
      %v817 = vpack.c.b16 %v810, %v809
      %v818 = vpack.c.b16 %v812, %v811
      %v819 = vpack.c.b16 %v814, %v813
      %v820 = vpack.c.b16 %v816, %v815
      %825 = vst [vmem:[%s240] sm:$0xff] %v817
      %826 = vst [vmem:[%s240 + $0x8] sm:$0xff] %v818
      %827 = vst [vmem:[%s240 + $0x10] sm:$0xff] %v819
      %828 = vst [vmem:[%s240 + $0x18] sm:$0xff] %v820
      %s829 = smul.u32 4, %s18
      %s830 = smul.u32 2, %s19
      %p831 = scmp.lt.s32.totalorder %s829, 7
      %s832 = scalar_select %p831, %s829, 7
      %p833 = scmp.lt.s32.totalorder %s830, 1
      %s834 = scalar_select %p833, %s830, 1
      %s835 = smul.addr %s832, 2
      %s836 = sadd.s32 %s834, %s835
      %s837 = smul.addr %s836, 4
      %s838 = scalar_lea.vmem %s3, %s837
      // Predicated region
      $region33: #{conv_autoencoder_forward.23} parent=31 // pred_check
        %p839 = pneg %p124
      $region34: #{conv_autoencoder_forward.23} parent=31 // pred_check_branch
        %841 = sbr.rel (%p839) target = $region36
      $region35: #{conv_autoencoder_forward.23} parent=31 // pred_region
        %s842 = smul.u32 4, %s18
        %s843 = smul.u32 2, %s19
      $region36: #{conv_autoencoder_forward.23} parent=31 // pred_fallthru
        _
    $region32: #{conv_autoencoder_forward.23} parent=5 // pred_fallthru
      _
    %p844 = scmp.le.s32.totalorder 2, %s9
    // Predicated region
    $region37: #{conv_autoencoder_forward.23} parent=5 // pred_check
      %p845 = pneg %p844
    $region38: #{conv_autoencoder_forward.23} parent=5 // pred_check_branch
      %847 = sbr.rel (%p845) target = $region40
    $region39: #{conv_autoencoder_forward.23} parent=5 // pred_region
      %s848 = ssub.s32 %s9, 2
      // Predicated region
      $region41: #{conv_autoencoder_forward.23} parent=39 // pred_check
        %p849 = pneg %p130
      $region42: #{conv_autoencoder_forward.23} parent=39 // pred_check_branch
        %851 = sbr.rel (%p849) target = $region44
      $region43: #{conv_autoencoder_forward.23} parent=39 // pred_region
        %s852 = smul.u32 4, %s20
        %s853 = smul.u32 2, %s21
        %p854 = scmp.lt.s32.totalorder %s852, 7
        %s855 = scalar_select %p854, %s852, 7
        %p856 = scmp.lt.s32.totalorder %s853, 1
        %s857 = scalar_select %p856, %s853, 1
        %s858 = smul.addr %s855, 2
        %s859 = sadd.s32 %s857, %s858
        %s860 = smul.addr %s859, 4
        %s861 = scalar_lea.vmem %s3, %s860
      $region44: #{conv_autoencoder_forward.23} parent=39 // pred_fallthru
        _
    $region40: #{conv_autoencoder_forward.23} parent=5 // pred_fallthru
      _
  $region6: #{conv_autoencoder_forward.23} parent=0 // loop_footer
    %s13 = sadd.s32 1, %s9
  $region7: #{conv_autoencoder_forward.23} parent=0 // loop_footer_branch
    %8 = sbr.rel target = $region3
  $region8: #{conv_autoencoder_forward.23} parent=0 // loop_exit
    _

// kernel: tile.33
$region0: #{tile.33}
  #allocation0 [shape = 's32[1]{0}', space=sflag, size = 0x4, scoped, tag = 'scoped memory for tile.33']
  %s0 = inlined_call_operand.vmem [shape: f32[32], index: 0, kind: input, shape index: {}]
  %s1 = inlined_call_operand.vmem [shape: f32[4,32], index: 1, kind: output, shape index: {}]
  // Predicated region
  $region2: #{tile.33} parent=0 // pred_check
    _
  $region3: #{tile.33} parent=0 // pred_check_branch
    %3 = sbr.rel (0) target = $region5
  $region4: #{tile.33} parent=0 // pred_region
    _
  $region5: #{tile.33} parent=0 // pred_fallthru
    _
  %v4 = vld [vmem:[%s0] ss:$0 sm:$0xff]
  %5 = vst [vmem:[%s1] sm:$0xf] %v4

// kernel: tile.34
$region0: #{tile.34}
  %s0 = inlined_call_operand.vmem [shape: f32[4,32], index: 0, kind: input, shape index: {}]
  %s1 = inlined_call_operand.vmem [shape: f32[1,128], index: 1, kind: output, shape index: {}]
  $region1: #{tile.34} parent=0
    #allocation0 [shape = 'u8[4096]{0}', space=vmem, size = 0x1000, scoped, tag = 'scoped mem for output reshape']
    #allocation1 [shape = 'u8[4096]{0}', space=vmem, size = 0x1000, scoped, tag = 'scoped mem for input reshape']
    %s3 = sshllo.u32 0, 4
    %v4 = vld [vmem:[%s0] sm:%s3]
    %5 = vst [vmem:[#allocation1] sm:%s3] %v4
    %v6 = vld [vmem:[#allocation1] sm:$0x1]
    %vm7 = vcmask 261120
    %8 = vst.msk [vmem:[#allocation0] sm:$0x1] %vm7, %v6
    %s9 = scalar_lea.vmem [#allocation1], 3
    %v10 = vld [vmem:[%s9] sm:$0x1]
    %11 = vrot.lane.b32.xlu0 %v10, 96
    %v12 = vpop.permute.xlu0 %11
    %vm13 = vcmask 1048320
    %14 = vst.msk [vmem:[#allocation0] sm:$0x1] %vm13, %v12
    %s15 = scalar_lea.vmem [#allocation1], 2
    %v16 = vld [vmem:[%s15] sm:$0x1]
    %17 = vrot.lane.b32.xlu0 %v16, 64
    %v18 = vpop.permute.xlu0 %17
    %vm19 = vcmask 785920
    %20 = vst.msk [vmem:[#allocation0] sm:$0x1] %vm19, %v18
    %s21 = scalar_lea.vmem [#allocation1], 1
    %v22 = vld [vmem:[%s21] sm:$0x1]
    %23 = vrot.lane.b32.xlu0 %v22, 32
    %v24 = vpop.permute.xlu0 %23
    %vm25 = vcmask 523520
    %26 = vst.msk [vmem:[#allocation0] sm:$0x1] %vm25, %v24
    %s28 = sshllo.u32 0, 1
    %v30 = vld [vmem:[#allocation0] sm:%s28]
    %s31 = sshllo.u32 0, 1
    %32 = vst [vmem:[%s1] sm:%s31] %v30

// kernel: conv_autoencoder_forward.24
$region0: #{conv_autoencoder_forward.24}
  #allocation0 [shape = 'u32[]', space=smem, size = 0x4, offset = 0x4, fixed_abs, tag = 'smem constant byte address 0x4 - core index']
  #allocation1 [shape = 'u32[144,128]{1,0:T(1,128)}', space=vmem, size = 0x12000, scoped, tag = 'internal scratch']
  %s0 = inlined_call_operand.vmem [shape: bf16[192,256], index: 0, kind: input, shape index: {}]
  %s1 = inlined_call_operand.vmem [shape: bf16[256,128], index: 1, kind: input, shape index: {}]
  %s2 = inlined_call_operand.vmem [shape: f32[1,128], index: 2, kind: input, shape index: {}]
  %s3 = inlined_call_operand.vmem [shape: bf16[192,128], index: 3, kind: output, shape index: {}]
  %s4 = sld [smem:[#allocation0]]
  $region45: #{conv_autoencoder_forward.24} parent=0
    _
  %s6 = ssub.s32 1, %s4
  %s7 = scalar_select 0, %s6, %s4
  loop: start=0, step=1, limit=4
  $region2: #{conv_autoencoder_forward.24} parent=0 // loop_pre_header
    _
  $region3: #{conv_autoencoder_forward.24} parent=0 // loop_header
    %s9 = sphi 0, %s13
    %p10 = scmp.ge.s32.totalorder %s9, 4
    %s16 = sphi 0, %s28
    %s17 = sphi 0, %s24
    %s18 = sphi 0, %s16
    %s19 = sphi 0, %s17
    %s20 = sphi 0, %s18
    %s21 = sphi 0, %s19
    %s31 = sphi 0, %s33
    %s34 = sphi 0, %s31
    %s35 = sphi 0, %s34
    %s51 = sphi 0, %s35
    %s57 = sphi 0, %s59
    %s60 = sphi 0, %s57
    %s61 = sphi 0, %s60
    %s77 = sphi 0, %s61
    %s83 = sphi 0, %s85
    %s86 = sphi 0, %s83
    %s87 = sphi 0, %s86
    %s103 = sphi 0, %s87
    %s111 = sphi 0, %s113
    %s114 = sphi 0, %s111
    %s115 = sphi 0, %s114
    %s131 = sphi 0, %s115
  $region4: #{conv_autoencoder_forward.24} parent=0 // loop_header_branch
    %12 = sbr.rel (%p10) target = $region8
  $region5: #{conv_autoencoder_forward.24} parent=0 // loop_body
    %s14 = ssub.s32 %s9, 1
    %s15 = ssub.s32 %s9, 2
    %s22 = sadd.s32 1, %s17
    %p23 = scmp.ge.s32.totalorder %s22, 1
    %s24 = scalar_select %p23, 0, %s22
    %s25 = sadd.s32 1, %s16
    %s26 = scalar_select %p23, %s25, %s16
    %p27 = scmp.ge.s32.totalorder %s26, 2
    %s28 = scalar_select %p27, 0, %s26
    %s29 = ssub.s32 %s16, %s28
    %p30 = scmp.eq.s32.totalorder %s29, 0
    %s32 = sadd.s32 %s31, 1
    %s33 = scalar_select %p30, %s31, %s32
    %p36 = pneg %p30
    %p37 = scmp.eq.s32.totalorder %s9, 1
    %p38 = por %p36, %p37
    %p39 = scmp.ne.s32.totalorder %s31, %s34
    %p40 = scmp.eq.s32.totalorder %s9, 0
    %p41 = por %p39, %p40
    %p42 = scmp.ne.s32.totalorder %s31, %s34
    %p43 = scmp.eq.s32.totalorder %s14, 1
    %p44 = por %p42, %p43
    %p45 = scmp.ne.s32.totalorder %s34, %s35
    %p46 = scmp.eq.s32.totalorder %s14, 0
    %p47 = por %p45, %p46
    %p48 = scmp.ne.s32.totalorder %s34, %s35
    %p49 = scmp.eq.s32.totalorder %s15, 1
    %p50 = por %p48, %p49
    %p52 = scmp.ne.s32.totalorder %s35, %s51
    %p53 = scmp.eq.s32.totalorder %s15, 0
    %p54 = por %p52, %p53
    %s55 = ssub.s32 %s17, %s24
    %p56 = scmp.eq.s32.totalorder %s55, 0
    %s58 = sadd.s32 %s57, 1
    %s59 = scalar_select %p56, %s57, %s58
    %p62 = pneg %p56
    %p63 = scmp.eq.s32.totalorder %s9, 1
    %p64 = por %p62, %p63
    %p65 = scmp.ne.s32.totalorder %s57, %s60
    %p66 = scmp.eq.s32.totalorder %s9, 0
    %p67 = por %p65, %p66
    %p68 = scmp.ne.s32.totalorder %s57, %s60
    %p69 = scmp.eq.s32.totalorder %s14, 1
    %p70 = por %p68, %p69
    %p71 = scmp.ne.s32.totalorder %s60, %s61
    %p72 = scmp.eq.s32.totalorder %s14, 0
    %p73 = por %p71, %p72
    %p74 = scmp.ne.s32.totalorder %s60, %s61
    %p75 = scmp.eq.s32.totalorder %s15, 1
    %p76 = por %p74, %p75
    %p78 = scmp.ne.s32.totalorder %s61, %s77
    %p79 = scmp.eq.s32.totalorder %s15, 0
    %p80 = por %p78, %p79
    %s81 = ssub.s32 %s17, %s24
    %p82 = scmp.eq.s32.totalorder %s81, 0
    %s84 = sadd.s32 %s83, 1
    %s85 = scalar_select %p82, %s83, %s84
    %p88 = pneg %p82
    %p89 = scmp.eq.s32.totalorder %s9, 1
    %p90 = por %p88, %p89
    %p91 = scmp.ne.s32.totalorder %s83, %s86
    %p92 = scmp.eq.s32.totalorder %s9, 0
    %p93 = por %p91, %p92
    %p94 = scmp.ne.s32.totalorder %s83, %s86
    %p95 = scmp.eq.s32.totalorder %s14, 1
    %p96 = por %p94, %p95
    %p97 = scmp.ne.s32.totalorder %s86, %s87
    %p98 = scmp.eq.s32.totalorder %s14, 0
    %p99 = por %p97, %p98
    %p100 = scmp.ne.s32.totalorder %s86, %s87
    %p101 = scmp.eq.s32.totalorder %s15, 1
    %p102 = por %p100, %p101
    %p104 = scmp.ne.s32.totalorder %s87, %s103
    %p105 = scmp.eq.s32.totalorder %s15, 0
    %p106 = por %p104, %p105
    %s107 = ssub.s32 %s16, %s28
    %s108 = ssub.s32 %s17, %s24
    %s109 = sor.u32 %s107, %s108
    %p110 = scmp.eq.s32.totalorder %s109, 0
    %s112 = sadd.s32 %s111, 1
    %s113 = scalar_select %p110, %s111, %s112
    %p116 = pneg %p110
    %p117 = scmp.eq.s32.totalorder %s9, 1
    %p118 = por %p116, %p117
    %p119 = scmp.ne.s32.totalorder %s111, %s114
    %p120 = scmp.eq.s32.totalorder %s9, 0
    %p121 = por %p119, %p120
    %p122 = scmp.ne.s32.totalorder %s111, %s114
    %p123 = scmp.eq.s32.totalorder %s14, 1
    %p124 = por %p122, %p123
    %p125 = scmp.ne.s32.totalorder %s114, %s115
    %p126 = scmp.eq.s32.totalorder %s14, 0
    %p127 = por %p125, %p126
    %p128 = scmp.ne.s32.totalorder %s114, %s115
    %p129 = scmp.eq.s32.totalorder %s15, 1
    %p130 = por %p128, %p129
    %p132 = scmp.ne.s32.totalorder %s115, %s131
    %p133 = scmp.eq.s32.totalorder %s15, 0
    %p134 = por %p132, %p133
    %p135 = scmp.le.s32.totalorder 1, %s9
    %p136 = scmp.lt.s32.totalorder %s9, 3
    %p137 = pnand %p135, %p136
    %p138 = pneg %p137
    // Predicated region
    $region9: #{conv_autoencoder_forward.24} parent=5 // pred_check
      _
    $region10: #{conv_autoencoder_forward.24} parent=5 // pred_check_branch
      %140 = sbr.rel (%p137) target = $region12
    $region11: #{conv_autoencoder_forward.24} parent=5 // pred_region
      %s141 = ssub.s32 %s9, 1
      // Predicated region
      $region13: #{conv_autoencoder_forward.24} parent=11 // pred_check
        %p142 = pneg %p73
      $region14: #{conv_autoencoder_forward.24} parent=11 // pred_check_branch
        %144 = sbr.rel (%p142) target = $region16
      $region15: #{conv_autoencoder_forward.24} parent=11 // pred_region
        %p145 = scmp.lt.s32.totalorder %s19, 0
        %s146 = scalar_select %p145, %s19, 0
        %s147 = smul.addr %s146, 4
        %s148 = scalar_lea.vmem %s1, %s147
      $region16: #{conv_autoencoder_forward.24} parent=11 // pred_fallthru
        _
      // Predicated region
      $region17: #{conv_autoencoder_forward.24} parent=11 // pred_check
        %p149 = pneg %p99
      $region18: #{conv_autoencoder_forward.24} parent=11 // pred_check_branch
        %151 = sbr.rel (%p149) target = $region20
      $region19: #{conv_autoencoder_forward.24} parent=11 // pred_region
        %p152 = scmp.lt.s32.totalorder %s19, 0
        %s153 = scalar_select %p152, %s19, 0
        %s154 = scalar_lea.vmem %s2, %s153
      $region20: #{conv_autoencoder_forward.24} parent=11 // pred_fallthru
        _
    $region12: #{conv_autoencoder_forward.24} parent=5 // pred_fallthru
      _
    %p155 = scmp.lt.s32.totalorder %s9, 2
    // Predicated region
    $region21: #{conv_autoencoder_forward.24} parent=5 // pred_check
      %p156 = pneg %p155
    $region22: #{conv_autoencoder_forward.24} parent=5 // pred_check_branch
      %158 = sbr.rel (%p156) target = $region24
    $region23: #{conv_autoencoder_forward.24} parent=5 // pred_region
      // Predicated region
      $region25: #{conv_autoencoder_forward.24} parent=23 // pred_check
        %p159 = pneg %p41
      $region26: #{conv_autoencoder_forward.24} parent=23 // pred_check_branch
        %161 = sbr.rel (%p159) target = $region28
      $region27: #{conv_autoencoder_forward.24} parent=23 // pred_region
        %s162 = smul.u32 12, %s16
        %p163 = scmp.lt.s32.totalorder %s162, 23
        %s164 = scalar_select %p163, %s162, 23
        %s165 = smul.addr %s164, 2
        %s166 = smul.addr %s165, 4
        %s167 = scalar_lea.vmem %s0, %s166
        %s168 = smul.u32 12, %s16
      $region28: #{conv_autoencoder_forward.24} parent=23 // pred_fallthru
        _
    $region24: #{conv_autoencoder_forward.24} parent=5 // pred_fallthru
      _
    %p169 = scmp.le.s32.totalorder 1, %s9
    %p170 = scmp.lt.s32.totalorder %s9, 3
    %p171 = pnand %p169, %p170
    %p172 = pneg %p171
    // Predicated region
    $region29: #{conv_autoencoder_forward.24} parent=5 // pred_check
      _
    $region30: #{conv_autoencoder_forward.24} parent=5 // pred_check_branch
      %174 = sbr.rel (%p171) target = $region32
    $region31: #{conv_autoencoder_forward.24} parent=5 // pred_region
      %s175 = ssub.s32 %s9, 1
      %s176 = smul.u32 12, %s18
      %p177 = scmp.lt.s32.totalorder %s176, 23
      %s178 = scalar_select %p177, %s176, 23
      %s179 = smul.addr %s178, 2
      %s180 = smul.addr %s179, 4
      %s181 = scalar_lea.vmem %s0, %s180
      %p182 = pneg %p47
      %p183 = pneg %p44
      %p184 = scmp.lt.s32.totalorder %s19, 0
      %s185 = scalar_select %p184, %s19, 0
      %s186 = smul.addr %s185, 4
      %s187 = scalar_lea.vmem %s1, %s186
      %p188 = pneg %p73
      %p189 = pneg %p70
      %p190 = scmp.lt.s32.totalorder %s19, 0
      %s191 = scalar_select %p190, %s19, 0
      %s192 = scalar_lea.vmem %s2, %s191
      %p193 = pneg %p99
      %p194 = pneg %p96
      %p195 = pneg %p127
      %p196 = pneg %p124
      %s197 = smul.u32 12, %s18
      %p198 = scmp.lt.s32.totalorder %s197, 23
      %s199 = scalar_select %p198, %s197, 23
      %p200 = scmp.lt.s32.totalorder %s19, 0
      %s201 = scalar_select %p200, %s19, 0
      %s202 = sadd.s32 %s201, %s199
      %s203 = smul.addr %s202, 4
      %s204 = scalar_lea.vmem %s3, %s203
      %s205 = smul.u32 12, %s18
      %p206 = scmp.lt.s32.totalorder %s205, 23
      %s207 = scalar_select %p206, %s205, 23
      %s208 = smul.addr %s207, 2
      %s209 = smul.addr %s208, 4
      %s210 = scalar_lea.vmem %s0, %s209
      %s211 = smul.u32 12, %s18
      %p212 = scmp.lt.s32.totalorder %s19, 0
      %s213 = scalar_select %p212, %s19, 0
      %s214 = smul.addr %s213, 4
      %s215 = scalar_lea.vmem %s1, %s214
      %p216 = scmp.lt.s32.totalorder %s19, 0
      %s217 = scalar_select %p216, %s19, 0
      %s218 = scalar_lea.vmem %s2, %s217
      %s219 = smul.u32 12, %s18
      %p220 = scmp.lt.s32.totalorder %s219, 23
      %s221 = scalar_select %p220, %s219, 23
      %p222 = scmp.lt.s32.totalorder %s19, 0
      %s223 = scalar_select %p222, %s19, 0
      %s224 = sadd.s32 %s223, %s221
      %s225 = smul.addr %s224, 4
      %s226 = scalar_lea.vmem %s3, %s225
      %s227 = smul.u32 12, %s18
      %v229 = vld [vmem:[%s210] sm:$0xff]
      %v230 = vld [vmem:[%s210 + $0x8] sm:$0xff]
      %v231 = vld [vmem:[%s210 + $0x10] sm:$0xff]
      %v232 = vld [vmem:[%s210 + $0x18] sm:$0xff]
      %v233 = vld [vmem:[%s210 + $0x20] sm:$0xff]
      %v234 = vld [vmem:[%s210 + $0x28] sm:$0xff]
      %v235 = vld [vmem:[%s210 + $0x30] sm:$0xff]
      %v236 = vld [vmem:[%s210 + $0x38] sm:$0xff]
      %v237 = vld [vmem:[%s210 + $0x40] sm:$0xff]
      %v238 = vld [vmem:[%s210 + $0x48] sm:$0xff]
      %v239 = vld [vmem:[%s210 + $0x50] sm:$0xff]
      %v240 = vld [vmem:[%s210 + $0x58] sm:$0xff]
      %v241 = vld [vmem:[%s215] sm:$0xf]
      %v242 = vld [vmem:[%s215 + $0x4] sm:$0xf]
      %v243 = vld [vmem:[%s215 + $0x8] sm:$0xf]
      %v244 = vld [vmem:[%s215 + $0xc] sm:$0xf]
      %v245 = vld [vmem:[%s215 + $0x10] sm:$0xf]
      %v246 = vld [vmem:[%s215 + $0x14] sm:$0xf]
      %v247 = vld [vmem:[%s215 + $0x18] sm:$0xf]
      %v248 = vld [vmem:[%s215 + $0x1c] sm:$0xf]
      %v249 = vld [vmem:[%s215 + $0x20] sm:$0xf]
      %v250 = vld [vmem:[%s215 + $0x24] sm:$0xf]
      %v251 = vld [vmem:[%s215 + $0x28] sm:$0xf]
      %v252 = vld [vmem:[%s215 + $0x2c] sm:$0xf]
      %v253 = vld [vmem:[%s215 + $0x30] sm:$0xf]
      %v254 = vld [vmem:[%s215 + $0x34] sm:$0xf]
      %v255 = vld [vmem:[%s215 + $0x38] sm:$0xf]
      %v256 = vld [vmem:[%s215 + $0x3c] sm:$0xf]
      %v257 = vld [vmem:[%s215 + $0x40] sm:$0xf]
      %v258 = vld [vmem:[%s215 + $0x44] sm:$0xf]
      %v259 = vld [vmem:[%s215 + $0x48] sm:$0xf]
      %v260 = vld [vmem:[%s215 + $0x4c] sm:$0xf]
      %v261 = vld [vmem:[%s215 + $0x50] sm:$0xf]
      %v262 = vld [vmem:[%s215 + $0x54] sm:$0xf]
      %v263 = vld [vmem:[%s215 + $0x58] sm:$0xf]
      %v264 = vld [vmem:[%s215 + $0x5c] sm:$0xf]
      %v265 = vld [vmem:[%s215 + $0x60] sm:$0xf]
      %v266 = vld [vmem:[%s215 + $0x64] sm:$0xf]
      %v267 = vld [vmem:[%s215 + $0x68] sm:$0xf]
      %v268 = vld [vmem:[%s215 + $0x6c] sm:$0xf]
      %v269 = vld [vmem:[%s215 + $0x70] sm:$0xf]
      %v270 = vld [vmem:[%s215 + $0x74] sm:$0xf]
      %v271 = vld [vmem:[%s215 + $0x78] sm:$0xf]
      %v272 = vld [vmem:[%s215 + $0x7c] sm:$0xf]
      %v273 = vld [vmem:[%s218] sm:$0x1]
      %v275 = vlaneseq
      %v276 = vshrl.u32 %v275, 7
      %v277 = vsub.s32 0, %v276
      %v278 = vrot.slane %v273, %v277
      %v292 = vunpack.c.l.b16 %v229
      %v293 = vunpack.c.h.b16 %v229
      %v294 = vunpack.c.l.b16 %v230
      %v295 = vunpack.c.h.b16 %v230
      %v296 = vunpack.c.l.b16 %v231
      %v297 = vunpack.c.h.b16 %v231
      %v298 = vunpack.c.l.b16 %v232
      %v299 = vunpack.c.h.b16 %v232
      %v300 = vunpack.c.l.b16 %v233
      %v301 = vunpack.c.h.b16 %v233
      %v302 = vunpack.c.l.b16 %v234
      %v303 = vunpack.c.h.b16 %v234
      %v304 = vunpack.c.l.b16 %v235
      %v305 = vunpack.c.h.b16 %v235
      %v306 = vunpack.c.l.b16 %v236
      %v307 = vunpack.c.h.b16 %v236
      %v308 = vunpack.c.l.b16 %v237
      %v309 = vunpack.c.h.b16 %v237
      %v310 = vunpack.c.l.b16 %v238
      %v311 = vunpack.c.h.b16 %v238
      %v312 = vunpack.c.l.b16 %v239
      %v313 = vunpack.c.h.b16 %v239
      %v314 = vunpack.c.l.b16 %v240
      %v315 = vunpack.c.h.b16 %v240
      %v316 = vpack.c.b16 %v294, %v292
      %v317 = vpack.c.b16 %v295, %v293
      %v318 = vpack.c.b16 %v298, %v296
      %v319 = vpack.c.b16 %v299, %v297
      %v320 = vpack.c.b16 %v302, %v300
      %v321 = vpack.c.b16 %v303, %v301
      %v322 = vpack.c.b16 %v306, %v304
      %v323 = vpack.c.b16 %v307, %v305
      %v324 = vpack.c.b16 %v310, %v308
      %v325 = vpack.c.b16 %v311, %v309
      %v326 = vpack.c.b16 %v314, %v312
      %v327 = vpack.c.b16 %v315, %v313
      %v372 = vunpack.c.l.b16 %v241
      %v373 = vunpack.c.l.b16 %v242
      %v374 = vunpack.c.l.b16 %v243
      %v375 = vunpack.c.l.b16 %v244
      %v376 = vunpack.c.l.b16 %v245
      %v377 = vunpack.c.l.b16 %v246
      %v378 = vunpack.c.l.b16 %v247
      %v379 = vunpack.c.l.b16 %v248
      %v380 = vunpack.c.l.b16 %v249
      %v381 = vunpack.c.l.b16 %v250
      %v382 = vunpack.c.l.b16 %v251
      %v383 = vunpack.c.l.b16 %v252
      %v384 = vunpack.c.l.b16 %v253
      %v385 = vunpack.c.l.b16 %v254
      %v386 = vunpack.c.l.b16 %v255
      %v387 = vunpack.c.l.b16 %v256
      %v388 = vunpack.c.l.b16 %v257
      %v389 = vunpack.c.l.b16 %v258
      %v390 = vunpack.c.l.b16 %v259
      %v391 = vunpack.c.l.b16 %v260
      %v392 = vunpack.c.l.b16 %v261
      %v393 = vunpack.c.l.b16 %v262
      %v394 = vunpack.c.l.b16 %v263
      %v395 = vunpack.c.l.b16 %v264
      %v396 = vunpack.c.l.b16 %v265
      %v397 = vunpack.c.l.b16 %v266
      %v398 = vunpack.c.l.b16 %v267
      %v399 = vunpack.c.l.b16 %v268
      %v400 = vunpack.c.l.b16 %v269
      %v401 = vunpack.c.l.b16 %v270
      %v402 = vunpack.c.l.b16 %v271
      %v403 = vunpack.c.l.b16 %v272
      %v404 = vpack.c.b16 %v373, %v372
      %v405 = vpack.c.b16 %v375, %v374
      %v406 = vpack.c.b16 %v377, %v376
      %v407 = vpack.c.b16 %v379, %v378
      %v408 = vpack.c.b16 %v381, %v380
      %v409 = vpack.c.b16 %v383, %v382
      %v410 = vpack.c.b16 %v385, %v384
      %v411 = vpack.c.b16 %v387, %v386
      %v412 = vpack.c.b16 %v389, %v388
      %v413 = vpack.c.b16 %v391, %v390
      %v414 = vpack.c.b16 %v393, %v392
      %v415 = vpack.c.b16 %v395, %v394
      %v416 = vpack.c.b16 %v397, %v396
      %v417 = vpack.c.b16 %v399, %v398
      %v418 = vpack.c.b16 %v401, %v400
      %v419 = vpack.c.b16 %v403, %v402
      %436 = vmatprep.subr.bf16.mxu0 0
      %437 = vmatpush1.bf16.msra.mxu0 %v404
      %438 = vmatprep.subr.bf16.mxu0 0
      %439 = vmatpush1.bf16.msra.mxu0 %v405
      %440 = vmatprep.subr.bf16.mxu0 0
      %441 = vmatpush1.bf16.msra.mxu0 %v406
      %442 = vmatprep.subr.bf16.mxu0 0
      %443 = vmatpush1.bf16.msra.mxu0 %v407
      %444 = vmatprep.subr.bf16.mxu0 0
      %445 = vmatpush1.bf16.msra.mxu0 %v408
      %446 = vmatprep.subr.bf16.mxu0 0
      %447 = vmatpush1.bf16.msra.mxu0 %v409
      %448 = vmatprep.subr.bf16.mxu0 0
      %449 = vmatpush1.bf16.msra.mxu0 %v410
      %450 = vmatprep.subr.bf16.mxu0 0
      %451 = vmatpush1.bf16.msra.mxu0 %v411
      %452 = vmatprep.subr.bf16.mxu0 0
      %453 = vmatpush1.bf16.msra.mxu0 %v412
      %454 = vmatprep.subr.bf16.mxu0 0
      %455 = vmatpush1.bf16.msra.mxu0 %v413
      %456 = vmatprep.subr.bf16.mxu0 0
      %457 = vmatpush1.bf16.msra.mxu0 %v414
      %458 = vmatprep.subr.bf16.mxu0 0
      %459 = vmatpush1.bf16.msra.mxu0 %v415
      %460 = vmatprep.subr.bf16.mxu0 0
      %461 = vmatpush1.bf16.msra.mxu0 %v416
      %462 = vmatprep.subr.bf16.mxu0 0
      %463 = vmatpush1.bf16.msra.mxu0 %v417
      %464 = vmatprep.subr.bf16.mxu0 0
      %465 = vmatpush1.bf16.msra.mxu0 %v418
      %466 = vmatprep.subr.bf16.mxu0 0
      %467 = vmatpush1.bf16.msra.mxu0 %v419
      %468 = vmatprep.mubr.bf16.mxu0 %v317
      %469 = vmatmul.mubr.bf16.gmra.mrb[0].mxu0 %v316
      %v470 = vpop.f32.mrb[0].mxu0
      %v471 = vadd.f32 %v278, %v470
      %v472 = vpop.f32.mrb[0].mxu0
      %v473 = vpop.f32.mrb[0].mxu0
      %v474 = vadd.f32 %v278, %v473
      %v475 = vpop.f32.mrb[0].mxu0
      %476 = vmatprep.mubr.bf16.mxu0 %v319
      %477 = vmatmul.mubr.bf16.gmra.mrb[0].mxu0 %v318
      %v478 = vpop.f32.mrb[0].mxu0
      %v479 = vadd.f32 %v278, %v478
      %v480 = vpop.f32.mrb[0].mxu0
      %v481 = vpop.f32.mrb[0].mxu0
      %v482 = vadd.f32 %v278, %v481
      %v483 = vpop.f32.mrb[0].mxu0
      %484 = vmatprep.mubr.bf16.mxu0 %v321
      %485 = vmatmul.mubr.bf16.gmra.mrb[0].mxu0 %v320
      %v486 = vpop.f32.mrb[0].mxu0
      %v487 = vadd.f32 %v278, %v486
      %v488 = vpop.f32.mrb[0].mxu0
      %v489 = vpop.f32.mrb[0].mxu0
      %v490 = vadd.f32 %v278, %v489
      %v491 = vpop.f32.mrb[0].mxu0
      %492 = vmatprep.mubr.bf16.mxu0 %v323
      %493 = vmatmul.mubr.bf16.gmra.mrb[0].mxu0 %v322
      %v494 = vpop.f32.mrb[0].mxu0
      %v495 = vadd.f32 %v278, %v494
      %v496 = vpop.f32.mrb[0].mxu0
      %v497 = vpop.f32.mrb[0].mxu0
      %v498 = vadd.f32 %v278, %v497
      %v499 = vpop.f32.mrb[0].mxu0
      %500 = vmatprep.mubr.bf16.mxu0 %v325
      %501 = vmatmul.mubr.bf16.gmra.mrb[0].mxu0 %v324
      %v502 = vpop.f32.mrb[0].mxu0
      %v503 = vadd.f32 %v278, %v502
      %v504 = vpop.f32.mrb[0].mxu0
      %v505 = vpop.f32.mrb[0].mxu0
      %v506 = vadd.f32 %v278, %v505
      %v507 = vpop.f32.mrb[0].mxu0
      %508 = vmatprep.mubr.bf16.mxu0 %v327
      %509 = vmatmul.mubr.bf16.gmra.mrb[0].mxu0 %v326
      %v510 = vpop.f32.mrb[0].mxu0
      %v511 = vadd.f32 %v278, %v510
      %v512 = vpop.f32.mrb[0].mxu0
      %v513 = vpop.f32.mrb[0].mxu0
      %v514 = vadd.f32 %v278, %v513
      %v515 = vpop.f32.mrb[0].mxu0
      %516 = vdwg.mxu0
      %v517 = vmax.f32 %v471, 0.0
      %v518 = vmax.f32 %v474, 0.0
      %v519 = vmax.f32 %v479, 0.0
      %v520 = vmax.f32 %v482, 0.0
      %v521 = vmax.f32 %v487, 0.0
      %v522 = vmax.f32 %v490, 0.0
      %v523 = vmax.f32 %v495, 0.0
      %v524 = vmax.f32 %v498, 0.0
      %v525 = vmax.f32 %v503, 0.0
      %v526 = vmax.f32 %v506, 0.0
      %v527 = vmax.f32 %v511, 0.0
      %v528 = vmax.f32 %v514, 0.0
      %v529 = vpack.c.bf16 %v518, %v517
      %v530 = vpack.c.bf16 %v520, %v519
      %v531 = vpack.c.bf16 %v522, %v521
      %v532 = vpack.c.bf16 %v524, %v523
      %v533 = vpack.c.bf16 %v526, %v525
      %v534 = vpack.c.bf16 %v528, %v527
      %v541 = vunpack.c.l.b16 %v529
      %v542 = vunpack.c.h.b16 %v529
      %v543 = vunpack.c.l.b16 %v530
      %v544 = vunpack.c.h.b16 %v530
      %v545 = vunpack.c.l.b16 %v531
      %v546 = vunpack.c.h.b16 %v531
      %v547 = vunpack.c.l.b16 %v532
      %v548 = vunpack.c.h.b16 %v532
      %v549 = vunpack.c.l.b16 %v533
      %v550 = vunpack.c.h.b16 %v533
      %v551 = vunpack.c.l.b16 %v534
      %v552 = vunpack.c.h.b16 %v534
      %v553 = vpack.c.b16 %v541, %v541
      %v554 = vpack.c.b16 %v542, %v542
      %v555 = vpack.c.b16 %v543, %v543
      %v556 = vpack.c.b16 %v544, %v544
      %v557 = vpack.c.b16 %v545, %v545
      %v558 = vpack.c.b16 %v546, %v546
      %v559 = vpack.c.b16 %v547, %v547
      %v560 = vpack.c.b16 %v548, %v548
      %v561 = vpack.c.b16 %v549, %v549
      %v562 = vpack.c.b16 %v550, %v550
      %v563 = vpack.c.b16 %v551, %v551
      %v564 = vpack.c.b16 %v552, %v552
      %577 = vst [vmem:[%s226] sm:$0xf] %v553
      %578 = vst [vmem:[%s226 + $0x4] sm:$0xf] %v554
      %579 = vst [vmem:[%s226 + $0x8] sm:$0xf] %v555
      %580 = vst [vmem:[%s226 + $0xc] sm:$0xf] %v556
      %581 = vst [vmem:[%s226 + $0x10] sm:$0xf] %v557
      %582 = vst [vmem:[%s226 + $0x14] sm:$0xf] %v558
      %583 = vst [vmem:[%s226 + $0x18] sm:$0xf] %v559
      %584 = vst [vmem:[%s226 + $0x1c] sm:$0xf] %v560
      %585 = vst [vmem:[%s226 + $0x20] sm:$0xf] %v561
      %586 = vst [vmem:[%s226 + $0x24] sm:$0xf] %v562
      %587 = vst [vmem:[%s226 + $0x28] sm:$0xf] %v563
      %588 = vst [vmem:[%s226 + $0x2c] sm:$0xf] %v564
      %s589 = smul.u32 12, %s18
      %p590 = scmp.lt.s32.totalorder %s589, 23
      %s591 = scalar_select %p590, %s589, 23
      %p592 = scmp.lt.s32.totalorder %s19, 0
      %s593 = scalar_select %p592, %s19, 0
      %s594 = sadd.s32 %s593, %s591
      %s595 = smul.addr %s594, 4
      %s596 = scalar_lea.vmem %s3, %s595
      // Predicated region
      $region33: #{conv_autoencoder_forward.24} parent=31 // pred_check
        %p597 = pneg %p124
      $region34: #{conv_autoencoder_forward.24} parent=31 // pred_check_branch
        %599 = sbr.rel (%p597) target = $region36
      $region35: #{conv_autoencoder_forward.24} parent=31 // pred_region
        %s600 = smul.u32 12, %s18
      $region36: #{conv_autoencoder_forward.24} parent=31 // pred_fallthru
        _
    $region32: #{conv_autoencoder_forward.24} parent=5 // pred_fallthru
      _
    %p601 = scmp.le.s32.totalorder 2, %s9
    // Predicated region
    $region37: #{conv_autoencoder_forward.24} parent=5 // pred_check
      %p602 = pneg %p601
    $region38: #{conv_autoencoder_forward.24} parent=5 // pred_check_branch
      %604 = sbr.rel (%p602) target = $region40
    $region39: #{conv_autoencoder_forward.24} parent=5 // pred_region
      %s605 = ssub.s32 %s9, 2
      // Predicated region
      $region41: #{conv_autoencoder_forward.24} parent=39 // pred_check
        %p606 = pneg %p130
      $region42: #{conv_autoencoder_forward.24} parent=39 // pred_check_branch
        %608 = sbr.rel (%p606) target = $region44
      $region43: #{conv_autoencoder_forward.24} parent=39 // pred_region
        %s609 = smul.u32 12, %s20
        %p610 = scmp.lt.s32.totalorder %s609, 23
        %s611 = scalar_select %p610, %s609, 23
        %p612 = scmp.lt.s32.totalorder %s21, 0
        %s613 = scalar_select %p612, %s21, 0
        %s614 = sadd.s32 %s613, %s611
        %s615 = smul.addr %s614, 4
        %s616 = scalar_lea.vmem %s3, %s615
      $region44: #{conv_autoencoder_forward.24} parent=39 // pred_fallthru
        _
    $region40: #{conv_autoencoder_forward.24} parent=5 // pred_fallthru
      _
  $region6: #{conv_autoencoder_forward.24} parent=0 // loop_footer
    %s13 = sadd.s32 1, %s9
  $region7: #{conv_autoencoder_forward.24} parent=0 // loop_footer_branch
    %8 = sbr.rel target = $region3
  $region8: #{conv_autoencoder_forward.24} parent=0 // loop_exit
    _

// kernel: tile.38
$region0: #{tile.38}
  #allocation0 [shape = 's32[1]{0}', space=sflag, size = 0x4, scoped, tag = 'scoped memory for tile.38']
  %s0 = inlined_call_operand.vmem [shape: f32[3], index: 0, kind: input, shape index: {}]
  %s1 = inlined_call_operand.vmem [shape: f32[4,3], index: 1, kind: output, shape index: {}]
  // Predicated region
  $region2: #{tile.38} parent=0 // pred_check
    _
  $region3: #{tile.38} parent=0 // pred_check_branch
    %3 = sbr.rel (0) target = $region5
  $region4: #{tile.38} parent=0 // pred_region
    _
  $region5: #{tile.38} parent=0 // pred_fallthru
    _
  %v4 = vld [vmem:[%s0] ss:$0 sm:$0xff]
  %5 = vst [vmem:[%s1] sm:$0xf] %v4

// kernel: tile.39
$region0: #{tile.39}
  %s0 = inlined_call_operand.vmem [shape: f32[4,3], index: 0, kind: input, shape index: {}]
  %s1 = inlined_call_operand.vmem [shape: f32[12], index: 1, kind: output, shape index: {}]
  $region1: #{tile.39} parent=0
    #allocation0 [shape = 'u8[4096]{0}', space=vmem, size = 0x1000, scoped, tag = 'scoped mem for output reshape']
    #allocation1 [shape = 'u8[4096]{0}', space=vmem, size = 0x1000, scoped, tag = 'scoped mem for input reshape']
    %s3 = sshllo.u32 0, 4
    %v4 = vld [vmem:[%s0] sm:%s3]
    %5 = vst [vmem:[#allocation1] sm:%s3] %v4
    %v6 = vld [vmem:[#allocation1] sm:$0x1]
    %vm7 = vcmask 23552
    %8 = vst.msk [vmem:[#allocation0] sm:$0x1] %vm7, %v6
    %s9 = scalar_lea.vmem [#allocation1], 3
    %v10 = vld [vmem:[%s9] sm:$0x1]
    %11 = vrot.lane.b32.xlu0 %v10, 9
    %v12 = vpop.permute.xlu0 %11
    %vm13 = vcmask 97352
    %14 = vst.msk [vmem:[#allocation0] sm:$0x1] %vm13, %v12
    %s15 = scalar_lea.vmem [#allocation1], 2
    %v16 = vld [vmem:[%s15] sm:$0x1]
    %17 = vrot.lane.b32.xlu0 %v16, 6
    %v18 = vpop.permute.xlu0 %17
    %vm19 = vcmask 72752
    %20 = vst.msk [vmem:[#allocation0] sm:$0x1] %vm19, %v18
    %s21 = scalar_lea.vmem [#allocation1], 1
    %v22 = vld [vmem:[%s21] sm:$0x1]
    %23 = vrot.lane.b32.xlu0 %v22, 3
    %v24 = vpop.permute.xlu0 %23
    %vm25 = vcmask 48152
    %26 = vst.msk [vmem:[#allocation0] sm:$0x1] %vm25, %v24
    %s28 = sshllo.u32 0, 1
    %v30 = vld [vmem:[#allocation0] sm:%s28]
    %s31 = sshllo.u32 0, 1
    %32 = vst [vmem:[%s1] sm:%s31] %v30

// kernel: conv_autoencoder_forward.25
$region0: #{conv_autoencoder_forward.25}
  #allocation0 [shape = 'u32[]', space=smem, size = 0x4, offset = 0x4, fixed_abs, tag = 'smem constant byte address 0x4 - core index']
  #allocation1 [shape = 'u32[144,128]{1,0:T(1,128)}', space=vmem, size = 0x12000, scoped, tag = 'internal scratch']
  %s0 = inlined_call_operand.vmem [shape: bf16[608,128], index: 0, kind: input, shape index: {}]
  %s1 = inlined_call_operand.vmem [shape: bf16[128,128], index: 1, kind: input, shape index: {}]
  %s2 = inlined_call_operand.vmem [shape: f32[1,128], index: 2, kind: input, shape index: {}]
  %s3 = inlined_call_operand.vmem [shape: f32[608,128], index: 3, kind: output, shape index: {}]
  %s4 = sld [smem:[#allocation0]]
  $region45: #{conv_autoencoder_forward.25} parent=0
    _
  %s6 = ssub.s32 1, %s4
  %s7 = scalar_select 0, %s6, %s4
  loop: start=0, step=1, limit=4
  $region2: #{conv_autoencoder_forward.25} parent=0 // loop_pre_header
    _
  $region3: #{conv_autoencoder_forward.25} parent=0 // loop_header
    %s9 = sphi 0, %s13
    %p10 = scmp.ge.s32.totalorder %s9, 4
    %s16 = sphi 0, %s28
    %s17 = sphi 0, %s24
    %s18 = sphi 0, %s16
    %s19 = sphi 0, %s17
    %s20 = sphi 0, %s18
    %s21 = sphi 0, %s19
    %s31 = sphi 0, %s33
    %s34 = sphi 0, %s31
    %s35 = sphi 0, %s34
    %s51 = sphi 0, %s35
    %s57 = sphi 0, %s59
    %s60 = sphi 0, %s57
    %s61 = sphi 0, %s60
    %s77 = sphi 0, %s61
    %s83 = sphi 0, %s85
    %s86 = sphi 0, %s83
    %s87 = sphi 0, %s86
    %s103 = sphi 0, %s87
    %s111 = sphi 0, %s113
    %s114 = sphi 0, %s111
    %s115 = sphi 0, %s114
    %s131 = sphi 0, %s115
  $region4: #{conv_autoencoder_forward.25} parent=0 // loop_header_branch
    %12 = sbr.rel (%p10) target = $region8
  $region5: #{conv_autoencoder_forward.25} parent=0 // loop_body
    %s14 = ssub.s32 %s9, 1
    %s15 = ssub.s32 %s9, 2
    %s22 = sadd.s32 1, %s17
    %p23 = scmp.ge.s32.totalorder %s22, 1
    %s24 = scalar_select %p23, 0, %s22
    %s25 = sadd.s32 1, %s16
    %s26 = scalar_select %p23, %s25, %s16
    %p27 = scmp.ge.s32.totalorder %s26, 2
    %s28 = scalar_select %p27, 0, %s26
    %s29 = ssub.s32 %s16, %s28
    %p30 = scmp.eq.s32.totalorder %s29, 0
    %s32 = sadd.s32 %s31, 1
    %s33 = scalar_select %p30, %s31, %s32
    %p36 = pneg %p30
    %p37 = scmp.eq.s32.totalorder %s9, 1
    %p38 = por %p36, %p37
    %p39 = scmp.ne.s32.totalorder %s31, %s34
    %p40 = scmp.eq.s32.totalorder %s9, 0
    %p41 = por %p39, %p40
    %p42 = scmp.ne.s32.totalorder %s31, %s34
    %p43 = scmp.eq.s32.totalorder %s14, 1
    %p44 = por %p42, %p43
    %p45 = scmp.ne.s32.totalorder %s34, %s35
    %p46 = scmp.eq.s32.totalorder %s14, 0
    %p47 = por %p45, %p46
    %p48 = scmp.ne.s32.totalorder %s34, %s35
    %p49 = scmp.eq.s32.totalorder %s15, 1
    %p50 = por %p48, %p49
    %p52 = scmp.ne.s32.totalorder %s35, %s51
    %p53 = scmp.eq.s32.totalorder %s15, 0
    %p54 = por %p52, %p53
    %s55 = ssub.s32 %s17, %s24
    %p56 = scmp.eq.s32.totalorder %s55, 0
    %s58 = sadd.s32 %s57, 1
    %s59 = scalar_select %p56, %s57, %s58
    %p62 = pneg %p56
    %p63 = scmp.eq.s32.totalorder %s9, 1
    %p64 = por %p62, %p63
    %p65 = scmp.ne.s32.totalorder %s57, %s60
    %p66 = scmp.eq.s32.totalorder %s9, 0
    %p67 = por %p65, %p66
    %p68 = scmp.ne.s32.totalorder %s57, %s60
    %p69 = scmp.eq.s32.totalorder %s14, 1
    %p70 = por %p68, %p69
    %p71 = scmp.ne.s32.totalorder %s60, %s61
    %p72 = scmp.eq.s32.totalorder %s14, 0
    %p73 = por %p71, %p72
    %p74 = scmp.ne.s32.totalorder %s60, %s61
    %p75 = scmp.eq.s32.totalorder %s15, 1
    %p76 = por %p74, %p75
    %p78 = scmp.ne.s32.totalorder %s61, %s77
    %p79 = scmp.eq.s32.totalorder %s15, 0
    %p80 = por %p78, %p79
    %s81 = ssub.s32 %s17, %s24
    %p82 = scmp.eq.s32.totalorder %s81, 0
    %s84 = sadd.s32 %s83, 1
    %s85 = scalar_select %p82, %s83, %s84
    %p88 = pneg %p82
    %p89 = scmp.eq.s32.totalorder %s9, 1
    %p90 = por %p88, %p89
    %p91 = scmp.ne.s32.totalorder %s83, %s86
    %p92 = scmp.eq.s32.totalorder %s9, 0
    %p93 = por %p91, %p92
    %p94 = scmp.ne.s32.totalorder %s83, %s86
    %p95 = scmp.eq.s32.totalorder %s14, 1
    %p96 = por %p94, %p95
    %p97 = scmp.ne.s32.totalorder %s86, %s87
    %p98 = scmp.eq.s32.totalorder %s14, 0
    %p99 = por %p97, %p98
    %p100 = scmp.ne.s32.totalorder %s86, %s87
    %p101 = scmp.eq.s32.totalorder %s15, 1
    %p102 = por %p100, %p101
    %p104 = scmp.ne.s32.totalorder %s87, %s103
    %p105 = scmp.eq.s32.totalorder %s15, 0
    %p106 = por %p104, %p105
    %s107 = ssub.s32 %s16, %s28
    %s108 = ssub.s32 %s17, %s24
    %s109 = sor.u32 %s107, %s108
    %p110 = scmp.eq.s32.totalorder %s109, 0
    %s112 = sadd.s32 %s111, 1
    %s113 = scalar_select %p110, %s111, %s112
    %p116 = pneg %p110
    %p117 = scmp.eq.s32.totalorder %s9, 1
    %p118 = por %p116, %p117
    %p119 = scmp.ne.s32.totalorder %s111, %s114
    %p120 = scmp.eq.s32.totalorder %s9, 0
    %p121 = por %p119, %p120
    %p122 = scmp.ne.s32.totalorder %s111, %s114
    %p123 = scmp.eq.s32.totalorder %s14, 1
    %p124 = por %p122, %p123
    %p125 = scmp.ne.s32.totalorder %s114, %s115
    %p126 = scmp.eq.s32.totalorder %s14, 0
    %p127 = por %p125, %p126
    %p128 = scmp.ne.s32.totalorder %s114, %s115
    %p129 = scmp.eq.s32.totalorder %s15, 1
    %p130 = por %p128, %p129
    %p132 = scmp.ne.s32.totalorder %s115, %s131
    %p133 = scmp.eq.s32.totalorder %s15, 0
    %p134 = por %p132, %p133
    %p135 = scmp.le.s32.totalorder 1, %s9
    %p136 = scmp.lt.s32.totalorder %s9, 3
    %p137 = pnand %p135, %p136
    %p138 = pneg %p137
    // Predicated region
    $region9: #{conv_autoencoder_forward.25} parent=5 // pred_check
      _
    $region10: #{conv_autoencoder_forward.25} parent=5 // pred_check_branch
      %140 = sbr.rel (%p137) target = $region12
    $region11: #{conv_autoencoder_forward.25} parent=5 // pred_region
      %s141 = ssub.s32 %s9, 1
      // Predicated region
      $region13: #{conv_autoencoder_forward.25} parent=11 // pred_check
        %p142 = pneg %p73
      $region14: #{conv_autoencoder_forward.25} parent=11 // pred_check_branch
        %144 = sbr.rel (%p142) target = $region16
      $region15: #{conv_autoencoder_forward.25} parent=11 // pred_region
        %p145 = scmp.lt.s32.totalorder %s19, 0
        %s146 = scalar_select %p145, %s19, 0
        %s147 = smul.addr %s146, 4
        %s148 = scalar_lea.vmem %s1, %s147
      $region16: #{conv_autoencoder_forward.25} parent=11 // pred_fallthru
        _
      // Predicated region
      $region17: #{conv_autoencoder_forward.25} parent=11 // pred_check
        %p149 = pneg %p99
      $region18: #{conv_autoencoder_forward.25} parent=11 // pred_check_branch
        %151 = sbr.rel (%p149) target = $region20
      $region19: #{conv_autoencoder_forward.25} parent=11 // pred_region
        %p152 = scmp.lt.s32.totalorder %s19, 0
        %s153 = scalar_select %p152, %s19, 0
        %s154 = scalar_lea.vmem %s2, %s153
      $region20: #{conv_autoencoder_forward.25} parent=11 // pred_fallthru
        _
    $region12: #{conv_autoencoder_forward.25} parent=5 // pred_fallthru
      _
    %p155 = scmp.lt.s32.totalorder %s9, 2
    // Predicated region
    $region21: #{conv_autoencoder_forward.25} parent=5 // pred_check
      %p156 = pneg %p155
    $region22: #{conv_autoencoder_forward.25} parent=5 // pred_check_branch
      %158 = sbr.rel (%p156) target = $region24
    $region23: #{conv_autoencoder_forward.25} parent=5 // pred_region
      // Predicated region
      $region25: #{conv_autoencoder_forward.25} parent=23 // pred_check
        %p159 = pneg %p41
      $region26: #{conv_autoencoder_forward.25} parent=23 // pred_check_branch
        %161 = sbr.rel (%p159) target = $region28
      $region27: #{conv_autoencoder_forward.25} parent=23 // pred_region
        %s162 = smul.u32 38, %s16
        %p163 = scmp.lt.s32.totalorder %s162, 75
        %s164 = scalar_select %p163, %s162, 75
        %s165 = smul.addr %s164, 4
        %s166 = scalar_lea.vmem %s0, %s165
        %s167 = smul.u32 38, %s16
      $region28: #{conv_autoencoder_forward.25} parent=23 // pred_fallthru
        _
    $region24: #{conv_autoencoder_forward.25} parent=5 // pred_fallthru
      _
    %p168 = scmp.le.s32.totalorder 1, %s9
    %p169 = scmp.lt.s32.totalorder %s9, 3
    %p170 = pnand %p168, %p169
    %p171 = pneg %p170
    // Predicated region
    $region29: #{conv_autoencoder_forward.25} parent=5 // pred_check
      _
    $region30: #{conv_autoencoder_forward.25} parent=5 // pred_check_branch
      %173 = sbr.rel (%p170) target = $region32
    $region31: #{conv_autoencoder_forward.25} parent=5 // pred_region
      %s174 = ssub.s32 %s9, 1
      %s175 = smul.u32 38, %s18
      %p176 = scmp.lt.s32.totalorder %s175, 75
      %s177 = scalar_select %p176, %s175, 75
      %s178 = smul.addr %s177, 4
      %s179 = scalar_lea.vmem %s0, %s178
      %p180 = pneg %p47
      %p181 = pneg %p44
      %p182 = scmp.lt.s32.totalorder %s19, 0
      %s183 = scalar_select %p182, %s19, 0
      %s184 = smul.addr %s183, 4
      %s185 = scalar_lea.vmem %s1, %s184
      %p186 = pneg %p73
      %p187 = pneg %p70
      %p188 = scmp.lt.s32.totalorder %s19, 0
      %s189 = scalar_select %p188, %s19, 0
      %s190 = scalar_lea.vmem %s2, %s189
      %p191 = pneg %p99
      %p192 = pneg %p96
      %p193 = pneg %p127
      %p194 = pneg %p124
      %s195 = smul.u32 38, %s18
      %p196 = scmp.lt.s32.totalorder %s195, 75
      %s197 = scalar_select %p196, %s195, 75
      %p198 = scmp.lt.s32.totalorder %s19, 0
      %s199 = scalar_select %p198, %s19, 0
      %s200 = sadd.s32 %s199, %s197
      %s201 = smul.addr %s200, 8
      %s202 = scalar_lea.vmem %s3, %s201
      %s203 = smul.u32 38, %s18
      %p204 = scmp.lt.s32.totalorder %s203, 75
      %s205 = scalar_select %p204, %s203, 75
      %s206 = smul.addr %s205, 4
      %s207 = scalar_lea.vmem %s0, %s206
      %s208 = smul.u32 38, %s18
      %p209 = scmp.lt.s32.totalorder %s19, 0
      %s210 = scalar_select %p209, %s19, 0
      %s211 = smul.addr %s210, 4
      %s212 = scalar_lea.vmem %s1, %s211
      %p213 = scmp.lt.s32.totalorder %s19, 0
      %s214 = scalar_select %p213, %s19, 0
      %s215 = scalar_lea.vmem %s2, %s214
      %s216 = smul.u32 38, %s18
      %p217 = scmp.lt.s32.totalorder %s216, 75
      %s218 = scalar_select %p217, %s216, 75
      %p219 = scmp.lt.s32.totalorder %s19, 0
      %s220 = scalar_select %p219, %s19, 0
      %s221 = sadd.s32 %s220, %s218
      %s222 = smul.addr %s221, 8
      %s223 = scalar_lea.vmem %s3, %s222
      %s224 = smul.u32 38, %s18
      %v226 = vld [vmem:[%s207] sm:$0xf]
      %v227 = vld [vmem:[%s207 + $0x4] sm:$0xf]
      %v228 = vld [vmem:[%s207 + $0x8] sm:$0xf]
      %v229 = vld [vmem:[%s207 + $0xc] sm:$0xf]
      %v230 = vld [vmem:[%s207 + $0x10] sm:$0xf]
      %v231 = vld [vmem:[%s207 + $0x14] sm:$0xf]
      %v232 = vld [vmem:[%s207 + $0x18] sm:$0xf]
      %v233 = vld [vmem:[%s207 + $0x1c] sm:$0xf]
      %v234 = vld [vmem:[%s207 + $0x20] sm:$0xf]
      %v235 = vld [vmem:[%s207 + $0x24] sm:$0xf]
      %v236 = vld [vmem:[%s207 + $0x28] sm:$0xf]
      %v237 = vld [vmem:[%s207 + $0x2c] sm:$0xf]
      %v238 = vld [vmem:[%s207 + $0x30] sm:$0xf]
      %v239 = vld [vmem:[%s207 + $0x34] sm:$0xf]
      %v240 = vld [vmem:[%s207 + $0x38] sm:$0xf]
      %v241 = vld [vmem:[%s207 + $0x3c] sm:$0xf]
      %v242 = vld [vmem:[%s207 + $0x40] sm:$0xf]
      %v243 = vld [vmem:[%s207 + $0x44] sm:$0xf]
      %v244 = vld [vmem:[%s207 + $0x48] sm:$0xf]
      %v245 = vld [vmem:[%s207 + $0x4c] sm:$0xf]
      %v246 = vld [vmem:[%s207 + $0x50] sm:$0xf]
      %v247 = vld [vmem:[%s207 + $0x54] sm:$0xf]
      %v248 = vld [vmem:[%s207 + $0x58] sm:$0xf]
      %v249 = vld [vmem:[%s207 + $0x5c] sm:$0xf]
      %v250 = vld [vmem:[%s207 + $0x60] sm:$0xf]
      %v251 = vld [vmem:[%s207 + $0x64] sm:$0xf]
      %v252 = vld [vmem:[%s207 + $0x68] sm:$0xf]
      %v253 = vld [vmem:[%s207 + $0x6c] sm:$0xf]
      %v254 = vld [vmem:[%s207 + $0x70] sm:$0xf]
      %v255 = vld [vmem:[%s207 + $0x74] sm:$0xf]
      %v256 = vld [vmem:[%s207 + $0x78] sm:$0xf]
      %v257 = vld [vmem:[%s207 + $0x7c] sm:$0xf]
      %v258 = vld [vmem:[%s207 + $0x80] sm:$0xf]
      %v259 = vld [vmem:[%s207 + $0x84] sm:$0xf]
      %v260 = vld [vmem:[%s207 + $0x88] sm:$0xf]
      %v261 = vld [vmem:[%s207 + $0x8c] sm:$0xf]
      %v262 = vld [vmem:[%s207 + $0x90] sm:$0xf]
      %v263 = vld [vmem:[%s207 + $0x94] sm:$0xf]
      %v264 = vld [vmem:[%s212] sm:$0xf]
      %v265 = vld [vmem:[%s212 + $0x4] sm:$0xf]
      %v266 = vld [vmem:[%s212 + $0x8] sm:$0xf]
      %v267 = vld [vmem:[%s212 + $0xc] sm:$0xf]
      %v268 = vld [vmem:[%s212 + $0x10] sm:$0xf]
      %v269 = vld [vmem:[%s212 + $0x14] sm:$0xf]
      %v270 = vld [vmem:[%s212 + $0x18] sm:$0xf]
      %v271 = vld [vmem:[%s212 + $0x1c] sm:$0xf]
      %v272 = vld [vmem:[%s212 + $0x20] sm:$0xf]
      %v273 = vld [vmem:[%s212 + $0x24] sm:$0xf]
      %v274 = vld [vmem:[%s212 + $0x28] sm:$0xf]
      %v275 = vld [vmem:[%s212 + $0x2c] sm:$0xf]
      %v276 = vld [vmem:[%s212 + $0x30] sm:$0xf]
      %v277 = vld [vmem:[%s212 + $0x34] sm:$0xf]
      %v278 = vld [vmem:[%s212 + $0x38] sm:$0xf]
      %v279 = vld [vmem:[%s212 + $0x3c] sm:$0xf]
      %v280 = vld [vmem:[%s215] sm:$0x1]
      %v282 = vlaneseq
      %v283 = vshrl.u32 %v282, 7
      %v284 = vsub.s32 0, %v283
      %v285 = vrot.slane %v280, %v284
      %v325 = vunpack.c.l.b16 %v226
      %v326 = vunpack.c.l.b16 %v227
      %v327 = vunpack.c.l.b16 %v228
      %v328 = vunpack.c.l.b16 %v229
      %v329 = vunpack.c.l.b16 %v230
      %v330 = vunpack.c.l.b16 %v231
      %v331 = vunpack.c.l.b16 %v232
      %v332 = vunpack.c.l.b16 %v233
      %v333 = vunpack.c.l.b16 %v234
      %v334 = vunpack.c.l.b16 %v235
      %v335 = vunpack.c.l.b16 %v236
      %v336 = vunpack.c.l.b16 %v237
      %v337 = vunpack.c.l.b16 %v238
      %v338 = vunpack.c.l.b16 %v239
      %v339 = vunpack.c.l.b16 %v240
      %v340 = vunpack.c.l.b16 %v241
      %v341 = vunpack.c.l.b16 %v242
      %v342 = vunpack.c.l.b16 %v243
      %v343 = vunpack.c.l.b16 %v244
      %v344 = vunpack.c.l.b16 %v245
      %v345 = vunpack.c.l.b16 %v246
      %v346 = vunpack.c.l.b16 %v247
      %v347 = vunpack.c.l.b16 %v248
      %v348 = vunpack.c.l.b16 %v249
      %v349 = vunpack.c.l.b16 %v250
      %v350 = vunpack.c.l.b16 %v251
      %v351 = vunpack.c.l.b16 %v252
      %v352 = vunpack.c.l.b16 %v253
      %v353 = vunpack.c.l.b16 %v254
      %v354 = vunpack.c.l.b16 %v255
      %v355 = vunpack.c.l.b16 %v256
      %v356 = vunpack.c.l.b16 %v257
      %v357 = vunpack.c.l.b16 %v258
      %v358 = vunpack.c.l.b16 %v259
      %v359 = vunpack.c.l.b16 %v260
      %v360 = vunpack.c.l.b16 %v261
      %v361 = vunpack.c.l.b16 %v262
      %v362 = vunpack.c.l.b16 %v263
      %v363 = vpack.c.b16 %v326, %v325
      %v364 = vpack.c.b16 %v328, %v327
      %v365 = vpack.c.b16 %v330, %v329
      %v366 = vpack.c.b16 %v332, %v331
      %v367 = vpack.c.b16 %v334, %v333
      %v368 = vpack.c.b16 %v336, %v335
      %v369 = vpack.c.b16 %v338, %v337
      %v370 = vpack.c.b16 %v340, %v339
      %v371 = vpack.c.b16 %v342, %v341
      %v372 = vpack.c.b16 %v344, %v343
      %v373 = vpack.c.b16 %v346, %v345
      %v374 = vpack.c.b16 %v348, %v347
      %v375 = vpack.c.b16 %v350, %v349
      %v376 = vpack.c.b16 %v352, %v351
      %v377 = vpack.c.b16 %v354, %v353
      %v378 = vpack.c.b16 %v356, %v355
      %v379 = vpack.c.b16 %v358, %v357
      %v380 = vpack.c.b16 %v360, %v359
      %v381 = vpack.c.b16 %v362, %v361
      %v417 = vunpack.c.l.b16 %v264
      %v418 = vunpack.c.l.b16 %v265
      %v419 = vunpack.c.l.b16 %v266
      %v420 = vunpack.c.l.b16 %v267
      %v421 = vunpack.c.l.b16 %v268
      %v422 = vunpack.c.l.b16 %v269
      %v423 = vunpack.c.l.b16 %v270
      %v424 = vunpack.c.l.b16 %v271
      %v425 = vunpack.c.l.b16 %v272
      %v426 = vunpack.c.l.b16 %v273
      %v427 = vunpack.c.l.b16 %v274
      %v428 = vunpack.c.l.b16 %v275
      %v429 = vunpack.c.l.b16 %v276
      %v430 = vunpack.c.l.b16 %v277
      %v431 = vunpack.c.l.b16 %v278
      %v432 = vunpack.c.l.b16 %v279
      %v433 = vpack.c.b16 %v418, %v417
      %v434 = vpack.c.b16 %v420, %v419
      %v435 = vpack.c.b16 %v422, %v421
      %v436 = vpack.c.b16 %v424, %v423
      %v437 = vpack.c.b16 %v426, %v425
      %v438 = vpack.c.b16 %v428, %v427
      %v439 = vpack.c.b16 %v430, %v429
      %v440 = vpack.c.b16 %v432, %v431
      %449 = vmatprep.subr.bf16.mxu0 0
      %450 = vmatpush1.bf16.msra.mxu0 %v433
      %451 = vmatprep.subr.bf16.mxu0 0
      %452 = vmatpush1.bf16.msra.mxu0 %v434
      %453 = vmatprep.subr.bf16.mxu0 0
      %454 = vmatpush1.bf16.msra.mxu0 %v435
      %455 = vmatprep.subr.bf16.mxu0 0
      %456 = vmatpush1.bf16.msra.mxu0 %v436
      %457 = vmatprep.subr.bf16.mxu0 0
      %458 = vmatpush1.bf16.msra.mxu0 %v437
      %459 = vmatprep.subr.bf16.mxu0 0
      %460 = vmatpush1.bf16.msra.mxu0 %v438
      %461 = vmatprep.subr.bf16.mxu0 0
      %462 = vmatpush1.bf16.msra.mxu0 %v439
      %463 = vmatprep.subr.bf16.mxu0 0
      %464 = vmatpush1.bf16.msra.mxu0 %v440
      %465 = vmatprep.subr.bf16.mxu0 0
      %466 = vmatpush1.bf16.msra.mxu0 0
      %467 = vmatprep.subr.bf16.mxu0 0
      %468 = vmatpush1.bf16.msra.mxu0 0
      %469 = vmatprep.subr.bf16.mxu0 0
      %470 = vmatpush1.bf16.msra.mxu0 0
      %471 = vmatprep.subr.bf16.mxu0 0
      %472 = vmatpush1.bf16.msra.mxu0 0
      %473 = vmatprep.subr.bf16.mxu0 0
      %474 = vmatpush1.bf16.msra.mxu0 0
      %475 = vmatprep.subr.bf16.mxu0 0
      %476 = vmatpush1.bf16.msra.mxu0 0
      %477 = vmatprep.subr.bf16.mxu0 0
      %478 = vmatpush1.bf16.msra.mxu0 0
      %479 = vmatprep.subr.bf16.mxu0 0
      %480 = vmatpush1.bf16.msra.mxu0 0
      %481 = vmatprep.mubr.bf16.mxu0 0
      %482 = vmatmul.mubr.bf16.gmra.mrb[0].mxu0 %v363
      %v483 = vpop.f32.mrb[0].mxu0
      %v484 = vadd.f32 %v285, %v483
      %v485 = vpop.f32.mrb[0].mxu0
      %v486 = vpop.f32.mrb[0].mxu0
      %v487 = vadd.f32 %v285, %v486
      %v488 = vpop.f32.mrb[0].mxu0
      %489 = vmatprep.mubr.bf16.mxu0 0
      %490 = vmatmul.mubr.bf16.gmra.mrb[0].mxu0 %v364
      %v491 = vpop.f32.mrb[0].mxu0
      %v492 = vadd.f32 %v285, %v491
      %v493 = vpop.f32.mrb[0].mxu0
      %v494 = vpop.f32.mrb[0].mxu0
      %v495 = vadd.f32 %v285, %v494
      %v496 = vpop.f32.mrb[0].mxu0
      %497 = vmatprep.mubr.bf16.mxu0 0
      %498 = vmatmul.mubr.bf16.gmra.mrb[0].mxu0 %v365
      %v499 = vpop.f32.mrb[0].mxu0
      %v500 = vadd.f32 %v285, %v499
      %v501 = vpop.f32.mrb[0].mxu0
      %v502 = vpop.f32.mrb[0].mxu0
      %v503 = vadd.f32 %v285, %v502
      %v504 = vpop.f32.mrb[0].mxu0
      %505 = vmatprep.mubr.bf16.mxu0 0
      %506 = vmatmul.mubr.bf16.gmra.mrb[0].mxu0 %v366
      %v507 = vpop.f32.mrb[0].mxu0
      %v508 = vadd.f32 %v285, %v507
      %v509 = vpop.f32.mrb[0].mxu0
      %v510 = vpop.f32.mrb[0].mxu0
      %v511 = vadd.f32 %v285, %v510
      %v512 = vpop.f32.mrb[0].mxu0
      %513 = vmatprep.mubr.bf16.mxu0 0
      %514 = vmatmul.mubr.bf16.gmra.mrb[0].mxu0 %v367
      %v515 = vpop.f32.mrb[0].mxu0
      %v516 = vadd.f32 %v285, %v515
      %v517 = vpop.f32.mrb[0].mxu0
      %v518 = vpop.f32.mrb[0].mxu0
      %v519 = vadd.f32 %v285, %v518
      %v520 = vpop.f32.mrb[0].mxu0
      %521 = vmatprep.mubr.bf16.mxu0 0
      %522 = vmatmul.mubr.bf16.gmra.mrb[0].mxu0 %v368
      %v523 = vpop.f32.mrb[0].mxu0
      %v524 = vadd.f32 %v285, %v523
      %v525 = vpop.f32.mrb[0].mxu0
      %v526 = vpop.f32.mrb[0].mxu0
      %v527 = vadd.f32 %v285, %v526
      %v528 = vpop.f32.mrb[0].mxu0
      %529 = vmatprep.mubr.bf16.mxu0 0
      %530 = vmatmul.mubr.bf16.gmra.mrb[0].mxu0 %v369
      %v531 = vpop.f32.mrb[0].mxu0
      %v532 = vadd.f32 %v285, %v531
      %v533 = vpop.f32.mrb[0].mxu0
      %v534 = vpop.f32.mrb[0].mxu0
      %v535 = vadd.f32 %v285, %v534
      %v536 = vpop.f32.mrb[0].mxu0
      %537 = vmatprep.mubr.bf16.mxu0 0
      %538 = vmatmul.mubr.bf16.gmra.mrb[0].mxu0 %v370
      %v539 = vpop.f32.mrb[0].mxu0
      %v540 = vadd.f32 %v285, %v539
      %v541 = vpop.f32.mrb[0].mxu0
      %v542 = vpop.f32.mrb[0].mxu0
      %v543 = vadd.f32 %v285, %v542
      %v544 = vpop.f32.mrb[0].mxu0
      %545 = vmatprep.mubr.bf16.mxu0 0
      %546 = vmatmul.mubr.bf16.gmra.mrb[0].mxu0 %v371
      %v547 = vpop.f32.mrb[0].mxu0
      %v548 = vadd.f32 %v285, %v547
      %v549 = vpop.f32.mrb[0].mxu0
      %v550 = vpop.f32.mrb[0].mxu0
      %v551 = vadd.f32 %v285, %v550
      %v552 = vpop.f32.mrb[0].mxu0
      %553 = vmatprep.mubr.bf16.mxu0 0
      %554 = vmatmul.mubr.bf16.gmra.mrb[0].mxu0 %v372
      %v555 = vpop.f32.mrb[0].mxu0
      %v556 = vadd.f32 %v285, %v555
      %v557 = vpop.f32.mrb[0].mxu0
      %v558 = vpop.f32.mrb[0].mxu0
      %v559 = vadd.f32 %v285, %v558
      %v560 = vpop.f32.mrb[0].mxu0
      %561 = vmatprep.mubr.bf16.mxu0 0
      %562 = vmatmul.mubr.bf16.gmra.mrb[0].mxu0 %v373
      %v563 = vpop.f32.mrb[0].mxu0
      %v564 = vadd.f32 %v285, %v563
      %v565 = vpop.f32.mrb[0].mxu0
      %v566 = vpop.f32.mrb[0].mxu0
      %v567 = vadd.f32 %v285, %v566
      %v568 = vpop.f32.mrb[0].mxu0
      %569 = vmatprep.mubr.bf16.mxu0 0
      %570 = vmatmul.mubr.bf16.gmra.mrb[0].mxu0 %v374
      %v571 = vpop.f32.mrb[0].mxu0
      %v572 = vadd.f32 %v285, %v571
      %v573 = vpop.f32.mrb[0].mxu0
      %v574 = vpop.f32.mrb[0].mxu0
      %v575 = vadd.f32 %v285, %v574
      %v576 = vpop.f32.mrb[0].mxu0
      %577 = vmatprep.mubr.bf16.mxu0 0
      %578 = vmatmul.mubr.bf16.gmra.mrb[0].mxu0 %v375
      %v579 = vpop.f32.mrb[0].mxu0
      %v580 = vadd.f32 %v285, %v579
      %v581 = vpop.f32.mrb[0].mxu0
      %v582 = vpop.f32.mrb[0].mxu0
      %v583 = vadd.f32 %v285, %v582
      %v584 = vpop.f32.mrb[0].mxu0
      %585 = vmatprep.mubr.bf16.mxu0 0
      %586 = vmatmul.mubr.bf16.gmra.mrb[0].mxu0 %v376
      %v587 = vpop.f32.mrb[0].mxu0
      %v588 = vadd.f32 %v285, %v587
      %v589 = vpop.f32.mrb[0].mxu0
      %v590 = vpop.f32.mrb[0].mxu0
      %v591 = vadd.f32 %v285, %v590
      %v592 = vpop.f32.mrb[0].mxu0
      %593 = vmatprep.mubr.bf16.mxu0 0
      %594 = vmatmul.mubr.bf16.gmra.mrb[0].mxu0 %v377
      %v595 = vpop.f32.mrb[0].mxu0
      %v596 = vadd.f32 %v285, %v595
      %v597 = vpop.f32.mrb[0].mxu0
      %v598 = vpop.f32.mrb[0].mxu0
      %v599 = vadd.f32 %v285, %v598
      %v600 = vpop.f32.mrb[0].mxu0
      %601 = vmatprep.mubr.bf16.mxu0 0
      %602 = vmatmul.mubr.bf16.gmra.mrb[0].mxu0 %v378
      %v603 = vpop.f32.mrb[0].mxu0
      %v604 = vadd.f32 %v285, %v603
      %v605 = vpop.f32.mrb[0].mxu0
      %v606 = vpop.f32.mrb[0].mxu0
      %v607 = vadd.f32 %v285, %v606
      %v608 = vpop.f32.mrb[0].mxu0
      %609 = vmatprep.mubr.bf16.mxu0 0
      %610 = vmatmul.mubr.bf16.gmra.mrb[0].mxu0 %v379
      %v611 = vpop.f32.mrb[0].mxu0
      %v612 = vadd.f32 %v285, %v611
      %v613 = vpop.f32.mrb[0].mxu0
      %v614 = vpop.f32.mrb[0].mxu0
      %v615 = vadd.f32 %v285, %v614
      %v616 = vpop.f32.mrb[0].mxu0
      %617 = vmatprep.mubr.bf16.mxu0 0
      %618 = vmatmul.mubr.bf16.gmra.mrb[0].mxu0 %v380
      %v619 = vpop.f32.mrb[0].mxu0
      %v620 = vadd.f32 %v285, %v619
      %v621 = vpop.f32.mrb[0].mxu0
      %v622 = vpop.f32.mrb[0].mxu0
      %v623 = vadd.f32 %v285, %v622
      %v624 = vpop.f32.mrb[0].mxu0
      %625 = vmatprep.mubr.bf16.mxu0 0
      %626 = vmatmul.mubr.bf16.gmra.mrb[0].mxu0 %v381
      %v627 = vpop.f32.mrb[0].mxu0
      %v628 = vadd.f32 %v285, %v627
      %v629 = vpop.f32.mrb[0].mxu0
      %v630 = vpop.f32.mrb[0].mxu0
      %v631 = vadd.f32 %v285, %v630
      %v632 = vpop.f32.mrb[0].mxu0
      %633 = vdwg.mxu0
      %634 = vst [vmem:[%s223] sm:$0xff] %v484
      %635 = vst [vmem:[%s223 + $0x8] sm:$0xff] %v487
      %636 = vst [vmem:[%s223 + $0x10] sm:$0xff] %v492
      %637 = vst [vmem:[%s223 + $0x18] sm:$0xff] %v495
      %638 = vst [vmem:[%s223 + $0x20] sm:$0xff] %v500
      %639 = vst [vmem:[%s223 + $0x28] sm:$0xff] %v503
      %640 = vst [vmem:[%s223 + $0x30] sm:$0xff] %v508
      %641 = vst [vmem:[%s223 + $0x38] sm:$0xff] %v511
      %642 = vst [vmem:[%s223 + $0x40] sm:$0xff] %v516
      %643 = vst [vmem:[%s223 + $0x48] sm:$0xff] %v519
      %644 = vst [vmem:[%s223 + $0x50] sm:$0xff] %v524
      %645 = vst [vmem:[%s223 + $0x58] sm:$0xff] %v527
      %646 = vst [vmem:[%s223 + $0x60] sm:$0xff] %v532
      %647 = vst [vmem:[%s223 + $0x68] sm:$0xff] %v535
      %648 = vst [vmem:[%s223 + $0x70] sm:$0xff] %v540
      %649 = vst [vmem:[%s223 + $0x78] sm:$0xff] %v543
      %650 = vst [vmem:[%s223 + $0x80] sm:$0xff] %v548
      %651 = vst [vmem:[%s223 + $0x88] sm:$0xff] %v551
      %652 = vst [vmem:[%s223 + $0x90] sm:$0xff] %v556
      %653 = vst [vmem:[%s223 + $0x98] sm:$0xff] %v559
      %654 = vst [vmem:[%s223 + $0xa0] sm:$0xff] %v564
      %655 = vst [vmem:[%s223 + $0xa8] sm:$0xff] %v567
      %656 = vst [vmem:[%s223 + $0xb0] sm:$0xff] %v572
      %657 = vst [vmem:[%s223 + $0xb8] sm:$0xff] %v575
      %658 = vst [vmem:[%s223 + $0xc0] sm:$0xff] %v580
      %659 = vst [vmem:[%s223 + $0xc8] sm:$0xff] %v583
      %660 = vst [vmem:[%s223 + $0xd0] sm:$0xff] %v588
      %661 = vst [vmem:[%s223 + $0xd8] sm:$0xff] %v591
      %662 = vst [vmem:[%s223 + $0xe0] sm:$0xff] %v596
      %663 = vst [vmem:[%s223 + $0xe8] sm:$0xff] %v599
      %664 = vst [vmem:[%s223 + $0xf0] sm:$0xff] %v604
      %665 = vst [vmem:[%s223 + $0xf8] sm:$0xff] %v607
      %666 = vst [vmem:[%s223 + $0x100] sm:$0xff] %v612
      %667 = vst [vmem:[%s223 + $0x108] sm:$0xff] %v615
      %668 = vst [vmem:[%s223 + $0x110] sm:$0xff] %v620
      %669 = vst [vmem:[%s223 + $0x118] sm:$0xff] %v623
      %670 = vst [vmem:[%s223 + $0x120] sm:$0xff] %v628
      %671 = vst [vmem:[%s223 + $0x128] sm:$0xff] %v631
      %s672 = smul.u32 38, %s18
      %p673 = scmp.lt.s32.totalorder %s672, 75
      %s674 = scalar_select %p673, %s672, 75
      %p675 = scmp.lt.s32.totalorder %s19, 0
      %s676 = scalar_select %p675, %s19, 0
      %s677 = sadd.s32 %s676, %s674
      %s678 = smul.addr %s677, 8
      %s679 = scalar_lea.vmem %s3, %s678
      // Predicated region
      $region33: #{conv_autoencoder_forward.25} parent=31 // pred_check
        %p680 = pneg %p124
      $region34: #{conv_autoencoder_forward.25} parent=31 // pred_check_branch
        %682 = sbr.rel (%p680) target = $region36
      $region35: #{conv_autoencoder_forward.25} parent=31 // pred_region
        %s683 = smul.u32 38, %s18
      $region36: #{conv_autoencoder_forward.25} parent=31 // pred_fallthru
        _
    $region32: #{conv_autoencoder_forward.25} parent=5 // pred_fallthru
      _
    %p684 = scmp.le.s32.totalorder 2, %s9
    // Predicated region
    $region37: #{conv_autoencoder_forward.25} parent=5 // pred_check
      %p685 = pneg %p684
    $region38: #{conv_autoencoder_forward.25} parent=5 // pred_check_branch
      %687 = sbr.rel (%p685) target = $region40
    $region39: #{conv_autoencoder_forward.25} parent=5 // pred_region
      %s688 = ssub.s32 %s9, 2
      // Predicated region
      $region41: #{conv_autoencoder_forward.25} parent=39 // pred_check
        %p689 = pneg %p130
      $region42: #{conv_autoencoder_forward.25} parent=39 // pred_check_branch
        %691 = sbr.rel (%p689) target = $region44
      $region43: #{conv_autoencoder_forward.25} parent=39 // pred_region
        %s692 = smul.u32 38, %s20
        %p693 = scmp.lt.s32.totalorder %s692, 75
        %s694 = scalar_select %p693, %s692, 75
        %p695 = scmp.lt.s32.totalorder %s21, 0
        %s696 = scalar_select %p695, %s21, 0
        %s697 = sadd.s32 %s696, %s694
        %s698 = smul.addr %s697, 8
        %s699 = scalar_lea.vmem %s3, %s698
      $region44: #{conv_autoencoder_forward.25} parent=39 // pred_fallthru
        _
    $region40: #{conv_autoencoder_forward.25} parent=5 // pred_fallthru
      _
  $region6: #{conv_autoencoder_forward.25} parent=0 // loop_footer
    %s13 = sadd.s32 1, %s9
  $region7: #{conv_autoencoder_forward.25} parent=0 // loop_footer_branch
    %8 = sbr.rel target = $region3
  $region8: #{conv_autoencoder_forward.25} parent=0 // loop_exit
    _

</llo_original>
